<compile_context>
chip_gen: v7x
topology: tpu7x:2x2x1
jax: 0.10.0
libtpu: 0.0.40
codegen_flags: <defaults>
</compile_context>

<pallas_src>
import functools

import jax
import jax.numpy as jnp
from jax.experimental import pallas as pl
from jax.experimental.pallas import tpu as pltpu

_VMEM_LIMIT = 32 * 1024 * 1024     # explicit scoped-VMEM budget, safe on v5e/v6e/v7x


def _round_up(x, m):
    return ((x + m - 1) // m) * m


# ----------------------------------------------------------------------------
# Kernel 1: fused Conv3x3 (stride 2, pad 1, folded eval-BN) + ReLU
#
# Inputs are the four (row,col)-parity phases of the zero-padded NHWC image:
#   phase[rp][cp][r, s, c] = x_padded[2r+rp, 2s+cp, c]
# so every (kh, kw) tap of the stride-2 conv is a *contiguous, static* slice of
# one phase -> no strided loads, no im2col blow-up, no in-kernel reshape.
# ----------------------------------------------------------------------------
def _conv3x3s2_kernel(pee_ref, peo_ref, poe_ref, poo_ref, w_ref, o_ref, *, Ho, Wo):
    # phase refs: (1, Ho+1, Wo+1, Cin_p) bf16 ; w_ref: (9, Cin_p, Cout) bf16
    # o_ref:      (1, Ho, Wo, Cout) bf16
    phases = {(0, 0): pee_ref, (0, 1): peo_ref,
              (1, 0): poe_ref, (1, 1): poo_ref}
    cout = o_ref.shape[-1]
    for ho in range(Ho):                                  # static unrolled (Ho small)
        acc = jnp.zeros((Wo, cout), jnp.float32)
        for kh in range(3):
            rp, ro = kh % 2, kh // 2                      # row parity / extra offset
            for kw in range(3):
                cp, co = kw % 2, kw // 2
                tap = phases[(rp, cp)][0, ro + ho, co:co + Wo, :]   # (Wo, Cin_p) bf16
                acc += jnp.dot(tap, w_ref[kh * 3 + kw],
                               preferred_element_type=jnp.float32)  # MXU, f32 acc
        # folded-BN bias is exactly zero -> no bias add (perf feedback #9)
        o_ref[0, ho] = jnp.maximum(acc, 0.0).astype(o_ref.dtype)


def conv3x3s2_bn_relu(x_nhwc, w_oihw, bn_eps=1e-5):
    """Conv2d(3x3, s=2, p=1, bias=False) + BatchNorm2d(eval, fresh init) + ReLU."""
    B, H, W, Cin = x_nhwc.shape
    Cout = w_oihw.shape[0]
    Ho = (H - 1) // 2 + 1
    Wo = (W - 1) // 2 + 1
    Cin_p = _round_up(Cin, 8)                             # contraction-dim padding

    # Fold eval-mode BN (mean=0, var=1, gamma=1, beta=0) into the weights.
    scale = 1.0 / jnp.sqrt(1.0 + bn_eps)
    w9 = jnp.transpose(w_oihw, (2, 3, 1, 0)).reshape(9, Cin, Cout) * scale
    w9 = jnp.pad(w9, ((0, 0), (0, Cin_p - Cin), (0, 0))).astype(jnp.bfloat16)

    # Zero-pad (conv halo + channel alignment) and split into 4 parity phases.
    xb = jnp.pad(x_nhwc.astype(jnp.bfloat16),
                 ((0, 0), (1, 2 * Ho + 1 - H), (1, 2 * Wo + 1 - W),
                  (0, Cin_p - Cin)))                      # (B, 2Ho+2, 2Wo+2, Cin_p)
    pee = xb[:, 0::2, 0::2, :]                            # (B, Ho+1, Wo+1, Cin_p)
    peo = xb[:, 0::2, 1::2, :]
    poe = xb[:, 1::2, 0::2, :]
    poo = xb[:, 1::2, 1::2, :]

    phase_spec = pl.BlockSpec((1, Ho + 1, Wo + 1, Cin_p), lambda b: (b, 0, 0, 0))
    return pl.pallas_call(
        functools.partial(_conv3x3s2_kernel, Ho=Ho, Wo=Wo),
        out_shape=jax.ShapeDtypeStruct((B, Ho, Wo, Cout), jnp.bfloat16),
        grid=(B,),
        in_specs=[phase_spec, phase_spec, phase_spec, phase_spec,
                  pl.BlockSpec((9, Cin_p, Cout), lambda b: (0, 0, 0))],
        out_specs=pl.BlockSpec((1, Ho, Wo, Cout), lambda b: (b, 0, 0, 0)),
        compiler_params=pltpu.CompilerParams(
            dimension_semantics=("parallel",),
            vmem_limit_bytes=_VMEM_LIMIT),
    )(pee, peo, poe, poo, w9)


# ----------------------------------------------------------------------------
# Kernel 2: fused Neck (Im2Seq mean-over-H + FC 32->48) + CTC head + softmax.
# Head classes padded to 128 lanes; padded logits masked via -1e30 bias.
# ----------------------------------------------------------------------------
def _neck_head_kernel(x_ref, wn_ref, bn_ref, wh_ref, bh_ref, o_ref, *, inv_h):
    x = x_ref[0].astype(jnp.float32)                      # (Hs, Ws, C)
    seq = (jnp.sum(x, axis=0) * inv_h).astype(jnp.bfloat16)   # Im2Seq: mean over H
    h = jnp.dot(seq, wn_ref[...],
                preferred_element_type=jnp.float32) + bn_ref[...]      # (Ws, 48)
    logits = jnp.dot(h.astype(jnp.bfloat16), wh_ref[...],
                     preferred_element_type=jnp.float32) + bh_ref[...]  # (Ws, 128)
    m = jnp.max(logits, axis=-1, keepdims=True)
    e = jnp.exp(logits - m)
    s = jnp.sum(e, axis=-1, keepdims=True)
    inv = pl.reciprocal(s, approx=True)                   # EUP slot
    inv = inv * (2.0 - s * inv)                           # one Newton step -> ~f32
    o_ref[0] = (e * inv).astype(o_ref.dtype)


def neck_head(y, neck_w, neck_b, head_w, head_b, num_classes):
    B, Hs, Ws, C = y.shape
    Hd = neck_w.shape[1]
    Np = _round_up(max(num_classes, 128), 128)            # lane-dense head output

    wn = neck_w.astype(jnp.bfloat16)
    bn = neck_b.reshape(1, Hd).astype(jnp.float32)
    wh = jnp.pad(head_w, ((0, 0), (0, Np - num_classes))).astype(jnp.bfloat16)
    bh = jnp.pad(head_b.astype(jnp.float32), (0, Np - num_classes),
                 constant_values=-1e30).reshape(1, Np)    # mask padded classes

    out = pl.pallas_call(
        functools.partial(_neck_head_kernel, inv_h=1.0 / Hs),
        out_shape=jax.ShapeDtypeStruct((B, Ws, Np), jnp.float32),
        grid=(B,),
        in_specs=[
            pl.BlockSpec((1, Hs, Ws, C), lambda b: (b, 0, 0, 0)),
            pl.BlockSpec((C, Hd), lambda b: (0, 0)),
            pl.BlockSpec((1, Hd), lambda b: (0, 0)),
            pl.BlockSpec((Hd, Np), lambda b: (0, 0)),
            pl.BlockSpec((1, Np), lambda b: (0, 0)),
        ],
        out_specs=pl.BlockSpec((1, Ws, Np), lambda b: (b, 0, 0)),
        compiler_params=pltpu.CompilerParams(
            dimension_semantics=("parallel",),
            vmem_limit_bytes=_VMEM_LIMIT),
    )(y, wn, bn, wh, bh)
    return out[:, :, :num_classes]                        # slice padding back off


# ----------------------------------------------------------------------------
# Deterministic parameter initialization (mirrors _initialize_weights)
# ----------------------------------------------------------------------------
def init_params(key, in_channels=3, c1=16, c2=32, hidden=48, num_classes=37):
    k0, k1, k2, k3 = jax.random.split(key, 4)
    std1 = (2.0 / (c1 * 3 * 3)) ** 0.5                    # kaiming_normal_, fan_out
    std2 = (2.0 / (c2 * 3 * 3)) ** 0.5
    conv1_w = jax.random.normal(k0, (c1, in_channels, 3, 3), jnp.float32) * std1
    conv2_w = jax.random.normal(k1, (c2, c1, 3, 3), jnp.float32) * std2
    neck_w = jax.random.normal(k2, (c2, hidden), jnp.float32) * 0.01   # N(0, 0.01)
    neck_b = jnp.zeros((hidden,), jnp.float32)
    head_w = jax.random.normal(k3, (hidden, num_classes), jnp.float32) * 0.01
    head_b = jnp.zeros((num_classes,), jnp.float32)
    return dict(conv1_w=conv1_w, conv2_w=conv2_w,
                neck_w=neck_w, neck_b=neck_b,
                head_w=head_w, head_b=head_b)


# ----------------------------------------------------------------------------
# BaseModel.forward:  [Transform skipped] -> Backbone -> Neck -> Head
# ----------------------------------------------------------------------------
@jax.jit
def base_model_forward(x_nchw, params):
    # TODO(synk): Transform stage omitted (config['Transform'] is None in this config).
    x = jnp.transpose(x_nchw, (0, 2, 3, 1))               # NCHW -> NHWC
    x = conv3x3s2_bn_relu(x, params["conv1_w"])           # (B, H/2, W/2, 16) bf16
    x = conv3x3s2_bn_relu(x, params["conv2_w"])           # (B, H/4, W/4, 32) bf16
    num_classes = params["head_b"].shape[0]
    return neck_head(x, params["neck_w"], params["neck_b"],
                     params["head_w"], params["head_b"], num_classes)


if __name__ == "__main__":
    key = jax.random.PRNGKey(0)
    kx, kp = jax.random.split(key)
    # PyTorch-style NCHW input: batch=2, channels=3, 16x16
    x = jax.random.normal(kx, (2, 3, 16, 16), jnp.float32)
    params = init_params(kp)
    out = jax.block_until_ready(base_model_forward(x, params))
    assert out.shape == (2, 4, 37), out.shape
    assert bool(jnp.all(jnp.isfinite(out)))
    # softmax rows over the 37 real classes should sum to ~1
    assert bool(jnp.allclose(jnp.sum(out, axis=-1), 1.0, atol=1e-3))
    print("KERNEL_OK")
</pallas_src>

<mosaic_0001>
module attributes {stable_mosaic.version = 11 : i64} {
  func.func @_conv3x3s2_kernel(%arg0: i32, %arg1: memref<1x9x9x8xbf16, #tpu.memory_space<vmem>>, %arg2: memref<1x9x9x8xbf16, #tpu.memory_space<vmem>>, %arg3: memref<1x9x9x8xbf16, #tpu.memory_space<vmem>>, %arg4: memref<1x9x9x8xbf16, #tpu.memory_space<vmem>>, %arg5: memref<9x8x16xbf16, #tpu.memory_space<vmem>>, %arg6: memref<1x8x8x16xbf16, #tpu.memory_space<vmem>>) attributes {dimension_semantics = [#tpu.dimension_semantics<parallel>], iteration_bounds = array<i64: 2>, scalar_prefetch = 0 : i64, scratch_operands = 0 : i64, tpu.core_type = #tpu.core_type<tc>, window_params = [{transform_indices = @transform_0, window_bounds = array<i64: 1, 9, 9, 8>}, {transform_indices = @transform_1, window_bounds = array<i64: 1, 9, 9, 8>}, {transform_indices = @transform_2, window_bounds = array<i64: 1, 9, 9, 8>}, {transform_indices = @transform_3, window_bounds = array<i64: 1, 9, 9, 8>}, {pipeline_mode = #tpu.pipeline_mode<synchronous>, transform_indices = @transform_4, window_bounds = array<i64: 9, 8, 16>}, {transform_indices = @transform_5, window_bounds = array<i64: 1, 8, 8, 16>}]} {
    %cst = arith.constant 0.000000e+00 : f32
    %0 = vector.broadcast %cst : f32 to vector<8x16xf32>
    %c0 = arith.constant 0 : index
    %c0_0 = arith.constant 0 : index
    %c0_1 = arith.constant 0 : index
    %c0_2 = arith.constant 0 : index
    %1 = vector.load %arg1[%c0, %c0_0, %c0_1, %c0_2] : memref<1x9x9x8xbf16, #tpu.memory_space<vmem>>, vector<1x1x8x8xbf16>
    %2 = vector.shape_cast %1 : vector<1x1x8x8xbf16> to vector<8x8xbf16>
    %c0_3 = arith.constant 0 : index
    %c0_4 = arith.constant 0 : index
    %c0_5 = arith.constant 0 : index
    %3 = vector.load %arg5[%c0_3, %c0_4, %c0_5] : memref<9x8x16xbf16, #tpu.memory_space<vmem>>, vector<1x8x16xbf16>
    %4 = vector.shape_cast %3 : vector<1x8x16xbf16> to vector<8x16xbf16>
    %cst_6 = arith.constant dense<0.000000e+00> : vector<8x16xf32>
    %5 = tpu.matmul %2, %4, %cst_6 {dimension_numbers = #tpu.dot_dimension_numbers<[1], [0], [0], [1], [0, 0, 1, 1], [], []>} : vector<8x8xbf16>, vector<8x16xbf16>, vector<8x16xf32> -> vector<8x16xf32>
    %6 = arith.addf %0, %5 : vector<8x16xf32>
    %c0_7 = arith.constant 0 : index
    %c0_8 = arith.constant 0 : index
    %c0_9 = arith.constant 0 : index
    %c0_10 = arith.constant 0 : index
    %7 = vector.load %arg2[%c0_7, %c0_8, %c0_9, %c0_10] : memref<1x9x9x8xbf16, #tpu.memory_space<vmem>>, vector<1x1x8x8xbf16>
    %8 = vector.shape_cast %7 : vector<1x1x8x8xbf16> to vector<8x8xbf16>
    %c1 = arith.constant 1 : index
    %c0_11 = arith.constant 0 : index
    %c0_12 = arith.constant 0 : index
    %9 = vector.load %arg5[%c1, %c0_11, %c0_12] : memref<9x8x16xbf16, #tpu.memory_space<vmem>>, vector<1x8x16xbf16>
    %10 = vector.shape_cast %9 : vector<1x8x16xbf16> to vector<8x16xbf16>
    %cst_13 = arith.constant dense<0.000000e+00> : vector<8x16xf32>
    %11 = tpu.matmul %8, %10, %cst_13 {dimension_numbers = #tpu.dot_dimension_numbers<[1], [0], [0], [1], [0, 0, 1, 1], [], []>} : vector<8x8xbf16>, vector<8x16xbf16>, vector<8x16xf32> -> vector<8x16xf32>
    %12 = arith.addf %6, %11 : vector<8x16xf32>
    %c0_14 = arith.constant 0 : index
    %c0_15 = arith.constant 0 : index
    %c1_16 = arith.constant 1 : index
    %c0_17 = arith.constant 0 : index
    %13 = vector.load %arg1[%c0_14, %c0_15, %c1_16, %c0_17] : memref<1x9x9x8xbf16, #tpu.memory_space<vmem>>, vector<1x1x8x8xbf16>
    %14 = vector.shape_cast %13 : vector<1x1x8x8xbf16> to vector<8x8xbf16>
    %c2 = arith.constant 2 : index
    %c0_18 = arith.constant 0 : index
    %c0_19 = arith.constant 0 : index
    %15 = vector.load %arg5[%c2, %c0_18, %c0_19] : memref<9x8x16xbf16, #tpu.memory_space<vmem>>, vector<1x8x16xbf16>
    %16 = vector.shape_cast %15 : vector<1x8x16xbf16> to vector<8x16xbf16>
    %cst_20 = arith.constant dense<0.000000e+00> : vector<8x16xf32>
    %17 = tpu.matmul %14, %16, %cst_20 {dimension_numbers = #tpu.dot_dimension_numbers<[1], [0], [0], [1], [0, 0, 1, 1], [], []>} : vector<8x8xbf16>, vector<8x16xbf16>, vector<8x16xf32> -> vector<8x16xf32>
    %18 = arith.addf %12, %17 : vector<8x16xf32>
    %c0_21 = arith.constant 0 : index
    %c0_22 = arith.constant 0 : index
    %c0_23 = arith.constant 0 : index
    %c0_24 = arith.constant 0 : index
    %19 = vector.load %arg3[%c0_21, %c0_22, %c0_23, %c0_24] : memref<1x9x9x8xbf16, #tpu.memory_space<vmem>>, vector<1x1x8x8xbf16>
    %20 = vector.shape_cast %19 : vector<1x1x8x8xbf16> to vector<8x8xbf16>
    %c3 = arith.constant 3 : index
    %c0_25 = arith.constant 0 : index
    %c0_26 = arith.constant 0 : index
    %21 = vector.load %arg5[%c3, %c0_25, %c0_26] : memref<9x8x16xbf16, #tpu.memory_space<vmem>>, vector<1x8x16xbf16>
    %22 = vector.shape_cast %21 : vector<1x8x16xbf16> to vector<8x16xbf16>
    %cst_27 = arith.constant dense<0.000000e+00> : vector<8x16xf32>
    %23 = tpu.matmul %20, %22, %cst_27 {dimension_numbers = #tpu.dot_dimension_numbers<[1], [0], [0], [1], [0, 0, 1, 1], [], []>} : vector<8x8xbf16>, vector<8x16xbf16>, vector<8x16xf32> -> vector<8x16xf32>
    %24 = arith.addf %18, %23 : vector<8x16xf32>
    %c0_28 = arith.constant 0 : index
    %c0_29 = arith.constant 0 : index
    %c0_30 = arith.constant 0 : index
    %c0_31 = arith.constant 0 : index
    %25 = vector.load %arg4[%c0_28, %c0_29, %c0_30, %c0_31] : memref<1x9x9x8xbf16, #tpu.memory_space<vmem>>, vector<1x1x8x8xbf16>
    %26 = vector.shape_cast %25 : vector<1x1x8x8xbf16> to vector<8x8xbf16>
    %c4 = arith.constant 4 : index
    %c0_32 = arith.constant 0 : index
    %c0_33 = arith.constant 0 : index
    %27 = vector.load %arg5[%c4, %c0_32, %c0_33] : memref<9x8x16xbf16, #tpu.memory_space<vmem>>, vector<1x8x16xbf16>
    %28 = vector.shape_cast %27 : vector<1x8x16xbf16> to vector<8x16xbf16>
    %cst_34 = arith.constant dense<0.000000e+00> : vector<8x16xf32>
    %29 = tpu.matmul %26, %28, %cst_34 {dimension_numbers = #tpu.dot_dimension_numbers<[1], [0], [0], [1], [0, 0, 1, 1], [], []>} : vector<8x8xbf16>, vector<8x16xbf16>, vector<8x16xf32> -> vector<8x16xf32>
    %30 = arith.addf %24, %29 : vector<8x16xf32>
    %c0_35 = arith.constant 0 : index
    %c0_36 = arith.constant 0 : index
    %c1_37 = arith.constant 1 : index
    %c0_38 = arith.constant 0 : index
    %31 = vector.load %arg3[%c0_35, %c0_36, %c1_37, %c0_38] : memref<1x9x9x8xbf16, #tpu.memory_space<vmem>>, vector<1x1x8x8xbf16>
    %32 = vector.shape_cast %31 : vector<1x1x8x8xbf16> to vector<8x8xbf16>
    %c5 = arith.constant 5 : index
    %c0_39 = arith.constant 0 : index
    %c0_40 = arith.constant 0 : index
    %33 = vector.load %arg5[%c5, %c0_39, %c0_40] : memref<9x8x16xbf16, #tpu.memory_space<vmem>>, vector<1x8x16xbf16>
    %34 = vector.shape_cast %33 : vector<1x8x16xbf16> to vector<8x16xbf16>
    %cst_41 = arith.constant dense<0.000000e+00> : vector<8x16xf32>
    %35 = tpu.matmul %32, %34, %cst_41 {dimension_numbers = #tpu.dot_dimension_numbers<[1], [0], [0], [1], [0, 0, 1, 1], [], []>} : vector<8x8xbf16>, vector<8x16xbf16>, vector<8x16xf32> -> vector<8x16xf32>
    %36 = arith.addf %30, %35 : vector<8x16xf32>
    %c0_42 = arith.constant 0 : index
    %c1_43 = arith.constant 1 : index
    %c0_44 = arith.constant 0 : index
    %c0_45 = arith.constant 0 : index
    %37 = vector.load %arg1[%c0_42, %c1_43, %c0_44, %c0_45] : memref<1x9x9x8xbf16, #tpu.memory_space<vmem>>, vector<1x1x8x8xbf16>
    %38 = vector.shape_cast %37 : vector<1x1x8x8xbf16> to vector<8x8xbf16>
    %c6 = arith.constant 6 : index
    %c0_46 = arith.constant 0 : index
    %c0_47 = arith.constant 0 : index
    %39 = vector.load %arg5[%c6, %c0_46, %c0_47] : memref<9x8x16xbf16, #tpu.memory_space<vmem>>, vector<1x8x16xbf16>
    %40 = vector.shape_cast %39 : vector<1x8x16xbf16> to vector<8x16xbf16>
    %cst_48 = arith.constant dense<0.000000e+00> : vector<8x16xf32>
    %41 = tpu.matmul %38, %40, %cst_48 {dimension_numbers = #tpu.dot_dimension_numbers<[1], [0], [0], [1], [0, 0, 1, 1], [], []>} : vector<8x8xbf16>, vector<8x16xbf16>, vector<8x16xf32> -> vector<8x16xf32>
    %42 = arith.addf %36, %41 : vector<8x16xf32>
    %c0_49 = arith.constant 0 : index
    %c1_50 = arith.constant 1 : index
    %c0_51 = arith.constant 0 : index
    %c0_52 = arith.constant 0 : index
    %43 = vector.load %arg2[%c0_49, %c1_50, %c0_51, %c0_52] : memref<1x9x9x8xbf16, #tpu.memory_space<vmem>>, vector<1x1x8x8xbf16>
    %44 = vector.shape_cast %43 : vector<1x1x8x8xbf16> to vector<8x8xbf16>
    %c7 = arith.constant 7 : index
    %c0_53 = arith.constant 0 : index
    %c0_54 = arith.constant 0 : index
    %45 = vector.load %arg5[%c7, %c0_53, %c0_54] : memref<9x8x16xbf16, #tpu.memory_space<vmem>>, vector<1x8x16xbf16>
    %46 = vector.shape_cast %45 : vector<1x8x16xbf16> to vector<8x16xbf16>
    %cst_55 = arith.constant dense<0.000000e+00> : vector<8x16xf32>
    %47 = tpu.matmul %44, %46, %cst_55 {dimension_numbers = #tpu.dot_dimension_numbers<[1], [0], [0], [1], [0, 0, 1, 1], [], []>} : vector<8x8xbf16>, vector<8x16xbf16>, vector<8x16xf32> -> vector<8x16xf32>
    %48 = arith.addf %42, %47 : vector<8x16xf32>
    %c0_56 = arith.constant 0 : index
    %c1_57 = arith.constant 1 : index
    %c1_58 = arith.constant 1 : index
    %c0_59 = arith.constant 0 : index
    %49 = vector.load %arg1[%c0_56, %c1_57, %c1_58, %c0_59] : memref<1x9x9x8xbf16, #tpu.memory_space<vmem>>, vector<1x1x8x8xbf16>
    %50 = vector.shape_cast %49 : vector<1x1x8x8xbf16> to vector<8x8xbf16>
    %c8 = arith.constant 8 : index
    %c0_60 = arith.constant 0 : index
    %c0_61 = arith.constant 0 : index
    %51 = vector.load %arg5[%c8, %c0_60, %c0_61] : memref<9x8x16xbf16, #tpu.memory_space<vmem>>, vector<1x8x16xbf16>
    %52 = vector.shape_cast %51 : vector<1x8x16xbf16> to vector<8x16xbf16>
    %cst_62 = arith.constant dense<0.000000e+00> : vector<8x16xf32>
    %53 = tpu.matmul %50, %52, %cst_62 {dimension_numbers = #tpu.dot_dimension_numbers<[1], [0], [0], [1], [0, 0, 1, 1], [], []>} : vector<8x8xbf16>, vector<8x16xbf16>, vector<8x16xf32> -> vector<8x16xf32>
    %54 = arith.addf %48, %53 : vector<8x16xf32>
    %cst_63 = arith.constant 0.000000e+00 : f32
    %55 = vector.broadcast %cst_63 : f32 to vector<8x16xf32>
    %56 = arith.maximumf %54, %55 : vector<8x16xf32>
    %57 = arith.truncf %56 : vector<8x16xf32> to vector<8x16xbf16>
    %c0_64 = arith.constant 0 : index
    %c0_65 = arith.constant 0 : index
    %c0_66 = arith.constant 0 : index
    %c0_67 = arith.constant 0 : index
    %58 = vector.load %arg6[%c0_64, %c0_65, %c0_66, %c0_67] : memref<1x8x8x16xbf16, #tpu.memory_space<vmem>>, vector<1x1x8x16xbf16>
    %59 = vector.shape_cast %58 : vector<1x1x8x16xbf16> to vector<8x16xbf16>
    %60 = vector.shape_cast %57 : vector<8x16xbf16> to vector<1x1x8x16xbf16>
    tpu.vector_store %arg6[%c0_64, %c0_65, %c0_66, %c0_67], %60 {strides = array<i32>} : memref<1x8x8x16xbf16, #tpu.memory_space<vmem>>, vector<1x1x8x16xbf16>,
    %cst_68 = arith.constant 0.000000e+00 : f32
    %61 = vector.broadcast %cst_68 : f32 to vector<8x16xf32>
    %c0_69 = arith.constant 0 : index
    %c1_70 = arith.constant 1 : index
    %c0_71 = arith.constant 0 : index
    %c0_72 = arith.constant 0 : index
    %62 = vector.load %arg1[%c0_69, %c1_70, %c0_71, %c0_72] : memref<1x9x9x8xbf16, #tpu.memory_space<vmem>>, vector<1x1x8x8xbf16>
    %63 = vector.shape_cast %62 : vector<1x1x8x8xbf16> to vector<8x8xbf16>
    %c0_73 = arith.constant 0 : index
    %c0_74 = arith.constant 0 : index
    %c0_75 = arith.constant 0 : index
    %64 = vector.load %arg5[%c0_73, %c0_74, %c0_75] : memref<9x8x16xbf16, #tpu.memory_space<vmem>>, vector<1x8x16xbf16>
    %65 = vector.shape_cast %64 : vector<1x8x16xbf16> to vector<8x16xbf16>
    %cst_76 = arith.constant dense<0.000000e+00> : vector<8x16xf32>
    %66 = tpu.matmul %63, %65, %cst_76 {dimension_numbers = #tpu.dot_dimension_numbers<[1], [0], [0], [1], [0, 0, 1, 1], [], []>} : vector<8x8xbf16>, vector<8x16xbf16>, vector<8x16xf32> -> vector<8x16xf32>
    %67 = arith.addf %61, %66 : vector<8x16xf32>
    %c0_77 = arith.constant 0 : index
    %c1_78 = arith.constant 1 : index
    %c0_79 = arith.constant 0 : index
    %c0_80 = arith.constant 0 : index
    %68 = vector.load %arg2[%c0_77, %c1_78, %c0_79, %c0_80] : memref<1x9x9x8xbf16, #tpu.memory_space<vmem>>, vector<1x1x8x8xbf16>
    %69 = vector.shape_cast %68 : vector<1x1x8x8xbf16> to vector<8x8xbf16>
    %c1_81 = arith.constant 1 : index
    %c0_82 = arith.constant 0 : index
    %c0_83 = arith.constant 0 : index
    %70 = vector.load %arg5[%c1_81, %c0_82, %c0_83] : memref<9x8x16xbf16, #tpu.memory_space<vmem>>, vector<1x8x16xbf16>
    %71 = vector.shape_cast %70 : vector<1x8x16xbf16> to vector<8x16xbf16>
    %cst_84 = arith.constant dense<0.000000e+00> : vector<8x16xf32>
    %72 = tpu.matmul %69, %71, %cst_84 {dimension_numbers = #tpu.dot_dimension_numbers<[1], [0], [0], [1], [0, 0, 1, 1], [], []>} : vector<8x8xbf16>, vector<8x16xbf16>, vector<8x16xf32> -> vector<8x16xf32>
    %73 = arith.addf %67, %72 : vector<8x16xf32>
    %c0_85 = arith.constant 0 : index
    %c1_86 = arith.constant 1 : index
    %c1_87 = arith.constant 1 : index
    %c0_88 = arith.constant 0 : index
    %74 = vector.load %arg1[%c0_85, %c1_86, %c1_87, %c0_88] : memref<1x9x9x8xbf16, #tpu.memory_space<vmem>>, vector<1x1x8x8xbf16>
    %75 = vector.shape_cast %74 : vector<1x1x8x8xbf16> to vector<8x8xbf16>
    %c2_89 = arith.constant 2 : index
    %c0_90 = arith.constant 0 : index
    %c0_91 = arith.constant 0 : index
    %76 = vector.load %arg5[%c2_89, %c0_90, %c0_91] : memref<9x8x16xbf16, #tpu.memory_space<vmem>>, vector<1x8x16xbf16>
    %77 = vector.shape_cast %76 : vector<1x8x16xbf16> to vector<8x16xbf16>
    %cst_92 = arith.constant dense<0.000000e+00> : vector<8x16xf32>
    %78 = tpu.matmul %75, %77, %cst_92 {dimension_numbers = #tpu.dot_dimension_numbers<[1], [0], [0], [1], [0, 0, 1, 1], [], []>} : vector<8x8xbf16>, vector<8x16xbf16>, vector<8x16xf32> -> vector<8x16xf32>
    %79 = arith.addf %73, %78 : vector<8x16xf32>
    %c0_93 = arith.constant 0 : index
    %c1_94 = arith.constant 1 : index
    %c0_95 = arith.constant 0 : index
    %c0_96 = arith.constant 0 : index
    %80 = vector.load %arg3[%c0_93, %c1_94, %c0_95, %c0_96] : memref<1x9x9x8xbf16, #tpu.memory_space<vmem>>, vector<1x1x8x8xbf16>
    %81 = vector.shape_cast %80 : vector<1x1x8x8xbf16> to vector<8x8xbf16>
    %c3_97 = arith.constant 3 : index
    %c0_98 = arith.constant 0 : index
    %c0_99 = arith.constant 0 : index
    %82 = vector.load %arg5[%c3_97, %c0_98, %c0_99] : memref<9x8x16xbf16, #tpu.memory_space<vmem>>, vector<1x8x16xbf16>
    %83 = vector.shape_cast %82 : vector<1x8x16xbf16> to vector<8x16xbf16>
    %cst_100 = arith.constant dense<0.000000e+00> : vector<8x16xf32>
    %84 = tpu.matmul %81, %83, %cst_100 {dimension_numbers = #tpu.dot_dimension_numbers<[1], [0], [0], [1], [0, 0, 1, 1], [], []>} : vector<8x8xbf16>, vector<8x16xbf16>, vector<8x16xf32> -> vector<8x16xf32>
    %85 = arith.addf %79, %84 : vector<8x16xf32>
    %c0_101 = arith.constant 0 : index
    %c1_102 = arith.constant 1 : index
    %c0_103 = arith.constant 0 : index
    %c0_104 = arith.constant 0 : index
    %86 = vector.load %arg4[%c0_101, %c1_102, %c0_103, %c0_104] : memref<1x9x9x8xbf16, #tpu.memory_space<vmem>>, vector<1x1x8x8xbf16>
    %87 = vector.shape_cast %86 : vector<1x1x8x8xbf16> to vector<8x8xbf16>
    %c4_105 = arith.constant 4 : index
    %c0_106 = arith.constant 0 : index
    %c0_107 = arith.constant 0 : index
    %88 = vector.load %arg5[%c4_105, %c0_106, %c0_107] : memref<9x8x16xbf16, #tpu.memory_space<vmem>>, vector<1x8x16xbf16>
    %89 = vector.shape_cast %88 : vector<1x8x16xbf16> to vector<8x16xbf16>
    %cst_108 = arith.constant dense<0.000000e+00> : vector<8x16xf32>
    %90 = tpu.matmul %87, %89, %cst_108 {dimension_numbers = #tpu.dot_dimension_numbers<[1], [0], [0], [1], [0, 0, 1, 1], [], []>} : vector<8x8xbf16>, vector<8x16xbf16>, vector<8x16xf32> -> vector<8x16xf32>
    %91 = arith.addf %85, %90 : vector<8x16xf32>
    %c0_109 = arith.constant 0 : index
    %c1_110 = arith.constant 1 : index
    %c1_111 = arith.constant 1 : index
    %c0_112 = arith.constant 0 : index
    %92 = vector.load %arg3[%c0_109, %c1_110, %c1_111, %c0_112] : memref<1x9x9x8xbf16, #tpu.memory_space<vmem>>, vector<1x1x8x8xbf16>
    %93 = vector.shape_cast %92 : vector<1x1x8x8xbf16> to vector<8x8xbf16>
    %c5_113 = arith.constant 5 : index
    %c0_114 = arith.constant 0 : index
    %c0_115 = arith.constant 0 : index
    %94 = vector.load %arg5[%c5_113, %c0_114, %c0_115] : memref<9x8x16xbf16, #tpu.memory_space<vmem>>, vector<1x8x16xbf16>
    %95 = vector.shape_cast %94 : vector<1x8x16xbf16> to vector<8x16xbf16>
    %cst_116 = arith.constant dense<0.000000e+00> : vector<8x16xf32>
    %96 = tpu.matmul %93, %95, %cst_116 {dimension_numbers = #tpu.dot_dimension_numbers<[1], [0], [0], [1], [0, 0, 1, 1], [], []>} : vector<8x8xbf16>, vector<8x16xbf16>, vector<8x16xf32> -> vector<8x16xf32>
    %97 = arith.addf %91, %96 : vector<8x16xf32>
    %c0_117 = arith.constant 0 : index
    %c2_118 = arith.constant 2 : index
    %c0_119 = arith.constant 0 : index
    %c0_120 = arith.constant 0 : index
    %98 = vector.load %arg1[%c0_117, %c2_118, %c0_119, %c0_120] : memref<1x9x9x8xbf16, #tpu.memory_space<vmem>>, vector<1x1x8x8xbf16>
    %99 = vector.shape_cast %98 : vector<1x1x8x8xbf16> to vector<8x8xbf16>
    %c6_121 = arith.constant 6 : index
    %c0_122 = arith.constant 0 : index
    %c0_123 = arith.constant 0 : index
    %100 = vector.load %arg5[%c6_121, %c0_122, %c0_123] : memref<9x8x16xbf16, #tpu.memory_space<vmem>>, vector<1x8x16xbf16>
    %101 = vector.shape_cast %100 : vector<1x8x16xbf16> to vector<8x16xbf16>
    %cst_124 = arith.constant dense<0.000000e+00> : vector<8x16xf32>
    %102 = tpu.matmul %99, %101, %cst_124 {dimension_numbers = #tpu.dot_dimension_numbers<[1], [0], [0], [1], [0, 0, 1, 1], [], []>} : vector<8x8xbf16>, vector<8x16xbf16>, vector<8x16xf32> -> vector<8x16xf32>
    %103 = arith.addf %97, %102 : vector<8x16xf32>
    %c0_125 = arith.constant 0 : index
    %c2_126 = arith.constant 2 : index
    %c0_127 = arith.constant 0 : index
    %c0_128 = arith.constant 0 : index
    %104 = vector.load %arg2[%c0_125, %c2_126, %c0_127, %c0_128] : memref<1x9x9x8xbf16, #tpu.memory_space<vmem>>, vector<1x1x8x8xbf16>
    %105 = vector.shape_cast %104 : vector<1x1x8x8xbf16> to vector<8x8xbf16>
    %c7_129 = arith.constant 7 : index
    %c0_130 = arith.constant 0 : index
    %c0_131 = arith.constant 0 : index
    %106 = vector.load %arg5[%c7_129, %c0_130, %c0_131] : memref<9x8x16xbf16, #tpu.memory_space<vmem>>, vector<1x8x16xbf16>
    %107 = vector.shape_cast %106 : vector<1x8x16xbf16> to vector<8x16xbf16>
    %cst_132 = arith.constant dense<0.000000e+00> : vector<8x16xf32>
    %108 = tpu.matmul %105, %107, %cst_132 {dimension_numbers = #tpu.dot_dimension_numbers<[1], [0], [0], [1], [0, 0, 1, 1], [], []>} : vector<8x8xbf16>, vector<8x16xbf16>, vector<8x16xf32> -> vector<8x16xf32>
    %109 = arith.addf %103, %108 : vector<8x16xf32>
    %c0_133 = arith.constant 0 : index
    %c2_134 = arith.constant 2 : index
    %c1_135 = arith.constant 1 : index
    %c0_136 = arith.constant 0 : index
    %110 = vector.load %arg1[%c0_133, %c2_134, %c1_135, %c0_136] : memref<1x9x9x8xbf16, #tpu.memory_space<vmem>>, vector<1x1x8x8xbf16>
    %111 = vector.shape_cast %110 : vector<1x1x8x8xbf16> to vector<8x8xbf16>
    %c8_137 = arith.constant 8 : index
    %c0_138 = arith.constant 0 : index
    %c0_139 = arith.constant 0 : index
    %112 = vector.load %arg5[%c8_137, %c0_138, %c0_139] : memref<9x8x16xbf16, #tpu.memory_space<vmem>>, vector<1x8x16xbf16>
    %113 = vector.shape_cast %112 : vector<1x8x16xbf16> to vector<8x16xbf16>
    %cst_140 = arith.constant dense<0.000000e+00> : vector<8x16xf32>
    %114 = tpu.matmul %111, %113, %cst_140 {dimension_numbers = #tpu.dot_dimension_numbers<[1], [0], [0], [1], [0, 0, 1, 1], [], []>} : vector<8x8xbf16>, vector<8x16xbf16>, vector<8x16xf32> -> vector<8x16xf32>
    %115 = arith.addf %109, %114 : vector<8x16xf32>
    %cst_141 = arith.constant 0.000000e+00 : f32
    %116 = vector.broadcast %cst_141 : f32 to vector<8x16xf32>
    %117 = arith.maximumf %115, %116 : vector<8x16xf32>
    %118 = arith.truncf %117 : vector<8x16xf32> to vector<8x16xbf16>
    %c0_142 = arith.constant 0 : index
    %c1_143 = arith.constant 1 : index
    %c0_144 = arith.constant 0 : index
    %c0_145 = arith.constant 0 : index
    %119 = vector.load %arg6[%c0_142, %c1_143, %c0_144, %c0_145] : memref<1x8x8x16xbf16, #tpu.memory_space<vmem>>, vector<1x1x8x16xbf16>
    %120 = vector.shape_cast %119 : vector<1x1x8x16xbf16> to vector<8x16xbf16>
    %121 = vector.shape_cast %118 : vector<8x16xbf16> to vector<1x1x8x16xbf16>
    tpu.vector_store %arg6[%c0_142, %c1_143, %c0_144, %c0_145], %121 {strides = array<i32>} : memref<1x8x8x16xbf16, #tpu.memory_space<vmem>>, vector<1x1x8x16xbf16>,
    %cst_146 = arith.constant 0.000000e+00 : f32
    %122 = vector.broadcast %cst_146 : f32 to vector<8x16xf32>
    %c0_147 = arith.constant 0 : index
    %c2_148 = arith.constant 2 : index
    %c0_149 = arith.constant 0 : index
    %c0_150 = arith.constant 0 : index
    %123 = vector.load %arg1[%c0_147, %c2_148, %c0_149, %c0_150] : memref<1x9x9x8xbf16, #tpu.memory_space<vmem>>, vector<1x1x8x8xbf16>
    %124 = vector.shape_cast %123 : vector<1x1x8x8xbf16> to vector<8x8xbf16>
    %c0_151 = arith.constant 0 : index
    %c0_152 = arith.constant 0 : index
    %c0_153 = arith.constant 0 : index
    %125 = vector.load %arg5[%c0_151, %c0_152, %c0_153] : memref<9x8x16xbf16, #tpu.memory_space<vmem>>, vector<1x8x16xbf16>
    %126 = vector.shape_cast %125 : vector<1x8x16xbf16> to vector<8x16xbf16>
    %cst_154 = arith.constant dense<0.000000e+00> : vector<8x16xf32>
    %127 = tpu.matmul %124, %126, %cst_154 {dimension_numbers = #tpu.dot_dimension_numbers<[1], [0], [0], [1], [0, 0, 1, 1], [], []>} : vector<8x8xbf16>, vector<8x16xbf16>, vector<8x16xf32> -> vector<8x16xf32>
    %128 = arith.addf %122, %127 : vector<8x16xf32>
    %c0_155 = arith.constant 0 : index
    %c2_156 = arith.constant 2 : index
    %c0_157 = arith.constant 0 : index
    %c0_158 = arith.constant 0 : index
    %129 = vector.load %arg2[%c0_155, %c2_156, %c0_157, %c0_158] : memref<1x9x9x8xbf16, #tpu.memory_space<vmem>>, vector<1x1x8x8xbf16>
    %130 = vector.shape_cast %129 : vector<1x1x8x8xbf16> to vector<8x8xbf16>
    %c1_159 = arith.constant 1 : index
    %c0_160 = arith.constant 0 : index
    %c0_161 = arith.constant 0 : index
    %131 = vector.load %arg5[%c1_159, %c0_160, %c0_161] : memref<9x8x16xbf16, #tpu.memory_space<vmem>>, vector<1x8x16xbf16>
    %132 = vector.shape_cast %131 : vector<1x8x16xbf16> to vector<8x16xbf16>
    %cst_162 = arith.constant dense<0.000000e+00> : vector<8x16xf32>
    %133 = tpu.matmul %130, %132, %cst_162 {dimension_numbers = #tpu.dot_dimension_numbers<[1], [0], [0], [1], [0, 0, 1, 1], [], []>} : vector<8x8xbf16>, vector<8x16xbf16>, vector<8x16xf32> -> vector<8x16xf32>
    %134 = arith.addf %128, %133 : vector<8x16xf32>
    %c0_163 = arith.constant 0 : index
    %c2_164 = arith.constant 2 : index
    %c1_165 = arith.constant 1 : index
    %c0_166 = arith.constant 0 : index
    %135 = vector.load %arg1[%c0_163, %c2_164, %c1_165, %c0_166] : memref<1x9x9x8xbf16, #tpu.memory_space<vmem>>, vector<1x1x8x8xbf16>
    %136 = vector.shape_cast %135 : vector<1x1x8x8xbf16> to vector<8x8xbf16>
    %c2_167 = arith.constant 2 : index
    %c0_168 = arith.constant 0 : index
    %c0_169 = arith.constant 0 : index
    %137 = vector.load %arg5[%c2_167, %c0_168, %c0_169] : memref<9x8x16xbf16, #tpu.memory_space<vmem>>, vector<1x8x16xbf16>
    %138 = vector.shape_cast %137 : vector<1x8x16xbf16> to vector<8x16xbf16>
    %cst_170 = arith.constant dense<0.000000e+00> : vector<8x16xf32>
    %139 = tpu.matmul %136, %138, %cst_170 {dimension_numbers = #tpu.dot_dimension_numbers<[1], [0], [0], [1], [0, 0, 1, 1], [], []>} : vector<8x8xbf16>, vector<8x16xbf16>, vector<8x16xf32> -> vector<8x16xf32>
    %140 = arith.addf %134, %139 : vector<8x16xf32>
    %c0_171 = arith.constant 0 : index
    %c2_172 = arith.constant 2 : index
    %c0_173 = arith.constant 0 : index
    %c0_174 = arith.constant 0 : index
    %141 = vector.load %arg3[%c0_171, %c2_172, %c0_173, %c0_174] : memref<1x9x9x8xbf16, #tpu.memory_space<vmem>>, vector<1x1x8x8xbf16>
    %142 = vector.shape_cast %141 : vector<1x1x8x8xbf16> to vector<8x8xbf16>
    %c3_175 = arith.constant 3 : index
    %c0_176 = arith.constant 0 : index
    %c0_177 = arith.constant 0 : index
    %143 = vector.load %arg5[%c3_175, %c0_176, %c0_177] : memref<9x8x16xbf16, #tpu.memory_space<vmem>>, vector<1x8x16xbf16>
    %144 = vector.shape_cast %143 : vector<1x8x16xbf16> to vector<8x16xbf16>
    %cst_178 = arith.constant dense<0.000000e+00> : vector<8x16xf32>
    %145 = tpu.matmul %142, %144, %cst_178 {dimension_numbers = #tpu.dot_dimension_numbers<[1], [0], [0], [1], [0, 0, 1, 1], [], []>} : vector<8x8xbf16>, vector<8x16xbf16>, vector<8x16xf32> -> vector<8x16xf32>
    %146 = arith.addf %140, %145 : vector<8x16xf32>
    %c0_179 = arith.constant 0 : index
    %c2_180 = arith.constant 2 : index
    %c0_181 = arith.constant 0 : index
    %c0_182 = arith.constant 0 : index
    %147 = vector.load %arg4[%c0_179, %c2_180, %c0_181, %c0_182] : memref<1x9x9x8xbf16, #tpu.memory_space<vmem>>, vector<1x1x8x8xbf16>
    %148 = vector.shape_cast %147 : vector<1x1x8x8xbf16> to vector<8x8xbf16>
    %c4_183 = arith.constant 4 : index
    %c0_184 = arith.constant 0 : index
    %c0_185 = arith.constant 0 : index
    %149 = vector.load %arg5[%c4_183, %c0_184, %c0_185] : memref<9x8x16xbf16, #tpu.memory_space<vmem>>, vector<1x8x16xbf16>
    %150 = vector.shape_cast %149 : vector<1x8x16xbf16> to vector<8x16xbf16>
    %cst_186 = arith.constant dense<0.000000e+00> : vector<8x16xf32>
    %151 = tpu.matmul %148, %150, %cst_186 {dimension_numbers = #tpu.dot_dimension_numbers<[1], [0], [0], [1], [0, 0, 1, 1], [], []>} : vector<8x8xbf16>, vector<8x16xbf16>, vector<8x16xf32> -> vector<8x16xf32>
    %152 = arith.addf %146, %151 : vector<8x16xf32>
    %c0_187 = arith.constant 0 : index
    %c2_188 = arith.constant 2 : index
    %c1_189 = arith.constant 1 : index
    %c0_190 = arith.constant 0 : index
    %153 = vector.load %arg3[%c0_187, %c2_188, %c1_189, %c0_190] : memref<1x9x9x8xbf16, #tpu.memory_space<vmem>>, vector<1x1x8x8xbf16>
    %154 = vector.shape_cast %153 : vector<1x1x8x8xbf16> to vector<8x8xbf16>
    %c5_191 = arith.constant 5 : index
    %c0_192 = arith.constant 0 : index
    %c0_193 = arith.constant 0 : index
    %155 = vector.load %arg5[%c5_191, %c0_192, %c0_193] : memref<9x8x16xbf16, #tpu.memory_space<vmem>>, vector<1x8x16xbf16>
    %156 = vector.shape_cast %155 : vector<1x8x16xbf16> to vector<8x16xbf16>
    %cst_194 = arith.constant dense<0.000000e+00> : vector<8x16xf32>
    %157 = tpu.matmul %154, %156, %cst_194 {dimension_numbers = #tpu.dot_dimension_numbers<[1], [0], [0], [1], [0, 0, 1, 1], [], []>} : vector<8x8xbf16>, vector<8x16xbf16>, vector<8x16xf32> -> vector<8x16xf32>
    %158 = arith.addf %152, %157 : vector<8x16xf32>
    %c0_195 = arith.constant 0 : index
    %c3_196 = arith.constant 3 : index
    %c0_197 = arith.constant 0 : index
    %c0_198 = arith.constant 0 : index
    %159 = vector.load %arg1[%c0_195, %c3_196, %c0_197, %c0_198] : memref<1x9x9x8xbf16, #tpu.memory_space<vmem>>, vector<1x1x8x8xbf16>
    %160 = vector.shape_cast %159 : vector<1x1x8x8xbf16> to vector<8x8xbf16>
    %c6_199 = arith.constant 6 : index
    %c0_200 = arith.constant 0 : index
    %c0_201 = arith.constant 0 : index
    %161 = vector.load %arg5[%c6_199, %c0_200, %c0_201] : memref<9x8x16xbf16, #tpu.memory_space<vmem>>, vector<1x8x16xbf16>
    %162 = vector.shape_cast %161 : vector<1x8x16xbf16> to vector<8x16xbf16>
    %cst_202 = arith.constant dense<0.000000e+00> : vector<8x16xf32>
    %163 = tpu.matmul %160, %162, %cst_202 {dimension_numbers = #tpu.dot_dimension_numbers<[1], [0], [0], [1], [0, 0, 1, 1], [], []>} : vector<8x8xbf16>, vector<8x16xbf16>, vector<8x16xf32> -> vector<8x16xf32>
    %164 = arith.addf %158, %163 : vector<8x16xf32>
    %c0_203 = arith.constant 0 : index
    %c3_204 = arith.constant 3 : index
    %c0_205 = arith.constant 0 : index
    %c0_206 = arith.constant 0 : index
    %165 = vector.load %arg2[%c0_203, %c3_204, %c0_205, %c0_206] : memref<1x9x9x8xbf16, #tpu.memory_space<vmem>>, vector<1x1x8x8xbf16>
    %166 = vector.shape_cast %165 : vector<1x1x8x8xbf16> to vector<8x8xbf16>
    %c7_207 = arith.constant 7 : index
    %c0_208 = arith.constant 0 : index
    %c0_209 = arith.constant 0 : index
    %167 = vector.load %arg5[%c7_207, %c0_208, %c0_209] : memref<9x8x16xbf16, #tpu.memory_space<vmem>>, vector<1x8x16xbf16>
    %168 = vector.shape_cast %167 : vector<1x8x16xbf16> to vector<8x16xbf16>
    %cst_210 = arith.constant dense<0.000000e+00> : vector<8x16xf32>
    %169 = tpu.matmul %166, %168, %cst_210 {dimension_numbers = #tpu.dot_dimension_numbers<[1], [0], [0], [1], [0, 0, 1, 1], [], []>} : vector<8x8xbf16>, vector<8x16xbf16>, vector<8x16xf32> -> vector<8x16xf32>
    %170 = arith.addf %164, %169 : vector<8x16xf32>
    %c0_211 = arith.constant 0 : index
    %c3_212 = arith.constant 3 : index
    %c1_213 = arith.constant 1 : index
    %c0_214 = arith.constant 0 : index
    %171 = vector.load %arg1[%c0_211, %c3_212, %c1_213, %c0_214] : memref<1x9x9x8xbf16, #tpu.memory_space<vmem>>, vector<1x1x8x8xbf16>
    %172 = vector.shape_cast %171 : vector<1x1x8x8xbf16> to vector<8x8xbf16>
    %c8_215 = arith.constant 8 : index
    %c0_216 = arith.constant 0 : index
    %c0_217 = arith.constant 0 : index
    %173 = vector.load %arg5[%c8_215, %c0_216, %c0_217] : memref<9x8x16xbf16, #tpu.memory_space<vmem>>, vector<1x8x16xbf16>
    %174 = vector.shape_cast %173 : vector<1x8x16xbf16> to vector<8x16xbf16>
    %cst_218 = arith.constant dense<0.000000e+00> : vector<8x16xf32>
    %175 = tpu.matmul %172, %174, %cst_218 {dimension_numbers = #tpu.dot_dimension_numbers<[1], [0], [0], [1], [0, 0, 1, 1], [], []>} : vector<8x8xbf16>, vector<8x16xbf16>, vector<8x16xf32> -> vector<8x16xf32>
    %176 = arith.addf %170, %175 : vector<8x16xf32>
    %cst_219 = arith.constant 0.000000e+00 : f32
    %177 = vector.broadcast %cst_219 : f32 to vector<8x16xf32>
    %178 = arith.maximumf %176, %177 : vector<8x16xf32>
    %179 = arith.truncf %178 : vector<8x16xf32> to vector<8x16xbf16>
    %c0_220 = arith.constant 0 : index
    %c2_221 = arith.constant 2 : index
    %c0_222 = arith.constant 0 : index
    %c0_223 = arith.constant 0 : index
    %180 = vector.load %arg6[%c0_220, %c2_221, %c0_222, %c0_223] : memref<1x8x8x16xbf16, #tpu.memory_space<vmem>>, vector<1x1x8x16xbf16>
    %181 = vector.shape_cast %180 : vector<1x1x8x16xbf16> to vector<8x16xbf16>
    %182 = vector.shape_cast %179 : vector<8x16xbf16> to vector<1x1x8x16xbf16>
    tpu.vector_store %arg6[%c0_220, %c2_221, %c0_222, %c0_223], %182 {strides = array<i32>} : memref<1x8x8x16xbf16, #tpu.memory_space<vmem>>, vector<1x1x8x16xbf16>,
    %cst_224 = arith.constant 0.000000e+00 : f32
    %183 = vector.broadcast %cst_224 : f32 to vector<8x16xf32>
    %c0_225 = arith.constant 0 : index
    %c3_226 = arith.constant 3 : index
    %c0_227 = arith.constant 0 : index
    %c0_228 = arith.constant 0 : index
    %184 = vector.load %arg1[%c0_225, %c3_226, %c0_227, %c0_228] : memref<1x9x9x8xbf16, #tpu.memory_space<vmem>>, vector<1x1x8x8xbf16>
    %185 = vector.shape_cast %184 : vector<1x1x8x8xbf16> to vector<8x8xbf16>
    %c0_229 = arith.constant 0 : index
    %c0_230 = arith.constant 0 : index
    %c0_231 = arith.constant 0 : index
    %186 = vector.load %arg5[%c0_229, %c0_230, %c0_231] : memref<9x8x16xbf16, #tpu.memory_space<vmem>>, vector<1x8x16xbf16>
    %187 = vector.shape_cast %186 : vector<1x8x16xbf16> to vector<8x16xbf16>
    %cst_232 = arith.constant dense<0.000000e+00> : vector<8x16xf32>
    %188 = tpu.matmul %185, %187, %cst_232 {dimension_numbers = #tpu.dot_dimension_numbers<[1], [0], [0], [1], [0, 0, 1, 1], [], []>} : vector<8x8xbf16>, vector<8x16xbf16>, vector<8x16xf32> -> vector<8x16xf32>
    %189 = arith.addf %183, %188 : vector<8x16xf32>
    %c0_233 = arith.constant 0 : index
    %c3_234 = arith.constant 3 : index
    %c0_235 = arith.constant 0 : index
    %c0_236 = arith.constant 0 : index
    %190 = vector.load %arg2[%c0_233, %c3_234, %c0_235, %c0_236] : memref<1x9x9x8xbf16, #tpu.memory_space<vmem>>, vector<1x1x8x8xbf16>
    %191 = vector.shape_cast %190 : vector<1x1x8x8xbf16> to vector<8x8xbf16>
    %c1_237 = arith.constant 1 : index
    %c0_238 = arith.constant 0 : index
    %c0_239 = arith.constant 0 : index
    %192 = vector.load %arg5[%c1_237, %c0_238, %c0_239] : memref<9x8x16xbf16, #tpu.memory_space<vmem>>, vector<1x8x16xbf16>
    %193 = vector.shape_cast %192 : vector<1x8x16xbf16> to vector<8x16xbf16>
    %cst_240 = arith.constant dense<0.000000e+00> : vector<8x16xf32>
    %194 = tpu.matmul %191, %193, %cst_240 {dimension_numbers = #tpu.dot_dimension_numbers<[1], [0], [0], [1], [0, 0, 1, 1], [], []>} : vector<8x8xbf16>, vector<8x16xbf16>, vector<8x16xf32> -> vector<8x16xf32>
    %195 = arith.addf %189, %194 : vector<8x16xf32>
    %c0_241 = arith.constant 0 : index
    %c3_242 = arith.constant 3 : index
    %c1_243 = arith.constant 1 : index
    %c0_244 = arith.constant 0 : index
    %196 = vector.load %arg1[%c0_241, %c3_242, %c1_243, %c0_244] : memref<1x9x9x8xbf16, #tpu.memory_space<vmem>>, vector<1x1x8x8xbf16>
    %197 = vector.shape_cast %196 : vector<1x1x8x8xbf16> to vector<8x8xbf16>
    %c2_245 = arith.constant 2 : index
    %c0_246 = arith.constant 0 : index
    %c0_247 = arith.constant 0 : index
    %198 = vector.load %arg5[%c2_245, %c0_246, %c0_247] : memref<9x8x16xbf16, #tpu.memory_space<vmem>>, vector<1x8x16xbf16>
    %199 = vector.shape_cast %198 : vector<1x8x16xbf16> to vector<8x16xbf16>
    %cst_248 = arith.constant dense<0.000000e+00> : vector<8x16xf32>
    %200 = tpu.matmul %197, %199, %cst_248 {dimension_numbers = #tpu.dot_dimension_numbers<[1], [0], [0], [1], [0, 0, 1, 1], [], []>} : vector<8x8xbf16>, vector<8x16xbf16>, vector<8x16xf32> -> vector<8x16xf32>
    %201 = arith.addf %195, %200 : vector<8x16xf32>
    %c0_249 = arith.constant 0 : index
    %c3_250 = arith.constant 3 : index
    %c0_251 = arith.constant 0 : index
    %c0_252 = arith.constant 0 : index
    %202 = vector.load %arg3[%c0_249, %c3_250, %c0_251, %c0_252] : memref<1x9x9x8xbf16, #tpu.memory_space<vmem>>, vector<1x1x8x8xbf16>
    %203 = vector.shape_cast %202 : vector<1x1x8x8xbf16> to vector<8x8xbf16>
    %c3_253 = arith.constant 3 : index
    %c0_254 = arith.constant 0 : index
    %c0_255 = arith.constant 0 : index
    %204 = vector.load %arg5[%c3_253, %c0_254, %c0_255] : memref<9x8x16xbf16, #tpu.memory_space<vmem>>, vector<1x8x16xbf16>
    %205 = vector.shape_cast %204 : vector<1x8x16xbf16> to vector<8x16xbf16>
    %cst_256 = arith.constant dense<0.000000e+00> : vector<8x16xf32>
    %206 = tpu.matmul %203, %205, %cst_256 {dimension_numbers = #tpu.dot_dimension_numbers<[1], [0], [0], [1], [0, 0, 1, 1], [], []>} : vector<8x8xbf16>, vector<8x16xbf16>, vector<8x16xf32> -> vector<8x16xf32>
    %207 = arith.addf %201, %206 : vector<8x16xf32>
    %c0_257 = arith.constant 0 : index
    %c3_258 = arith.constant 3 : index
    %c0_259 = arith.constant 0 : index
    %c0_260 = arith.constant 0 : index
    %208 = vector.load %arg4[%c0_257, %c3_258, %c0_259, %c0_260] : memref<1x9x9x8xbf16, #tpu.memory_space<vmem>>, vector<1x1x8x8xbf16>
    %209 = vector.shape_cast %208 : vector<1x1x8x8xbf16> to vector<8x8xbf16>
    %c4_261 = arith.constant 4 : index
    %c0_262 = arith.constant 0 : index
    %c0_263 = arith.constant 0 : index
    %210 = vector.load %arg5[%c4_261, %c0_262, %c0_263] : memref<9x8x16xbf16, #tpu.memory_space<vmem>>, vector<1x8x16xbf16>
    %211 = vector.shape_cast %210 : vector<1x8x16xbf16> to vector<8x16xbf16>
    %cst_264 = arith.constant dense<0.000000e+00> : vector<8x16xf32>
    %212 = tpu.matmul %209, %211, %cst_264 {dimension_numbers = #tpu.dot_dimension_numbers<[1], [0], [0], [1], [0, 0, 1, 1], [], []>} : vector<8x8xbf16>, vector<8x16xbf16>, vector<8x16xf32> -> vector<8x16xf32>
    %213 = arith.addf %207, %212 : vector<8x16xf32>
    %c0_265 = arith.constant 0 : index
    %c3_266 = arith.constant 3 : index
    %c1_267 = arith.constant 1 : index
    %c0_268 = arith.constant 0 : index
    %214 = vector.load %arg3[%c0_265, %c3_266, %c1_267, %c0_268] : memref<1x9x9x8xbf16, #tpu.memory_space<vmem>>, vector<1x1x8x8xbf16>
    %215 = vector.shape_cast %214 : vector<1x1x8x8xbf16> to vector<8x8xbf16>
    %c5_269 = arith.constant 5 : index
    %c0_270 = arith.constant 0 : index
    %c0_271 = arith.constant 0 : index
    %216 = vector.load %arg5[%c5_269, %c0_270, %c0_271] : memref<9x8x16xbf16, #tpu.memory_space<vmem>>, vector<1x8x16xbf16>
    %217 = vector.shape_cast %216 : vector<1x8x16xbf16> to vector<8x16xbf16>
    %cst_272 = arith.constant dense<0.000000e+00> : vector<8x16xf32>
    %218 = tpu.matmul %215, %217, %cst_272 {dimension_numbers = #tpu.dot_dimension_numbers<[1], [0], [0], [1], [0, 0, 1, 1], [], []>} : vector<8x8xbf16>, vector<8x16xbf16>, vector<8x16xf32> -> vector<8x16xf32>
    %219 = arith.addf %213, %218 : vector<8x16xf32>
    %c0_273 = arith.constant 0 : index
    %c4_274 = arith.constant 4 : index
    %c0_275 = arith.constant 0 : index
    %c0_276 = arith.constant 0 : index
    %220 = vector.load %arg1[%c0_273, %c4_274, %c0_275, %c0_276] : memref<1x9x9x8xbf16, #tpu.memory_space<vmem>>, vector<1x1x8x8xbf16>
    %221 = vector.shape_cast %220 : vector<1x1x8x8xbf16> to vector<8x8xbf16>
    %c6_277 = arith.constant 6 : index
    %c0_278 = arith.constant 0 : index
    %c0_279 = arith.constant 0 : index
    %222 = vector.load %arg5[%c6_277, %c0_278, %c0_279] : memref<9x8x16xbf16, #tpu.memory_space<vmem>>, vector<1x8x16xbf16>
    %223 = vector.shape_cast %222 : vector<1x8x16xbf16> to vector<8x16xbf16>
    %cst_280 = arith.constant dense<0.000000e+00> : vector<8x16xf32>
    %224 = tpu.matmul %221, %223, %cst_280 {dimension_numbers = #tpu.dot_dimension_numbers<[1], [0], [0], [1], [0, 0, 1, 1], [], []>} : vector<8x8xbf16>, vector<8x16xbf16>, vector<8x16xf32> -> vector<8x16xf32>
    %225 = arith.addf %219, %224 : vector<8x16xf32>
    %c0_281 = arith.constant 0 : index
    %c4_282 = arith.constant 4 : index
    %c0_283 = arith.constant 0 : index
    %c0_284 = arith.constant 0 : index
    %226 = vector.load %arg2[%c0_281, %c4_282, %c0_283, %c0_284] : memref<1x9x9x8xbf16, #tpu.memory_space<vmem>>, vector<1x1x8x8xbf16>
    %227 = vector.shape_cast %226 : vector<1x1x8x8xbf16> to vector<8x8xbf16>
    %c7_285 = arith.constant 7 : index
    %c0_286 = arith.constant 0 : index
    %c0_287 = arith.constant 0 : index
    %228 = vector.load %arg5[%c7_285, %c0_286, %c0_287] : memref<9x8x16xbf16, #tpu.memory_space<vmem>>, vector<1x8x16xbf16>
    %229 = vector.shape_cast %228 : vector<1x8x16xbf16> to vector<8x16xbf16>
    %cst_288 = arith.constant dense<0.000000e+00> : vector<8x16xf32>
    %230 = tpu.matmul %227, %229, %cst_288 {dimension_numbers = #tpu.dot_dimension_numbers<[1], [0], [0], [1], [0, 0, 1, 1], [], []>} : vector<8x8xbf16>, vector<8x16xbf16>, vector<8x16xf32> -> vector<8x16xf32>
    %231 = arith.addf %225, %230 : vector<8x16xf32>
    %c0_289 = arith.constant 0 : index
    %c4_290 = arith.constant 4 : index
    %c1_291 = arith.constant 1 : index
    %c0_292 = arith.constant 0 : index
    %232 = vector.load %arg1[%c0_289, %c4_290, %c1_291, %c0_292] : memref<1x9x9x8xbf16, #tpu.memory_space<vmem>>, vector<1x1x8x8xbf16>
    %233 = vector.shape_cast %232 : vector<1x1x8x8xbf16> to vector<8x8xbf16>
    %c8_293 = arith.constant 8 : index
    %c0_294 = arith.constant 0 : index
    %c0_295 = arith.constant 0 : index
    %234 = vector.load %arg5[%c8_293, %c0_294, %c0_295] : memref<9x8x16xbf16, #tpu.memory_space<vmem>>, vector<1x8x16xbf16>
    %235 = vector.shape_cast %234 : vector<1x8x16xbf16> to vector<8x16xbf16>
    %cst_296 = arith.constant dense<0.000000e+00> : vector<8x16xf32>
    %236 = tpu.matmul %233, %235, %cst_296 {dimension_numbers = #tpu.dot_dimension_numbers<[1], [0], [0], [1], [0, 0, 1, 1], [], []>} : vector<8x8xbf16>, vector<8x16xbf16>, vector<8x16xf32> -> vector<8x16xf32>
    %237 = arith.addf %231, %236 : vector<8x16xf32>
    %cst_297 = arith.constant 0.000000e+00 : f32
    %238 = vector.broadcast %cst_297 : f32 to vector<8x16xf32>
    %239 = arith.maximumf %237, %238 : vector<8x16xf32>
    %240 = arith.truncf %239 : vector<8x16xf32> to vector<8x16xbf16>
    %c0_298 = arith.constant 0 : index
    %c3_299 = arith.constant 3 : index
    %c0_300 = arith.constant 0 : index
    %c0_301 = arith.constant 0 : index
    %241 = vector.load %arg6[%c0_298, %c3_299, %c0_300, %c0_301] : memref<1x8x8x16xbf16, #tpu.memory_space<vmem>>, vector<1x1x8x16xbf16>
    %242 = vector.shape_cast %241 : vector<1x1x8x16xbf16> to vector<8x16xbf16>
    %243 = vector.shape_cast %240 : vector<8x16xbf16> to vector<1x1x8x16xbf16>
    tpu.vector_store %arg6[%c0_298, %c3_299, %c0_300, %c0_301], %243 {strides = array<i32>} : memref<1x8x8x16xbf16, #tpu.memory_space<vmem>>, vector<1x1x8x16xbf16>,
    %cst_302 = arith.constant 0.000000e+00 : f32
    %244 = vector.broadcast %cst_302 : f32 to vector<8x16xf32>
    %c0_303 = arith.constant 0 : index
    %c4_304 = arith.constant 4 : index
    %c0_305 = arith.constant 0 : index
    %c0_306 = arith.constant 0 : index
    %245 = vector.load %arg1[%c0_303, %c4_304, %c0_305, %c0_306] : memref<1x9x9x8xbf16, #tpu.memory_space<vmem>>, vector<1x1x8x8xbf16>
    %246 = vector.shape_cast %245 : vector<1x1x8x8xbf16> to vector<8x8xbf16>
    %c0_307 = arith.constant 0 : index
    %c0_308 = arith.constant 0 : index
    %c0_309 = arith.constant 0 : index
    %247 = vector.load %arg5[%c0_307, %c0_308, %c0_309] : memref<9x8x16xbf16, #tpu.memory_space<vmem>>, vector<1x8x16xbf16>
    %248 = vector.shape_cast %247 : vector<1x8x16xbf16> to vector<8x16xbf16>
    %cst_310 = arith.constant dense<0.000000e+00> : vector<8x16xf32>
    %249 = tpu.matmul %246, %248, %cst_310 {dimension_numbers = #tpu.dot_dimension_numbers<[1], [0], [0], [1], [0, 0, 1, 1], [], []>} : vector<8x8xbf16>, vector<8x16xbf16>, vector<8x16xf32> -> vector<8x16xf32>
    %250 = arith.addf %244, %249 : vector<8x16xf32>
    %c0_311 = arith.constant 0 : index
    %c4_312 = arith.constant 4 : index
    %c0_313 = arith.constant 0 : index
    %c0_314 = arith.constant 0 : index
    %251 = vector.load %arg2[%c0_311, %c4_312, %c0_313, %c0_314] : memref<1x9x9x8xbf16, #tpu.memory_space<vmem>>, vector<1x1x8x8xbf16>
    %252 = vector.shape_cast %251 : vector<1x1x8x8xbf16> to vector<8x8xbf16>
    %c1_315 = arith.constant 1 : index
    %c0_316 = arith.constant 0 : index
    %c0_317 = arith.constant 0 : index
    %253 = vector.load %arg5[%c1_315, %c0_316, %c0_317] : memref<9x8x16xbf16, #tpu.memory_space<vmem>>, vector<1x8x16xbf16>
    %254 = vector.shape_cast %253 : vector<1x8x16xbf16> to vector<8x16xbf16>
    %cst_318 = arith.constant dense<0.000000e+00> : vector<8x16xf32>
    %255 = tpu.matmul %252, %254, %cst_318 {dimension_numbers = #tpu.dot_dimension_numbers<[1], [0], [0], [1], [0, 0, 1, 1], [], []>} : vector<8x8xbf16>, vector<8x16xbf16>, vector<8x16xf32> -> vector<8x16xf32>
    %256 = arith.addf %250, %255 : vector<8x16xf32>
    %c0_319 = arith.constant 0 : index
    %c4_320 = arith.constant 4 : index
    %c1_321 = arith.constant 1 : index
    %c0_322 = arith.constant 0 : index
    %257 = vector.load %arg1[%c0_319, %c4_320, %c1_321, %c0_322] : memref<1x9x9x8xbf16, #tpu.memory_space<vmem>>, vector<1x1x8x8xbf16>
    %258 = vector.shape_cast %257 : vector<1x1x8x8xbf16> to vector<8x8xbf16>
    %c2_323 = arith.constant 2 : index
    %c0_324 = arith.constant 0 : index
    %c0_325 = arith.constant 0 : index
    %259 = vector.load %arg5[%c2_323, %c0_324, %c0_325] : memref<9x8x16xbf16, #tpu.memory_space<vmem>>, vector<1x8x16xbf16>
    %260 = vector.shape_cast %259 : vector<1x8x16xbf16> to vector<8x16xbf16>
    %cst_326 = arith.constant dense<0.000000e+00> : vector<8x16xf32>
    %261 = tpu.matmul %258, %260, %cst_326 {dimension_numbers = #tpu.dot_dimension_numbers<[1], [0], [0], [1], [0, 0, 1, 1], [], []>} : vector<8x8xbf16>, vector<8x16xbf16>, vector<8x16xf32> -> vector<8x16xf32>
    %262 = arith.addf %256, %261 : vector<8x16xf32>
    %c0_327 = arith.constant 0 : index
    %c4_328 = arith.constant 4 : index
    %c0_329 = arith.constant 0 : index
    %c0_330 = arith.constant 0 : index
    %263 = vector.load %arg3[%c0_327, %c4_328, %c0_329, %c0_330] : memref<1x9x9x8xbf16, #tpu.memory_space<vmem>>, vector<1x1x8x8xbf16>
    %264 = vector.shape_cast %263 : vector<1x1x8x8xbf16> to vector<8x8xbf16>
    %c3_331 = arith.constant 3 : index
    %c0_332 = arith.constant 0 : index
    %c0_333 = arith.constant 0 : index
    %265 = vector.load %arg5[%c3_331, %c0_332, %c0_333] : memref<9x8x16xbf16, #tpu.memory_space<vmem>>, vector<1x8x16xbf16>
    %266 = vector.shape_cast %265 : vector<1x8x16xbf16> to vector<8x16xbf16>
    %cst_334 = arith.constant dense<0.000000e+00> : vector<8x16xf32>
    %267 = tpu.matmul %264, %266, %cst_334 {dimension_numbers = #tpu.dot_dimension_numbers<[1], [0], [0], [1], [0, 0, 1, 1], [], []>} : vector<8x8xbf16>, vector<8x16xbf16>, vector<8x16xf32> -> vector<8x16xf32>
    %268 = arith.addf %262, %267 : vector<8x16xf32>
    %c0_335 = arith.constant 0 : index
    %c4_336 = arith.constant 4 : index
    %c0_337 = arith.constant 0 : index
    %c0_338 = arith.constant 0 : index
    %269 = vector.load %arg4[%c0_335, %c4_336, %c0_337, %c0_338] : memref<1x9x9x8xbf16, #tpu.memory_space<vmem>>, vector<1x1x8x8xbf16>
    %270 = vector.shape_cast %269 : vector<1x1x8x8xbf16> to vector<8x8xbf16>
    %c4_339 = arith.constant 4 : index
    %c0_340 = arith.constant 0 : index
    %c0_341 = arith.constant 0 : index
    %271 = vector.load %arg5[%c4_339, %c0_340, %c0_341] : memref<9x8x16xbf16, #tpu.memory_space<vmem>>, vector<1x8x16xbf16>
    %272 = vector.shape_cast %271 : vector<1x8x16xbf16> to vector<8x16xbf16>
    %cst_342 = arith.constant dense<0.000000e+00> : vector<8x16xf32>
    %273 = tpu.matmul %270, %272, %cst_342 {dimension_numbers = #tpu.dot_dimension_numbers<[1], [0], [0], [1], [0, 0, 1, 1], [], []>} : vector<8x8xbf16>, vector<8x16xbf16>, vector<8x16xf32> -> vector<8x16xf32>
    %274 = arith.addf %268, %273 : vector<8x16xf32>
    %c0_343 = arith.constant 0 : index
    %c4_344 = arith.constant 4 : index
    %c1_345 = arith.constant 1 : index
    %c0_346 = arith.constant 0 : index
    %275 = vector.load %arg3[%c0_343, %c4_344, %c1_345, %c0_346] : memref<1x9x9x8xbf16, #tpu.memory_space<vmem>>, vector<1x1x8x8xbf16>
    %276 = vector.shape_cast %275 : vector<1x1x8x8xbf16> to vector<8x8xbf16>
    %c5_347 = arith.constant 5 : index
    %c0_348 = arith.constant 0 : index
    %c0_349 = arith.constant 0 : index
    %277 = vector.load %arg5[%c5_347, %c0_348, %c0_349] : memref<9x8x16xbf16, #tpu.memory_space<vmem>>, vector<1x8x16xbf16>
    %278 = vector.shape_cast %277 : vector<1x8x16xbf16> to vector<8x16xbf16>
    %cst_350 = arith.constant dense<0.000000e+00> : vector<8x16xf32>
    %279 = tpu.matmul %276, %278, %cst_350 {dimension_numbers = #tpu.dot_dimension_numbers<[1], [0], [0], [1], [0, 0, 1, 1], [], []>} : vector<8x8xbf16>, vector<8x16xbf16>, vector<8x16xf32> -> vector<8x16xf32>
    %280 = arith.addf %274, %279 : vector<8x16xf32>
    %c0_351 = arith.constant 0 : index
    %c5_352 = arith.constant 5 : index
    %c0_353 = arith.constant 0 : index
    %c0_354 = arith.constant 0 : index
    %281 = vector.load %arg1[%c0_351, %c5_352, %c0_353, %c0_354] : memref<1x9x9x8xbf16, #tpu.memory_space<vmem>>, vector<1x1x8x8xbf16>
    %282 = vector.shape_cast %281 : vector<1x1x8x8xbf16> to vector<8x8xbf16>
    %c6_355 = arith.constant 6 : index
    %c0_356 = arith.constant 0 : index
    %c0_357 = arith.constant 0 : index
    %283 = vector.load %arg5[%c6_355, %c0_356, %c0_357] : memref<9x8x16xbf16, #tpu.memory_space<vmem>>, vector<1x8x16xbf16>
    %284 = vector.shape_cast %283 : vector<1x8x16xbf16> to vector<8x16xbf16>
    %cst_358 = arith.constant dense<0.000000e+00> : vector<8x16xf32>
    %285 = tpu.matmul %282, %284, %cst_358 {dimension_numbers = #tpu.dot_dimension_numbers<[1], [0], [0], [1], [0, 0, 1, 1], [], []>} : vector<8x8xbf16>, vector<8x16xbf16>, vector<8x16xf32> -> vector<8x16xf32>
    %286 = arith.addf %280, %285 : vector<8x16xf32>
    %c0_359 = arith.constant 0 : index
    %c5_360 = arith.constant 5 : index
    %c0_361 = arith.constant 0 : index
    %c0_362 = arith.constant 0 : index
    %287 = vector.load %arg2[%c0_359, %c5_360, %c0_361, %c0_362] : memref<1x9x9x8xbf16, #tpu.memory_space<vmem>>, vector<1x1x8x8xbf16>
    %288 = vector.shape_cast %287 : vector<1x1x8x8xbf16> to vector<8x8xbf16>
    %c7_363 = arith.constant 7 : index
    %c0_364 = arith.constant 0 : index
    %c0_365 = arith.constant 0 : index
    %289 = vector.load %arg5[%c7_363, %c0_364, %c0_365] : memref<9x8x16xbf16, #tpu.memory_space<vmem>>, vector<1x8x16xbf16>
    %290 = vector.shape_cast %289 : vector<1x8x16xbf16> to vector<8x16xbf16>
    %cst_366 = arith.constant dense<0.000000e+00> : vector<8x16xf32>
    %291 = tpu.matmul %288, %290, %cst_366 {dimension_numbers = #tpu.dot_dimension_numbers<[1], [0], [0], [1], [0, 0, 1, 1], [], []>} : vector<8x8xbf16>, vector<8x16xbf16>, vector<8x16xf32> -> vector<8x16xf32>
    %292 = arith.addf %286, %291 : vector<8x16xf32>
    %c0_367 = arith.constant 0 : index
    %c5_368 = arith.constant 5 : index
    %c1_369 = arith.constant 1 : index
    %c0_370 = arith.constant 0 : index
    %293 = vector.load %arg1[%c0_367, %c5_368, %c1_369, %c0_370] : memref<1x9x9x8xbf16, #tpu.memory_space<vmem>>, vector<1x1x8x8xbf16>
    %294 = vector.shape_cast %293 : vector<1x1x8x8xbf16> to vector<8x8xbf16>
    %c8_371 = arith.constant 8 : index
    %c0_372 = arith.constant 0 : index
    %c0_373 = arith.constant 0 : index
    %295 = vector.load %arg5[%c8_371, %c0_372, %c0_373] : memref<9x8x16xbf16, #tpu.memory_space<vmem>>, vector<1x8x16xbf16>
    %296 = vector.shape_cast %295 : vector<1x8x16xbf16> to vector<8x16xbf16>
    %cst_374 = arith.constant dense<0.000000e+00> : vector<8x16xf32>
    %297 = tpu.matmul %294, %296, %cst_374 {dimension_numbers = #tpu.dot_dimension_numbers<[1], [0], [0], [1], [0, 0, 1, 1], [], []>} : vector<8x8xbf16>, vector<8x16xbf16>, vector<8x16xf32> -> vector<8x16xf32>
    %298 = arith.addf %292, %297 : vector<8x16xf32>
    %cst_375 = arith.constant 0.000000e+00 : f32
    %299 = vector.broadcast %cst_375 : f32 to vector<8x16xf32>
    %300 = arith.maximumf %298, %299 : vector<8x16xf32>
    %301 = arith.truncf %300 : vector<8x16xf32> to vector<8x16xbf16>
    %c0_376 = arith.constant 0 : index
    %c4_377 = arith.constant 4 : index
    %c0_378 = arith.constant 0 : index
    %c0_379 = arith.constant 0 : index
    %302 = vector.load %arg6[%c0_376, %c4_377, %c0_378, %c0_379] : memref<1x8x8x16xbf16, #tpu.memory_space<vmem>>, vector<1x1x8x16xbf16>
    %303 = vector.shape_cast %302 : vector<1x1x8x16xbf16> to vector<8x16xbf16>
    %304 = vector.shape_cast %301 : vector<8x16xbf16> to vector<1x1x8x16xbf16>
    tpu.vector_store %arg6[%c0_376, %c4_377, %c0_378, %c0_379], %304 {strides = array<i32>} : memref<1x8x8x16xbf16, #tpu.memory_space<vmem>>, vector<1x1x8x16xbf16>,
    %cst_380 = arith.constant 0.000000e+00 : f32
    %305 = vector.broadcast %cst_380 : f32 to vector<8x16xf32>
    %c0_381 = arith.constant 0 : index
    %c5_382 = arith.constant 5 : index
    %c0_383 = arith.constant 0 : index
    %c0_384 = arith.constant 0 : index
    %306 = vector.load %arg1[%c0_381, %c5_382, %c0_383, %c0_384] : memref<1x9x9x8xbf16, #tpu.memory_space<vmem>>, vector<1x1x8x8xbf16>
    %307 = vector.shape_cast %306 : vector<1x1x8x8xbf16> to vector<8x8xbf16>
    %c0_385 = arith.constant 0 : index
    %c0_386 = arith.constant 0 : index
    %c0_387 = arith.constant 0 : index
    %308 = vector.load %arg5[%c0_385, %c0_386, %c0_387] : memref<9x8x16xbf16, #tpu.memory_space<vmem>>, vector<1x8x16xbf16>
    %309 = vector.shape_cast %308 : vector<1x8x16xbf16> to vector<8x16xbf16>
    %cst_388 = arith.constant dense<0.000000e+00> : vector<8x16xf32>
    %310 = tpu.matmul %307, %309, %cst_388 {dimension_numbers = #tpu.dot_dimension_numbers<[1], [0], [0], [1], [0, 0, 1, 1], [], []>} : vector<8x8xbf16>, vector<8x16xbf16>, vector<8x16xf32> -> vector<8x16xf32>
    %311 = arith.addf %305, %310 : vector<8x16xf32>
    %c0_389 = arith.constant 0 : index
    %c5_390 = arith.constant 5 : index
    %c0_391 = arith.constant 0 : index
    %c0_392 = arith.constant 0 : index
    %312 = vector.load %arg2[%c0_389, %c5_390, %c0_391, %c0_392] : memref<1x9x9x8xbf16, #tpu.memory_space<vmem>>, vector<1x1x8x8xbf16>
    %313 = vector.shape_cast %312 : vector<1x1x8x8xbf16> to vector<8x8xbf16>
    %c1_393 = arith.constant 1 : index
    %c0_394 = arith.constant 0 : index
    %c0_395 = arith.constant 0 : index
    %314 = vector.load %arg5[%c1_393, %c0_394, %c0_395] : memref<9x8x16xbf16, #tpu.memory_space<vmem>>, vector<1x8x16xbf16>
    %315 = vector.shape_cast %314 : vector<1x8x16xbf16> to vector<8x16xbf16>
    %cst_396 = arith.constant dense<0.000000e+00> : vector<8x16xf32>
    %316 = tpu.matmul %313, %315, %cst_396 {dimension_numbers = #tpu.dot_dimension_numbers<[1], [0], [0], [1], [0, 0, 1, 1], [], []>} : vector<8x8xbf16>, vector<8x16xbf16>, vector<8x16xf32> -> vector<8x16xf32>
    %317 = arith.addf %311, %316 : vector<8x16xf32>
    %c0_397 = arith.constant 0 : index
    %c5_398 = arith.constant 5 : index
    %c1_399 = arith.constant 1 : index
    %c0_400 = arith.constant 0 : index
    %318 = vector.load %arg1[%c0_397, %c5_398, %c1_399, %c0_400] : memref<1x9x9x8xbf16, #tpu.memory_space<vmem>>, vector<1x1x8x8xbf16>
    %319 = vector.shape_cast %318 : vector<1x1x8x8xbf16> to vector<8x8xbf16>
    %c2_401 = arith.constant 2 : index
    %c0_402 = arith.constant 0 : index
    %c0_403 = arith.constant 0 : index
    %320 = vector.load %arg5[%c2_401, %c0_402, %c0_403] : memref<9x8x16xbf16, #tpu.memory_space<vmem>>, vector<1x8x16xbf16>
    %321 = vector.shape_cast %320 : vector<1x8x16xbf16> to vector<8x16xbf16>
    %cst_404 = arith.constant dense<0.000000e+00> : vector<8x16xf32>
    %322 = tpu.matmul %319, %321, %cst_404 {dimension_numbers = #tpu.dot_dimension_numbers<[1], [0], [0], [1], [0, 0, 1, 1], [], []>} : vector<8x8xbf16>, vector<8x16xbf16>, vector<8x16xf32> -> vector<8x16xf32>
    %323 = arith.addf %317, %322 : vector<8x16xf32>
    %c0_405 = arith.constant 0 : index
    %c5_406 = arith.constant 5 : index
    %c0_407 = arith.constant 0 : index
    %c0_408 = arith.constant 0 : index
    %324 = vector.load %arg3[%c0_405, %c5_406, %c0_407, %c0_408] : memref<1x9x9x8xbf16, #tpu.memory_space<vmem>>, vector<1x1x8x8xbf16>
    %325 = vector.shape_cast %324 : vector<1x1x8x8xbf16> to vector<8x8xbf16>
    %c3_409 = arith.constant 3 : index
    %c0_410 = arith.constant 0 : index
    %c0_411 = arith.constant 0 : index
    %326 = vector.load %arg5[%c3_409, %c0_410, %c0_411] : memref<9x8x16xbf16, #tpu.memory_space<vmem>>, vector<1x8x16xbf16>
    %327 = vector.shape_cast %326 : vector<1x8x16xbf16> to vector<8x16xbf16>
    %cst_412 = arith.constant dense<0.000000e+00> : vector<8x16xf32>
    %328 = tpu.matmul %325, %327, %cst_412 {dimension_numbers = #tpu.dot_dimension_numbers<[1], [0], [0], [1], [0, 0, 1, 1], [], []>} : vector<8x8xbf16>, vector<8x16xbf16>, vector<8x16xf32> -> vector<8x16xf32>
    %329 = arith.addf %323, %328 : vector<8x16xf32>
    %c0_413 = arith.constant 0 : index
    %c5_414 = arith.constant 5 : index
    %c0_415 = arith.constant 0 : index
    %c0_416 = arith.constant 0 : index
    %330 = vector.load %arg4[%c0_413, %c5_414, %c0_415, %c0_416] : memref<1x9x9x8xbf16, #tpu.memory_space<vmem>>, vector<1x1x8x8xbf16>
    %331 = vector.shape_cast %330 : vector<1x1x8x8xbf16> to vector<8x8xbf16>
    %c4_417 = arith.constant 4 : index
    %c0_418 = arith.constant 0 : index
    %c0_419 = arith.constant 0 : index
    %332 = vector.load %arg5[%c4_417, %c0_418, %c0_419] : memref<9x8x16xbf16, #tpu.memory_space<vmem>>, vector<1x8x16xbf16>
    %333 = vector.shape_cast %332 : vector<1x8x16xbf16> to vector<8x16xbf16>
    %cst_420 = arith.constant dense<0.000000e+00> : vector<8x16xf32>
    %334 = tpu.matmul %331, %333, %cst_420 {dimension_numbers = #tpu.dot_dimension_numbers<[1], [0], [0], [1], [0, 0, 1, 1], [], []>} : vector<8x8xbf16>, vector<8x16xbf16>, vector<8x16xf32> -> vector<8x16xf32>
    %335 = arith.addf %329, %334 : vector<8x16xf32>
    %c0_421 = arith.constant 0 : index
    %c5_422 = arith.constant 5 : index
    %c1_423 = arith.constant 1 : index
    %c0_424 = arith.constant 0 : index
    %336 = vector.load %arg3[%c0_421, %c5_422, %c1_423, %c0_424] : memref<1x9x9x8xbf16, #tpu.memory_space<vmem>>, vector<1x1x8x8xbf16>
    %337 = vector.shape_cast %336 : vector<1x1x8x8xbf16> to vector<8x8xbf16>
    %c5_425 = arith.constant 5 : index
    %c0_426 = arith.constant 0 : index
    %c0_427 = arith.constant 0 : index
    %338 = vector.load %arg5[%c5_425, %c0_426, %c0_427] : memref<9x8x16xbf16, #tpu.memory_space<vmem>>, vector<1x8x16xbf16>
    %339 = vector.shape_cast %338 : vector<1x8x16xbf16> to vector<8x16xbf16>
    %cst_428 = arith.constant dense<0.000000e+00> : vector<8x16xf32>
    %340 = tpu.matmul %337, %339, %cst_428 {dimension_numbers = #tpu.dot_dimension_numbers<[1], [0], [0], [1], [0, 0, 1, 1], [], []>} : vector<8x8xbf16>, vector<8x16xbf16>, vector<8x16xf32> -> vector<8x16xf32>
    %341 = arith.addf %335, %340 : vector<8x16xf32>
    %c0_429 = arith.constant 0 : index
    %c6_430 = arith.constant 6 : index
    %c0_431 = arith.constant 0 : index
    %c0_432 = arith.constant 0 : index
    %342 = vector.load %arg1[%c0_429, %c6_430, %c0_431, %c0_432] : memref<1x9x9x8xbf16, #tpu.memory_space<vmem>>, vector<1x1x8x8xbf16>
    %343 = vector.shape_cast %342 : vector<1x1x8x8xbf16> to vector<8x8xbf16>
    %c6_433 = arith.constant 6 : index
    %c0_434 = arith.constant 0 : index
    %c0_435 = arith.constant 0 : index
    %344 = vector.load %arg5[%c6_433, %c0_434, %c0_435] : memref<9x8x16xbf16, #tpu.memory_space<vmem>>, vector<1x8x16xbf16>
    %345 = vector.shape_cast %344 : vector<1x8x16xbf16> to vector<8x16xbf16>
    %cst_436 = arith.constant dense<0.000000e+00> : vector<8x16xf32>
    %346 = tpu.matmul %343, %345, %cst_436 {dimension_numbers = #tpu.dot_dimension_numbers<[1], [0], [0], [1], [0, 0, 1, 1], [], []>} : vector<8x8xbf16>, vector<8x16xbf16>, vector<8x16xf32> -> vector<8x16xf32>
    %347 = arith.addf %341, %346 : vector<8x16xf32>
    %c0_437 = arith.constant 0 : index
    %c6_438 = arith.constant 6 : index
    %c0_439 = arith.constant 0 : index
    %c0_440 = arith.constant 0 : index
    %348 = vector.load %arg2[%c0_437, %c6_438, %c0_439, %c0_440] : memref<1x9x9x8xbf16, #tpu.memory_space<vmem>>, vector<1x1x8x8xbf16>
    %349 = vector.shape_cast %348 : vector<1x1x8x8xbf16> to vector<8x8xbf16>
    %c7_441 = arith.constant 7 : index
    %c0_442 = arith.constant 0 : index
    %c0_443 = arith.constant 0 : index
    %350 = vector.load %arg5[%c7_441, %c0_442, %c0_443] : memref<9x8x16xbf16, #tpu.memory_space<vmem>>, vector<1x8x16xbf16>
    %351 = vector.shape_cast %350 : vector<1x8x16xbf16> to vector<8x16xbf16>
    %cst_444 = arith.constant dense<0.000000e+00> : vector<8x16xf32>
    %352 = tpu.matmul %349, %351, %cst_444 {dimension_numbers = #tpu.dot_dimension_numbers<[1], [0], [0], [1], [0, 0, 1, 1], [], []>} : vector<8x8xbf16>, vector<8x16xbf16>, vector<8x16xf32> -> vector<8x16xf32>
    %353 = arith.addf %347, %352 : vector<8x16xf32>
    %c0_445 = arith.constant 0 : index
    %c6_446 = arith.constant 6 : index
    %c1_447 = arith.constant 1 : index
    %c0_448 = arith.constant 0 : index
    %354 = vector.load %arg1[%c0_445, %c6_446, %c1_447, %c0_448] : memref<1x9x9x8xbf16, #tpu.memory_space<vmem>>, vector<1x1x8x8xbf16>
    %355 = vector.shape_cast %354 : vector<1x1x8x8xbf16> to vector<8x8xbf16>
    %c8_449 = arith.constant 8 : index
    %c0_450 = arith.constant 0 : index
    %c0_451 = arith.constant 0 : index
    %356 = vector.load %arg5[%c8_449, %c0_450, %c0_451] : memref<9x8x16xbf16, #tpu.memory_space<vmem>>, vector<1x8x16xbf16>
    %357 = vector.shape_cast %356 : vector<1x8x16xbf16> to vector<8x16xbf16>
    %cst_452 = arith.constant dense<0.000000e+00> : vector<8x16xf32>
    %358 = tpu.matmul %355, %357, %cst_452 {dimension_numbers = #tpu.dot_dimension_numbers<[1], [0], [0], [1], [0, 0, 1, 1], [], []>} : vector<8x8xbf16>, vector<8x16xbf16>, vector<8x16xf32> -> vector<8x16xf32>
    %359 = arith.addf %353, %358 : vector<8x16xf32>
    %cst_453 = arith.constant 0.000000e+00 : f32
    %360 = vector.broadcast %cst_453 : f32 to vector<8x16xf32>
    %361 = arith.maximumf %359, %360 : vector<8x16xf32>
    %362 = arith.truncf %361 : vector<8x16xf32> to vector<8x16xbf16>
    %c0_454 = arith.constant 0 : index
    %c5_455 = arith.constant 5 : index
    %c0_456 = arith.constant 0 : index
    %c0_457 = arith.constant 0 : index
    %363 = vector.load %arg6[%c0_454, %c5_455, %c0_456, %c0_457] : memref<1x8x8x16xbf16, #tpu.memory_space<vmem>>, vector<1x1x8x16xbf16>
    %364 = vector.shape_cast %363 : vector<1x1x8x16xbf16> to vector<8x16xbf16>
    %365 = vector.shape_cast %362 : vector<8x16xbf16> to vector<1x1x8x16xbf16>
    tpu.vector_store %arg6[%c0_454, %c5_455, %c0_456, %c0_457], %365 {strides = array<i32>} : memref<1x8x8x16xbf16, #tpu.memory_space<vmem>>, vector<1x1x8x16xbf16>,
    %cst_458 = arith.constant 0.000000e+00 : f32
    %366 = vector.broadcast %cst_458 : f32 to vector<8x16xf32>
    %c0_459 = arith.constant 0 : index
    %c6_460 = arith.constant 6 : index
    %c0_461 = arith.constant 0 : index
    %c0_462 = arith.constant 0 : index
    %367 = vector.load %arg1[%c0_459, %c6_460, %c0_461, %c0_462] : memref<1x9x9x8xbf16, #tpu.memory_space<vmem>>, vector<1x1x8x8xbf16>
    %368 = vector.shape_cast %367 : vector<1x1x8x8xbf16> to vector<8x8xbf16>
    %c0_463 = arith.constant 0 : index
    %c0_464 = arith.constant 0 : index
    %c0_465 = arith.constant 0 : index
    %369 = vector.load %arg5[%c0_463, %c0_464, %c0_465] : memref<9x8x16xbf16, #tpu.memory_space<vmem>>, vector<1x8x16xbf16>
    %370 = vector.shape_cast %369 : vector<1x8x16xbf16> to vector<8x16xbf16>
    %cst_466 = arith.constant dense<0.000000e+00> : vector<8x16xf32>
    %371 = tpu.matmul %368, %370, %cst_466 {dimension_numbers = #tpu.dot_dimension_numbers<[1], [0], [0], [1], [0, 0, 1, 1], [], []>} : vector<8x8xbf16>, vector<8x16xbf16>, vector<8x16xf32> -> vector<8x16xf32>
    %372 = arith.addf %366, %371 : vector<8x16xf32>
    %c0_467 = arith.constant 0 : index
    %c6_468 = arith.constant 6 : index
    %c0_469 = arith.constant 0 : index
    %c0_470 = arith.constant 0 : index
    %373 = vector.load %arg2[%c0_467, %c6_468, %c0_469, %c0_470] : memref<1x9x9x8xbf16, #tpu.memory_space<vmem>>, vector<1x1x8x8xbf16>
    %374 = vector.shape_cast %373 : vector<1x1x8x8xbf16> to vector<8x8xbf16>
    %c1_471 = arith.constant 1 : index
    %c0_472 = arith.constant 0 : index
    %c0_473 = arith.constant 0 : index
    %375 = vector.load %arg5[%c1_471, %c0_472, %c0_473] : memref<9x8x16xbf16, #tpu.memory_space<vmem>>, vector<1x8x16xbf16>
    %376 = vector.shape_cast %375 : vector<1x8x16xbf16> to vector<8x16xbf16>
    %cst_474 = arith.constant dense<0.000000e+00> : vector<8x16xf32>
    %377 = tpu.matmul %374, %376, %cst_474 {dimension_numbers = #tpu.dot_dimension_numbers<[1], [0], [0], [1], [0, 0, 1, 1], [], []>} : vector<8x8xbf16>, vector<8x16xbf16>, vector<8x16xf32> -> vector<8x16xf32>
    %378 = arith.addf %372, %377 : vector<8x16xf32>
    %c0_475 = arith.constant 0 : index
    %c6_476 = arith.constant 6 : index
    %c1_477 = arith.constant 1 : index
    %c0_478 = arith.constant 0 : index
    %379 = vector.load %arg1[%c0_475, %c6_476, %c1_477, %c0_478] : memref<1x9x9x8xbf16, #tpu.memory_space<vmem>>, vector<1x1x8x8xbf16>
    %380 = vector.shape_cast %379 : vector<1x1x8x8xbf16> to vector<8x8xbf16>
    %c2_479 = arith.constant 2 : index
    %c0_480 = arith.constant 0 : index
    %c0_481 = arith.constant 0 : index
    %381 = vector.load %arg5[%c2_479, %c0_480, %c0_481] : memref<9x8x16xbf16, #tpu.memory_space<vmem>>, vector<1x8x16xbf16>
    %382 = vector.shape_cast %381 : vector<1x8x16xbf16> to vector<8x16xbf16>
    %cst_482 = arith.constant dense<0.000000e+00> : vector<8x16xf32>
    %383 = tpu.matmul %380, %382, %cst_482 {dimension_numbers = #tpu.dot_dimension_numbers<[1], [0], [0], [1], [0, 0, 1, 1], [], []>} : vector<8x8xbf16>, vector<8x16xbf16>, vector<8x16xf32> -> vector<8x16xf32>
    %384 = arith.addf %378, %383 : vector<8x16xf32>
    %c0_483 = arith.constant 0 : index
    %c6_484 = arith.constant 6 : index
    %c0_485 = arith.constant 0 : index
    %c0_486 = arith.constant 0 : index
    %385 = vector.load %arg3[%c0_483, %c6_484, %c0_485, %c0_486] : memref<1x9x9x8xbf16, #tpu.memory_space<vmem>>, vector<1x1x8x8xbf16>
    %386 = vector.shape_cast %385 : vector<1x1x8x8xbf16> to vector<8x8xbf16>
    %c3_487 = arith.constant 3 : index
    %c0_488 = arith.constant 0 : index
    %c0_489 = arith.constant 0 : index
    %387 = vector.load %arg5[%c3_487, %c0_488, %c0_489] : memref<9x8x16xbf16, #tpu.memory_space<vmem>>, vector<1x8x16xbf16>
    %388 = vector.shape_cast %387 : vector<1x8x16xbf16> to vector<8x16xbf16>
    %cst_490 = arith.constant dense<0.000000e+00> : vector<8x16xf32>
    %389 = tpu.matmul %386, %388, %cst_490 {dimension_numbers = #tpu.dot_dimension_numbers<[1], [0], [0], [1], [0, 0, 1, 1], [], []>} : vector<8x8xbf16>, vector<8x16xbf16>, vector<8x16xf32> -> vector<8x16xf32>
    %390 = arith.addf %384, %389 : vector<8x16xf32>
    %c0_491 = arith.constant 0 : index
    %c6_492 = arith.constant 6 : index
    %c0_493 = arith.constant 0 : index
    %c0_494 = arith.constant 0 : index
    %391 = vector.load %arg4[%c0_491, %c6_492, %c0_493, %c0_494] : memref<1x9x9x8xbf16, #tpu.memory_space<vmem>>, vector<1x1x8x8xbf16>
    %392 = vector.shape_cast %391 : vector<1x1x8x8xbf16> to vector<8x8xbf16>
    %c4_495 = arith.constant 4 : index
    %c0_496 = arith.constant 0 : index
    %c0_497 = arith.constant 0 : index
    %393 = vector.load %arg5[%c4_495, %c0_496, %c0_497] : memref<9x8x16xbf16, #tpu.memory_space<vmem>>, vector<1x8x16xbf16>
    %394 = vector.shape_cast %393 : vector<1x8x16xbf16> to vector<8x16xbf16>
    %cst_498 = arith.constant dense<0.000000e+00> : vector<8x16xf32>
    %395 = tpu.matmul %392, %394, %cst_498 {dimension_numbers = #tpu.dot_dimension_numbers<[1], [0], [0], [1], [0, 0, 1, 1], [], []>} : vector<8x8xbf16>, vector<8x16xbf16>, vector<8x16xf32> -> vector<8x16xf32>
    %396 = arith.addf %390, %395 : vector<8x16xf32>
    %c0_499 = arith.constant 0 : index
    %c6_500 = arith.constant 6 : index
    %c1_501 = arith.constant 1 : index
    %c0_502 = arith.constant 0 : index
    %397 = vector.load %arg3[%c0_499, %c6_500, %c1_501, %c0_502] : memref<1x9x9x8xbf16, #tpu.memory_space<vmem>>, vector<1x1x8x8xbf16>
    %398 = vector.shape_cast %397 : vector<1x1x8x8xbf16> to vector<8x8xbf16>
    %c5_503 = arith.constant 5 : index
    %c0_504 = arith.constant 0 : index
    %c0_505 = arith.constant 0 : index
    %399 = vector.load %arg5[%c5_503, %c0_504, %c0_505] : memref<9x8x16xbf16, #tpu.memory_space<vmem>>, vector<1x8x16xbf16>
    %400 = vector.shape_cast %399 : vector<1x8x16xbf16> to vector<8x16xbf16>
    %cst_506 = arith.constant dense<0.000000e+00> : vector<8x16xf32>
    %401 = tpu.matmul %398, %400, %cst_506 {dimension_numbers = #tpu.dot_dimension_numbers<[1], [0], [0], [1], [0, 0, 1, 1], [], []>} : vector<8x8xbf16>, vector<8x16xbf16>, vector<8x16xf32> -> vector<8x16xf32>
    %402 = arith.addf %396, %401 : vector<8x16xf32>
    %c0_507 = arith.constant 0 : index
    %c7_508 = arith.constant 7 : index
    %c0_509 = arith.constant 0 : index
    %c0_510 = arith.constant 0 : index
    %403 = vector.load %arg1[%c0_507, %c7_508, %c0_509, %c0_510] : memref<1x9x9x8xbf16, #tpu.memory_space<vmem>>, vector<1x1x8x8xbf16>
    %404 = vector.shape_cast %403 : vector<1x1x8x8xbf16> to vector<8x8xbf16>
    %c6_511 = arith.constant 6 : index
    %c0_512 = arith.constant 0 : index
    %c0_513 = arith.constant 0 : index
    %405 = vector.load %arg5[%c6_511, %c0_512, %c0_513] : memref<9x8x16xbf16, #tpu.memory_space<vmem>>, vector<1x8x16xbf16>
    %406 = vector.shape_cast %405 : vector<1x8x16xbf16> to vector<8x16xbf16>
    %cst_514 = arith.constant dense<0.000000e+00> : vector<8x16xf32>
    %407 = tpu.matmul %404, %406, %cst_514 {dimension_numbers = #tpu.dot_dimension_numbers<[1], [0], [0], [1], [0, 0, 1, 1], [], []>} : vector<8x8xbf16>, vector<8x16xbf16>, vector<8x16xf32> -> vector<8x16xf32>
    %408 = arith.addf %402, %407 : vector<8x16xf32>
    %c0_515 = arith.constant 0 : index
    %c7_516 = arith.constant 7 : index
    %c0_517 = arith.constant 0 : index
    %c0_518 = arith.constant 0 : index
    %409 = vector.load %arg2[%c0_515, %c7_516, %c0_517, %c0_518] : memref<1x9x9x8xbf16, #tpu.memory_space<vmem>>, vector<1x1x8x8xbf16>
    %410 = vector.shape_cast %409 : vector<1x1x8x8xbf16> to vector<8x8xbf16>
    %c7_519 = arith.constant 7 : index
    %c0_520 = arith.constant 0 : index
    %c0_521 = arith.constant 0 : index
    %411 = vector.load %arg5[%c7_519, %c0_520, %c0_521] : memref<9x8x16xbf16, #tpu.memory_space<vmem>>, vector<1x8x16xbf16>
    %412 = vector.shape_cast %411 : vector<1x8x16xbf16> to vector<8x16xbf16>
    %cst_522 = arith.constant dense<0.000000e+00> : vector<8x16xf32>
    %413 = tpu.matmul %410, %412, %cst_522 {dimension_numbers = #tpu.dot_dimension_numbers<[1], [0], [0], [1], [0, 0, 1, 1], [], []>} : vector<8x8xbf16>, vector<8x16xbf16>, vector<8x16xf32> -> vector<8x16xf32>
    %414 = arith.addf %408, %413 : vector<8x16xf32>
    %c0_523 = arith.constant 0 : index
    %c7_524 = arith.constant 7 : index
    %c1_525 = arith.constant 1 : index
    %c0_526 = arith.constant 0 : index
    %415 = vector.load %arg1[%c0_523, %c7_524, %c1_525, %c0_526] : memref<1x9x9x8xbf16, #tpu.memory_space<vmem>>, vector<1x1x8x8xbf16>
    %416 = vector.shape_cast %415 : vector<1x1x8x8xbf16> to vector<8x8xbf16>
    %c8_527 = arith.constant 8 : index
    %c0_528 = arith.constant 0 : index
    %c0_529 = arith.constant 0 : index
    %417 = vector.load %arg5[%c8_527, %c0_528, %c0_529] : memref<9x8x16xbf16, #tpu.memory_space<vmem>>, vector<1x8x16xbf16>
    %418 = vector.shape_cast %417 : vector<1x8x16xbf16> to vector<8x16xbf16>
    %cst_530 = arith.constant dense<0.000000e+00> : vector<8x16xf32>
    %419 = tpu.matmul %416, %418, %cst_530 {dimension_numbers = #tpu.dot_dimension_numbers<[1], [0], [0], [1], [0, 0, 1, 1], [], []>} : vector<8x8xbf16>, vector<8x16xbf16>, vector<8x16xf32> -> vector<8x16xf32>
    %420 = arith.addf %414, %419 : vector<8x16xf32>
    %cst_531 = arith.constant 0.000000e+00 : f32
    %421 = vector.broadcast %cst_531 : f32 to vector<8x16xf32>
    %422 = arith.maximumf %420, %421 : vector<8x16xf32>
    %423 = arith.truncf %422 : vector<8x16xf32> to vector<8x16xbf16>
    %c0_532 = arith.constant 0 : index
    %c6_533 = arith.constant 6 : index
    %c0_534 = arith.constant 0 : index
    %c0_535 = arith.constant 0 : index
    %424 = vector.load %arg6[%c0_532, %c6_533, %c0_534, %c0_535] : memref<1x8x8x16xbf16, #tpu.memory_space<vmem>>, vector<1x1x8x16xbf16>
    %425 = vector.shape_cast %424 : vector<1x1x8x16xbf16> to vector<8x16xbf16>
    %426 = vector.shape_cast %423 : vector<8x16xbf16> to vector<1x1x8x16xbf16>
    tpu.vector_store %arg6[%c0_532, %c6_533, %c0_534, %c0_535], %426 {strides = array<i32>} : memref<1x8x8x16xbf16, #tpu.memory_space<vmem>>, vector<1x1x8x16xbf16>,
    %cst_536 = arith.constant 0.000000e+00 : f32
    %427 = vector.broadcast %cst_536 : f32 to vector<8x16xf32>
    %c0_537 = arith.constant 0 : index
    %c7_538 = arith.constant 7 : index
    %c0_539 = arith.constant 0 : index
    %c0_540 = arith.constant 0 : index
    %428 = vector.load %arg1[%c0_537, %c7_538, %c0_539, %c0_540] : memref<1x9x9x8xbf16, #tpu.memory_space<vmem>>, vector<1x1x8x8xbf16>
    %429 = vector.shape_cast %428 : vector<1x1x8x8xbf16> to vector<8x8xbf16>
    %c0_541 = arith.constant 0 : index
    %c0_542 = arith.constant 0 : index
    %c0_543 = arith.constant 0 : index
    %430 = vector.load %arg5[%c0_541, %c0_542, %c0_543] : memref<9x8x16xbf16, #tpu.memory_space<vmem>>, vector<1x8x16xbf16>
    %431 = vector.shape_cast %430 : vector<1x8x16xbf16> to vector<8x16xbf16>
    %cst_544 = arith.constant dense<0.000000e+00> : vector<8x16xf32>
    %432 = tpu.matmul %429, %431, %cst_544 {dimension_numbers = #tpu.dot_dimension_numbers<[1], [0], [0], [1], [0, 0, 1, 1], [], []>} : vector<8x8xbf16>, vector<8x16xbf16>, vector<8x16xf32> -> vector<8x16xf32>
    %433 = arith.addf %427, %432 : vector<8x16xf32>
    %c0_545 = arith.constant 0 : index
    %c7_546 = arith.constant 7 : index
    %c0_547 = arith.constant 0 : index
    %c0_548 = arith.constant 0 : index
    %434 = vector.load %arg2[%c0_545, %c7_546, %c0_547, %c0_548] : memref<1x9x9x8xbf16, #tpu.memory_space<vmem>>, vector<1x1x8x8xbf16>
    %435 = vector.shape_cast %434 : vector<1x1x8x8xbf16> to vector<8x8xbf16>
    %c1_549 = arith.constant 1 : index
    %c0_550 = arith.constant 0 : index
    %c0_551 = arith.constant 0 : index
    %436 = vector.load %arg5[%c1_549, %c0_550, %c0_551] : memref<9x8x16xbf16, #tpu.memory_space<vmem>>, vector<1x8x16xbf16>
    %437 = vector.shape_cast %436 : vector<1x8x16xbf16> to vector<8x16xbf16>
    %cst_552 = arith.constant dense<0.000000e+00> : vector<8x16xf32>
    %438 = tpu.matmul %435, %437, %cst_552 {dimension_numbers = #tpu.dot_dimension_numbers<[1], [0], [0], [1], [0, 0, 1, 1], [], []>} : vector<8x8xbf16>, vector<8x16xbf16>, vector<8x16xf32> -> vector<8x16xf32>
    %439 = arith.addf %433, %438 : vector<8x16xf32>
    %c0_553 = arith.constant 0 : index
    %c7_554 = arith.constant 7 : index
    %c1_555 = arith.constant 1 : index
    %c0_556 = arith.constant 0 : index
    %440 = vector.load %arg1[%c0_553, %c7_554, %c1_555, %c0_556] : memref<1x9x9x8xbf16, #tpu.memory_space<vmem>>, vector<1x1x8x8xbf16>
    %441 = vector.shape_cast %440 : vector<1x1x8x8xbf16> to vector<8x8xbf16>
    %c2_557 = arith.constant 2 : index
    %c0_558 = arith.constant 0 : index
    %c0_559 = arith.constant 0 : index
    %442 = vector.load %arg5[%c2_557, %c0_558, %c0_559] : memref<9x8x16xbf16, #tpu.memory_space<vmem>>, vector<1x8x16xbf16>
    %443 = vector.shape_cast %442 : vector<1x8x16xbf16> to vector<8x16xbf16>
    %cst_560 = arith.constant dense<0.000000e+00> : vector<8x16xf32>
    %444 = tpu.matmul %441, %443, %cst_560 {dimension_numbers = #tpu.dot_dimension_numbers<[1], [0], [0], [1], [0, 0, 1, 1], [], []>} : vector<8x8xbf16>, vector<8x16xbf16>, vector<8x16xf32> -> vector<8x16xf32>
    %445 = arith.addf %439, %444 : vector<8x16xf32>
    %c0_561 = arith.constant 0 : index
    %c7_562 = arith.constant 7 : index
    %c0_563 = arith.constant 0 : index
    %c0_564 = arith.constant 0 : index
    %446 = vector.load %arg3[%c0_561, %c7_562, %c0_563, %c0_564] : memref<1x9x9x8xbf16, #tpu.memory_space<vmem>>, vector<1x1x8x8xbf16>
    %447 = vector.shape_cast %446 : vector<1x1x8x8xbf16> to vector<8x8xbf16>
    %c3_565 = arith.constant 3 : index
    %c0_566 = arith.constant 0 : index
    %c0_567 = arith.constant 0 : index
    %448 = vector.load %arg5[%c3_565, %c0_566, %c0_567] : memref<9x8x16xbf16, #tpu.memory_space<vmem>>, vector<1x8x16xbf16>
    %449 = vector.shape_cast %448 : vector<1x8x16xbf16> to vector<8x16xbf16>
    %cst_568 = arith.constant dense<0.000000e+00> : vector<8x16xf32>
    %450 = tpu.matmul %447, %449, %cst_568 {dimension_numbers = #tpu.dot_dimension_numbers<[1], [0], [0], [1], [0, 0, 1, 1], [], []>} : vector<8x8xbf16>, vector<8x16xbf16>, vector<8x16xf32> -> vector<8x16xf32>
    %451 = arith.addf %445, %450 : vector<8x16xf32>
    %c0_569 = arith.constant 0 : index
    %c7_570 = arith.constant 7 : index
    %c0_571 = arith.constant 0 : index
    %c0_572 = arith.constant 0 : index
    %452 = vector.load %arg4[%c0_569, %c7_570, %c0_571, %c0_572] : memref<1x9x9x8xbf16, #tpu.memory_space<vmem>>, vector<1x1x8x8xbf16>
    %453 = vector.shape_cast %452 : vector<1x1x8x8xbf16> to vector<8x8xbf16>
    %c4_573 = arith.constant 4 : index
    %c0_574 = arith.constant 0 : index
    %c0_575 = arith.constant 0 : index
    %454 = vector.load %arg5[%c4_573, %c0_574, %c0_575] : memref<9x8x16xbf16, #tpu.memory_space<vmem>>, vector<1x8x16xbf16>
    %455 = vector.shape_cast %454 : vector<1x8x16xbf16> to vector<8x16xbf16>
    %cst_576 = arith.constant dense<0.000000e+00> : vector<8x16xf32>
    %456 = tpu.matmul %453, %455, %cst_576 {dimension_numbers = #tpu.dot_dimension_numbers<[1], [0], [0], [1], [0, 0, 1, 1], [], []>} : vector<8x8xbf16>, vector<8x16xbf16>, vector<8x16xf32> -> vector<8x16xf32>
    %457 = arith.addf %451, %456 : vector<8x16xf32>
    %c0_577 = arith.constant 0 : index
    %c7_578 = arith.constant 7 : index
    %c1_579 = arith.constant 1 : index
    %c0_580 = arith.constant 0 : index
    %458 = vector.load %arg3[%c0_577, %c7_578, %c1_579, %c0_580] : memref<1x9x9x8xbf16, #tpu.memory_space<vmem>>, vector<1x1x8x8xbf16>
    %459 = vector.shape_cast %458 : vector<1x1x8x8xbf16> to vector<8x8xbf16>
    %c5_581 = arith.constant 5 : index
    %c0_582 = arith.constant 0 : index
    %c0_583 = arith.constant 0 : index
    %460 = vector.load %arg5[%c5_581, %c0_582, %c0_583] : memref<9x8x16xbf16, #tpu.memory_space<vmem>>, vector<1x8x16xbf16>
    %461 = vector.shape_cast %460 : vector<1x8x16xbf16> to vector<8x16xbf16>
    %cst_584 = arith.constant dense<0.000000e+00> : vector<8x16xf32>
    %462 = tpu.matmul %459, %461, %cst_584 {dimension_numbers = #tpu.dot_dimension_numbers<[1], [0], [0], [1], [0, 0, 1, 1], [], []>} : vector<8x8xbf16>, vector<8x16xbf16>, vector<8x16xf32> -> vector<8x16xf32>
    %463 = arith.addf %457, %462 : vector<8x16xf32>
    %c0_585 = arith.constant 0 : index
    %c8_586 = arith.constant 8 : index
    %c0_587 = arith.constant 0 : index
    %c0_588 = arith.constant 0 : index
    %464 = vector.load %arg1[%c0_585, %c8_586, %c0_587, %c0_588] : memref<1x9x9x8xbf16, #tpu.memory_space<vmem>>, vector<1x1x8x8xbf16>
    %465 = vector.shape_cast %464 : vector<1x1x8x8xbf16> to vector<8x8xbf16>
    %c6_589 = arith.constant 6 : index
    %c0_590 = arith.constant 0 : index
    %c0_591 = arith.constant 0 : index
    %466 = vector.load %arg5[%c6_589, %c0_590, %c0_591] : memref<9x8x16xbf16, #tpu.memory_space<vmem>>, vector<1x8x16xbf16>
    %467 = vector.shape_cast %466 : vector<1x8x16xbf16> to vector<8x16xbf16>
    %cst_592 = arith.constant dense<0.000000e+00> : vector<8x16xf32>
    %468 = tpu.matmul %465, %467, %cst_592 {dimension_numbers = #tpu.dot_dimension_numbers<[1], [0], [0], [1], [0, 0, 1, 1], [], []>} : vector<8x8xbf16>, vector<8x16xbf16>, vector<8x16xf32> -> vector<8x16xf32>
    %469 = arith.addf %463, %468 : vector<8x16xf32>
    %c0_593 = arith.constant 0 : index
    %c8_594 = arith.constant 8 : index
    %c0_595 = arith.constant 0 : index
    %c0_596 = arith.constant 0 : index
    %470 = vector.load %arg2[%c0_593, %c8_594, %c0_595, %c0_596] : memref<1x9x9x8xbf16, #tpu.memory_space<vmem>>, vector<1x1x8x8xbf16>
    %471 = vector.shape_cast %470 : vector<1x1x8x8xbf16> to vector<8x8xbf16>
    %c7_597 = arith.constant 7 : index
    %c0_598 = arith.constant 0 : index
    %c0_599 = arith.constant 0 : index
    %472 = vector.load %arg5[%c7_597, %c0_598, %c0_599] : memref<9x8x16xbf16, #tpu.memory_space<vmem>>, vector<1x8x16xbf16>
    %473 = vector.shape_cast %472 : vector<1x8x16xbf16> to vector<8x16xbf16>
    %cst_600 = arith.constant dense<0.000000e+00> : vector<8x16xf32>
    %474 = tpu.matmul %471, %473, %cst_600 {dimension_numbers = #tpu.dot_dimension_numbers<[1], [0], [0], [1], [0, 0, 1, 1], [], []>} : vector<8x8xbf16>, vector<8x16xbf16>, vector<8x16xf32> -> vector<8x16xf32>
    %475 = arith.addf %469, %474 : vector<8x16xf32>
    %c0_601 = arith.constant 0 : index
    %c8_602 = arith.constant 8 : index
    %c1_603 = arith.constant 1 : index
    %c0_604 = arith.constant 0 : index
    %476 = vector.load %arg1[%c0_601, %c8_602, %c1_603, %c0_604] : memref<1x9x9x8xbf16, #tpu.memory_space<vmem>>, vector<1x1x8x8xbf16>
    %477 = vector.shape_cast %476 : vector<1x1x8x8xbf16> to vector<8x8xbf16>
    %c8_605 = arith.constant 8 : index
    %c0_606 = arith.constant 0 : index
    %c0_607 = arith.constant 0 : index
    %478 = vector.load %arg5[%c8_605, %c0_606, %c0_607] : memref<9x8x16xbf16, #tpu.memory_space<vmem>>, vector<1x8x16xbf16>
    %479 = vector.shape_cast %478 : vector<1x8x16xbf16> to vector<8x16xbf16>
    %cst_608 = arith.constant dense<0.000000e+00> : vector<8x16xf32>
    %480 = tpu.matmul %477, %479, %cst_608 {dimension_numbers = #tpu.dot_dimension_numbers<[1], [0], [0], [1], [0, 0, 1, 1], [], []>} : vector<8x8xbf16>, vector<8x16xbf16>, vector<8x16xf32> -> vector<8x16xf32>
    %481 = arith.addf %475, %480 : vector<8x16xf32>
    %cst_609 = arith.constant 0.000000e+00 : f32
    %482 = vector.broadcast %cst_609 : f32 to vector<8x16xf32>
    %483 = arith.maximumf %481, %482 : vector<8x16xf32>
    %484 = arith.truncf %483 : vector<8x16xf32> to vector<8x16xbf16>
    %c0_610 = arith.constant 0 : index
    %c7_611 = arith.constant 7 : index
    %c0_612 = arith.constant 0 : index
    %c0_613 = arith.constant 0 : index
    %485 = vector.load %arg6[%c0_610, %c7_611, %c0_612, %c0_613] : memref<1x8x8x16xbf16, #tpu.memory_space<vmem>>, vector<1x1x8x16xbf16>
    %486 = vector.shape_cast %485 : vector<1x1x8x16xbf16> to vector<8x16xbf16>
    %487 = vector.shape_cast %484 : vector<8x16xbf16> to vector<1x1x8x16xbf16>
    tpu.vector_store %arg6[%c0_610, %c7_611, %c0_612, %c0_613], %487 {strides = array<i32>} : memref<1x8x8x16xbf16, #tpu.memory_space<vmem>>, vector<1x1x8x16xbf16>,
    return
  }
  func.func @transform_0(%arg0: i32) -> (i32, i32, i32, i32) {
    %c0_i32 = arith.constant 0 : i32
    %c0_i32_0 = arith.constant 0 : i32
    %c0_i32_1 = arith.constant 0 : i32
    %c0_i32_2 = arith.constant 0 : i32
    return %arg0, %c0_i32, %c0_i32_0, %c0_i32_1 : i32, i32, i32, i32
  }
  func.func @transform_1(%arg0: i32) -> (i32, i32, i32, i32) {
    %c0_i32 = arith.constant 0 : i32
    %c0_i32_0 = arith.constant 0 : i32
    %c0_i32_1 = arith.constant 0 : i32
    %c0_i32_2 = arith.constant 0 : i32
    return %arg0, %c0_i32, %c0_i32_0, %c0_i32_1 : i32, i32, i32, i32
  }
  func.func @transform_2(%arg0: i32) -> (i32, i32, i32, i32) {
    %c0_i32 = arith.constant 0 : i32
    %c0_i32_0 = arith.constant 0 : i32
    %c0_i32_1 = arith.constant 0 : i32
    %c0_i32_2 = arith.constant 0 : i32
    return %arg0, %c0_i32, %c0_i32_0, %c0_i32_1 : i32, i32, i32, i32
  }
  func.func @transform_3(%arg0: i32) -> (i32, i32, i32, i32) {
    %c0_i32 = arith.constant 0 : i32
    %c0_i32_0 = arith.constant 0 : i32
    %c0_i32_1 = arith.constant 0 : i32
    %c0_i32_2 = arith.constant 0 : i32
    return %arg0, %c0_i32, %c0_i32_0, %c0_i32_1 : i32, i32, i32, i32
  }
  func.func @transform_4(%arg0: i32) -> (i32, i32, i32) {
    %c0_i32 = arith.constant 0 : i32
    %c0_i32_0 = arith.constant 0 : i32
    %c0_i32_1 = arith.constant 0 : i32
    %c0_i32_2 = arith.constant 0 : i32
    return %c0_i32, %c0_i32_0, %c0_i32_1 : i32, i32, i32
  }
  func.func @transform_5(%arg0: i32) -> (i32, i32, i32, i32) {
    %c0_i32 = arith.constant 0 : i32
    %c0_i32_0 = arith.constant 0 : i32
    %c0_i32_1 = arith.constant 0 : i32
    %c0_i32_2 = arith.constant 0 : i32
    return %arg0, %c0_i32, %c0_i32_0, %c0_i32_1 : i32, i32, i32, i32
  }
}

module attributes {stable_mosaic.version = 11 : i64} {
  func.func @_conv3x3s2_kernel(%arg0: i32, %arg1: memref<1x5x5x16xbf16, #tpu.memory_space<vmem>>, %arg2: memref<1x5x5x16xbf16, #tpu.memory_space<vmem>>, %arg3: memref<1x5x5x16xbf16, #tpu.memory_space<vmem>>, %arg4: memref<1x5x5x16xbf16, #tpu.memory_space<vmem>>, %arg5: memref<9x16x32xbf16, #tpu.memory_space<vmem>>, %arg6: memref<1x4x4x32xbf16, #tpu.memory_space<vmem>>) attributes {dimension_semantics = [#tpu.dimension_semantics<parallel>], iteration_bounds = array<i64: 2>, scalar_prefetch = 0 : i64, scratch_operands = 0 : i64, tpu.core_type = #tpu.core_type<tc>, window_params = [{transform_indices = @transform_0, window_bounds = array<i64: 1, 5, 5, 16>}, {transform_indices = @transform_1, window_bounds = array<i64: 1, 5, 5, 16>}, {transform_indices = @transform_2, window_bounds = array<i64: 1, 5, 5, 16>}, {transform_indices = @transform_3, window_bounds = array<i64: 1, 5, 5, 16>}, {pipeline_mode = #tpu.pipeline_mode<synchronous>, transform_indices = @transform_4, window_bounds = array<i64: 9, 16, 32>}, {transform_indices = @transform_5, window_bounds = array<i64: 1, 4, 4, 32>}]} {
    %cst = arith.constant 0.000000e+00 : f32
    %0 = vector.broadcast %cst : f32 to vector<4x32xf32>
    %c0 = arith.constant 0 : index
    %c0_0 = arith.constant 0 : index
    %c0_1 = arith.constant 0 : index
    %c0_2 = arith.constant 0 : index
    %1 = vector.load %arg1[%c0, %c0_0, %c0_1, %c0_2] : memref<1x5x5x16xbf16, #tpu.memory_space<vmem>>, vector<1x1x4x16xbf16>
    %2 = vector.shape_cast %1 : vector<1x1x4x16xbf16> to vector<4x16xbf16>
    %c0_3 = arith.constant 0 : index
    %c0_4 = arith.constant 0 : index
    %c0_5 = arith.constant 0 : index
    %3 = vector.load %arg5[%c0_3, %c0_4, %c0_5] : memref<9x16x32xbf16, #tpu.memory_space<vmem>>, vector<1x16x32xbf16>
    %4 = vector.shape_cast %3 : vector<1x16x32xbf16> to vector<16x32xbf16>
    %cst_6 = arith.constant dense<0.000000e+00> : vector<4x32xf32>
    %5 = tpu.matmul %2, %4, %cst_6 {dimension_numbers = #tpu.dot_dimension_numbers<[1], [0], [0], [1], [0, 0, 1, 1], [], []>} : vector<4x16xbf16>, vector<16x32xbf16>, vector<4x32xf32> -> vector<4x32xf32>
    %6 = arith.addf %0, %5 : vector<4x32xf32>
    %c0_7 = arith.constant 0 : index
    %c0_8 = arith.constant 0 : index
    %c0_9 = arith.constant 0 : index
    %c0_10 = arith.constant 0 : index
    %7 = vector.load %arg2[%c0_7, %c0_8, %c0_9, %c0_10] : memref<1x5x5x16xbf16, #tpu.memory_space<vmem>>, vector<1x1x4x16xbf16>
    %8 = vector.shape_cast %7 : vector<1x1x4x16xbf16> to vector<4x16xbf16>
    %c1 = arith.constant 1 : index
    %c0_11 = arith.constant 0 : index
    %c0_12 = arith.constant 0 : index
    %9 = vector.load %arg5[%c1, %c0_11, %c0_12] : memref<9x16x32xbf16, #tpu.memory_space<vmem>>, vector<1x16x32xbf16>
    %10 = vector.shape_cast %9 : vector<1x16x32xbf16> to vector<16x32xbf16>
    %cst_13 = arith.constant dense<0.000000e+00> : vector<4x32xf32>
    %11 = tpu.matmul %8, %10, %cst_13 {dimension_numbers = #tpu.dot_dimension_numbers<[1], [0], [0], [1], [0, 0, 1, 1], [], []>} : vector<4x16xbf16>, vector<16x32xbf16>, vector<4x32xf32> -> vector<4x32xf32>
    %12 = arith.addf %6, %11 : vector<4x32xf32>
    %c0_14 = arith.constant 0 : index
    %c0_15 = arith.constant 0 : index
    %c1_16 = arith.constant 1 : index
    %c0_17 = arith.constant 0 : index
    %13 = vector.load %arg1[%c0_14, %c0_15, %c1_16, %c0_17] : memref<1x5x5x16xbf16, #tpu.memory_space<vmem>>, vector<1x1x4x16xbf16>
    %14 = vector.shape_cast %13 : vector<1x1x4x16xbf16> to vector<4x16xbf16>
    %c2 = arith.constant 2 : index
    %c0_18 = arith.constant 0 : index
    %c0_19 = arith.constant 0 : index
    %15 = vector.load %arg5[%c2, %c0_18, %c0_19] : memref<9x16x32xbf16, #tpu.memory_space<vmem>>, vector<1x16x32xbf16>
    %16 = vector.shape_cast %15 : vector<1x16x32xbf16> to vector<16x32xbf16>
    %cst_20 = arith.constant dense<0.000000e+00> : vector<4x32xf32>
    %17 = tpu.matmul %14, %16, %cst_20 {dimension_numbers = #tpu.dot_dimension_numbers<[1], [0], [0], [1], [0, 0, 1, 1], [], []>} : vector<4x16xbf16>, vector<16x32xbf16>, vector<4x32xf32> -> vector<4x32xf32>
    %18 = arith.addf %12, %17 : vector<4x32xf32>
    %c0_21 = arith.constant 0 : index
    %c0_22 = arith.constant 0 : index
    %c0_23 = arith.constant 0 : index
    %c0_24 = arith.constant 0 : index
    %19 = vector.load %arg3[%c0_21, %c0_22, %c0_23, %c0_24] : memref<1x5x5x16xbf16, #tpu.memory_space<vmem>>, vector<1x1x4x16xbf16>
    %20 = vector.shape_cast %19 : vector<1x1x4x16xbf16> to vector<4x16xbf16>
    %c3 = arith.constant 3 : index
    %c0_25 = arith.constant 0 : index
    %c0_26 = arith.constant 0 : index
    %21 = vector.load %arg5[%c3, %c0_25, %c0_26] : memref<9x16x32xbf16, #tpu.memory_space<vmem>>, vector<1x16x32xbf16>
    %22 = vector.shape_cast %21 : vector<1x16x32xbf16> to vector<16x32xbf16>
    %cst_27 = arith.constant dense<0.000000e+00> : vector<4x32xf32>
    %23 = tpu.matmul %20, %22, %cst_27 {dimension_numbers = #tpu.dot_dimension_numbers<[1], [0], [0], [1], [0, 0, 1, 1], [], []>} : vector<4x16xbf16>, vector<16x32xbf16>, vector<4x32xf32> -> vector<4x32xf32>
    %24 = arith.addf %18, %23 : vector<4x32xf32>
    %c0_28 = arith.constant 0 : index
    %c0_29 = arith.constant 0 : index
    %c0_30 = arith.constant 0 : index
    %c0_31 = arith.constant 0 : index
    %25 = vector.load %arg4[%c0_28, %c0_29, %c0_30, %c0_31] : memref<1x5x5x16xbf16, #tpu.memory_space<vmem>>, vector<1x1x4x16xbf16>
    %26 = vector.shape_cast %25 : vector<1x1x4x16xbf16> to vector<4x16xbf16>
    %c4 = arith.constant 4 : index
    %c0_32 = arith.constant 0 : index
    %c0_33 = arith.constant 0 : index
    %27 = vector.load %arg5[%c4, %c0_32, %c0_33] : memref<9x16x32xbf16, #tpu.memory_space<vmem>>, vector<1x16x32xbf16>
    %28 = vector.shape_cast %27 : vector<1x16x32xbf16> to vector<16x32xbf16>
    %cst_34 = arith.constant dense<0.000000e+00> : vector<4x32xf32>
    %29 = tpu.matmul %26, %28, %cst_34 {dimension_numbers = #tpu.dot_dimension_numbers<[1], [0], [0], [1], [0, 0, 1, 1], [], []>} : vector<4x16xbf16>, vector<16x32xbf16>, vector<4x32xf32> -> vector<4x32xf32>
    %30 = arith.addf %24, %29 : vector<4x32xf32>
    %c0_35 = arith.constant 0 : index
    %c0_36 = arith.constant 0 : index
    %c1_37 = arith.constant 1 : index
    %c0_38 = arith.constant 0 : index
    %31 = vector.load %arg3[%c0_35, %c0_36, %c1_37, %c0_38] : memref<1x5x5x16xbf16, #tpu.memory_space<vmem>>, vector<1x1x4x16xbf16>
    %32 = vector.shape_cast %31 : vector<1x1x4x16xbf16> to vector<4x16xbf16>
    %c5 = arith.constant 5 : index
    %c0_39 = arith.constant 0 : index
    %c0_40 = arith.constant 0 : index
    %33 = vector.load %arg5[%c5, %c0_39, %c0_40] : memref<9x16x32xbf16, #tpu.memory_space<vmem>>, vector<1x16x32xbf16>
    %34 = vector.shape_cast %33 : vector<1x16x32xbf16> to vector<16x32xbf16>
    %cst_41 = arith.constant dense<0.000000e+00> : vector<4x32xf32>
    %35 = tpu.matmul %32, %34, %cst_41 {dimension_numbers = #tpu.dot_dimension_numbers<[1], [0], [0], [1], [0, 0, 1, 1], [], []>} : vector<4x16xbf16>, vector<16x32xbf16>, vector<4x32xf32> -> vector<4x32xf32>
    %36 = arith.addf %30, %35 : vector<4x32xf32>
    %c0_42 = arith.constant 0 : index
    %c1_43 = arith.constant 1 : index
    %c0_44 = arith.constant 0 : index
    %c0_45 = arith.constant 0 : index
    %37 = vector.load %arg1[%c0_42, %c1_43, %c0_44, %c0_45] : memref<1x5x5x16xbf16, #tpu.memory_space<vmem>>, vector<1x1x4x16xbf16>
    %38 = vector.shape_cast %37 : vector<1x1x4x16xbf16> to vector<4x16xbf16>
    %c6 = arith.constant 6 : index
    %c0_46 = arith.constant 0 : index
    %c0_47 = arith.constant 0 : index
    %39 = vector.load %arg5[%c6, %c0_46, %c0_47] : memref<9x16x32xbf16, #tpu.memory_space<vmem>>, vector<1x16x32xbf16>
    %40 = vector.shape_cast %39 : vector<1x16x32xbf16> to vector<16x32xbf16>
    %cst_48 = arith.constant dense<0.000000e+00> : vector<4x32xf32>
    %41 = tpu.matmul %38, %40, %cst_48 {dimension_numbers = #tpu.dot_dimension_numbers<[1], [0], [0], [1], [0, 0, 1, 1], [], []>} : vector<4x16xbf16>, vector<16x32xbf16>, vector<4x32xf32> -> vector<4x32xf32>
    %42 = arith.addf %36, %41 : vector<4x32xf32>
    %c0_49 = arith.constant 0 : index
    %c1_50 = arith.constant 1 : index
    %c0_51 = arith.constant 0 : index
    %c0_52 = arith.constant 0 : index
    %43 = vector.load %arg2[%c0_49, %c1_50, %c0_51, %c0_52] : memref<1x5x5x16xbf16, #tpu.memory_space<vmem>>, vector<1x1x4x16xbf16>
    %44 = vector.shape_cast %43 : vector<1x1x4x16xbf16> to vector<4x16xbf16>
    %c7 = arith.constant 7 : index
    %c0_53 = arith.constant 0 : index
    %c0_54 = arith.constant 0 : index
    %45 = vector.load %arg5[%c7, %c0_53, %c0_54] : memref<9x16x32xbf16, #tpu.memory_space<vmem>>, vector<1x16x32xbf16>
    %46 = vector.shape_cast %45 : vector<1x16x32xbf16> to vector<16x32xbf16>
    %cst_55 = arith.constant dense<0.000000e+00> : vector<4x32xf32>
    %47 = tpu.matmul %44, %46, %cst_55 {dimension_numbers = #tpu.dot_dimension_numbers<[1], [0], [0], [1], [0, 0, 1, 1], [], []>} : vector<4x16xbf16>, vector<16x32xbf16>, vector<4x32xf32> -> vector<4x32xf32>
    %48 = arith.addf %42, %47 : vector<4x32xf32>
    %c0_56 = arith.constant 0 : index
    %c1_57 = arith.constant 1 : index
    %c1_58 = arith.constant 1 : index
    %c0_59 = arith.constant 0 : index
    %49 = vector.load %arg1[%c0_56, %c1_57, %c1_58, %c0_59] : memref<1x5x5x16xbf16, #tpu.memory_space<vmem>>, vector<1x1x4x16xbf16>
    %50 = vector.shape_cast %49 : vector<1x1x4x16xbf16> to vector<4x16xbf16>
    %c8 = arith.constant 8 : index
    %c0_60 = arith.constant 0 : index
    %c0_61 = arith.constant 0 : index
    %51 = vector.load %arg5[%c8, %c0_60, %c0_61] : memref<9x16x32xbf16, #tpu.memory_space<vmem>>, vector<1x16x32xbf16>
    %52 = vector.shape_cast %51 : vector<1x16x32xbf16> to vector<16x32xbf16>
    %cst_62 = arith.constant dense<0.000000e+00> : vector<4x32xf32>
    %53 = tpu.matmul %50, %52, %cst_62 {dimension_numbers = #tpu.dot_dimension_numbers<[1], [0], [0], [1], [0, 0, 1, 1], [], []>} : vector<4x16xbf16>, vector<16x32xbf16>, vector<4x32xf32> -> vector<4x32xf32>
    %54 = arith.addf %48, %53 : vector<4x32xf32>
    %cst_63 = arith.constant 0.000000e+00 : f32
    %55 = vector.broadcast %cst_63 : f32 to vector<4x32xf32>
    %56 = arith.maximumf %54, %55 : vector<4x32xf32>
    %57 = arith.truncf %56 : vector<4x32xf32> to vector<4x32xbf16>
    %c0_64 = arith.constant 0 : index
    %c0_65 = arith.constant 0 : index
    %c0_66 = arith.constant 0 : index
    %c0_67 = arith.constant 0 : index
    %58 = vector.load %arg6[%c0_64, %c0_65, %c0_66, %c0_67] : memref<1x4x4x32xbf16, #tpu.memory_space<vmem>>, vector<1x1x4x32xbf16>
    %59 = vector.shape_cast %58 : vector<1x1x4x32xbf16> to vector<4x32xbf16>
    %60 = vector.shape_cast %57 : vector<4x32xbf16> to vector<1x1x4x32xbf16>
    tpu.vector_store %arg6[%c0_64, %c0_65, %c0_66, %c0_67], %60 {strides = array<i32>} : memref<1x4x4x32xbf16, #tpu.memory_space<vmem>>, vector<1x1x4x32xbf16>,
    %cst_68 = arith.constant 0.000000e+00 : f32
    %61 = vector.broadcast %cst_68 : f32 to vector<4x32xf32>
    %c0_69 = arith.constant 0 : index
    %c1_70 = arith.constant 1 : index
    %c0_71 = arith.constant 0 : index
    %c0_72 = arith.constant 0 : index
    %62 = vector.load %arg1[%c0_69, %c1_70, %c0_71, %c0_72] : memref<1x5x5x16xbf16, #tpu.memory_space<vmem>>, vector<1x1x4x16xbf16>
    %63 = vector.shape_cast %62 : vector<1x1x4x16xbf16> to vector<4x16xbf16>
    %c0_73 = arith.constant 0 : index
    %c0_74 = arith.constant 0 : index
    %c0_75 = arith.constant 0 : index
    %64 = vector.load %arg5[%c0_73, %c0_74, %c0_75] : memref<9x16x32xbf16, #tpu.memory_space<vmem>>, vector<1x16x32xbf16>
    %65 = vector.shape_cast %64 : vector<1x16x32xbf16> to vector<16x32xbf16>
    %cst_76 = arith.constant dense<0.000000e+00> : vector<4x32xf32>
    %66 = tpu.matmul %63, %65, %cst_76 {dimension_numbers = #tpu.dot_dimension_numbers<[1], [0], [0], [1], [0, 0, 1, 1], [], []>} : vector<4x16xbf16>, vector<16x32xbf16>, vector<4x32xf32> -> vector<4x32xf32>
    %67 = arith.addf %61, %66 : vector<4x32xf32>
    %c0_77 = arith.constant 0 : index
    %c1_78 = arith.constant 1 : index
    %c0_79 = arith.constant 0 : index
    %c0_80 = arith.constant 0 : index
    %68 = vector.load %arg2[%c0_77, %c1_78, %c0_79, %c0_80] : memref<1x5x5x16xbf16, #tpu.memory_space<vmem>>, vector<1x1x4x16xbf16>
    %69 = vector.shape_cast %68 : vector<1x1x4x16xbf16> to vector<4x16xbf16>
    %c1_81 = arith.constant 1 : index
    %c0_82 = arith.constant 0 : index
    %c0_83 = arith.constant 0 : index
    %70 = vector.load %arg5[%c1_81, %c0_82, %c0_83] : memref<9x16x32xbf16, #tpu.memory_space<vmem>>, vector<1x16x32xbf16>
    %71 = vector.shape_cast %70 : vector<1x16x32xbf16> to vector<16x32xbf16>
    %cst_84 = arith.constant dense<0.000000e+00> : vector<4x32xf32>
    %72 = tpu.matmul %69, %71, %cst_84 {dimension_numbers = #tpu.dot_dimension_numbers<[1], [0], [0], [1], [0, 0, 1, 1], [], []>} : vector<4x16xbf16>, vector<16x32xbf16>, vector<4x32xf32> -> vector<4x32xf32>
    %73 = arith.addf %67, %72 : vector<4x32xf32>
    %c0_85 = arith.constant 0 : index
    %c1_86 = arith.constant 1 : index
    %c1_87 = arith.constant 1 : index
    %c0_88 = arith.constant 0 : index
    %74 = vector.load %arg1[%c0_85, %c1_86, %c1_87, %c0_88] : memref<1x5x5x16xbf16, #tpu.memory_space<vmem>>, vector<1x1x4x16xbf16>
    %75 = vector.shape_cast %74 : vector<1x1x4x16xbf16> to vector<4x16xbf16>
    %c2_89 = arith.constant 2 : index
    %c0_90 = arith.constant 0 : index
    %c0_91 = arith.constant 0 : index
    %76 = vector.load %arg5[%c2_89, %c0_90, %c0_91] : memref<9x16x32xbf16, #tpu.memory_space<vmem>>, vector<1x16x32xbf16>
    %77 = vector.shape_cast %76 : vector<1x16x32xbf16> to vector<16x32xbf16>
    %cst_92 = arith.constant dense<0.000000e+00> : vector<4x32xf32>
    %78 = tpu.matmul %75, %77, %cst_92 {dimension_numbers = #tpu.dot_dimension_numbers<[1], [0], [0], [1], [0, 0, 1, 1], [], []>} : vector<4x16xbf16>, vector<16x32xbf16>, vector<4x32xf32> -> vector<4x32xf32>
    %79 = arith.addf %73, %78 : vector<4x32xf32>
    %c0_93 = arith.constant 0 : index
    %c1_94 = arith.constant 1 : index
    %c0_95 = arith.constant 0 : index
    %c0_96 = arith.constant 0 : index
    %80 = vector.load %arg3[%c0_93, %c1_94, %c0_95, %c0_96] : memref<1x5x5x16xbf16, #tpu.memory_space<vmem>>, vector<1x1x4x16xbf16>
    %81 = vector.shape_cast %80 : vector<1x1x4x16xbf16> to vector<4x16xbf16>
    %c3_97 = arith.constant 3 : index
    %c0_98 = arith.constant 0 : index
    %c0_99 = arith.constant 0 : index
    %82 = vector.load %arg5[%c3_97, %c0_98, %c0_99] : memref<9x16x32xbf16, #tpu.memory_space<vmem>>, vector<1x16x32xbf16>
    %83 = vector.shape_cast %82 : vector<1x16x32xbf16> to vector<16x32xbf16>
    %cst_100 = arith.constant dense<0.000000e+00> : vector<4x32xf32>
    %84 = tpu.matmul %81, %83, %cst_100 {dimension_numbers = #tpu.dot_dimension_numbers<[1], [0], [0], [1], [0, 0, 1, 1], [], []>} : vector<4x16xbf16>, vector<16x32xbf16>, vector<4x32xf32> -> vector<4x32xf32>
    %85 = arith.addf %79, %84 : vector<4x32xf32>
    %c0_101 = arith.constant 0 : index
    %c1_102 = arith.constant 1 : index
    %c0_103 = arith.constant 0 : index
    %c0_104 = arith.constant 0 : index
    %86 = vector.load %arg4[%c0_101, %c1_102, %c0_103, %c0_104] : memref<1x5x5x16xbf16, #tpu.memory_space<vmem>>, vector<1x1x4x16xbf16>
    %87 = vector.shape_cast %86 : vector<1x1x4x16xbf16> to vector<4x16xbf16>
    %c4_105 = arith.constant 4 : index
    %c0_106 = arith.constant 0 : index
    %c0_107 = arith.constant 0 : index
    %88 = vector.load %arg5[%c4_105, %c0_106, %c0_107] : memref<9x16x32xbf16, #tpu.memory_space<vmem>>, vector<1x16x32xbf16>
    %89 = vector.shape_cast %88 : vector<1x16x32xbf16> to vector<16x32xbf16>
    %cst_108 = arith.constant dense<0.000000e+00> : vector<4x32xf32>
    %90 = tpu.matmul %87, %89, %cst_108 {dimension_numbers = #tpu.dot_dimension_numbers<[1], [0], [0], [1], [0, 0, 1, 1], [], []>} : vector<4x16xbf16>, vector<16x32xbf16>, vector<4x32xf32> -> vector<4x32xf32>
    %91 = arith.addf %85, %90 : vector<4x32xf32>
    %c0_109 = arith.constant 0 : index
    %c1_110 = arith.constant 1 : index
    %c1_111 = arith.constant 1 : index
    %c0_112 = arith.constant 0 : index
    %92 = vector.load %arg3[%c0_109, %c1_110, %c1_111, %c0_112] : memref<1x5x5x16xbf16, #tpu.memory_space<vmem>>, vector<1x1x4x16xbf16>
    %93 = vector.shape_cast %92 : vector<1x1x4x16xbf16> to vector<4x16xbf16>
    %c5_113 = arith.constant 5 : index
    %c0_114 = arith.constant 0 : index
    %c0_115 = arith.constant 0 : index
    %94 = vector.load %arg5[%c5_113, %c0_114, %c0_115] : memref<9x16x32xbf16, #tpu.memory_space<vmem>>, vector<1x16x32xbf16>
    %95 = vector.shape_cast %94 : vector<1x16x32xbf16> to vector<16x32xbf16>
    %cst_116 = arith.constant dense<0.000000e+00> : vector<4x32xf32>
    %96 = tpu.matmul %93, %95, %cst_116 {dimension_numbers = #tpu.dot_dimension_numbers<[1], [0], [0], [1], [0, 0, 1, 1], [], []>} : vector<4x16xbf16>, vector<16x32xbf16>, vector<4x32xf32> -> vector<4x32xf32>
    %97 = arith.addf %91, %96 : vector<4x32xf32>
    %c0_117 = arith.constant 0 : index
    %c2_118 = arith.constant 2 : index
    %c0_119 = arith.constant 0 : index
    %c0_120 = arith.constant 0 : index
    %98 = vector.load %arg1[%c0_117, %c2_118, %c0_119, %c0_120] : memref<1x5x5x16xbf16, #tpu.memory_space<vmem>>, vector<1x1x4x16xbf16>
    %99 = vector.shape_cast %98 : vector<1x1x4x16xbf16> to vector<4x16xbf16>
    %c6_121 = arith.constant 6 : index
    %c0_122 = arith.constant 0 : index
    %c0_123 = arith.constant 0 : index
    %100 = vector.load %arg5[%c6_121, %c0_122, %c0_123] : memref<9x16x32xbf16, #tpu.memory_space<vmem>>, vector<1x16x32xbf16>
    %101 = vector.shape_cast %100 : vector<1x16x32xbf16> to vector<16x32xbf16>
    %cst_124 = arith.constant dense<0.000000e+00> : vector<4x32xf32>
    %102 = tpu.matmul %99, %101, %cst_124 {dimension_numbers = #tpu.dot_dimension_numbers<[1], [0], [0], [1], [0, 0, 1, 1], [], []>} : vector<4x16xbf16>, vector<16x32xbf16>, vector<4x32xf32> -> vector<4x32xf32>
    %103 = arith.addf %97, %102 : vector<4x32xf32>
    %c0_125 = arith.constant 0 : index
    %c2_126 = arith.constant 2 : index
    %c0_127 = arith.constant 0 : index
    %c0_128 = arith.constant 0 : index
    %104 = vector.load %arg2[%c0_125, %c2_126, %c0_127, %c0_128] : memref<1x5x5x16xbf16, #tpu.memory_space<vmem>>, vector<1x1x4x16xbf16>
    %105 = vector.shape_cast %104 : vector<1x1x4x16xbf16> to vector<4x16xbf16>
    %c7_129 = arith.constant 7 : index
    %c0_130 = arith.constant 0 : index
    %c0_131 = arith.constant 0 : index
    %106 = vector.load %arg5[%c7_129, %c0_130, %c0_131] : memref<9x16x32xbf16, #tpu.memory_space<vmem>>, vector<1x16x32xbf16>
    %107 = vector.shape_cast %106 : vector<1x16x32xbf16> to vector<16x32xbf16>
    %cst_132 = arith.constant dense<0.000000e+00> : vector<4x32xf32>
    %108 = tpu.matmul %105, %107, %cst_132 {dimension_numbers = #tpu.dot_dimension_numbers<[1], [0], [0], [1], [0, 0, 1, 1], [], []>} : vector<4x16xbf16>, vector<16x32xbf16>, vector<4x32xf32> -> vector<4x32xf32>
    %109 = arith.addf %103, %108 : vector<4x32xf32>
    %c0_133 = arith.constant 0 : index
    %c2_134 = arith.constant 2 : index
    %c1_135 = arith.constant 1 : index
    %c0_136 = arith.constant 0 : index
    %110 = vector.load %arg1[%c0_133, %c2_134, %c1_135, %c0_136] : memref<1x5x5x16xbf16, #tpu.memory_space<vmem>>, vector<1x1x4x16xbf16>
    %111 = vector.shape_cast %110 : vector<1x1x4x16xbf16> to vector<4x16xbf16>
    %c8_137 = arith.constant 8 : index
    %c0_138 = arith.constant 0 : index
    %c0_139 = arith.constant 0 : index
    %112 = vector.load %arg5[%c8_137, %c0_138, %c0_139] : memref<9x16x32xbf16, #tpu.memory_space<vmem>>, vector<1x16x32xbf16>
    %113 = vector.shape_cast %112 : vector<1x16x32xbf16> to vector<16x32xbf16>
    %cst_140 = arith.constant dense<0.000000e+00> : vector<4x32xf32>
    %114 = tpu.matmul %111, %113, %cst_140 {dimension_numbers = #tpu.dot_dimension_numbers<[1], [0], [0], [1], [0, 0, 1, 1], [], []>} : vector<4x16xbf16>, vector<16x32xbf16>, vector<4x32xf32> -> vector<4x32xf32>
    %115 = arith.addf %109, %114 : vector<4x32xf32>
    %cst_141 = arith.constant 0.000000e+00 : f32
    %116 = vector.broadcast %cst_141 : f32 to vector<4x32xf32>
    %117 = arith.maximumf %115, %116 : vector<4x32xf32>
    %118 = arith.truncf %117 : vector<4x32xf32> to vector<4x32xbf16>
    %c0_142 = arith.constant 0 : index
    %c1_143 = arith.constant 1 : index
    %c0_144 = arith.constant 0 : index
    %c0_145 = arith.constant 0 : index
    %119 = vector.load %arg6[%c0_142, %c1_143, %c0_144, %c0_145] : memref<1x4x4x32xbf16, #tpu.memory_space<vmem>>, vector<1x1x4x32xbf16>
    %120 = vector.shape_cast %119 : vector<1x1x4x32xbf16> to vector<4x32xbf16>
    %121 = vector.shape_cast %118 : vector<4x32xbf16> to vector<1x1x4x32xbf16>
    tpu.vector_store %arg6[%c0_142, %c1_143, %c0_144, %c0_145], %121 {strides = array<i32>} : memref<1x4x4x32xbf16, #tpu.memory_space<vmem>>, vector<1x1x4x32xbf16>,
    %cst_146 = arith.constant 0.000000e+00 : f32
    %122 = vector.broadcast %cst_146 : f32 to vector<4x32xf32>
    %c0_147 = arith.constant 0 : index
    %c2_148 = arith.constant 2 : index
    %c0_149 = arith.constant 0 : index
    %c0_150 = arith.constant 0 : index
    %123 = vector.load %arg1[%c0_147, %c2_148, %c0_149, %c0_150] : memref<1x5x5x16xbf16, #tpu.memory_space<vmem>>, vector<1x1x4x16xbf16>
    %124 = vector.shape_cast %123 : vector<1x1x4x16xbf16> to vector<4x16xbf16>
    %c0_151 = arith.constant 0 : index
    %c0_152 = arith.constant 0 : index
    %c0_153 = arith.constant 0 : index
    %125 = vector.load %arg5[%c0_151, %c0_152, %c0_153] : memref<9x16x32xbf16, #tpu.memory_space<vmem>>, vector<1x16x32xbf16>
    %126 = vector.shape_cast %125 : vector<1x16x32xbf16> to vector<16x32xbf16>
    %cst_154 = arith.constant dense<0.000000e+00> : vector<4x32xf32>
    %127 = tpu.matmul %124, %126, %cst_154 {dimension_numbers = #tpu.dot_dimension_numbers<[1], [0], [0], [1], [0, 0, 1, 1], [], []>} : vector<4x16xbf16>, vector<16x32xbf16>, vector<4x32xf32> -> vector<4x32xf32>
    %128 = arith.addf %122, %127 : vector<4x32xf32>
    %c0_155 = arith.constant 0 : index
    %c2_156 = arith.constant 2 : index
    %c0_157 = arith.constant 0 : index
    %c0_158 = arith.constant 0 : index
    %129 = vector.load %arg2[%c0_155, %c2_156, %c0_157, %c0_158] : memref<1x5x5x16xbf16, #tpu.memory_space<vmem>>, vector<1x1x4x16xbf16>
    %130 = vector.shape_cast %129 : vector<1x1x4x16xbf16> to vector<4x16xbf16>
    %c1_159 = arith.constant 1 : index
    %c0_160 = arith.constant 0 : index
    %c0_161 = arith.constant 0 : index
    %131 = vector.load %arg5[%c1_159, %c0_160, %c0_161] : memref<9x16x32xbf16, #tpu.memory_space<vmem>>, vector<1x16x32xbf16>
    %132 = vector.shape_cast %131 : vector<1x16x32xbf16> to vector<16x32xbf16>
    %cst_162 = arith.constant dense<0.000000e+00> : vector<4x32xf32>
    %133 = tpu.matmul %130, %132, %cst_162 {dimension_numbers = #tpu.dot_dimension_numbers<[1], [0], [0], [1], [0, 0, 1, 1], [], []>} : vector<4x16xbf16>, vector<16x32xbf16>, vector<4x32xf32> -> vector<4x32xf32>
    %134 = arith.addf %128, %133 : vector<4x32xf32>
    %c0_163 = arith.constant 0 : index
    %c2_164 = arith.constant 2 : index
    %c1_165 = arith.constant 1 : index
    %c0_166 = arith.constant 0 : index
    %135 = vector.load %arg1[%c0_163, %c2_164, %c1_165, %c0_166] : memref<1x5x5x16xbf16, #tpu.memory_space<vmem>>, vector<1x1x4x16xbf16>
    %136 = vector.shape_cast %135 : vector<1x1x4x16xbf16> to vector<4x16xbf16>
    %c2_167 = arith.constant 2 : index
    %c0_168 = arith.constant 0 : index
    %c0_169 = arith.constant 0 : index
    %137 = vector.load %arg5[%c2_167, %c0_168, %c0_169] : memref<9x16x32xbf16, #tpu.memory_space<vmem>>, vector<1x16x32xbf16>
    %138 = vector.shape_cast %137 : vector<1x16x32xbf16> to vector<16x32xbf16>
    %cst_170 = arith.constant dense<0.000000e+00> : vector<4x32xf32>
    %139 = tpu.matmul %136, %138, %cst_170 {dimension_numbers = #tpu.dot_dimension_numbers<[1], [0], [0], [1], [0, 0, 1, 1], [], []>} : vector<4x16xbf16>, vector<16x32xbf16>, vector<4x32xf32> -> vector<4x32xf32>
    %140 = arith.addf %134, %139 : vector<4x32xf32>
    %c0_171 = arith.constant 0 : index
    %c2_172 = arith.constant 2 : index
    %c0_173 = arith.constant 0 : index
    %c0_174 = arith.constant 0 : index
    %141 = vector.load %arg3[%c0_171, %c2_172, %c0_173, %c0_174] : memref<1x5x5x16xbf16, #tpu.memory_space<vmem>>, vector<1x1x4x16xbf16>
    %142 = vector.shape_cast %141 : vector<1x1x4x16xbf16> to vector<4x16xbf16>
    %c3_175 = arith.constant 3 : index
    %c0_176 = arith.constant 0 : index
    %c0_177 = arith.constant 0 : index
    %143 = vector.load %arg5[%c3_175, %c0_176, %c0_177] : memref<9x16x32xbf16, #tpu.memory_space<vmem>>, vector<1x16x32xbf16>
    %144 = vector.shape_cast %143 : vector<1x16x32xbf16> to vector<16x32xbf16>
    %cst_178 = arith.constant dense<0.000000e+00> : vector<4x32xf32>
    %145 = tpu.matmul %142, %144, %cst_178 {dimension_numbers = #tpu.dot_dimension_numbers<[1], [0], [0], [1], [0, 0, 1, 1], [], []>} : vector<4x16xbf16>, vector<16x32xbf16>, vector<4x32xf32> -> vector<4x32xf32>
    %146 = arith.addf %140, %145 : vector<4x32xf32>
    %c0_179 = arith.constant 0 : index
    %c2_180 = arith.constant 2 : index
    %c0_181 = arith.constant 0 : index
    %c0_182 = arith.constant 0 : index
    %147 = vector.load %arg4[%c0_179, %c2_180, %c0_181, %c0_182] : memref<1x5x5x16xbf16, #tpu.memory_space<vmem>>, vector<1x1x4x16xbf16>
    %148 = vector.shape_cast %147 : vector<1x1x4x16xbf16> to vector<4x16xbf16>
    %c4_183 = arith.constant 4 : index
    %c0_184 = arith.constant 0 : index
    %c0_185 = arith.constant 0 : index
    %149 = vector.load %arg5[%c4_183, %c0_184, %c0_185] : memref<9x16x32xbf16, #tpu.memory_space<vmem>>, vector<1x16x32xbf16>
    %150 = vector.shape_cast %149 : vector<1x16x32xbf16> to vector<16x32xbf16>
    %cst_186 = arith.constant dense<0.000000e+00> : vector<4x32xf32>
    %151 = tpu.matmul %148, %150, %cst_186 {dimension_numbers = #tpu.dot_dimension_numbers<[1], [0], [0], [1], [0, 0, 1, 1], [], []>} : vector<4x16xbf16>, vector<16x32xbf16>, vector<4x32xf32> -> vector<4x32xf32>
    %152 = arith.addf %146, %151 : vector<4x32xf32>
    %c0_187 = arith.constant 0 : index
    %c2_188 = arith.constant 2 : index
    %c1_189 = arith.constant 1 : index
    %c0_190 = arith.constant 0 : index
    %153 = vector.load %arg3[%c0_187, %c2_188, %c1_189, %c0_190] : memref<1x5x5x16xbf16, #tpu.memory_space<vmem>>, vector<1x1x4x16xbf16>
    %154 = vector.shape_cast %153 : vector<1x1x4x16xbf16> to vector<4x16xbf16>
    %c5_191 = arith.constant 5 : index
    %c0_192 = arith.constant 0 : index
    %c0_193 = arith.constant 0 : index
    %155 = vector.load %arg5[%c5_191, %c0_192, %c0_193] : memref<9x16x32xbf16, #tpu.memory_space<vmem>>, vector<1x16x32xbf16>
    %156 = vector.shape_cast %155 : vector<1x16x32xbf16> to vector<16x32xbf16>
    %cst_194 = arith.constant dense<0.000000e+00> : vector<4x32xf32>
    %157 = tpu.matmul %154, %156, %cst_194 {dimension_numbers = #tpu.dot_dimension_numbers<[1], [0], [0], [1], [0, 0, 1, 1], [], []>} : vector<4x16xbf16>, vector<16x32xbf16>, vector<4x32xf32> -> vector<4x32xf32>
    %158 = arith.addf %152, %157 : vector<4x32xf32>
    %c0_195 = arith.constant 0 : index
    %c3_196 = arith.constant 3 : index
    %c0_197 = arith.constant 0 : index
    %c0_198 = arith.constant 0 : index
    %159 = vector.load %arg1[%c0_195, %c3_196, %c0_197, %c0_198] : memref<1x5x5x16xbf16, #tpu.memory_space<vmem>>, vector<1x1x4x16xbf16>
    %160 = vector.shape_cast %159 : vector<1x1x4x16xbf16> to vector<4x16xbf16>
    %c6_199 = arith.constant 6 : index
    %c0_200 = arith.constant 0 : index
    %c0_201 = arith.constant 0 : index
    %161 = vector.load %arg5[%c6_199, %c0_200, %c0_201] : memref<9x16x32xbf16, #tpu.memory_space<vmem>>, vector<1x16x32xbf16>
    %162 = vector.shape_cast %161 : vector<1x16x32xbf16> to vector<16x32xbf16>
    %cst_202 = arith.constant dense<0.000000e+00> : vector<4x32xf32>
    %163 = tpu.matmul %160, %162, %cst_202 {dimension_numbers = #tpu.dot_dimension_numbers<[1], [0], [0], [1], [0, 0, 1, 1], [], []>} : vector<4x16xbf16>, vector<16x32xbf16>, vector<4x32xf32> -> vector<4x32xf32>
    %164 = arith.addf %158, %163 : vector<4x32xf32>
    %c0_203 = arith.constant 0 : index
    %c3_204 = arith.constant 3 : index
    %c0_205 = arith.constant 0 : index
    %c0_206 = arith.constant 0 : index
    %165 = vector.load %arg2[%c0_203, %c3_204, %c0_205, %c0_206] : memref<1x5x5x16xbf16, #tpu.memory_space<vmem>>, vector<1x1x4x16xbf16>
    %166 = vector.shape_cast %165 : vector<1x1x4x16xbf16> to vector<4x16xbf16>
    %c7_207 = arith.constant 7 : index
    %c0_208 = arith.constant 0 : index
    %c0_209 = arith.constant 0 : index
    %167 = vector.load %arg5[%c7_207, %c0_208, %c0_209] : memref<9x16x32xbf16, #tpu.memory_space<vmem>>, vector<1x16x32xbf16>
    %168 = vector.shape_cast %167 : vector<1x16x32xbf16> to vector<16x32xbf16>
    %cst_210 = arith.constant dense<0.000000e+00> : vector<4x32xf32>
    %169 = tpu.matmul %166, %168, %cst_210 {dimension_numbers = #tpu.dot_dimension_numbers<[1], [0], [0], [1], [0, 0, 1, 1], [], []>} : vector<4x16xbf16>, vector<16x32xbf16>, vector<4x32xf32> -> vector<4x32xf32>
    %170 = arith.addf %164, %169 : vector<4x32xf32>
    %c0_211 = arith.constant 0 : index
    %c3_212 = arith.constant 3 : index
    %c1_213 = arith.constant 1 : index
    %c0_214 = arith.constant 0 : index
    %171 = vector.load %arg1[%c0_211, %c3_212, %c1_213, %c0_214] : memref<1x5x5x16xbf16, #tpu.memory_space<vmem>>, vector<1x1x4x16xbf16>
    %172 = vector.shape_cast %171 : vector<1x1x4x16xbf16> to vector<4x16xbf16>
    %c8_215 = arith.constant 8 : index
    %c0_216 = arith.constant 0 : index
    %c0_217 = arith.constant 0 : index
    %173 = vector.load %arg5[%c8_215, %c0_216, %c0_217] : memref<9x16x32xbf16, #tpu.memory_space<vmem>>, vector<1x16x32xbf16>
    %174 = vector.shape_cast %173 : vector<1x16x32xbf16> to vector<16x32xbf16>
    %cst_218 = arith.constant dense<0.000000e+00> : vector<4x32xf32>
    %175 = tpu.matmul %172, %174, %cst_218 {dimension_numbers = #tpu.dot_dimension_numbers<[1], [0], [0], [1], [0, 0, 1, 1], [], []>} : vector<4x16xbf16>, vector<16x32xbf16>, vector<4x32xf32> -> vector<4x32xf32>
    %176 = arith.addf %170, %175 : vector<4x32xf32>
    %cst_219 = arith.constant 0.000000e+00 : f32
    %177 = vector.broadcast %cst_219 : f32 to vector<4x32xf32>
    %178 = arith.maximumf %176, %177 : vector<4x32xf32>
    %179 = arith.truncf %178 : vector<4x32xf32> to vector<4x32xbf16>
    %c0_220 = arith.constant 0 : index
    %c2_221 = arith.constant 2 : index
    %c0_222 = arith.constant 0 : index
    %c0_223 = arith.constant 0 : index
    %180 = vector.load %arg6[%c0_220, %c2_221, %c0_222, %c0_223] : memref<1x4x4x32xbf16, #tpu.memory_space<vmem>>, vector<1x1x4x32xbf16>
    %181 = vector.shape_cast %180 : vector<1x1x4x32xbf16> to vector<4x32xbf16>
    %182 = vector.shape_cast %179 : vector<4x32xbf16> to vector<1x1x4x32xbf16>
    tpu.vector_store %arg6[%c0_220, %c2_221, %c0_222, %c0_223], %182 {strides = array<i32>} : memref<1x4x4x32xbf16, #tpu.memory_space<vmem>>, vector<1x1x4x32xbf16>,
    %cst_224 = arith.constant 0.000000e+00 : f32
    %183 = vector.broadcast %cst_224 : f32 to vector<4x32xf32>
    %c0_225 = arith.constant 0 : index
    %c3_226 = arith.constant 3 : index
    %c0_227 = arith.constant 0 : index
    %c0_228 = arith.constant 0 : index
    %184 = vector.load %arg1[%c0_225, %c3_226, %c0_227, %c0_228] : memref<1x5x5x16xbf16, #tpu.memory_space<vmem>>, vector<1x1x4x16xbf16>
    %185 = vector.shape_cast %184 : vector<1x1x4x16xbf16> to vector<4x16xbf16>
    %c0_229 = arith.constant 0 : index
    %c0_230 = arith.constant 0 : index
    %c0_231 = arith.constant 0 : index
    %186 = vector.load %arg5[%c0_229, %c0_230, %c0_231] : memref<9x16x32xbf16, #tpu.memory_space<vmem>>, vector<1x16x32xbf16>
    %187 = vector.shape_cast %186 : vector<1x16x32xbf16> to vector<16x32xbf16>
    %cst_232 = arith.constant dense<0.000000e+00> : vector<4x32xf32>
    %188 = tpu.matmul %185, %187, %cst_232 {dimension_numbers = #tpu.dot_dimension_numbers<[1], [0], [0], [1], [0, 0, 1, 1], [], []>} : vector<4x16xbf16>, vector<16x32xbf16>, vector<4x32xf32> -> vector<4x32xf32>
    %189 = arith.addf %183, %188 : vector<4x32xf32>
    %c0_233 = arith.constant 0 : index
    %c3_234 = arith.constant 3 : index
    %c0_235 = arith.constant 0 : index
    %c0_236 = arith.constant 0 : index
    %190 = vector.load %arg2[%c0_233, %c3_234, %c0_235, %c0_236] : memref<1x5x5x16xbf16, #tpu.memory_space<vmem>>, vector<1x1x4x16xbf16>
    %191 = vector.shape_cast %190 : vector<1x1x4x16xbf16> to vector<4x16xbf16>
    %c1_237 = arith.constant 1 : index
    %c0_238 = arith.constant 0 : index
    %c0_239 = arith.constant 0 : index
    %192 = vector.load %arg5[%c1_237, %c0_238, %c0_239] : memref<9x16x32xbf16, #tpu.memory_space<vmem>>, vector<1x16x32xbf16>
    %193 = vector.shape_cast %192 : vector<1x16x32xbf16> to vector<16x32xbf16>
    %cst_240 = arith.constant dense<0.000000e+00> : vector<4x32xf32>
    %194 = tpu.matmul %191, %193, %cst_240 {dimension_numbers = #tpu.dot_dimension_numbers<[1], [0], [0], [1], [0, 0, 1, 1], [], []>} : vector<4x16xbf16>, vector<16x32xbf16>, vector<4x32xf32> -> vector<4x32xf32>
    %195 = arith.addf %189, %194 : vector<4x32xf32>
    %c0_241 = arith.constant 0 : index
    %c3_242 = arith.constant 3 : index
    %c1_243 = arith.constant 1 : index
    %c0_244 = arith.constant 0 : index
    %196 = vector.load %arg1[%c0_241, %c3_242, %c1_243, %c0_244] : memref<1x5x5x16xbf16, #tpu.memory_space<vmem>>, vector<1x1x4x16xbf16>
    %197 = vector.shape_cast %196 : vector<1x1x4x16xbf16> to vector<4x16xbf16>
    %c2_245 = arith.constant 2 : index
    %c0_246 = arith.constant 0 : index
    %c0_247 = arith.constant 0 : index
    %198 = vector.load %arg5[%c2_245, %c0_246, %c0_247] : memref<9x16x32xbf16, #tpu.memory_space<vmem>>, vector<1x16x32xbf16>
    %199 = vector.shape_cast %198 : vector<1x16x32xbf16> to vector<16x32xbf16>
    %cst_248 = arith.constant dense<0.000000e+00> : vector<4x32xf32>
    %200 = tpu.matmul %197, %199, %cst_248 {dimension_numbers = #tpu.dot_dimension_numbers<[1], [0], [0], [1], [0, 0, 1, 1], [], []>} : vector<4x16xbf16>, vector<16x32xbf16>, vector<4x32xf32> -> vector<4x32xf32>
    %201 = arith.addf %195, %200 : vector<4x32xf32>
    %c0_249 = arith.constant 0 : index
    %c3_250 = arith.constant 3 : index
    %c0_251 = arith.constant 0 : index
    %c0_252 = arith.constant 0 : index
    %202 = vector.load %arg3[%c0_249, %c3_250, %c0_251, %c0_252] : memref<1x5x5x16xbf16, #tpu.memory_space<vmem>>, vector<1x1x4x16xbf16>
    %203 = vector.shape_cast %202 : vector<1x1x4x16xbf16> to vector<4x16xbf16>
    %c3_253 = arith.constant 3 : index
    %c0_254 = arith.constant 0 : index
    %c0_255 = arith.constant 0 : index
    %204 = vector.load %arg5[%c3_253, %c0_254, %c0_255] : memref<9x16x32xbf16, #tpu.memory_space<vmem>>, vector<1x16x32xbf16>
    %205 = vector.shape_cast %204 : vector<1x16x32xbf16> to vector<16x32xbf16>
    %cst_256 = arith.constant dense<0.000000e+00> : vector<4x32xf32>
    %206 = tpu.matmul %203, %205, %cst_256 {dimension_numbers = #tpu.dot_dimension_numbers<[1], [0], [0], [1], [0, 0, 1, 1], [], []>} : vector<4x16xbf16>, vector<16x32xbf16>, vector<4x32xf32> -> vector<4x32xf32>
    %207 = arith.addf %201, %206 : vector<4x32xf32>
    %c0_257 = arith.constant 0 : index
    %c3_258 = arith.constant 3 : index
    %c0_259 = arith.constant 0 : index
    %c0_260 = arith.constant 0 : index
    %208 = vector.load %arg4[%c0_257, %c3_258, %c0_259, %c0_260] : memref<1x5x5x16xbf16, #tpu.memory_space<vmem>>, vector<1x1x4x16xbf16>
    %209 = vector.shape_cast %208 : vector<1x1x4x16xbf16> to vector<4x16xbf16>
    %c4_261 = arith.constant 4 : index
    %c0_262 = arith.constant 0 : index
    %c0_263 = arith.constant 0 : index
    %210 = vector.load %arg5[%c4_261, %c0_262, %c0_263] : memref<9x16x32xbf16, #tpu.memory_space<vmem>>, vector<1x16x32xbf16>
    %211 = vector.shape_cast %210 : vector<1x16x32xbf16> to vector<16x32xbf16>
    %cst_264 = arith.constant dense<0.000000e+00> : vector<4x32xf32>
    %212 = tpu.matmul %209, %211, %cst_264 {dimension_numbers = #tpu.dot_dimension_numbers<[1], [0], [0], [1], [0, 0, 1, 1], [], []>} : vector<4x16xbf16>, vector<16x32xbf16>, vector<4x32xf32> -> vector<4x32xf32>
    %213 = arith.addf %207, %212 : vector<4x32xf32>
    %c0_265 = arith.constant 0 : index
    %c3_266 = arith.constant 3 : index
    %c1_267 = arith.constant 1 : index
    %c0_268 = arith.constant 0 : index
    %214 = vector.load %arg3[%c0_265, %c3_266, %c1_267, %c0_268] : memref<1x5x5x16xbf16, #tpu.memory_space<vmem>>, vector<1x1x4x16xbf16>
    %215 = vector.shape_cast %214 : vector<1x1x4x16xbf16> to vector<4x16xbf16>
    %c5_269 = arith.constant 5 : index
    %c0_270 = arith.constant 0 : index
    %c0_271 = arith.constant 0 : index
    %216 = vector.load %arg5[%c5_269, %c0_270, %c0_271] : memref<9x16x32xbf16, #tpu.memory_space<vmem>>, vector<1x16x32xbf16>
    %217 = vector.shape_cast %216 : vector<1x16x32xbf16> to vector<16x32xbf16>
    %cst_272 = arith.constant dense<0.000000e+00> : vector<4x32xf32>
    %218 = tpu.matmul %215, %217, %cst_272 {dimension_numbers = #tpu.dot_dimension_numbers<[1], [0], [0], [1], [0, 0, 1, 1], [], []>} : vector<4x16xbf16>, vector<16x32xbf16>, vector<4x32xf32> -> vector<4x32xf32>
    %219 = arith.addf %213, %218 : vector<4x32xf32>
    %c0_273 = arith.constant 0 : index
    %c4_274 = arith.constant 4 : index
    %c0_275 = arith.constant 0 : index
    %c0_276 = arith.constant 0 : index
    %220 = vector.load %arg1[%c0_273, %c4_274, %c0_275, %c0_276] : memref<1x5x5x16xbf16, #tpu.memory_space<vmem>>, vector<1x1x4x16xbf16>
    %221 = vector.shape_cast %220 : vector<1x1x4x16xbf16> to vector<4x16xbf16>
    %c6_277 = arith.constant 6 : index
    %c0_278 = arith.constant 0 : index
    %c0_279 = arith.constant 0 : index
    %222 = vector.load %arg5[%c6_277, %c0_278, %c0_279] : memref<9x16x32xbf16, #tpu.memory_space<vmem>>, vector<1x16x32xbf16>
    %223 = vector.shape_cast %222 : vector<1x16x32xbf16> to vector<16x32xbf16>
    %cst_280 = arith.constant dense<0.000000e+00> : vector<4x32xf32>
    %224 = tpu.matmul %221, %223, %cst_280 {dimension_numbers = #tpu.dot_dimension_numbers<[1], [0], [0], [1], [0, 0, 1, 1], [], []>} : vector<4x16xbf16>, vector<16x32xbf16>, vector<4x32xf32> -> vector<4x32xf32>
    %225 = arith.addf %219, %224 : vector<4x32xf32>
    %c0_281 = arith.constant 0 : index
    %c4_282 = arith.constant 4 : index
    %c0_283 = arith.constant 0 : index
    %c0_284 = arith.constant 0 : index
    %226 = vector.load %arg2[%c0_281, %c4_282, %c0_283, %c0_284] : memref<1x5x5x16xbf16, #tpu.memory_space<vmem>>, vector<1x1x4x16xbf16>
    %227 = vector.shape_cast %226 : vector<1x1x4x16xbf16> to vector<4x16xbf16>
    %c7_285 = arith.constant 7 : index
    %c0_286 = arith.constant 0 : index
    %c0_287 = arith.constant 0 : index
    %228 = vector.load %arg5[%c7_285, %c0_286, %c0_287] : memref<9x16x32xbf16, #tpu.memory_space<vmem>>, vector<1x16x32xbf16>
    %229 = vector.shape_cast %228 : vector<1x16x32xbf16> to vector<16x32xbf16>
    %cst_288 = arith.constant dense<0.000000e+00> : vector<4x32xf32>
    %230 = tpu.matmul %227, %229, %cst_288 {dimension_numbers = #tpu.dot_dimension_numbers<[1], [0], [0], [1], [0, 0, 1, 1], [], []>} : vector<4x16xbf16>, vector<16x32xbf16>, vector<4x32xf32> -> vector<4x32xf32>
    %231 = arith.addf %225, %230 : vector<4x32xf32>
    %c0_289 = arith.constant 0 : index
    %c4_290 = arith.constant 4 : index
    %c1_291 = arith.constant 1 : index
    %c0_292 = arith.constant 0 : index
    %232 = vector.load %arg1[%c0_289, %c4_290, %c1_291, %c0_292] : memref<1x5x5x16xbf16, #tpu.memory_space<vmem>>, vector<1x1x4x16xbf16>
    %233 = vector.shape_cast %232 : vector<1x1x4x16xbf16> to vector<4x16xbf16>
    %c8_293 = arith.constant 8 : index
    %c0_294 = arith.constant 0 : index
    %c0_295 = arith.constant 0 : index
    %234 = vector.load %arg5[%c8_293, %c0_294, %c0_295] : memref<9x16x32xbf16, #tpu.memory_space<vmem>>, vector<1x16x32xbf16>
    %235 = vector.shape_cast %234 : vector<1x16x32xbf16> to vector<16x32xbf16>
    %cst_296 = arith.constant dense<0.000000e+00> : vector<4x32xf32>
    %236 = tpu.matmul %233, %235, %cst_296 {dimension_numbers = #tpu.dot_dimension_numbers<[1], [0], [0], [1], [0, 0, 1, 1], [], []>} : vector<4x16xbf16>, vector<16x32xbf16>, vector<4x32xf32> -> vector<4x32xf32>
    %237 = arith.addf %231, %236 : vector<4x32xf32>
    %cst_297 = arith.constant 0.000000e+00 : f32
    %238 = vector.broadcast %cst_297 : f32 to vector<4x32xf32>
    %239 = arith.maximumf %237, %238 : vector<4x32xf32>
    %240 = arith.truncf %239 : vector<4x32xf32> to vector<4x32xbf16>
    %c0_298 = arith.constant 0 : index
    %c3_299 = arith.constant 3 : index
    %c0_300 = arith.constant 0 : index
    %c0_301 = arith.constant 0 : index
    %241 = vector.load %arg6[%c0_298, %c3_299, %c0_300, %c0_301] : memref<1x4x4x32xbf16, #tpu.memory_space<vmem>>, vector<1x1x4x32xbf16>
    %242 = vector.shape_cast %241 : vector<1x1x4x32xbf16> to vector<4x32xbf16>
    %243 = vector.shape_cast %240 : vector<4x32xbf16> to vector<1x1x4x32xbf16>
    tpu.vector_store %arg6[%c0_298, %c3_299, %c0_300, %c0_301], %243 {strides = array<i32>} : memref<1x4x4x32xbf16, #tpu.memory_space<vmem>>, vector<1x1x4x32xbf16>,
    return
  }
  func.func @transform_0(%arg0: i32) -> (i32, i32, i32, i32) {
    %c0_i32 = arith.constant 0 : i32
    %c0_i32_0 = arith.constant 0 : i32
    %c0_i32_1 = arith.constant 0 : i32
    %c0_i32_2 = arith.constant 0 : i32
    return %arg0, %c0_i32, %c0_i32_0, %c0_i32_1 : i32, i32, i32, i32
  }
  func.func @transform_1(%arg0: i32) -> (i32, i32, i32, i32) {
    %c0_i32 = arith.constant 0 : i32
    %c0_i32_0 = arith.constant 0 : i32
    %c0_i32_1 = arith.constant 0 : i32
    %c0_i32_2 = arith.constant 0 : i32
    return %arg0, %c0_i32, %c0_i32_0, %c0_i32_1 : i32, i32, i32, i32
  }
  func.func @transform_2(%arg0: i32) -> (i32, i32, i32, i32) {
    %c0_i32 = arith.constant 0 : i32
    %c0_i32_0 = arith.constant 0 : i32
    %c0_i32_1 = arith.constant 0 : i32
    %c0_i32_2 = arith.constant 0 : i32
    return %arg0, %c0_i32, %c0_i32_0, %c0_i32_1 : i32, i32, i32, i32
  }
  func.func @transform_3(%arg0: i32) -> (i32, i32, i32, i32) {
    %c0_i32 = arith.constant 0 : i32
    %c0_i32_0 = arith.constant 0 : i32
    %c0_i32_1 = arith.constant 0 : i32
    %c0_i32_2 = arith.constant 0 : i32
    return %arg0, %c0_i32, %c0_i32_0, %c0_i32_1 : i32, i32, i32, i32
  }
  func.func @transform_4(%arg0: i32) -> (i32, i32, i32) {
    %c0_i32 = arith.constant 0 : i32
    %c0_i32_0 = arith.constant 0 : i32
    %c0_i32_1 = arith.constant 0 : i32
    %c0_i32_2 = arith.constant 0 : i32
    return %c0_i32, %c0_i32_0, %c0_i32_1 : i32, i32, i32
  }
  func.func @transform_5(%arg0: i32) -> (i32, i32, i32, i32) {
    %c0_i32 = arith.constant 0 : i32
    %c0_i32_0 = arith.constant 0 : i32
    %c0_i32_1 = arith.constant 0 : i32
    %c0_i32_2 = arith.constant 0 : i32
    return %arg0, %c0_i32, %c0_i32_0, %c0_i32_1 : i32, i32, i32, i32
  }
}

module attributes {stable_mosaic.version = 11 : i64} {
  func.func @_neck_head_kernel(%arg0: i32, %arg1: memref<1x4x4x32xbf16, #tpu.memory_space<vmem>>, %arg2: memref<32x48xbf16, #tpu.memory_space<vmem>>, %arg3: memref<1x48xf32, #tpu.memory_space<vmem>>, %arg4: memref<48x128xbf16, #tpu.memory_space<vmem>>, %arg5: memref<1x128xf32, #tpu.memory_space<vmem>>, %arg6: memref<1x4x128xf32, #tpu.memory_space<vmem>>) attributes {dimension_semantics = [#tpu.dimension_semantics<parallel>], iteration_bounds = array<i64: 2>, scalar_prefetch = 0 : i64, scratch_operands = 0 : i64, tpu.core_type = #tpu.core_type<tc>, window_params = [{transform_indices = @transform_0, window_bounds = array<i64: 1, 4, 4, 32>}, {pipeline_mode = #tpu.pipeline_mode<synchronous>, transform_indices = @transform_1, window_bounds = array<i64: 32, 48>}, {pipeline_mode = #tpu.pipeline_mode<synchronous>, transform_indices = @transform_2, window_bounds = array<i64: 1, 48>}, {pipeline_mode = #tpu.pipeline_mode<synchronous>, transform_indices = @transform_3, window_bounds = array<i64: 48, 128>}, {pipeline_mode = #tpu.pipeline_mode<synchronous>, transform_indices = @transform_4, window_bounds = array<i64: 1, 128>}, {transform_indices = @transform_5, window_bounds = array<i64: 1, 4, 128>}]} {
    %c0 = arith.constant 0 : index
    %c0_0 = arith.constant 0 : index
    %c0_1 = arith.constant 0 : index
    %c0_2 = arith.constant 0 : index
    %0 = vector.load %arg1[%c0, %c0_0, %c0_1, %c0_2] : memref<1x4x4x32xbf16, #tpu.memory_space<vmem>>, vector<1x4x4x32xbf16>
    %1 = vector.shape_cast %0 : vector<1x4x4x32xbf16> to vector<4x4x32xbf16>
    %2 = arith.extf %1 : vector<4x4x32xbf16> to vector<4x4x32xf32>
    %cst = arith.constant dense<0.000000e+00> : vector<4x32xf32>
    %3 = vector.multi_reduction <add>, %2, %cst [0] : vector<4x4x32xf32> to vector<4x32xf32>
    %cst_3 = arith.constant 2.500000e-01 : f32
    %4 = vector.broadcast %cst_3 : f32 to vector<4x32xf32>
    %5 = arith.mulf %3, %4 : vector<4x32xf32>
    %6 = arith.truncf %5 : vector<4x32xf32> to vector<4x32xbf16>
    %c0_4 = arith.constant 0 : index
    %c0_5 = arith.constant 0 : index
    %7 = vector.load %arg2[%c0_4, %c0_5] : memref<32x48xbf16, #tpu.memory_space<vmem>>, vector<32x48xbf16>
    %cst_6 = arith.constant dense<0.000000e+00> : vector<4x48xf32>
    %8 = tpu.matmul %6, %7, %cst_6 {dimension_numbers = #tpu.dot_dimension_numbers<[1], [0], [0], [1], [0, 0, 1, 1], [], []>} : vector<4x32xbf16>, vector<32x48xbf16>, vector<4x48xf32> -> vector<4x48xf32>
    %c0_7 = arith.constant 0 : index
    %c0_8 = arith.constant 0 : index
    %9 = vector.load %arg3[%c0_7, %c0_8] : memref<1x48xf32, #tpu.memory_space<vmem>>, vector<1x48xf32>
    %10 = vector.broadcast %9 : vector<1x48xf32> to vector<4x48xf32>
    %11 = arith.addf %8, %10 : vector<4x48xf32>
    %12 = arith.truncf %11 : vector<4x48xf32> to vector<4x48xbf16>
    %c0_9 = arith.constant 0 : index
    %c0_10 = arith.constant 0 : index
    %13 = vector.load %arg4[%c0_9, %c0_10] : memref<48x128xbf16, #tpu.memory_space<vmem>>, vector<48x128xbf16>
    %cst_11 = arith.constant dense<0.000000e+00> : vector<4x128xf32>
    %14 = tpu.matmul %12, %13, %cst_11 {dimension_numbers = #tpu.dot_dimension_numbers<[1], [0], [0], [1], [0, 0, 1, 1], [], []>} : vector<4x48xbf16>, vector<48x128xbf16>, vector<4x128xf32> -> vector<4x128xf32>
    %c0_12 = arith.constant 0 : index
    %c0_13 = arith.constant 0 : index
    %15 = vector.load %arg5[%c0_12, %c0_13] : memref<1x128xf32, #tpu.memory_space<vmem>>, vector<1x128xf32>
    %16 = vector.broadcast %15 : vector<1x128xf32> to vector<4x128xf32>
    %17 = arith.addf %14, %16 : vector<4x128xf32>
    %cst_14 = arith.constant dense<0xFF800000> : vector<4xf32>
    %18 = vector.multi_reduction <maximumf>, %17, %cst_14 [1] : vector<4x128xf32> to vector<4xf32>
    %19 = vector.shape_cast %18 : vector<4xf32> to vector<4x1xf32>
    %20 = vector.broadcast %19 : vector<4x1xf32> to vector<4x128xf32>
    %21 = arith.subf %17, %20 : vector<4x128xf32>
    %22 = math.exp %21 : vector<4x128xf32>
    %cst_15 = arith.constant dense<0.000000e+00> : vector<4xf32>
    %23 = vector.multi_reduction <add>, %22, %cst_15 [1] : vector<4x128xf32> to vector<4xf32>
    %24 = vector.shape_cast %23 : vector<4xf32> to vector<4x1xf32>
    %25 = tpu.reciprocal %24 {approx = true} : vector<4x1xf32> -> vector<4x1xf32>
    %26 = arith.mulf %24, %25 : vector<4x1xf32>
    %cst_16 = arith.constant 2.000000e+00 : f32
    %27 = vector.broadcast %cst_16 : f32 to vector<4x1xf32>
    %28 = arith.subf %27, %26 : vector<4x1xf32>
    %29 = arith.mulf %25, %28 : vector<4x1xf32>
    %30 = vector.broadcast %29 : vector<4x1xf32> to vector<4x128xf32>
    %31 = arith.mulf %22, %30 : vector<4x128xf32>
    %c0_17 = arith.constant 0 : index
    %c0_18 = arith.constant 0 : index
    %c0_19 = arith.constant 0 : index
    %32 = vector.load %arg6[%c0_17, %c0_18, %c0_19] : memref<1x4x128xf32, #tpu.memory_space<vmem>>, vector<1x4x128xf32>
    %33 = vector.shape_cast %32 : vector<1x4x128xf32> to vector<4x128xf32>
    %34 = vector.shape_cast %31 : vector<4x128xf32> to vector<1x4x128xf32>
    tpu.vector_store %arg6[%c0_17, %c0_18, %c0_19], %34 {strides = array<i32>} : memref<1x4x128xf32, #tpu.memory_space<vmem>>, vector<1x4x128xf32>,
    return
  }
  func.func @transform_0(%arg0: i32) -> (i32, i32, i32, i32) {
    %c0_i32 = arith.constant 0 : i32
    %c0_i32_0 = arith.constant 0 : i32
    %c0_i32_1 = arith.constant 0 : i32
    %c0_i32_2 = arith.constant 0 : i32
    return %arg0, %c0_i32, %c0_i32_0, %c0_i32_1 : i32, i32, i32, i32
  }
  func.func @transform_1(%arg0: i32) -> (i32, i32) {
    %c0_i32 = arith.constant 0 : i32
    %c0_i32_0 = arith.constant 0 : i32
    %c0_i32_1 = arith.constant 0 : i32
    return %c0_i32, %c0_i32_0 : i32, i32
  }
  func.func @transform_2(%arg0: i32) -> (i32, i32) {
    %c0_i32 = arith.constant 0 : i32
    %c0_i32_0 = arith.constant 0 : i32
    %c0_i32_1 = arith.constant 0 : i32
    return %c0_i32, %c0_i32_0 : i32, i32
  }
  func.func @transform_3(%arg0: i32) -> (i32, i32) {
    %c0_i32 = arith.constant 0 : i32
    %c0_i32_0 = arith.constant 0 : i32
    %c0_i32_1 = arith.constant 0 : i32
    return %c0_i32, %c0_i32_0 : i32, i32
  }
  func.func @transform_4(%arg0: i32) -> (i32, i32) {
    %c0_i32 = arith.constant 0 : i32
    %c0_i32_0 = arith.constant 0 : i32
    %c0_i32_1 = arith.constant 0 : i32
    return %c0_i32, %c0_i32_0 : i32, i32
  }
  func.func @transform_5(%arg0: i32) -> (i32, i32, i32) {
    %c0_i32 = arith.constant 0 : i32
    %c0_i32_0 = arith.constant 0 : i32
    %c0_i32_1 = arith.constant 0 : i32
    return %arg0, %c0_i32, %c0_i32_0 : i32, i32, i32
  }
}

</mosaic_0001>

<llo_original>
// kernel: base_model_forward.5
$region0: #{base_model_forward.5}
  #allocation0 [shape = 'u32[]', space=smem, size = 0x4, offset = 0x4, fixed_abs, tag = 'smem constant byte address 0x4 - core index']
  #allocation1 [shape = 'u32[144,128]{1,0:T(1,128)}', space=vmem, size = 0x12000, scoped, tag = 'internal scratch']
  %s0 = inlined_call_operand.vmem [shape: bf16[2,4,4,32], index: 0, kind: input, shape index: {}]
  %s1 = inlined_call_operand.vmem [shape: bf16[32,48], index: 1, kind: input, shape index: {}]
  %s2 = inlined_call_operand.vmem [shape: f32[1,48], index: 2, kind: input, shape index: {}]
  %s3 = inlined_call_operand.vmem [shape: bf16[48,128], index: 3, kind: input, shape index: {}]
  %s4 = inlined_call_operand.vmem [shape: f32[1,128], index: 4, kind: input, shape index: {}]
  %s5 = inlined_call_operand.hbm [shape: f32[2,4,128], index: 5, kind: output, shape index: {}]
  %s6 = sld [smem:[#allocation0]]
  $region53: #{base_model_forward.5} parent=0
    _
  %s8 = ssub.s32 1, %s6
  %s9 = scalar_select 0, %s8, %s6
  $region1: #{base_model_forward.5} parent=0
    #allocation2 [shape = 'u8[4096]{0}', space=vmem, size = 0x1000, scoped, tag = 'output window, operand 0']
    #allocation3 [shape = 's32[2]{0}', space=sflag, size = 0x8, scoped, tag = 'scoped memory for base_model_forward.5']
    %10 = vsyncpa [#allocation3], 0
    %s11 = scalar_lea.sflag [#allocation3], 1
    %12 = vsyncpa %s11, 0
    loop: start=0, step=1, limit=4
    $region2: #{base_model_forward.5} parent=1 // loop_pre_header
      _
    $region3: #{base_model_forward.5} parent=1 // loop_header
      %s14 = sphi 0, %s18
      %p15 = scmp.ge.s32.totalorder %s14, 4
      %s24 = sphi 0, %s26
      %s27 = sphi 0, %s24
      %s28 = sphi 0, %s27
      %s44 = sphi 0, %s28
      %s48 = sphi 0, %s48
      %s50 = sphi 0, %s48
      %s51 = sphi 0, %s50
      %s65 = sphi 0, %s51
      %s69 = sphi 0, %s69
      %s71 = sphi 0, %s69
      %s72 = sphi 0, %s71
      %s86 = sphi 0, %s72
      %s90 = sphi 0, %s90
      %s92 = sphi 0, %s90
      %s93 = sphi 0, %s92
      %s107 = sphi 0, %s93
      %s111 = sphi 0, %s111
      %s113 = sphi 0, %s111
      %s114 = sphi 0, %s113
      %s128 = sphi 0, %s114
      %s134 = sphi 0, %s136
      %s137 = sphi 0, %s134
      %s138 = sphi 0, %s137
      %s154 = sphi 0, %s138
    $region4: #{base_model_forward.5} parent=1 // loop_header_branch
      %17 = sbr.rel (%p15) target = $region8
    $region5: #{base_model_forward.5} parent=1 // loop_body
      %s19 = ssub.s32 %s14, 1
      %s20 = ssub.s32 %s14, 2
      %s21 = sadd.s32 %s14, 1
      %s22 = ssub.s32 %s14, %s21
      %p23 = scmp.eq.s32.totalorder %s22, 0
      %s25 = sadd.s32 %s24, 1
      %s26 = scalar_select %p23, %s24, %s25
      %p29 = pneg %p23
      %p30 = scmp.eq.s32.totalorder %s14, 1
      %p31 = por %p29, %p30
      %p32 = scmp.ne.s32.totalorder %s24, %s27
      %p33 = scmp.eq.s32.totalorder %s14, 0
      %p34 = por %p32, %p33
      %p35 = scmp.ne.s32.totalorder %s24, %s27
      %p36 = scmp.eq.s32.totalorder %s19, 1
      %p37 = por %p35, %p36
      %p38 = scmp.ne.s32.totalorder %s27, %s28
      %p39 = scmp.eq.s32.totalorder %s19, 0
      %p40 = por %p38, %p39
      %p41 = scmp.ne.s32.totalorder %s27, %s28
      %p42 = scmp.eq.s32.totalorder %s20, 1
      %p43 = por %p41, %p42
      %p45 = scmp.ne.s32.totalorder %s28, %s44
      %p46 = scmp.eq.s32.totalorder %s20, 0
      %p47 = por %p45, %p46
      %s49 = sadd.s32 %s48, 1
      %p52 = scmp.eq.s32.totalorder %s14, 1
      %p53 = scmp.ne.s32.totalorder %s48, %s50
      %p54 = scmp.eq.s32.totalorder %s14, 0
      %p55 = por %p53, %p54
      %p56 = scmp.ne.s32.totalorder %s48, %s50
      %p57 = scmp.eq.s32.totalorder %s19, 1
      %p58 = por %p56, %p57
      %p59 = scmp.ne.s32.totalorder %s50, %s51
      %p60 = scmp.eq.s32.totalorder %s19, 0
      %p61 = por %p59, %p60
      %p62 = scmp.ne.s32.totalorder %s50, %s51
      %p63 = scmp.eq.s32.totalorder %s20, 1
      %p64 = por %p62, %p63
      %p66 = scmp.ne.s32.totalorder %s51, %s65
      %p67 = scmp.eq.s32.totalorder %s20, 0
      %p68 = por %p66, %p67
      %s70 = sadd.s32 %s69, 1
      %p73 = scmp.eq.s32.totalorder %s14, 1
      %p74 = scmp.ne.s32.totalorder %s69, %s71
      %p75 = scmp.eq.s32.totalorder %s14, 0
      %p76 = por %p74, %p75
      %p77 = scmp.ne.s32.totalorder %s69, %s71
      %p78 = scmp.eq.s32.totalorder %s19, 1
      %p79 = por %p77, %p78
      %p80 = scmp.ne.s32.totalorder %s71, %s72
      %p81 = scmp.eq.s32.totalorder %s19, 0
      %p82 = por %p80, %p81
      %p83 = scmp.ne.s32.totalorder %s71, %s72
      %p84 = scmp.eq.s32.totalorder %s20, 1
      %p85 = por %p83, %p84
      %p87 = scmp.ne.s32.totalorder %s72, %s86
      %p88 = scmp.eq.s32.totalorder %s20, 0
      %p89 = por %p87, %p88
      %s91 = sadd.s32 %s90, 1
      %p94 = scmp.eq.s32.totalorder %s14, 1
      %p95 = scmp.ne.s32.totalorder %s90, %s92
      %p96 = scmp.eq.s32.totalorder %s14, 0
      %p97 = por %p95, %p96
      %p98 = scmp.ne.s32.totalorder %s90, %s92
      %p99 = scmp.eq.s32.totalorder %s19, 1
      %p100 = por %p98, %p99
      %p101 = scmp.ne.s32.totalorder %s92, %s93
      %p102 = scmp.eq.s32.totalorder %s19, 0
      %p103 = por %p101, %p102
      %p104 = scmp.ne.s32.totalorder %s92, %s93
      %p105 = scmp.eq.s32.totalorder %s20, 1
      %p106 = por %p104, %p105
      %p108 = scmp.ne.s32.totalorder %s93, %s107
      %p109 = scmp.eq.s32.totalorder %s20, 0
      %p110 = por %p108, %p109
      %s112 = sadd.s32 %s111, 1
      %p115 = scmp.eq.s32.totalorder %s14, 1
      %p116 = scmp.ne.s32.totalorder %s111, %s113
      %p117 = scmp.eq.s32.totalorder %s14, 0
      %p118 = por %p116, %p117
      %p119 = scmp.ne.s32.totalorder %s111, %s113
      %p120 = scmp.eq.s32.totalorder %s19, 1
      %p121 = por %p119, %p120
      %p122 = scmp.ne.s32.totalorder %s113, %s114
      %p123 = scmp.eq.s32.totalorder %s19, 0
      %p124 = por %p122, %p123
      %p125 = scmp.ne.s32.totalorder %s113, %s114
      %p126 = scmp.eq.s32.totalorder %s20, 1
      %p127 = por %p125, %p126
      %p129 = scmp.ne.s32.totalorder %s114, %s128
      %p130 = scmp.eq.s32.totalorder %s20, 0
      %p131 = por %p129, %p130
      %s132 = ssub.s32 %s14, %s21
      %p133 = scmp.eq.s32.totalorder %s132, 0
      %s135 = sadd.s32 %s134, 1
      %s136 = scalar_select %p133, %s134, %s135
      %p139 = pneg %p133
      %p140 = scmp.eq.s32.totalorder %s14, 1
      %p141 = por %p139, %p140
      %p142 = scmp.ne.s32.totalorder %s134, %s137
      %p143 = scmp.eq.s32.totalorder %s14, 0
      %p144 = por %p142, %p143
      %p145 = scmp.ne.s32.totalorder %s134, %s137
      %p146 = scmp.eq.s32.totalorder %s19, 1
      %p147 = por %p145, %p146
      %p148 = scmp.ne.s32.totalorder %s137, %s138
      %p149 = scmp.eq.s32.totalorder %s19, 0
      %p150 = por %p148, %p149
      %p151 = scmp.ne.s32.totalorder %s137, %s138
      %p152 = scmp.eq.s32.totalorder %s20, 1
      %p153 = por %p151, %p152
      %p155 = scmp.ne.s32.totalorder %s138, %s154
      %p156 = scmp.eq.s32.totalorder %s20, 0
      %p157 = por %p155, %p156
      %p158 = scmp.le.s32.totalorder 1, %s14
      %p159 = scmp.lt.s32.totalorder %s14, 3
      %p160 = pnand %p158, %p159
      %p161 = pneg %p160
      // Predicated region
      $region9: #{base_model_forward.5} parent=5 // pred_check
        _
      $region10: #{base_model_forward.5} parent=5 // pred_check_branch
        %163 = sbr.rel (%p160) target = $region12
      $region11: #{base_model_forward.5} parent=5 // pred_region
        %s164 = ssub.s32 %s14, 1
        // Predicated region
        $region13: #{base_model_forward.5} parent=11 // pred_check
          %p165 = pneg %p61
        $region14: #{base_model_forward.5} parent=11 // pred_check_branch
          %167 = sbr.rel (%p165) target = $region16
        $region15: #{base_model_forward.5} parent=11 // pred_region
          _
        $region16: #{base_model_forward.5} parent=11 // pred_fallthru
          _
        // Predicated region
        $region17: #{base_model_forward.5} parent=11 // pred_check
          %p168 = pneg %p82
        $region18: #{base_model_forward.5} parent=11 // pred_check_branch
          %170 = sbr.rel (%p168) target = $region20
        $region19: #{base_model_forward.5} parent=11 // pred_region
          _
        $region20: #{base_model_forward.5} parent=11 // pred_fallthru
          _
        // Predicated region
        $region21: #{base_model_forward.5} parent=11 // pred_check
          %p171 = pneg %p103
        $region22: #{base_model_forward.5} parent=11 // pred_check_branch
          %173 = sbr.rel (%p171) target = $region24
        $region23: #{base_model_forward.5} parent=11 // pred_region
          _
        $region24: #{base_model_forward.5} parent=11 // pred_fallthru
          _
        // Predicated region
        $region25: #{base_model_forward.5} parent=11 // pred_check
          %p174 = pneg %p124
        $region26: #{base_model_forward.5} parent=11 // pred_check_branch
          %176 = sbr.rel (%p174) target = $region28
        $region27: #{base_model_forward.5} parent=11 // pred_region
          _
        $region28: #{base_model_forward.5} parent=11 // pred_fallthru
          _
      $region12: #{base_model_forward.5} parent=5 // pred_fallthru
        _
      %p177 = scmp.lt.s32.totalorder %s14, 2
      // Predicated region
      $region29: #{base_model_forward.5} parent=5 // pred_check
        %p178 = pneg %p177
      $region30: #{base_model_forward.5} parent=5 // pred_check_branch
        %180 = sbr.rel (%p178) target = $region32
      $region31: #{base_model_forward.5} parent=5 // pred_region
        // Predicated region
        $region33: #{base_model_forward.5} parent=31 // pred_check
          %p181 = pneg %p34
        $region34: #{base_model_forward.5} parent=31 // pred_check_branch
          %183 = sbr.rel (%p181) target = $region36
        $region35: #{base_model_forward.5} parent=31 // pred_region
          %p184 = scmp.lt.s32.totalorder %s14, 1
          %s185 = scalar_select %p184, %s14, 1
          %s186 = smul.addr %s185, 4
          %s187 = smul.addr %s186, 2
          %s188 = scalar_lea.vmem %s0, %s187
        $region36: #{base_model_forward.5} parent=31 // pred_fallthru
          _
      $region32: #{base_model_forward.5} parent=5 // pred_fallthru
        _
      %p189 = scmp.le.s32.totalorder 1, %s14
      %p190 = scmp.lt.s32.totalorder %s14, 3
      %p191 = pnand %p189, %p190
      %p192 = pneg %p191
      // Predicated region
      $region37: #{base_model_forward.5} parent=5 // pred_check
        _
      $region38: #{base_model_forward.5} parent=5 // pred_check_branch
        %194 = sbr.rel (%p191) target = $region40
      $region39: #{base_model_forward.5} parent=5 // pred_region
        %s195 = ssub.s32 %s14, 1
        %p196 = scmp.lt.s32.totalorder %s19, 1
        %s197 = scalar_select %p196, %s19, 1
        %s198 = smul.addr %s197, 4
        %s199 = smul.addr %s198, 2
        %s200 = scalar_lea.vmem %s0, %s199
        %p201 = pneg %p40
        %p202 = pneg %p37
        %p203 = pneg %p61
        %p204 = pneg %p58
        %p205 = pneg %p82
        %p206 = pneg %p79
        %p207 = pneg %p103
        %p208 = pneg %p100
        %p209 = pneg %p124
        %p210 = pneg %p121
        %p211 = pneg %p150
        %p212 = pneg %p147
        %s213 = sand.u32 %s137, 1
        %s214 = scalar_lea.sflag [#allocation3], %s213
        %s215 = sand.u32 %s137, 1
        %s216 = smul.addr %s215, 4
        %s217 = scalar_lea.vmem [#allocation2], %s216
        %p218 = scmp.lt.s32.totalorder %s19, 1
        %s219 = scalar_select %p218, %s19, 1
        %s220 = smul.addr %s219, 4
        %s221 = smul.addr %s220, 2
        %s222 = scalar_lea.vmem %s0, %s221
        %v224 = vld [vmem:[%s222] sm:$0x3]
        %v225 = vld [vmem:[%s222 + $0x2] sm:$0x3]
        %v226 = vld [vmem:[%s222 + $0x4] sm:$0x3]
        %v227 = vld [vmem:[%s222 + $0x6] sm:$0x3]
        %v228 = vunpack.c.l.bf16 %v224
        %v229 = vunpack.c.l.bf16 %v225
        %v230 = vunpack.c.l.bf16 %v226
        %v231 = vunpack.c.l.bf16 %v227
        %vm232 = vcmask 257024
        %v233 = vsel %vm232, %v228, 0.0
        %v234 = vsel %vm232, %v229, 0.0
        %v235 = vadd.f32 %v233, %v234
        %v236 = vsel %vm232, %v230, 0.0
        %v237 = vadd.f32 %v235, %v236
        %v238 = vsel %vm232, %v231, 0.0
        %v239 = vadd.f32 %v237, %v238
        %v240 = vmul.f32 %v239, 0.25
        %v241 = vpack.c.bf16 %v240, %v240
        %v242 = vld [vmem:[%s1] sm:$0xf]
        %v243 = vld [vmem:[%s1 + $0x4] sm:$0xf]
        %v244 = vld [vmem:[%s1 + $0x8] sm:$0xf]
        %v245 = vld [vmem:[%s1 + $0xc] sm:$0xf]
        %v246 = vld [vmem:[%s2] sm:$0x1]
        %v248 = vlaneseq
        %v249 = vshrl.u32 %v248, 7
        %v250 = vsub.s32 0, %v249
        %v251 = vrot.slane %v246, %v250
        %v257 = vunpack.c.l.b16 %v242
        %v258 = vunpack.c.l.b16 %v243
        %v259 = vunpack.c.l.b16 %v244
        %v260 = vunpack.c.l.b16 %v245
        %v261 = vpack.c.b16 %v258, %v257
        %v262 = vpack.c.b16 %v260, %v259
        %vm265 = vcmask 261120
        %v267 = vsel %vm265, %v241, 0
        %269 = vmatprep.subr.bf16.mxu0 0
        %270 = vmatpush1.bf16.msra.mxu0 %v261
        %271 = vmatprep.subr.bf16.mxu0 0
        %272 = vmatpush1.bf16.msra.mxu0 %v262
        %273 = vmatprep.subr.bf16.mxu0 0
        %274 = vmatpush1.bf16.msra.mxu0 0
        %275 = vmatprep.subr.bf16.mxu0 0
        %276 = vmatpush1.bf16.msra.mxu0 0
        %277 = vmatprep.subr.bf16.mxu0 0
        %278 = vmatpush1.bf16.msra.mxu0 0
        %279 = vmatprep.subr.bf16.mxu0 0
        %280 = vmatpush1.bf16.msra.mxu0 0
        %281 = vmatprep.subr.bf16.mxu0 0
        %282 = vmatpush1.bf16.msra.mxu0 0
        %283 = vmatprep.subr.bf16.mxu0 0
        %284 = vmatpush1.bf16.msra.mxu0 0
        %285 = vmatprep.subr.bf16.mxu0 0
        %286 = vmatpush1.bf16.msra.mxu0 0
        %287 = vmatprep.subr.bf16.mxu0 0
        %288 = vmatpush1.bf16.msra.mxu0 0
        %289 = vmatprep.subr.bf16.mxu0 0
        %290 = vmatpush1.bf16.msra.mxu0 0
        %291 = vmatprep.subr.bf16.mxu0 0
        %292 = vmatpush1.bf16.msra.mxu0 0
        %293 = vmatprep.subr.bf16.mxu0 0
        %294 = vmatpush1.bf16.msra.mxu0 0
        %295 = vmatprep.subr.bf16.mxu0 0
        %296 = vmatpush1.bf16.msra.mxu0 0
        %297 = vmatprep.subr.bf16.mxu0 0
        %298 = vmatpush1.bf16.msra.mxu0 0
        %299 = vmatprep.subr.bf16.mxu0 0
        %300 = vmatpush1.bf16.msra.mxu0 0
        %301 = vmatprep.mubr.bf16.mxu0 0
        %302 = vmatmul.mubr.bf16.gmra.mrb[0].mxu0 %v267
        %v303 = vpop.f32.mrb[0].mxu0
        %v304 = vadd.f32 %v251, %v303
        %v305 = vpop.f32.mrb[0].mxu0
        %v306 = vpop.f32.mrb[0].mxu0
        %v307 = vpop.f32.mrb[0].mxu0
        %308 = vdwg.mxu0
        %v309 = vpack.c.bf16 %v304, %v304
        %v310 = vld [vmem:[%s3] sm:$0xf]
        %v311 = vld [vmem:[%s3 + $0x4] sm:$0xf]
        %v312 = vld [vmem:[%s3 + $0x8] sm:$0xf]
        %v313 = vld [vmem:[%s3 + $0xc] sm:$0xf]
        %v314 = vld [vmem:[%s3 + $0x10] sm:$0xf]
        %v315 = vld [vmem:[%s3 + $0x14] sm:$0xf]
        %v316 = vld [vmem:[%s4] sm:$0x1]
        %v318 = vlaneseq
        %v319 = vshrl.u32 %v318, 7
        %v320 = vsub.s32 0, %v319
        %v321 = vrot.slane %v316, %v320
        %v329 = vunpack.c.l.b16 %v310
        %v330 = vunpack.c.l.b16 %v311
        %v331 = vunpack.c.l.b16 %v312
        %v332 = vunpack.c.l.b16 %v313
        %v333 = vunpack.c.l.b16 %v314
        %v334 = vunpack.c.l.b16 %v315
        %v335 = vpack.c.b16 %v330, %v329
        %v336 = vpack.c.b16 %v332, %v331
        %v337 = vpack.c.b16 %v334, %v333
        %vm341 = vcmask 392192
        %v343 = vsel %vm341, %v309, 0
        %345 = vmatprep.subr.bf16.mxu0 0
        %346 = vmatpush1.bf16.msra.mxu0 %v335
        %347 = vmatprep.subr.bf16.mxu0 0
        %348 = vmatpush1.bf16.msra.mxu0 %v336
        %349 = vmatprep.subr.bf16.mxu0 0
        %350 = vmatpush1.bf16.msra.mxu0 %v337
        %351 = vmatprep.subr.bf16.mxu0 0
        %352 = vmatpush1.bf16.msra.mxu0 0
        %353 = vmatprep.subr.bf16.mxu0 0
        %354 = vmatpush1.bf16.msra.mxu0 0
        %355 = vmatprep.subr.bf16.mxu0 0
        %356 = vmatpush1.bf16.msra.mxu0 0
        %357 = vmatprep.subr.bf16.mxu0 0
        %358 = vmatpush1.bf16.msra.mxu0 0
        %359 = vmatprep.subr.bf16.mxu0 0
        %360 = vmatpush1.bf16.msra.mxu0 0
        %361 = vmatprep.subr.bf16.mxu0 0
        %362 = vmatpush1.bf16.msra.mxu0 0
        %363 = vmatprep.subr.bf16.mxu0 0
        %364 = vmatpush1.bf16.msra.mxu0 0
        %365 = vmatprep.subr.bf16.mxu0 0
        %366 = vmatpush1.bf16.msra.mxu0 0
        %367 = vmatprep.subr.bf16.mxu0 0
        %368 = vmatpush1.bf16.msra.mxu0 0
        %369 = vmatprep.subr.bf16.mxu0 0
        %370 = vmatpush1.bf16.msra.mxu0 0
        %371 = vmatprep.subr.bf16.mxu0 0
        %372 = vmatpush1.bf16.msra.mxu0 0
        %373 = vmatprep.subr.bf16.mxu0 0
        %374 = vmatpush1.bf16.msra.mxu0 0
        %375 = vmatprep.subr.bf16.mxu0 0
        %376 = vmatpush1.bf16.msra.mxu0 0
        %377 = vmatprep.mubr.bf16.mxu0 0
        %378 = vmatmul.mubr.bf16.gmra.mrb[0].mxu0 %v343
        %v379 = vpop.f32.mrb[0].mxu0
        %v380 = vadd.f32 %v321, %v379
        %v381 = vpop.f32.mrb[0].mxu0
        %v382 = vpop.f32.mrb[0].mxu0
        %v383 = vpop.f32.mrb[0].mxu0
        %384 = vdwg.mxu0
        %vm385 = vcmask 1043456
        %v386 = vsel %vm385, %v380, -inf
        %387 = vmax.xlane.f32.xlu0 %v386
        %v388 = vpop.xlane.xlu0 %387
        %v389 = vsub.f32 %v380, %v388
        %v390 = vmul.f32 %v389, 1.442695
        %v391 = vpow.pop %v390
        %v392 = vsel %vm385, %v391, 0.0
        %393 = vadd.xlane.f32.xlu0 %v392
        %v394 = vpop.xlane.xlu0 %393
        %v395 = vrcp.pop %v394
        %v396 = vmul.f32 %v394, %v395
        %v397 = vsub.f32 2.0, %v396
        %v398 = vmul.f32 %v395, %v397
        %v399 = vmul.f32 %v391, %v398
        %400 = vst [vmem:[%s217] sm:$0xf] %v399
        %s401 = sand.u32 %s137, 1
        %s402 = scalar_lea.sflag [#allocation3], %s401
        %s403 = sand.u32 %s137, 1
        %s404 = smul.addr %s403, 4
        %s405 = scalar_lea.vmem [#allocation2], %s404
        // Predicated region
        $region41: #{base_model_forward.5} parent=39 // pred_check
          %p406 = pneg %p147
        $region42: #{base_model_forward.5} parent=39 // pred_check_branch
          %408 = sbr.rel (%p406) target = $region44
        $region43: #{base_model_forward.5} parent=39 // pred_region
          %s410 = ssub.s32 64, 64
          %411 = vsyncadd %s402, %s410
          %s412 = smul.addr %s19, 64
          %s413 = scalar_lea.hbm %s5, %s412
          %s415 = sshll.u32 %s405, 4
          %s416 = int_to_ptr.vmem [resolvable:$true] %s415
          %418 = dma.vmem_to_hbm [thread:$0]  %s416, 64, %s413, %s402
        $region44: #{base_model_forward.5} parent=39 // pred_fallthru
          _
      $region40: #{base_model_forward.5} parent=5 // pred_fallthru
        _
      %p419 = scmp.le.s32.totalorder 2, %s14
      // Predicated region
      $region45: #{base_model_forward.5} parent=5 // pred_check
        %p420 = pneg %p419
      $region46: #{base_model_forward.5} parent=5 // pred_check_branch
        %422 = sbr.rel (%p420) target = $region48
      $region47: #{base_model_forward.5} parent=5 // pred_region
        %s423 = ssub.s32 %s14, 2
        // Predicated region
        $region49: #{base_model_forward.5} parent=47 // pred_check
          %p424 = pneg %p153
        $region50: #{base_model_forward.5} parent=47 // pred_check_branch
          %426 = sbr.rel (%p424) target = $region52
        $region51: #{base_model_forward.5} parent=47 // pred_region
          %s427 = sand.u32 %s138, 1
          %s428 = scalar_lea.sflag [#allocation3], %s427
          %s429 = sand.u32 %s138, 1
          %s430 = smul.addr %s429, 4
          %s431 = scalar_lea.vmem [#allocation2], %s430
          %432 = dma.done %s428, 64
        $region52: #{base_model_forward.5} parent=47 // pred_fallthru
          _
      $region48: #{base_model_forward.5} parent=5 // pred_fallthru
        _
    $region6: #{base_model_forward.5} parent=1 // loop_footer
      %s18 = sadd.s32 1, %s14
    $region7: #{base_model_forward.5} parent=1 // loop_footer_branch
      %13 = sbr.rel target = $region3
    $region8: #{base_model_forward.5} parent=1 // loop_exit
      _
    %433 = vsyncpa [#allocation3], 1
    %s434 = scalar_lea.sflag [#allocation3], 1
    %435 = vsyncpa %s434, 1

// kernel: base_model_forward.4
$region0: #{base_model_forward.4}
  #allocation0 [shape = 'u32[]', space=smem, size = 0x4, offset = 0x4, fixed_abs, tag = 'smem constant byte address 0x4 - core index']
  #allocation1 [shape = 'u32[144,128]{1,0:T(1,128)}', space=vmem, size = 0x12000, scoped, tag = 'internal scratch']
  %s0 = inlined_call_operand.vmem [shape: bf16[2,5,5,16], index: 0, kind: input, shape index: {}]
  %s1 = inlined_call_operand.vmem [shape: bf16[2,5,5,16], index: 1, kind: input, shape index: {}]
  %s2 = inlined_call_operand.vmem [shape: bf16[2,5,5,16], index: 2, kind: input, shape index: {}]
  %s3 = inlined_call_operand.vmem [shape: bf16[2,5,5,16], index: 3, kind: input, shape index: {}]
  %s4 = inlined_call_operand.vmem [shape: bf16[9,16,32], index: 4, kind: input, shape index: {}]
  %s5 = inlined_call_operand.vmem [shape: bf16[2,4,4,32], index: 5, kind: output, shape index: {}]
  %s6 = sld [smem:[#allocation0]]
  $region53: #{base_model_forward.4} parent=0
    _
  %s8 = ssub.s32 1, %s6
  %s9 = scalar_select 0, %s8, %s6
  loop: start=0, step=1, limit=4
  $region2: #{base_model_forward.4} parent=0 // loop_pre_header
    _
  $region3: #{base_model_forward.4} parent=0 // loop_header
    %s11 = sphi 0, %s15
    %p12 = scmp.ge.s32.totalorder %s11, 4
    %s21 = sphi 0, %s23
    %s24 = sphi 0, %s21
    %s25 = sphi 0, %s24
    %s41 = sphi 0, %s25
    %s47 = sphi 0, %s49
    %s50 = sphi 0, %s47
    %s51 = sphi 0, %s50
    %s67 = sphi 0, %s51
    %s73 = sphi 0, %s75
    %s76 = sphi 0, %s73
    %s77 = sphi 0, %s76
    %s93 = sphi 0, %s77
    %s99 = sphi 0, %s101
    %s102 = sphi 0, %s99
    %s103 = sphi 0, %s102
    %s119 = sphi 0, %s103
    %s123 = sphi 0, %s123
    %s125 = sphi 0, %s123
    %s126 = sphi 0, %s125
    %s140 = sphi 0, %s126
    %s146 = sphi 0, %s148
    %s149 = sphi 0, %s146
    %s150 = sphi 0, %s149
    %s166 = sphi 0, %s150
  $region4: #{base_model_forward.4} parent=0 // loop_header_branch
    %14 = sbr.rel (%p12) target = $region8
  $region5: #{base_model_forward.4} parent=0 // loop_body
    %s16 = ssub.s32 %s11, 1
    %s17 = ssub.s32 %s11, 2
    %s18 = sadd.s32 %s11, 1
    %s19 = ssub.s32 %s11, %s18
    %p20 = scmp.eq.s32.totalorder %s19, 0
    %s22 = sadd.s32 %s21, 1
    %s23 = scalar_select %p20, %s21, %s22
    %p26 = pneg %p20
    %p27 = scmp.eq.s32.totalorder %s11, 1
    %p28 = por %p26, %p27
    %p29 = scmp.ne.s32.totalorder %s21, %s24
    %p30 = scmp.eq.s32.totalorder %s11, 0
    %p31 = por %p29, %p30
    %p32 = scmp.ne.s32.totalorder %s21, %s24
    %p33 = scmp.eq.s32.totalorder %s16, 1
    %p34 = por %p32, %p33
    %p35 = scmp.ne.s32.totalorder %s24, %s25
    %p36 = scmp.eq.s32.totalorder %s16, 0
    %p37 = por %p35, %p36
    %p38 = scmp.ne.s32.totalorder %s24, %s25
    %p39 = scmp.eq.s32.totalorder %s17, 1
    %p40 = por %p38, %p39
    %p42 = scmp.ne.s32.totalorder %s25, %s41
    %p43 = scmp.eq.s32.totalorder %s17, 0
    %p44 = por %p42, %p43
    %s45 = ssub.s32 %s11, %s18
    %p46 = scmp.eq.s32.totalorder %s45, 0
    %s48 = sadd.s32 %s47, 1
    %s49 = scalar_select %p46, %s47, %s48
    %p52 = pneg %p46
    %p53 = scmp.eq.s32.totalorder %s11, 1
    %p54 = por %p52, %p53
    %p55 = scmp.ne.s32.totalorder %s47, %s50
    %p56 = scmp.eq.s32.totalorder %s11, 0
    %p57 = por %p55, %p56
    %p58 = scmp.ne.s32.totalorder %s47, %s50
    %p59 = scmp.eq.s32.totalorder %s16, 1
    %p60 = por %p58, %p59
    %p61 = scmp.ne.s32.totalorder %s50, %s51
    %p62 = scmp.eq.s32.totalorder %s16, 0
    %p63 = por %p61, %p62
    %p64 = scmp.ne.s32.totalorder %s50, %s51
    %p65 = scmp.eq.s32.totalorder %s17, 1
    %p66 = por %p64, %p65
    %p68 = scmp.ne.s32.totalorder %s51, %s67
    %p69 = scmp.eq.s32.totalorder %s17, 0
    %p70 = por %p68, %p69
    %s71 = ssub.s32 %s11, %s18
    %p72 = scmp.eq.s32.totalorder %s71, 0
    %s74 = sadd.s32 %s73, 1
    %s75 = scalar_select %p72, %s73, %s74
    %p78 = pneg %p72
    %p79 = scmp.eq.s32.totalorder %s11, 1
    %p80 = por %p78, %p79
    %p81 = scmp.ne.s32.totalorder %s73, %s76
    %p82 = scmp.eq.s32.totalorder %s11, 0
    %p83 = por %p81, %p82
    %p84 = scmp.ne.s32.totalorder %s73, %s76
    %p85 = scmp.eq.s32.totalorder %s16, 1
    %p86 = por %p84, %p85
    %p87 = scmp.ne.s32.totalorder %s76, %s77
    %p88 = scmp.eq.s32.totalorder %s16, 0
    %p89 = por %p87, %p88
    %p90 = scmp.ne.s32.totalorder %s76, %s77
    %p91 = scmp.eq.s32.totalorder %s17, 1
    %p92 = por %p90, %p91
    %p94 = scmp.ne.s32.totalorder %s77, %s93
    %p95 = scmp.eq.s32.totalorder %s17, 0
    %p96 = por %p94, %p95
    %s97 = ssub.s32 %s11, %s18
    %p98 = scmp.eq.s32.totalorder %s97, 0
    %s100 = sadd.s32 %s99, 1
    %s101 = scalar_select %p98, %s99, %s100
    %p104 = pneg %p98
    %p105 = scmp.eq.s32.totalorder %s11, 1
    %p106 = por %p104, %p105
    %p107 = scmp.ne.s32.totalorder %s99, %s102
    %p108 = scmp.eq.s32.totalorder %s11, 0
    %p109 = por %p107, %p108
    %p110 = scmp.ne.s32.totalorder %s99, %s102
    %p111 = scmp.eq.s32.totalorder %s16, 1
    %p112 = por %p110, %p111
    %p113 = scmp.ne.s32.totalorder %s102, %s103
    %p114 = scmp.eq.s32.totalorder %s16, 0
    %p115 = por %p113, %p114
    %p116 = scmp.ne.s32.totalorder %s102, %s103
    %p117 = scmp.eq.s32.totalorder %s17, 1
    %p118 = por %p116, %p117
    %p120 = scmp.ne.s32.totalorder %s103, %s119
    %p121 = scmp.eq.s32.totalorder %s17, 0
    %p122 = por %p120, %p121
    %s124 = sadd.s32 %s123, 1
    %p127 = scmp.eq.s32.totalorder %s11, 1
    %p128 = scmp.ne.s32.totalorder %s123, %s125
    %p129 = scmp.eq.s32.totalorder %s11, 0
    %p130 = por %p128, %p129
    %p131 = scmp.ne.s32.totalorder %s123, %s125
    %p132 = scmp.eq.s32.totalorder %s16, 1
    %p133 = por %p131, %p132
    %p134 = scmp.ne.s32.totalorder %s125, %s126
    %p135 = scmp.eq.s32.totalorder %s16, 0
    %p136 = por %p134, %p135
    %p137 = scmp.ne.s32.totalorder %s125, %s126
    %p138 = scmp.eq.s32.totalorder %s17, 1
    %p139 = por %p137, %p138
    %p141 = scmp.ne.s32.totalorder %s126, %s140
    %p142 = scmp.eq.s32.totalorder %s17, 0
    %p143 = por %p141, %p142
    %s144 = ssub.s32 %s11, %s18
    %p145 = scmp.eq.s32.totalorder %s144, 0
    %s147 = sadd.s32 %s146, 1
    %s148 = scalar_select %p145, %s146, %s147
    %p151 = pneg %p145
    %p152 = scmp.eq.s32.totalorder %s11, 1
    %p153 = por %p151, %p152
    %p154 = scmp.ne.s32.totalorder %s146, %s149
    %p155 = scmp.eq.s32.totalorder %s11, 0
    %p156 = por %p154, %p155
    %p157 = scmp.ne.s32.totalorder %s146, %s149
    %p158 = scmp.eq.s32.totalorder %s16, 1
    %p159 = por %p157, %p158
    %p160 = scmp.ne.s32.totalorder %s149, %s150
    %p161 = scmp.eq.s32.totalorder %s16, 0
    %p162 = por %p160, %p161
    %p163 = scmp.ne.s32.totalorder %s149, %s150
    %p164 = scmp.eq.s32.totalorder %s17, 1
    %p165 = por %p163, %p164
    %p167 = scmp.ne.s32.totalorder %s150, %s166
    %p168 = scmp.eq.s32.totalorder %s17, 0
    %p169 = por %p167, %p168
    %p170 = scmp.le.s32.totalorder 1, %s11
    %p171 = scmp.lt.s32.totalorder %s11, 3
    %p172 = pnand %p170, %p171
    %p173 = pneg %p172
    // Predicated region
    $region9: #{base_model_forward.4} parent=5 // pred_check
      _
    $region10: #{base_model_forward.4} parent=5 // pred_check_branch
      %175 = sbr.rel (%p172) target = $region12
    $region11: #{base_model_forward.4} parent=5 // pred_region
      %s176 = ssub.s32 %s11, 1
      // Predicated region
      $region13: #{base_model_forward.4} parent=11 // pred_check
        %p177 = pneg %p136
      $region14: #{base_model_forward.4} parent=11 // pred_check_branch
        %179 = sbr.rel (%p177) target = $region16
      $region15: #{base_model_forward.4} parent=11 // pred_region
        _
      $region16: #{base_model_forward.4} parent=11 // pred_fallthru
        _
    $region12: #{base_model_forward.4} parent=5 // pred_fallthru
      _
    %p180 = scmp.lt.s32.totalorder %s11, 2
    // Predicated region
    $region17: #{base_model_forward.4} parent=5 // pred_check
      %p181 = pneg %p180
    $region18: #{base_model_forward.4} parent=5 // pred_check_branch
      %183 = sbr.rel (%p181) target = $region20
    $region19: #{base_model_forward.4} parent=5 // pred_region
      // Predicated region
      $region21: #{base_model_forward.4} parent=19 // pred_check
        %p184 = pneg %p31
      $region22: #{base_model_forward.4} parent=19 // pred_check_branch
        %186 = sbr.rel (%p184) target = $region24
      $region23: #{base_model_forward.4} parent=19 // pred_region
        %p187 = scmp.lt.s32.totalorder %s11, 1
        %s188 = scalar_select %p187, %s11, 1
        %s189 = smul.addr %s188, 5
        %s190 = smul.addr %s189, 4
        %s191 = scalar_lea.vmem %s0, %s190
      $region24: #{base_model_forward.4} parent=19 // pred_fallthru
        _
      // Predicated region
      $region25: #{base_model_forward.4} parent=19 // pred_check
        %p192 = pneg %p57
      $region26: #{base_model_forward.4} parent=19 // pred_check_branch
        %194 = sbr.rel (%p192) target = $region28
      $region27: #{base_model_forward.4} parent=19 // pred_region
        %p195 = scmp.lt.s32.totalorder %s11, 1
        %s196 = scalar_select %p195, %s11, 1
        %s197 = smul.addr %s196, 5
        %s198 = smul.addr %s197, 4
        %s199 = scalar_lea.vmem %s1, %s198
      $region28: #{base_model_forward.4} parent=19 // pred_fallthru
        _
      // Predicated region
      $region29: #{base_model_forward.4} parent=19 // pred_check
        %p200 = pneg %p83
      $region30: #{base_model_forward.4} parent=19 // pred_check_branch
        %202 = sbr.rel (%p200) target = $region32
      $region31: #{base_model_forward.4} parent=19 // pred_region
        %p203 = scmp.lt.s32.totalorder %s11, 1
        %s204 = scalar_select %p203, %s11, 1
        %s205 = smul.addr %s204, 5
        %s206 = smul.addr %s205, 4
        %s207 = scalar_lea.vmem %s2, %s206
      $region32: #{base_model_forward.4} parent=19 // pred_fallthru
        _
      // Predicated region
      $region33: #{base_model_forward.4} parent=19 // pred_check
        %p208 = pneg %p109
      $region34: #{base_model_forward.4} parent=19 // pred_check_branch
        %210 = sbr.rel (%p208) target = $region36
      $region35: #{base_model_forward.4} parent=19 // pred_region
        %p211 = scmp.lt.s32.totalorder %s11, 1
        %s212 = scalar_select %p211, %s11, 1
        %s213 = smul.addr %s212, 5
        %s214 = smul.addr %s213, 4
        %s215 = scalar_lea.vmem %s3, %s214
      $region36: #{base_model_forward.4} parent=19 // pred_fallthru
        _
    $region20: #{base_model_forward.4} parent=5 // pred_fallthru
      _
    %p216 = scmp.le.s32.totalorder 1, %s11
    %p217 = scmp.lt.s32.totalorder %s11, 3
    %p218 = pnand %p216, %p217
    %p219 = pneg %p218
    // Predicated region
    $region37: #{base_model_forward.4} parent=5 // pred_check
      _
    $region38: #{base_model_forward.4} parent=5 // pred_check_branch
      %221 = sbr.rel (%p218) target = $region40
    $region39: #{base_model_forward.4} parent=5 // pred_region
      %s222 = ssub.s32 %s11, 1
      %p223 = scmp.lt.s32.totalorder %s16, 1
      %s224 = scalar_select %p223, %s16, 1
      %s225 = smul.addr %s224, 5
      %s226 = smul.addr %s225, 4
      %s227 = scalar_lea.vmem %s0, %s226
      %p228 = pneg %p37
      %p229 = pneg %p34
      %p230 = scmp.lt.s32.totalorder %s16, 1
      %s231 = scalar_select %p230, %s16, 1
      %s232 = smul.addr %s231, 5
      %s233 = smul.addr %s232, 4
      %s234 = scalar_lea.vmem %s1, %s233
      %p235 = pneg %p63
      %p236 = pneg %p60
      %p237 = scmp.lt.s32.totalorder %s16, 1
      %s238 = scalar_select %p237, %s16, 1
      %s239 = smul.addr %s238, 5
      %s240 = smul.addr %s239, 4
      %s241 = scalar_lea.vmem %s2, %s240
      %p242 = pneg %p89
      %p243 = pneg %p86
      %p244 = scmp.lt.s32.totalorder %s16, 1
      %s245 = scalar_select %p244, %s16, 1
      %s246 = smul.addr %s245, 5
      %s247 = smul.addr %s246, 4
      %s248 = scalar_lea.vmem %s3, %s247
      %p249 = pneg %p115
      %p250 = pneg %p112
      %p251 = pneg %p136
      %p252 = pneg %p133
      %p253 = pneg %p162
      %p254 = pneg %p159
      %p255 = scmp.lt.s32.totalorder %s16, 1
      %s256 = scalar_select %p255, %s16, 1
      %s257 = smul.addr %s256, 4
      %s258 = smul.addr %s257, 2
      %s259 = scalar_lea.vmem %s5, %s258
      %p260 = scmp.lt.s32.totalorder %s16, 1
      %s261 = scalar_select %p260, %s16, 1
      %s262 = smul.addr %s261, 5
      %s263 = smul.addr %s262, 4
      %s264 = scalar_lea.vmem %s0, %s263
      %p265 = scmp.lt.s32.totalorder %s16, 1
      %s266 = scalar_select %p265, %s16, 1
      %s267 = smul.addr %s266, 5
      %s268 = smul.addr %s267, 4
      %s269 = scalar_lea.vmem %s1, %s268
      %p270 = scmp.lt.s32.totalorder %s16, 1
      %s271 = scalar_select %p270, %s16, 1
      %s272 = smul.addr %s271, 5
      %s273 = smul.addr %s272, 4
      %s274 = scalar_lea.vmem %s2, %s273
      %p275 = scmp.lt.s32.totalorder %s16, 1
      %s276 = scalar_select %p275, %s16, 1
      %s277 = smul.addr %s276, 5
      %s278 = smul.addr %s277, 4
      %s279 = scalar_lea.vmem %s3, %s278
      %p280 = scmp.lt.s32.totalorder %s16, 1
      %s281 = scalar_select %p280, %s16, 1
      %s282 = smul.addr %s281, 4
      %s283 = smul.addr %s282, 2
      %s284 = scalar_lea.vmem %s5, %s283
      %v286 = vld [vmem:[%s264] sm:$0x3]
      %v287 = vld [vmem:[%s4] sm:$0xf]
      %v288 = vld [vmem:[%s4 + $0x4] sm:$0xf]
      %v289 = vld [vmem:[%s269] sm:$0x3]
      %s290 = scalar_lea.vmem %s4, 8
      %v291 = vld [vmem:[%s290] sm:$0xf]
      %v292 = vld [vmem:[%s290 + $0x4] sm:$0xf]
      %v295 = vunpack.c.l.b16 %v291
      %v296 = vunpack.c.l.b16 %v292
      %v297 = vpack.c.b16 %v296, %v295
      %vm299 = vcmask 130048
      %v301 = vsel %vm299, %v289, 0
      %303 = vmatprep.subr.bf16.mxu0 0
      %304 = vmatpush1.bf16.msra.mxu0 %v297
      %305 = vmatprep.subr.bf16.mxu0 0
      %306 = vmatpush1.bf16.msra.mxu0 0
      %307 = vmatprep.subr.bf16.mxu0 0
      %308 = vmatpush1.bf16.msra.mxu0 0
      %309 = vmatprep.subr.bf16.mxu0 0
      %310 = vmatpush1.bf16.msra.mxu0 0
      %311 = vmatprep.subr.bf16.mxu0 0
      %312 = vmatpush1.bf16.msra.mxu0 0
      %313 = vmatprep.subr.bf16.mxu0 0
      %314 = vmatpush1.bf16.msra.mxu0 0
      %315 = vmatprep.subr.bf16.mxu0 0
      %316 = vmatpush1.bf16.msra.mxu0 0
      %317 = vmatprep.subr.bf16.mxu0 0
      %318 = vmatpush1.bf16.msra.mxu0 0
      %319 = vmatprep.subr.bf16.mxu0 0
      %320 = vmatpush1.bf16.msra.mxu0 0
      %321 = vmatprep.subr.bf16.mxu0 0
      %322 = vmatpush1.bf16.msra.mxu0 0
      %323 = vmatprep.subr.bf16.mxu0 0
      %324 = vmatpush1.bf16.msra.mxu0 0
      %325 = vmatprep.subr.bf16.mxu0 0
      %326 = vmatpush1.bf16.msra.mxu0 0
      %327 = vmatprep.subr.bf16.mxu0 0
      %328 = vmatpush1.bf16.msra.mxu0 0
      %329 = vmatprep.subr.bf16.mxu0 0
      %330 = vmatpush1.bf16.msra.mxu0 0
      %331 = vmatprep.subr.bf16.mxu0 0
      %332 = vmatpush1.bf16.msra.mxu0 0
      %333 = vmatprep.subr.bf16.mxu0 0
      %334 = vmatpush1.bf16.msra.mxu0 0
      %335 = vmatprep.mubr.bf16.mxu0 0
      %336 = vmatmul.mubr.bf16.gmra.mrb[0].mxu0 %v301
      %v337 = vpop.f32.mrb[0].mxu0
      %v338 = vadd.f32 0.0, %v337
      %v339 = vpop.f32.mrb[0].mxu0
      %v340 = vpop.f32.mrb[0].mxu0
      %v341 = vpop.f32.mrb[0].mxu0
      %342 = vdwg.mxu0
      %v345 = vunpack.c.l.b16 %v287
      %v346 = vunpack.c.l.b16 %v288
      %v347 = vpack.c.b16 %v346, %v345
      %v350 = vsel %vm299, %v286, 0
      %352 = vmatprep.subr.bf16.mxu0 0
      %353 = vmatpush1.bf16.msra.mxu0 %v347
      %354 = vmatprep.subr.bf16.mxu0 0
      %355 = vmatpush1.bf16.msra.mxu0 0
      %356 = vmatprep.subr.bf16.mxu0 0
      %357 = vmatpush1.bf16.msra.mxu0 0
      %358 = vmatprep.subr.bf16.mxu0 0
      %359 = vmatpush1.bf16.msra.mxu0 0
      %360 = vmatprep.subr.bf16.mxu0 0
      %361 = vmatpush1.bf16.msra.mxu0 0
      %362 = vmatprep.subr.bf16.mxu0 0
      %363 = vmatpush1.bf16.msra.mxu0 0
      %364 = vmatprep.subr.bf16.mxu0 0
      %365 = vmatpush1.bf16.msra.mxu0 0
      %366 = vmatprep.subr.bf16.mxu0 0
      %367 = vmatpush1.bf16.msra.mxu0 0
      %368 = vmatprep.subr.bf16.mxu0 0
      %369 = vmatpush1.bf16.msra.mxu0 0
      %370 = vmatprep.subr.bf16.mxu0 0
      %371 = vmatpush1.bf16.msra.mxu0 0
      %372 = vmatprep.subr.bf16.mxu0 0
      %373 = vmatpush1.bf16.msra.mxu0 0
      %374 = vmatprep.subr.bf16.mxu0 0
      %375 = vmatpush1.bf16.msra.mxu0 0
      %376 = vmatprep.subr.bf16.mxu0 0
      %377 = vmatpush1.bf16.msra.mxu0 0
      %378 = vmatprep.subr.bf16.mxu0 0
      %379 = vmatpush1.bf16.msra.mxu0 0
      %380 = vmatprep.subr.bf16.mxu0 0
      %381 = vmatpush1.bf16.msra.mxu0 0
      %382 = vmatprep.subr.bf16.mxu0 0
      %383 = vmatpush1.bf16.msra.mxu0 0
      %384 = vmatprep.mubr.bf16.mxu0 0
      %385 = vmatmul.mubr.bf16.gmra.mrb[0].mxu0 %v350
      %v386 = vpop.f32.mrb[0].mxu0
      %v387 = vadd.f32 %v338, %v386
      %v388 = vpop.f32.mrb[0].mxu0
      %v389 = vpop.f32.mrb[0].mxu0
      %v390 = vpop.f32.mrb[0].mxu0
      %391 = vdwg.mxu0
      %v392 = vld [vmem:[%s264] sm:$0x7]
      %s393 = scalar_lea.vmem %s4, 16
      %v394 = vld [vmem:[%s393] sm:$0xf]
      %v395 = vld [vmem:[%s393 + $0x4] sm:$0xf]
      %v397 = vunpack.c.l.b16 %v392
      %v398 = vpack.c.b16 %v397, %v397
      %v400 = vshrl.u32 %v398, 16
      %v402 = vshll.u32 %v398, 16
      %v404 = vrot.slane %v402, 1
      %v405 = vor.u32 %v400, %v404
      %v408 = vunpack.c.l.b16 %v394
      %v409 = vunpack.c.l.b16 %v395
      %v410 = vpack.c.b16 %v409, %v408
      %v413 = vsel %vm299, %v405, 0
      %415 = vmatprep.subr.bf16.mxu0 0
      %416 = vmatpush1.bf16.msra.mxu0 %v410
      %417 = vmatprep.subr.bf16.mxu0 0
      %418 = vmatpush1.bf16.msra.mxu0 0
      %419 = vmatprep.subr.bf16.mxu0 0
      %420 = vmatpush1.bf16.msra.mxu0 0
      %421 = vmatprep.subr.bf16.mxu0 0
      %422 = vmatpush1.bf16.msra.mxu0 0
      %423 = vmatprep.subr.bf16.mxu0 0
      %424 = vmatpush1.bf16.msra.mxu0 0
      %425 = vmatprep.subr.bf16.mxu0 0
      %426 = vmatpush1.bf16.msra.mxu0 0
      %427 = vmatprep.subr.bf16.mxu0 0
      %428 = vmatpush1.bf16.msra.mxu0 0
      %429 = vmatprep.subr.bf16.mxu0 0
      %430 = vmatpush1.bf16.msra.mxu0 0
      %431 = vmatprep.subr.bf16.mxu0 0
      %432 = vmatpush1.bf16.msra.mxu0 0
      %433 = vmatprep.subr.bf16.mxu0 0
      %434 = vmatpush1.bf16.msra.mxu0 0
      %435 = vmatprep.subr.bf16.mxu0 0
      %436 = vmatpush1.bf16.msra.mxu0 0
      %437 = vmatprep.subr.bf16.mxu0 0
      %438 = vmatpush1.bf16.msra.mxu0 0
      %439 = vmatprep.subr.bf16.mxu0 0
      %440 = vmatpush1.bf16.msra.mxu0 0
      %441 = vmatprep.subr.bf16.mxu0 0
      %442 = vmatpush1.bf16.msra.mxu0 0
      %443 = vmatprep.subr.bf16.mxu0 0
      %444 = vmatpush1.bf16.msra.mxu0 0
      %445 = vmatprep.subr.bf16.mxu0 0
      %446 = vmatpush1.bf16.msra.mxu0 0
      %447 = vmatprep.mubr.bf16.mxu0 0
      %448 = vmatmul.mubr.bf16.gmra.mrb[0].mxu0 %v413
      %v449 = vpop.f32.mrb[0].mxu0
      %v450 = vadd.f32 0.0, %v449
      %v451 = vpop.f32.mrb[0].mxu0
      %v452 = vpop.f32.mrb[0].mxu0
      %v453 = vpop.f32.mrb[0].mxu0
      %454 = vdwg.mxu0
      %v455 = vadd.f32 %v387, %v450
      %v456 = vld [vmem:[%s274] sm:$0x3]
      %s457 = scalar_lea.vmem %s4, 24
      %v458 = vld [vmem:[%s457] sm:$0xf]
      %v459 = vld [vmem:[%s457 + $0x4] sm:$0xf]
      %v462 = vunpack.c.l.b16 %v458
      %v463 = vunpack.c.l.b16 %v459
      %v464 = vpack.c.b16 %v463, %v462
      %v467 = vsel %vm299, %v456, 0
      %469 = vmatprep.subr.bf16.mxu0 0
      %470 = vmatpush1.bf16.msra.mxu0 %v464
      %471 = vmatprep.subr.bf16.mxu0 0
      %472 = vmatpush1.bf16.msra.mxu0 0
      %473 = vmatprep.subr.bf16.mxu0 0
      %474 = vmatpush1.bf16.msra.mxu0 0
      %475 = vmatprep.subr.bf16.mxu0 0
      %476 = vmatpush1.bf16.msra.mxu0 0
      %477 = vmatprep.subr.bf16.mxu0 0
      %478 = vmatpush1.bf16.msra.mxu0 0
      %479 = vmatprep.subr.bf16.mxu0 0
      %480 = vmatpush1.bf16.msra.mxu0 0
      %481 = vmatprep.subr.bf16.mxu0 0
      %482 = vmatpush1.bf16.msra.mxu0 0
      %483 = vmatprep.subr.bf16.mxu0 0
      %484 = vmatpush1.bf16.msra.mxu0 0
      %485 = vmatprep.subr.bf16.mxu0 0
      %486 = vmatpush1.bf16.msra.mxu0 0
      %487 = vmatprep.subr.bf16.mxu0 0
      %488 = vmatpush1.bf16.msra.mxu0 0
      %489 = vmatprep.subr.bf16.mxu0 0
      %490 = vmatpush1.bf16.msra.mxu0 0
      %491 = vmatprep.subr.bf16.mxu0 0
      %492 = vmatpush1.bf16.msra.mxu0 0
      %493 = vmatprep.subr.bf16.mxu0 0
      %494 = vmatpush1.bf16.msra.mxu0 0
      %495 = vmatprep.subr.bf16.mxu0 0
      %496 = vmatpush1.bf16.msra.mxu0 0
      %497 = vmatprep.subr.bf16.mxu0 0
      %498 = vmatpush1.bf16.msra.mxu0 0
      %499 = vmatprep.subr.bf16.mxu0 0
      %500 = vmatpush1.bf16.msra.mxu0 0
      %501 = vmatprep.mubr.bf16.mxu0 0
      %502 = vmatmul.mubr.bf16.gmra.mrb[0].mxu0 %v467
      %v503 = vpop.f32.mrb[0].mxu0
      %v504 = vadd.f32 0.0, %v503
      %v505 = vpop.f32.mrb[0].mxu0
      %v506 = vpop.f32.mrb[0].mxu0
      %v507 = vpop.f32.mrb[0].mxu0
      %508 = vdwg.mxu0
      %v509 = vadd.f32 %v455, %v504
      %v510 = vld [vmem:[%s279] sm:$0x3]
      %s511 = scalar_lea.vmem %s4, 32
      %v512 = vld [vmem:[%s511] sm:$0xf]
      %v513 = vld [vmem:[%s511 + $0x4] sm:$0xf]
      %v516 = vunpack.c.l.b16 %v512
      %v517 = vunpack.c.l.b16 %v513
      %v518 = vpack.c.b16 %v517, %v516
      %v521 = vsel %vm299, %v510, 0
      %523 = vmatprep.subr.bf16.mxu0 0
      %524 = vmatpush1.bf16.msra.mxu0 %v518
      %525 = vmatprep.subr.bf16.mxu0 0
      %526 = vmatpush1.bf16.msra.mxu0 0
      %527 = vmatprep.subr.bf16.mxu0 0
      %528 = vmatpush1.bf16.msra.mxu0 0
      %529 = vmatprep.subr.bf16.mxu0 0
      %530 = vmatpush1.bf16.msra.mxu0 0
      %531 = vmatprep.subr.bf16.mxu0 0
      %532 = vmatpush1.bf16.msra.mxu0 0
      %533 = vmatprep.subr.bf16.mxu0 0
      %534 = vmatpush1.bf16.msra.mxu0 0
      %535 = vmatprep.subr.bf16.mxu0 0
      %536 = vmatpush1.bf16.msra.mxu0 0
      %537 = vmatprep.subr.bf16.mxu0 0
      %538 = vmatpush1.bf16.msra.mxu0 0
      %539 = vmatprep.subr.bf16.mxu0 0
      %540 = vmatpush1.bf16.msra.mxu0 0
      %541 = vmatprep.subr.bf16.mxu0 0
      %542 = vmatpush1.bf16.msra.mxu0 0
      %543 = vmatprep.subr.bf16.mxu0 0
      %544 = vmatpush1.bf16.msra.mxu0 0
      %545 = vmatprep.subr.bf16.mxu0 0
      %546 = vmatpush1.bf16.msra.mxu0 0
      %547 = vmatprep.subr.bf16.mxu0 0
      %548 = vmatpush1.bf16.msra.mxu0 0
      %549 = vmatprep.subr.bf16.mxu0 0
      %550 = vmatpush1.bf16.msra.mxu0 0
      %551 = vmatprep.subr.bf16.mxu0 0
      %552 = vmatpush1.bf16.msra.mxu0 0
      %553 = vmatprep.subr.bf16.mxu0 0
      %554 = vmatpush1.bf16.msra.mxu0 0
      %555 = vmatprep.mubr.bf16.mxu0 0
      %556 = vmatmul.mubr.bf16.gmra.mrb[0].mxu0 %v521
      %v557 = vpop.f32.mrb[0].mxu0
      %v558 = vadd.f32 0.0, %v557
      %v559 = vpop.f32.mrb[0].mxu0
      %v560 = vpop.f32.mrb[0].mxu0
      %v561 = vpop.f32.mrb[0].mxu0
      %562 = vdwg.mxu0
      %v563 = vadd.f32 %v509, %v558
      %v564 = vld [vmem:[%s274] sm:$0x7]
      %s565 = scalar_lea.vmem %s4, 40
      %v566 = vld [vmem:[%s565] sm:$0xf]
      %v567 = vld [vmem:[%s565 + $0x4] sm:$0xf]
      %v569 = vunpack.c.l.b16 %v564
      %v570 = vpack.c.b16 %v569, %v569
      %v572 = vshrl.u32 %v570, 16
      %v574 = vshll.u32 %v570, 16
      %v576 = vrot.slane %v574, 1
      %v577 = vor.u32 %v572, %v576
      %v580 = vunpack.c.l.b16 %v566
      %v581 = vunpack.c.l.b16 %v567
      %v582 = vpack.c.b16 %v581, %v580
      %v585 = vsel %vm299, %v577, 0
      %587 = vmatprep.subr.bf16.mxu0 0
      %588 = vmatpush1.bf16.msra.mxu0 %v582
      %589 = vmatprep.subr.bf16.mxu0 0
      %590 = vmatpush1.bf16.msra.mxu0 0
      %591 = vmatprep.subr.bf16.mxu0 0
      %592 = vmatpush1.bf16.msra.mxu0 0
      %593 = vmatprep.subr.bf16.mxu0 0
      %594 = vmatpush1.bf16.msra.mxu0 0
      %595 = vmatprep.subr.bf16.mxu0 0
      %596 = vmatpush1.bf16.msra.mxu0 0
      %597 = vmatprep.subr.bf16.mxu0 0
      %598 = vmatpush1.bf16.msra.mxu0 0
      %599 = vmatprep.subr.bf16.mxu0 0
      %600 = vmatpush1.bf16.msra.mxu0 0
      %601 = vmatprep.subr.bf16.mxu0 0
      %602 = vmatpush1.bf16.msra.mxu0 0
      %603 = vmatprep.subr.bf16.mxu0 0
      %604 = vmatpush1.bf16.msra.mxu0 0
      %605 = vmatprep.subr.bf16.mxu0 0
      %606 = vmatpush1.bf16.msra.mxu0 0
      %607 = vmatprep.subr.bf16.mxu0 0
      %608 = vmatpush1.bf16.msra.mxu0 0
      %609 = vmatprep.subr.bf16.mxu0 0
      %610 = vmatpush1.bf16.msra.mxu0 0
      %611 = vmatprep.subr.bf16.mxu0 0
      %612 = vmatpush1.bf16.msra.mxu0 0
      %613 = vmatprep.subr.bf16.mxu0 0
      %614 = vmatpush1.bf16.msra.mxu0 0
      %615 = vmatprep.subr.bf16.mxu0 0
      %616 = vmatpush1.bf16.msra.mxu0 0
      %617 = vmatprep.subr.bf16.mxu0 0
      %618 = vmatpush1.bf16.msra.mxu0 0
      %619 = vmatprep.mubr.bf16.mxu0 0
      %620 = vmatmul.mubr.bf16.gmra.mrb[0].mxu0 %v585
      %v621 = vpop.f32.mrb[0].mxu0
      %v622 = vadd.f32 0.0, %v621
      %v623 = vpop.f32.mrb[0].mxu0
      %v624 = vpop.f32.mrb[0].mxu0
      %v625 = vpop.f32.mrb[0].mxu0
      %626 = vdwg.mxu0
      %v627 = vadd.f32 %v563, %v622
      %s628 = scalar_lea.vmem %s264, 4
      %v629 = vld [vmem:[%s628] sm:$0x3]
      %s630 = scalar_lea.vmem %s4, 48
      %v631 = vld [vmem:[%s630] sm:$0xf]
      %v632 = vld [vmem:[%s630 + $0x4] sm:$0xf]
      %v635 = vunpack.c.l.b16 %v631
      %v636 = vunpack.c.l.b16 %v632
      %v637 = vpack.c.b16 %v636, %v635
      %v640 = vsel %vm299, %v629, 0
      %642 = vmatprep.subr.bf16.mxu0 0
      %643 = vmatpush1.bf16.msra.mxu0 %v637
      %644 = vmatprep.subr.bf16.mxu0 0
      %645 = vmatpush1.bf16.msra.mxu0 0
      %646 = vmatprep.subr.bf16.mxu0 0
      %647 = vmatpush1.bf16.msra.mxu0 0
      %648 = vmatprep.subr.bf16.mxu0 0
      %649 = vmatpush1.bf16.msra.mxu0 0
      %650 = vmatprep.subr.bf16.mxu0 0
      %651 = vmatpush1.bf16.msra.mxu0 0
      %652 = vmatprep.subr.bf16.mxu0 0
      %653 = vmatpush1.bf16.msra.mxu0 0
      %654 = vmatprep.subr.bf16.mxu0 0
      %655 = vmatpush1.bf16.msra.mxu0 0
      %656 = vmatprep.subr.bf16.mxu0 0
      %657 = vmatpush1.bf16.msra.mxu0 0
      %658 = vmatprep.subr.bf16.mxu0 0
      %659 = vmatpush1.bf16.msra.mxu0 0
      %660 = vmatprep.subr.bf16.mxu0 0
      %661 = vmatpush1.bf16.msra.mxu0 0
      %662 = vmatprep.subr.bf16.mxu0 0
      %663 = vmatpush1.bf16.msra.mxu0 0
      %664 = vmatprep.subr.bf16.mxu0 0
      %665 = vmatpush1.bf16.msra.mxu0 0
      %666 = vmatprep.subr.bf16.mxu0 0
      %667 = vmatpush1.bf16.msra.mxu0 0
      %668 = vmatprep.subr.bf16.mxu0 0
      %669 = vmatpush1.bf16.msra.mxu0 0
      %670 = vmatprep.subr.bf16.mxu0 0
      %671 = vmatpush1.bf16.msra.mxu0 0
      %672 = vmatprep.subr.bf16.mxu0 0
      %673 = vmatpush1.bf16.msra.mxu0 0
      %674 = vmatprep.mubr.bf16.mxu0 0
      %675 = vmatmul.mubr.bf16.gmra.mrb[0].mxu0 %v640
      %v676 = vpop.f32.mrb[0].mxu0
      %v677 = vadd.f32 0.0, %v676
      %v678 = vpop.f32.mrb[0].mxu0
      %v679 = vpop.f32.mrb[0].mxu0
      %v680 = vpop.f32.mrb[0].mxu0
      %681 = vdwg.mxu0
      %v682 = vadd.f32 %v627, %v677
      %s683 = scalar_lea.vmem %s269, 4
      %v684 = vld [vmem:[%s683] sm:$0x3]
      %s685 = scalar_lea.vmem %s4, 56
      %v686 = vld [vmem:[%s685] sm:$0xf]
      %v687 = vld [vmem:[%s685 + $0x4] sm:$0xf]
      %v690 = vunpack.c.l.b16 %v686
      %v691 = vunpack.c.l.b16 %v687
      %v692 = vpack.c.b16 %v691, %v690
      %v695 = vsel %vm299, %v684, 0
      %697 = vmatprep.subr.bf16.mxu0 0
      %698 = vmatpush1.bf16.msra.mxu0 %v692
      %699 = vmatprep.subr.bf16.mxu0 0
      %700 = vmatpush1.bf16.msra.mxu0 0
      %701 = vmatprep.subr.bf16.mxu0 0
      %702 = vmatpush1.bf16.msra.mxu0 0
      %703 = vmatprep.subr.bf16.mxu0 0
      %704 = vmatpush1.bf16.msra.mxu0 0
      %705 = vmatprep.subr.bf16.mxu0 0
      %706 = vmatpush1.bf16.msra.mxu0 0
      %707 = vmatprep.subr.bf16.mxu0 0
      %708 = vmatpush1.bf16.msra.mxu0 0
      %709 = vmatprep.subr.bf16.mxu0 0
      %710 = vmatpush1.bf16.msra.mxu0 0
      %711 = vmatprep.subr.bf16.mxu0 0
      %712 = vmatpush1.bf16.msra.mxu0 0
      %713 = vmatprep.subr.bf16.mxu0 0
      %714 = vmatpush1.bf16.msra.mxu0 0
      %715 = vmatprep.subr.bf16.mxu0 0
      %716 = vmatpush1.bf16.msra.mxu0 0
      %717 = vmatprep.subr.bf16.mxu0 0
      %718 = vmatpush1.bf16.msra.mxu0 0
      %719 = vmatprep.subr.bf16.mxu0 0
      %720 = vmatpush1.bf16.msra.mxu0 0
      %721 = vmatprep.subr.bf16.mxu0 0
      %722 = vmatpush1.bf16.msra.mxu0 0
      %723 = vmatprep.subr.bf16.mxu0 0
      %724 = vmatpush1.bf16.msra.mxu0 0
      %725 = vmatprep.subr.bf16.mxu0 0
      %726 = vmatpush1.bf16.msra.mxu0 0
      %727 = vmatprep.subr.bf16.mxu0 0
      %728 = vmatpush1.bf16.msra.mxu0 0
      %729 = vmatprep.mubr.bf16.mxu0 0
      %730 = vmatmul.mubr.bf16.gmra.mrb[0].mxu0 %v695
      %v731 = vpop.f32.mrb[0].mxu0
      %v732 = vadd.f32 0.0, %v731
      %v733 = vpop.f32.mrb[0].mxu0
      %v734 = vpop.f32.mrb[0].mxu0
      %v735 = vpop.f32.mrb[0].mxu0
      %736 = vdwg.mxu0
      %v737 = vadd.f32 %v682, %v732
      %v738 = vld [vmem:[%s628] sm:$0x7]
      %s739 = scalar_lea.vmem %s4, 64
      %v740 = vld [vmem:[%s739] sm:$0xf]
      %v741 = vld [vmem:[%s739 + $0x4] sm:$0xf]
      %v743 = vunpack.c.l.b16 %v738
      %v744 = vpack.c.b16 %v743, %v743
      %v746 = vshrl.u32 %v744, 16
      %v748 = vshll.u32 %v744, 16
      %v750 = vrot.slane %v748, 1
      %v751 = vor.u32 %v746, %v750
      %v754 = vunpack.c.l.b16 %v740
      %v755 = vunpack.c.l.b16 %v741
      %v756 = vpack.c.b16 %v755, %v754
      %v759 = vsel %vm299, %v751, 0
      %761 = vmatprep.subr.bf16.mxu0 0
      %762 = vmatpush1.bf16.msra.mxu0 %v756
      %763 = vmatprep.subr.bf16.mxu0 0
      %764 = vmatpush1.bf16.msra.mxu0 0
      %765 = vmatprep.subr.bf16.mxu0 0
      %766 = vmatpush1.bf16.msra.mxu0 0
      %767 = vmatprep.subr.bf16.mxu0 0
      %768 = vmatpush1.bf16.msra.mxu0 0
      %769 = vmatprep.subr.bf16.mxu0 0
      %770 = vmatpush1.bf16.msra.mxu0 0
      %771 = vmatprep.subr.bf16.mxu0 0
      %772 = vmatpush1.bf16.msra.mxu0 0
      %773 = vmatprep.subr.bf16.mxu0 0
      %774 = vmatpush1.bf16.msra.mxu0 0
      %775 = vmatprep.subr.bf16.mxu0 0
      %776 = vmatpush1.bf16.msra.mxu0 0
      %777 = vmatprep.subr.bf16.mxu0 0
      %778 = vmatpush1.bf16.msra.mxu0 0
      %779 = vmatprep.subr.bf16.mxu0 0
      %780 = vmatpush1.bf16.msra.mxu0 0
      %781 = vmatprep.subr.bf16.mxu0 0
      %782 = vmatpush1.bf16.msra.mxu0 0
      %783 = vmatprep.subr.bf16.mxu0 0
      %784 = vmatpush1.bf16.msra.mxu0 0
      %785 = vmatprep.subr.bf16.mxu0 0
      %786 = vmatpush1.bf16.msra.mxu0 0
      %787 = vmatprep.subr.bf16.mxu0 0
      %788 = vmatpush1.bf16.msra.mxu0 0
      %789 = vmatprep.subr.bf16.mxu0 0
      %790 = vmatpush1.bf16.msra.mxu0 0
      %791 = vmatprep.subr.bf16.mxu0 0
      %792 = vmatpush1.bf16.msra.mxu0 0
      %793 = vmatprep.mubr.bf16.mxu0 0
      %794 = vmatmul.mubr.bf16.gmra.mrb[0].mxu0 %v759
      %v795 = vpop.f32.mrb[0].mxu0
      %v796 = vadd.f32 0.0, %v795
      %v797 = vpop.f32.mrb[0].mxu0
      %v798 = vpop.f32.mrb[0].mxu0
      %v799 = vpop.f32.mrb[0].mxu0
      %800 = vdwg.mxu0
      %v801 = vadd.f32 %v737, %v796
      %v802 = vmax.f32 %v801, 0.0
      %v803 = vpack.c.bf16 %v802, %v802
      %vm804 = vcmask 254976
      %805 = vst.msk [vmem:[%s284] sm:$0x3] %vm804, %v803
      %v806 = vld [vmem:[%s628] sm:$0x3]
      %v807 = vld [vmem:[%s4] sm:$0xf]
      %v808 = vld [vmem:[%s4 + $0x4] sm:$0xf]
      %v809 = vld [vmem:[%s683] sm:$0x3]
      %v810 = vld [vmem:[%s290] sm:$0xf]
      %v811 = vld [vmem:[%s290 + $0x4] sm:$0xf]
      %v814 = vunpack.c.l.b16 %v810
      %v815 = vunpack.c.l.b16 %v811
      %v816 = vpack.c.b16 %v815, %v814
      %v819 = vsel %vm299, %v809, 0
      %821 = vmatprep.subr.bf16.mxu0 0
      %822 = vmatpush1.bf16.msra.mxu0 %v816
      %823 = vmatprep.subr.bf16.mxu0 0
      %824 = vmatpush1.bf16.msra.mxu0 0
      %825 = vmatprep.subr.bf16.mxu0 0
      %826 = vmatpush1.bf16.msra.mxu0 0
      %827 = vmatprep.subr.bf16.mxu0 0
      %828 = vmatpush1.bf16.msra.mxu0 0
      %829 = vmatprep.subr.bf16.mxu0 0
      %830 = vmatpush1.bf16.msra.mxu0 0
      %831 = vmatprep.subr.bf16.mxu0 0
      %832 = vmatpush1.bf16.msra.mxu0 0
      %833 = vmatprep.subr.bf16.mxu0 0
      %834 = vmatpush1.bf16.msra.mxu0 0
      %835 = vmatprep.subr.bf16.mxu0 0
      %836 = vmatpush1.bf16.msra.mxu0 0
      %837 = vmatprep.subr.bf16.mxu0 0
      %838 = vmatpush1.bf16.msra.mxu0 0
      %839 = vmatprep.subr.bf16.mxu0 0
      %840 = vmatpush1.bf16.msra.mxu0 0
      %841 = vmatprep.subr.bf16.mxu0 0
      %842 = vmatpush1.bf16.msra.mxu0 0
      %843 = vmatprep.subr.bf16.mxu0 0
      %844 = vmatpush1.bf16.msra.mxu0 0
      %845 = vmatprep.subr.bf16.mxu0 0
      %846 = vmatpush1.bf16.msra.mxu0 0
      %847 = vmatprep.subr.bf16.mxu0 0
      %848 = vmatpush1.bf16.msra.mxu0 0
      %849 = vmatprep.subr.bf16.mxu0 0
      %850 = vmatpush1.bf16.msra.mxu0 0
      %851 = vmatprep.subr.bf16.mxu0 0
      %852 = vmatpush1.bf16.msra.mxu0 0
      %853 = vmatprep.mubr.bf16.mxu0 0
      %854 = vmatmul.mubr.bf16.gmra.mrb[0].mxu0 %v819
      %v855 = vpop.f32.mrb[0].mxu0
      %v856 = vadd.f32 0.0, %v855
      %v857 = vpop.f32.mrb[0].mxu0
      %v858 = vpop.f32.mrb[0].mxu0
      %v859 = vpop.f32.mrb[0].mxu0
      %860 = vdwg.mxu0
      %v863 = vunpack.c.l.b16 %v807
      %v864 = vunpack.c.l.b16 %v808
      %v865 = vpack.c.b16 %v864, %v863
      %v868 = vsel %vm299, %v806, 0
      %870 = vmatprep.subr.bf16.mxu0 0
      %871 = vmatpush1.bf16.msra.mxu0 %v865
      %872 = vmatprep.subr.bf16.mxu0 0
      %873 = vmatpush1.bf16.msra.mxu0 0
      %874 = vmatprep.subr.bf16.mxu0 0
      %875 = vmatpush1.bf16.msra.mxu0 0
      %876 = vmatprep.subr.bf16.mxu0 0
      %877 = vmatpush1.bf16.msra.mxu0 0
      %878 = vmatprep.subr.bf16.mxu0 0
      %879 = vmatpush1.bf16.msra.mxu0 0
      %880 = vmatprep.subr.bf16.mxu0 0
      %881 = vmatpush1.bf16.msra.mxu0 0
      %882 = vmatprep.subr.bf16.mxu0 0
      %883 = vmatpush1.bf16.msra.mxu0 0
      %884 = vmatprep.subr.bf16.mxu0 0
      %885 = vmatpush1.bf16.msra.mxu0 0
      %886 = vmatprep.subr.bf16.mxu0 0
      %887 = vmatpush1.bf16.msra.mxu0 0
      %888 = vmatprep.subr.bf16.mxu0 0
      %889 = vmatpush1.bf16.msra.mxu0 0
      %890 = vmatprep.subr.bf16.mxu0 0
      %891 = vmatpush1.bf16.msra.mxu0 0
      %892 = vmatprep.subr.bf16.mxu0 0
      %893 = vmatpush1.bf16.msra.mxu0 0
      %894 = vmatprep.subr.bf16.mxu0 0
      %895 = vmatpush1.bf16.msra.mxu0 0
      %896 = vmatprep.subr.bf16.mxu0 0
      %897 = vmatpush1.bf16.msra.mxu0 0
      %898 = vmatprep.subr.bf16.mxu0 0
      %899 = vmatpush1.bf16.msra.mxu0 0
      %900 = vmatprep.subr.bf16.mxu0 0
      %901 = vmatpush1.bf16.msra.mxu0 0
      %902 = vmatprep.mubr.bf16.mxu0 0
      %903 = vmatmul.mubr.bf16.gmra.mrb[0].mxu0 %v868
      %v904 = vpop.f32.mrb[0].mxu0
      %v905 = vadd.f32 %v856, %v904
      %v906 = vpop.f32.mrb[0].mxu0
      %v907 = vpop.f32.mrb[0].mxu0
      %v908 = vpop.f32.mrb[0].mxu0
      %909 = vdwg.mxu0
      %v910 = vld [vmem:[%s628] sm:$0x7]
      %v911 = vld [vmem:[%s393] sm:$0xf]
      %v912 = vld [vmem:[%s393 + $0x4] sm:$0xf]
      %v914 = vunpack.c.l.b16 %v910
      %v915 = vpack.c.b16 %v914, %v914
      %v917 = vshrl.u32 %v915, 16
      %v919 = vshll.u32 %v915, 16
      %v921 = vrot.slane %v919, 1
      %v922 = vor.u32 %v917, %v921
      %v925 = vunpack.c.l.b16 %v911
      %v926 = vunpack.c.l.b16 %v912
      %v927 = vpack.c.b16 %v926, %v925
      %v930 = vsel %vm299, %v922, 0
      %932 = vmatprep.subr.bf16.mxu0 0
      %933 = vmatpush1.bf16.msra.mxu0 %v927
      %934 = vmatprep.subr.bf16.mxu0 0
      %935 = vmatpush1.bf16.msra.mxu0 0
      %936 = vmatprep.subr.bf16.mxu0 0
      %937 = vmatpush1.bf16.msra.mxu0 0
      %938 = vmatprep.subr.bf16.mxu0 0
      %939 = vmatpush1.bf16.msra.mxu0 0
      %940 = vmatprep.subr.bf16.mxu0 0
      %941 = vmatpush1.bf16.msra.mxu0 0
      %942 = vmatprep.subr.bf16.mxu0 0
      %943 = vmatpush1.bf16.msra.mxu0 0
      %944 = vmatprep.subr.bf16.mxu0 0
      %945 = vmatpush1.bf16.msra.mxu0 0
      %946 = vmatprep.subr.bf16.mxu0 0
      %947 = vmatpush1.bf16.msra.mxu0 0
      %948 = vmatprep.subr.bf16.mxu0 0
      %949 = vmatpush1.bf16.msra.mxu0 0
      %950 = vmatprep.subr.bf16.mxu0 0
      %951 = vmatpush1.bf16.msra.mxu0 0
      %952 = vmatprep.subr.bf16.mxu0 0
      %953 = vmatpush1.bf16.msra.mxu0 0
      %954 = vmatprep.subr.bf16.mxu0 0
      %955 = vmatpush1.bf16.msra.mxu0 0
      %956 = vmatprep.subr.bf16.mxu0 0
      %957 = vmatpush1.bf16.msra.mxu0 0
      %958 = vmatprep.subr.bf16.mxu0 0
      %959 = vmatpush1.bf16.msra.mxu0 0
      %960 = vmatprep.subr.bf16.mxu0 0
      %961 = vmatpush1.bf16.msra.mxu0 0
      %962 = vmatprep.subr.bf16.mxu0 0
      %963 = vmatpush1.bf16.msra.mxu0 0
      %964 = vmatprep.mubr.bf16.mxu0 0
      %965 = vmatmul.mubr.bf16.gmra.mrb[0].mxu0 %v930
      %v966 = vpop.f32.mrb[0].mxu0
      %v967 = vadd.f32 0.0, %v966
      %v968 = vpop.f32.mrb[0].mxu0
      %v969 = vpop.f32.mrb[0].mxu0
      %v970 = vpop.f32.mrb[0].mxu0
      %971 = vdwg.mxu0
      %v972 = vadd.f32 %v905, %v967
      %s973 = scalar_lea.vmem %s274, 4
      %v974 = vld [vmem:[%s973] sm:$0x3]
      %v975 = vld [vmem:[%s457] sm:$0xf]
      %v976 = vld [vmem:[%s457 + $0x4] sm:$0xf]
      %v979 = vunpack.c.l.b16 %v975
      %v980 = vunpack.c.l.b16 %v976
      %v981 = vpack.c.b16 %v980, %v979
      %v984 = vsel %vm299, %v974, 0
      %986 = vmatprep.subr.bf16.mxu0 0
      %987 = vmatpush1.bf16.msra.mxu0 %v981
      %988 = vmatprep.subr.bf16.mxu0 0
      %989 = vmatpush1.bf16.msra.mxu0 0
      %990 = vmatprep.subr.bf16.mxu0 0
      %991 = vmatpush1.bf16.msra.mxu0 0
      %992 = vmatprep.subr.bf16.mxu0 0
      %993 = vmatpush1.bf16.msra.mxu0 0
      %994 = vmatprep.subr.bf16.mxu0 0
      %995 = vmatpush1.bf16.msra.mxu0 0
      %996 = vmatprep.subr.bf16.mxu0 0
      %997 = vmatpush1.bf16.msra.mxu0 0
      %998 = vmatprep.subr.bf16.mxu0 0
      %999 = vmatpush1.bf16.msra.mxu0 0
      %1000 = vmatprep.subr.bf16.mxu0 0
      %1001 = vmatpush1.bf16.msra.mxu0 0
      %1002 = vmatprep.subr.bf16.mxu0 0
      %1003 = vmatpush1.bf16.msra.mxu0 0
      %1004 = vmatprep.subr.bf16.mxu0 0
      %1005 = vmatpush1.bf16.msra.mxu0 0
      %1006 = vmatprep.subr.bf16.mxu0 0
      %1007 = vmatpush1.bf16.msra.mxu0 0
      %1008 = vmatprep.subr.bf16.mxu0 0
      %1009 = vmatpush1.bf16.msra.mxu0 0
      %1010 = vmatprep.subr.bf16.mxu0 0
      %1011 = vmatpush1.bf16.msra.mxu0 0
      %1012 = vmatprep.subr.bf16.mxu0 0
      %1013 = vmatpush1.bf16.msra.mxu0 0
      %1014 = vmatprep.subr.bf16.mxu0 0
      %1015 = vmatpush1.bf16.msra.mxu0 0
      %1016 = vmatprep.subr.bf16.mxu0 0
      %1017 = vmatpush1.bf16.msra.mxu0 0
      %1018 = vmatprep.mubr.bf16.mxu0 0
      %1019 = vmatmul.mubr.bf16.gmra.mrb[0].mxu0 %v984
      %v1020 = vpop.f32.mrb[0].mxu0
      %v1021 = vadd.f32 0.0, %v1020
      %v1022 = vpop.f32.mrb[0].mxu0
      %v1023 = vpop.f32.mrb[0].mxu0
      %v1024 = vpop.f32.mrb[0].mxu0
      %1025 = vdwg.mxu0
      %v1026 = vadd.f32 %v972, %v1021
      %s1027 = scalar_lea.vmem %s279, 4
      %v1028 = vld [vmem:[%s1027] sm:$0x3]
      %v1029 = vld [vmem:[%s511] sm:$0xf]
      %v1030 = vld [vmem:[%s511 + $0x4] sm:$0xf]
      %v1033 = vunpack.c.l.b16 %v1029
      %v1034 = vunpack.c.l.b16 %v1030
      %v1035 = vpack.c.b16 %v1034, %v1033
      %v1038 = vsel %vm299, %v1028, 0
      %1040 = vmatprep.subr.bf16.mxu0 0
      %1041 = vmatpush1.bf16.msra.mxu0 %v1035
      %1042 = vmatprep.subr.bf16.mxu0 0
      %1043 = vmatpush1.bf16.msra.mxu0 0
      %1044 = vmatprep.subr.bf16.mxu0 0
      %1045 = vmatpush1.bf16.msra.mxu0 0
      %1046 = vmatprep.subr.bf16.mxu0 0
      %1047 = vmatpush1.bf16.msra.mxu0 0
      %1048 = vmatprep.subr.bf16.mxu0 0
      %1049 = vmatpush1.bf16.msra.mxu0 0
      %1050 = vmatprep.subr.bf16.mxu0 0
      %1051 = vmatpush1.bf16.msra.mxu0 0
      %1052 = vmatprep.subr.bf16.mxu0 0
      %1053 = vmatpush1.bf16.msra.mxu0 0
      %1054 = vmatprep.subr.bf16.mxu0 0
      %1055 = vmatpush1.bf16.msra.mxu0 0
      %1056 = vmatprep.subr.bf16.mxu0 0
      %1057 = vmatpush1.bf16.msra.mxu0 0
      %1058 = vmatprep.subr.bf16.mxu0 0
      %1059 = vmatpush1.bf16.msra.mxu0 0
      %1060 = vmatprep.subr.bf16.mxu0 0
      %1061 = vmatpush1.bf16.msra.mxu0 0
      %1062 = vmatprep.subr.bf16.mxu0 0
      %1063 = vmatpush1.bf16.msra.mxu0 0
      %1064 = vmatprep.subr.bf16.mxu0 0
      %1065 = vmatpush1.bf16.msra.mxu0 0
      %1066 = vmatprep.subr.bf16.mxu0 0
      %1067 = vmatpush1.bf16.msra.mxu0 0
      %1068 = vmatprep.subr.bf16.mxu0 0
      %1069 = vmatpush1.bf16.msra.mxu0 0
      %1070 = vmatprep.subr.bf16.mxu0 0
      %1071 = vmatpush1.bf16.msra.mxu0 0
      %1072 = vmatprep.mubr.bf16.mxu0 0
      %1073 = vmatmul.mubr.bf16.gmra.mrb[0].mxu0 %v1038
      %v1074 = vpop.f32.mrb[0].mxu0
      %v1075 = vadd.f32 0.0, %v1074
      %v1076 = vpop.f32.mrb[0].mxu0
      %v1077 = vpop.f32.mrb[0].mxu0
      %v1078 = vpop.f32.mrb[0].mxu0
      %1079 = vdwg.mxu0
      %v1080 = vadd.f32 %v1026, %v1075
      %v1081 = vld [vmem:[%s973] sm:$0x7]
      %v1082 = vld [vmem:[%s565] sm:$0xf]
      %v1083 = vld [vmem:[%s565 + $0x4] sm:$0xf]
      %v1085 = vunpack.c.l.b16 %v1081
      %v1086 = vpack.c.b16 %v1085, %v1085
      %v1088 = vshrl.u32 %v1086, 16
      %v1090 = vshll.u32 %v1086, 16
      %v1092 = vrot.slane %v1090, 1
      %v1093 = vor.u32 %v1088, %v1092
      %v1096 = vunpack.c.l.b16 %v1082
      %v1097 = vunpack.c.l.b16 %v1083
      %v1098 = vpack.c.b16 %v1097, %v1096
      %v1101 = vsel %vm299, %v1093, 0
      %1103 = vmatprep.subr.bf16.mxu0 0
      %1104 = vmatpush1.bf16.msra.mxu0 %v1098
      %1105 = vmatprep.subr.bf16.mxu0 0
      %1106 = vmatpush1.bf16.msra.mxu0 0
      %1107 = vmatprep.subr.bf16.mxu0 0
      %1108 = vmatpush1.bf16.msra.mxu0 0
      %1109 = vmatprep.subr.bf16.mxu0 0
      %1110 = vmatpush1.bf16.msra.mxu0 0
      %1111 = vmatprep.subr.bf16.mxu0 0
      %1112 = vmatpush1.bf16.msra.mxu0 0
      %1113 = vmatprep.subr.bf16.mxu0 0
      %1114 = vmatpush1.bf16.msra.mxu0 0
      %1115 = vmatprep.subr.bf16.mxu0 0
      %1116 = vmatpush1.bf16.msra.mxu0 0
      %1117 = vmatprep.subr.bf16.mxu0 0
      %1118 = vmatpush1.bf16.msra.mxu0 0
      %1119 = vmatprep.subr.bf16.mxu0 0
      %1120 = vmatpush1.bf16.msra.mxu0 0
      %1121 = vmatprep.subr.bf16.mxu0 0
      %1122 = vmatpush1.bf16.msra.mxu0 0
      %1123 = vmatprep.subr.bf16.mxu0 0
      %1124 = vmatpush1.bf16.msra.mxu0 0
      %1125 = vmatprep.subr.bf16.mxu0 0
      %1126 = vmatpush1.bf16.msra.mxu0 0
      %1127 = vmatprep.subr.bf16.mxu0 0
      %1128 = vmatpush1.bf16.msra.mxu0 0
      %1129 = vmatprep.subr.bf16.mxu0 0
      %1130 = vmatpush1.bf16.msra.mxu0 0
      %1131 = vmatprep.subr.bf16.mxu0 0
      %1132 = vmatpush1.bf16.msra.mxu0 0
      %1133 = vmatprep.subr.bf16.mxu0 0
      %1134 = vmatpush1.bf16.msra.mxu0 0
      %1135 = vmatprep.mubr.bf16.mxu0 0
      %1136 = vmatmul.mubr.bf16.gmra.mrb[0].mxu0 %v1101
      %v1137 = vpop.f32.mrb[0].mxu0
      %v1138 = vadd.f32 0.0, %v1137
      %v1139 = vpop.f32.mrb[0].mxu0
      %v1140 = vpop.f32.mrb[0].mxu0
      %v1141 = vpop.f32.mrb[0].mxu0
      %1142 = vdwg.mxu0
      %v1143 = vadd.f32 %v1080, %v1138
      %s1144 = scalar_lea.vmem %s264, 8
      %v1145 = vld [vmem:[%s1144] sm:$0x3]
      %v1146 = vld [vmem:[%s630] sm:$0xf]
      %v1147 = vld [vmem:[%s630 + $0x4] sm:$0xf]
      %v1150 = vunpack.c.l.b16 %v1146
      %v1151 = vunpack.c.l.b16 %v1147
      %v1152 = vpack.c.b16 %v1151, %v1150
      %v1155 = vsel %vm299, %v1145, 0
      %1157 = vmatprep.subr.bf16.mxu0 0
      %1158 = vmatpush1.bf16.msra.mxu0 %v1152
      %1159 = vmatprep.subr.bf16.mxu0 0
      %1160 = vmatpush1.bf16.msra.mxu0 0
      %1161 = vmatprep.subr.bf16.mxu0 0
      %1162 = vmatpush1.bf16.msra.mxu0 0
      %1163 = vmatprep.subr.bf16.mxu0 0
      %1164 = vmatpush1.bf16.msra.mxu0 0
      %1165 = vmatprep.subr.bf16.mxu0 0
      %1166 = vmatpush1.bf16.msra.mxu0 0
      %1167 = vmatprep.subr.bf16.mxu0 0
      %1168 = vmatpush1.bf16.msra.mxu0 0
      %1169 = vmatprep.subr.bf16.mxu0 0
      %1170 = vmatpush1.bf16.msra.mxu0 0
      %1171 = vmatprep.subr.bf16.mxu0 0
      %1172 = vmatpush1.bf16.msra.mxu0 0
      %1173 = vmatprep.subr.bf16.mxu0 0
      %1174 = vmatpush1.bf16.msra.mxu0 0
      %1175 = vmatprep.subr.bf16.mxu0 0
      %1176 = vmatpush1.bf16.msra.mxu0 0
      %1177 = vmatprep.subr.bf16.mxu0 0
      %1178 = vmatpush1.bf16.msra.mxu0 0
      %1179 = vmatprep.subr.bf16.mxu0 0
      %1180 = vmatpush1.bf16.msra.mxu0 0
      %1181 = vmatprep.subr.bf16.mxu0 0
      %1182 = vmatpush1.bf16.msra.mxu0 0
      %1183 = vmatprep.subr.bf16.mxu0 0
      %1184 = vmatpush1.bf16.msra.mxu0 0
      %1185 = vmatprep.subr.bf16.mxu0 0
      %1186 = vmatpush1.bf16.msra.mxu0 0
      %1187 = vmatprep.subr.bf16.mxu0 0
      %1188 = vmatpush1.bf16.msra.mxu0 0
      %1189 = vmatprep.mubr.bf16.mxu0 0
      %1190 = vmatmul.mubr.bf16.gmra.mrb[0].mxu0 %v1155
      %v1191 = vpop.f32.mrb[0].mxu0
      %v1192 = vadd.f32 0.0, %v1191
      %v1193 = vpop.f32.mrb[0].mxu0
      %v1194 = vpop.f32.mrb[0].mxu0
      %v1195 = vpop.f32.mrb[0].mxu0
      %1196 = vdwg.mxu0
      %v1197 = vadd.f32 %v1143, %v1192
      %s1198 = scalar_lea.vmem %s269, 8
      %v1199 = vld [vmem:[%s1198] sm:$0x3]
      %v1200 = vld [vmem:[%s685] sm:$0xf]
      %v1201 = vld [vmem:[%s685 + $0x4] sm:$0xf]
      %v1204 = vunpack.c.l.b16 %v1200
      %v1205 = vunpack.c.l.b16 %v1201
      %v1206 = vpack.c.b16 %v1205, %v1204
      %v1209 = vsel %vm299, %v1199, 0
      %1211 = vmatprep.subr.bf16.mxu0 0
      %1212 = vmatpush1.bf16.msra.mxu0 %v1206
      %1213 = vmatprep.subr.bf16.mxu0 0
      %1214 = vmatpush1.bf16.msra.mxu0 0
      %1215 = vmatprep.subr.bf16.mxu0 0
      %1216 = vmatpush1.bf16.msra.mxu0 0
      %1217 = vmatprep.subr.bf16.mxu0 0
      %1218 = vmatpush1.bf16.msra.mxu0 0
      %1219 = vmatprep.subr.bf16.mxu0 0
      %1220 = vmatpush1.bf16.msra.mxu0 0
      %1221 = vmatprep.subr.bf16.mxu0 0
      %1222 = vmatpush1.bf16.msra.mxu0 0
      %1223 = vmatprep.subr.bf16.mxu0 0
      %1224 = vmatpush1.bf16.msra.mxu0 0
      %1225 = vmatprep.subr.bf16.mxu0 0
      %1226 = vmatpush1.bf16.msra.mxu0 0
      %1227 = vmatprep.subr.bf16.mxu0 0
      %1228 = vmatpush1.bf16.msra.mxu0 0
      %1229 = vmatprep.subr.bf16.mxu0 0
      %1230 = vmatpush1.bf16.msra.mxu0 0
      %1231 = vmatprep.subr.bf16.mxu0 0
      %1232 = vmatpush1.bf16.msra.mxu0 0
      %1233 = vmatprep.subr.bf16.mxu0 0
      %1234 = vmatpush1.bf16.msra.mxu0 0
      %1235 = vmatprep.subr.bf16.mxu0 0
      %1236 = vmatpush1.bf16.msra.mxu0 0
      %1237 = vmatprep.subr.bf16.mxu0 0
      %1238 = vmatpush1.bf16.msra.mxu0 0
      %1239 = vmatprep.subr.bf16.mxu0 0
      %1240 = vmatpush1.bf16.msra.mxu0 0
      %1241 = vmatprep.subr.bf16.mxu0 0
      %1242 = vmatpush1.bf16.msra.mxu0 0
      %1243 = vmatprep.mubr.bf16.mxu0 0
      %1244 = vmatmul.mubr.bf16.gmra.mrb[0].mxu0 %v1209
      %v1245 = vpop.f32.mrb[0].mxu0
      %v1246 = vadd.f32 0.0, %v1245
      %v1247 = vpop.f32.mrb[0].mxu0
      %v1248 = vpop.f32.mrb[0].mxu0
      %v1249 = vpop.f32.mrb[0].mxu0
      %1250 = vdwg.mxu0
      %v1251 = vadd.f32 %v1197, %v1246
      %v1252 = vld [vmem:[%s1144] sm:$0x7]
      %v1253 = vld [vmem:[%s739] sm:$0xf]
      %v1254 = vld [vmem:[%s739 + $0x4] sm:$0xf]
      %v1256 = vunpack.c.l.b16 %v1252
      %v1257 = vpack.c.b16 %v1256, %v1256
      %v1259 = vshrl.u32 %v1257, 16
      %v1261 = vshll.u32 %v1257, 16
      %v1263 = vrot.slane %v1261, 1
      %v1264 = vor.u32 %v1259, %v1263
      %v1267 = vunpack.c.l.b16 %v1253
      %v1268 = vunpack.c.l.b16 %v1254
      %v1269 = vpack.c.b16 %v1268, %v1267
      %v1272 = vsel %vm299, %v1264, 0
      %1274 = vmatprep.subr.bf16.mxu0 0
      %1275 = vmatpush1.bf16.msra.mxu0 %v1269
      %1276 = vmatprep.subr.bf16.mxu0 0
      %1277 = vmatpush1.bf16.msra.mxu0 0
      %1278 = vmatprep.subr.bf16.mxu0 0
      %1279 = vmatpush1.bf16.msra.mxu0 0
      %1280 = vmatprep.subr.bf16.mxu0 0
      %1281 = vmatpush1.bf16.msra.mxu0 0
      %1282 = vmatprep.subr.bf16.mxu0 0
      %1283 = vmatpush1.bf16.msra.mxu0 0
      %1284 = vmatprep.subr.bf16.mxu0 0
      %1285 = vmatpush1.bf16.msra.mxu0 0
      %1286 = vmatprep.subr.bf16.mxu0 0
      %1287 = vmatpush1.bf16.msra.mxu0 0
      %1288 = vmatprep.subr.bf16.mxu0 0
      %1289 = vmatpush1.bf16.msra.mxu0 0
      %1290 = vmatprep.subr.bf16.mxu0 0
      %1291 = vmatpush1.bf16.msra.mxu0 0
      %1292 = vmatprep.subr.bf16.mxu0 0
      %1293 = vmatpush1.bf16.msra.mxu0 0
      %1294 = vmatprep.subr.bf16.mxu0 0
      %1295 = vmatpush1.bf16.msra.mxu0 0
      %1296 = vmatprep.subr.bf16.mxu0 0
      %1297 = vmatpush1.bf16.msra.mxu0 0
      %1298 = vmatprep.subr.bf16.mxu0 0
      %1299 = vmatpush1.bf16.msra.mxu0 0
      %1300 = vmatprep.subr.bf16.mxu0 0
      %1301 = vmatpush1.bf16.msra.mxu0 0
      %1302 = vmatprep.subr.bf16.mxu0 0
      %1303 = vmatpush1.bf16.msra.mxu0 0
      %1304 = vmatprep.subr.bf16.mxu0 0
      %1305 = vmatpush1.bf16.msra.mxu0 0
      %1306 = vmatprep.mubr.bf16.mxu0 0
      %1307 = vmatmul.mubr.bf16.gmra.mrb[0].mxu0 %v1272
      %v1308 = vpop.f32.mrb[0].mxu0
      %v1309 = vadd.f32 0.0, %v1308
      %v1310 = vpop.f32.mrb[0].mxu0
      %v1311 = vpop.f32.mrb[0].mxu0
      %v1312 = vpop.f32.mrb[0].mxu0
      %1313 = vdwg.mxu0
      %v1314 = vadd.f32 %v1251, %v1309
      %v1315 = vmax.f32 %v1314, 0.0
      %v1316 = vpack.c.bf16 %v1315, %v1315
      %s1317 = scalar_lea.vmem %s284, 2
      %1318 = vst.msk [vmem:[%s1317] sm:$0x3] %vm804, %v1316
      %v1319 = vld [vmem:[%s1144] sm:$0x3]
      %v1320 = vld [vmem:[%s4] sm:$0xf]
      %v1321 = vld [vmem:[%s4 + $0x4] sm:$0xf]
      %v1322 = vld [vmem:[%s1198] sm:$0x3]
      %v1323 = vld [vmem:[%s290] sm:$0xf]
      %v1324 = vld [vmem:[%s290 + $0x4] sm:$0xf]
      %v1327 = vunpack.c.l.b16 %v1323
      %v1328 = vunpack.c.l.b16 %v1324
      %v1329 = vpack.c.b16 %v1328, %v1327
      %v1332 = vsel %vm299, %v1322, 0
      %1334 = vmatprep.subr.bf16.mxu0 0
      %1335 = vmatpush1.bf16.msra.mxu0 %v1329
      %1336 = vmatprep.subr.bf16.mxu0 0
      %1337 = vmatpush1.bf16.msra.mxu0 0
      %1338 = vmatprep.subr.bf16.mxu0 0
      %1339 = vmatpush1.bf16.msra.mxu0 0
      %1340 = vmatprep.subr.bf16.mxu0 0
      %1341 = vmatpush1.bf16.msra.mxu0 0
      %1342 = vmatprep.subr.bf16.mxu0 0
      %1343 = vmatpush1.bf16.msra.mxu0 0
      %1344 = vmatprep.subr.bf16.mxu0 0
      %1345 = vmatpush1.bf16.msra.mxu0 0
      %1346 = vmatprep.subr.bf16.mxu0 0
      %1347 = vmatpush1.bf16.msra.mxu0 0
      %1348 = vmatprep.subr.bf16.mxu0 0
      %1349 = vmatpush1.bf16.msra.mxu0 0
      %1350 = vmatprep.subr.bf16.mxu0 0
      %1351 = vmatpush1.bf16.msra.mxu0 0
      %1352 = vmatprep.subr.bf16.mxu0 0
      %1353 = vmatpush1.bf16.msra.mxu0 0
      %1354 = vmatprep.subr.bf16.mxu0 0
      %1355 = vmatpush1.bf16.msra.mxu0 0
      %1356 = vmatprep.subr.bf16.mxu0 0
      %1357 = vmatpush1.bf16.msra.mxu0 0
      %1358 = vmatprep.subr.bf16.mxu0 0
      %1359 = vmatpush1.bf16.msra.mxu0 0
      %1360 = vmatprep.subr.bf16.mxu0 0
      %1361 = vmatpush1.bf16.msra.mxu0 0
      %1362 = vmatprep.subr.bf16.mxu0 0
      %1363 = vmatpush1.bf16.msra.mxu0 0
      %1364 = vmatprep.subr.bf16.mxu0 0
      %1365 = vmatpush1.bf16.msra.mxu0 0
      %1366 = vmatprep.mubr.bf16.mxu0 0
      %1367 = vmatmul.mubr.bf16.gmra.mrb[0].mxu0 %v1332
      %v1368 = vpop.f32.mrb[0].mxu0
      %v1369 = vadd.f32 0.0, %v1368
      %v1370 = vpop.f32.mrb[0].mxu0
      %v1371 = vpop.f32.mrb[0].mxu0
      %v1372 = vpop.f32.mrb[0].mxu0
      %1373 = vdwg.mxu0
      %v1376 = vunpack.c.l.b16 %v1320
      %v1377 = vunpack.c.l.b16 %v1321
      %v1378 = vpack.c.b16 %v1377, %v1376
      %v1381 = vsel %vm299, %v1319, 0
      %1383 = vmatprep.subr.bf16.mxu0 0
      %1384 = vmatpush1.bf16.msra.mxu0 %v1378
      %1385 = vmatprep.subr.bf16.mxu0 0
      %1386 = vmatpush1.bf16.msra.mxu0 0
      %1387 = vmatprep.subr.bf16.mxu0 0
      %1388 = vmatpush1.bf16.msra.mxu0 0
      %1389 = vmatprep.subr.bf16.mxu0 0
      %1390 = vmatpush1.bf16.msra.mxu0 0
      %1391 = vmatprep.subr.bf16.mxu0 0
      %1392 = vmatpush1.bf16.msra.mxu0 0
      %1393 = vmatprep.subr.bf16.mxu0 0
      %1394 = vmatpush1.bf16.msra.mxu0 0
      %1395 = vmatprep.subr.bf16.mxu0 0
      %1396 = vmatpush1.bf16.msra.mxu0 0
      %1397 = vmatprep.subr.bf16.mxu0 0
      %1398 = vmatpush1.bf16.msra.mxu0 0
      %1399 = vmatprep.subr.bf16.mxu0 0
      %1400 = vmatpush1.bf16.msra.mxu0 0
      %1401 = vmatprep.subr.bf16.mxu0 0
      %1402 = vmatpush1.bf16.msra.mxu0 0
      %1403 = vmatprep.subr.bf16.mxu0 0
      %1404 = vmatpush1.bf16.msra.mxu0 0
      %1405 = vmatprep.subr.bf16.mxu0 0
      %1406 = vmatpush1.bf16.msra.mxu0 0
      %1407 = vmatprep.subr.bf16.mxu0 0
      %1408 = vmatpush1.bf16.msra.mxu0 0
      %1409 = vmatprep.subr.bf16.mxu0 0
      %1410 = vmatpush1.bf16.msra.mxu0 0
      %1411 = vmatprep.subr.bf16.mxu0 0
      %1412 = vmatpush1.bf16.msra.mxu0 0
      %1413 = vmatprep.subr.bf16.mxu0 0
      %1414 = vmatpush1.bf16.msra.mxu0 0
      %1415 = vmatprep.mubr.bf16.mxu0 0
      %1416 = vmatmul.mubr.bf16.gmra.mrb[0].mxu0 %v1381
      %v1417 = vpop.f32.mrb[0].mxu0
      %v1418 = vadd.f32 %v1369, %v1417
      %v1419 = vpop.f32.mrb[0].mxu0
      %v1420 = vpop.f32.mrb[0].mxu0
      %v1421 = vpop.f32.mrb[0].mxu0
      %1422 = vdwg.mxu0
      %v1423 = vld [vmem:[%s1144] sm:$0x7]
      %v1424 = vld [vmem:[%s393] sm:$0xf]
      %v1425 = vld [vmem:[%s393 + $0x4] sm:$0xf]
      %v1427 = vunpack.c.l.b16 %v1423
      %v1428 = vpack.c.b16 %v1427, %v1427
      %v1430 = vshrl.u32 %v1428, 16
      %v1432 = vshll.u32 %v1428, 16
      %v1434 = vrot.slane %v1432, 1
      %v1435 = vor.u32 %v1430, %v1434
      %v1438 = vunpack.c.l.b16 %v1424
      %v1439 = vunpack.c.l.b16 %v1425
      %v1440 = vpack.c.b16 %v1439, %v1438
      %v1443 = vsel %vm299, %v1435, 0
      %1445 = vmatprep.subr.bf16.mxu0 0
      %1446 = vmatpush1.bf16.msra.mxu0 %v1440
      %1447 = vmatprep.subr.bf16.mxu0 0
      %1448 = vmatpush1.bf16.msra.mxu0 0
      %1449 = vmatprep.subr.bf16.mxu0 0
      %1450 = vmatpush1.bf16.msra.mxu0 0
      %1451 = vmatprep.subr.bf16.mxu0 0
      %1452 = vmatpush1.bf16.msra.mxu0 0
      %1453 = vmatprep.subr.bf16.mxu0 0
      %1454 = vmatpush1.bf16.msra.mxu0 0
      %1455 = vmatprep.subr.bf16.mxu0 0
      %1456 = vmatpush1.bf16.msra.mxu0 0
      %1457 = vmatprep.subr.bf16.mxu0 0
      %1458 = vmatpush1.bf16.msra.mxu0 0
      %1459 = vmatprep.subr.bf16.mxu0 0
      %1460 = vmatpush1.bf16.msra.mxu0 0
      %1461 = vmatprep.subr.bf16.mxu0 0
      %1462 = vmatpush1.bf16.msra.mxu0 0
      %1463 = vmatprep.subr.bf16.mxu0 0
      %1464 = vmatpush1.bf16.msra.mxu0 0
      %1465 = vmatprep.subr.bf16.mxu0 0
      %1466 = vmatpush1.bf16.msra.mxu0 0
      %1467 = vmatprep.subr.bf16.mxu0 0
      %1468 = vmatpush1.bf16.msra.mxu0 0
      %1469 = vmatprep.subr.bf16.mxu0 0
      %1470 = vmatpush1.bf16.msra.mxu0 0
      %1471 = vmatprep.subr.bf16.mxu0 0
      %1472 = vmatpush1.bf16.msra.mxu0 0
      %1473 = vmatprep.subr.bf16.mxu0 0
      %1474 = vmatpush1.bf16.msra.mxu0 0
      %1475 = vmatprep.subr.bf16.mxu0 0
      %1476 = vmatpush1.bf16.msra.mxu0 0
      %1477 = vmatprep.mubr.bf16.mxu0 0
      %1478 = vmatmul.mubr.bf16.gmra.mrb[0].mxu0 %v1443
      %v1479 = vpop.f32.mrb[0].mxu0
      %v1480 = vadd.f32 0.0, %v1479
      %v1481 = vpop.f32.mrb[0].mxu0
      %v1482 = vpop.f32.mrb[0].mxu0
      %v1483 = vpop.f32.mrb[0].mxu0
      %1484 = vdwg.mxu0
      %v1485 = vadd.f32 %v1418, %v1480
      %s1486 = scalar_lea.vmem %s274, 8
      %v1487 = vld [vmem:[%s1486] sm:$0x3]
      %v1488 = vld [vmem:[%s457] sm:$0xf]
      %v1489 = vld [vmem:[%s457 + $0x4] sm:$0xf]
      %v1492 = vunpack.c.l.b16 %v1488
      %v1493 = vunpack.c.l.b16 %v1489
      %v1494 = vpack.c.b16 %v1493, %v1492
      %v1497 = vsel %vm299, %v1487, 0
      %1499 = vmatprep.subr.bf16.mxu0 0
      %1500 = vmatpush1.bf16.msra.mxu0 %v1494
      %1501 = vmatprep.subr.bf16.mxu0 0
      %1502 = vmatpush1.bf16.msra.mxu0 0
      %1503 = vmatprep.subr.bf16.mxu0 0
      %1504 = vmatpush1.bf16.msra.mxu0 0
      %1505 = vmatprep.subr.bf16.mxu0 0
      %1506 = vmatpush1.bf16.msra.mxu0 0
      %1507 = vmatprep.subr.bf16.mxu0 0
      %1508 = vmatpush1.bf16.msra.mxu0 0
      %1509 = vmatprep.subr.bf16.mxu0 0
      %1510 = vmatpush1.bf16.msra.mxu0 0
      %1511 = vmatprep.subr.bf16.mxu0 0
      %1512 = vmatpush1.bf16.msra.mxu0 0
      %1513 = vmatprep.subr.bf16.mxu0 0
      %1514 = vmatpush1.bf16.msra.mxu0 0
      %1515 = vmatprep.subr.bf16.mxu0 0
      %1516 = vmatpush1.bf16.msra.mxu0 0
      %1517 = vmatprep.subr.bf16.mxu0 0
      %1518 = vmatpush1.bf16.msra.mxu0 0
      %1519 = vmatprep.subr.bf16.mxu0 0
      %1520 = vmatpush1.bf16.msra.mxu0 0
      %1521 = vmatprep.subr.bf16.mxu0 0
      %1522 = vmatpush1.bf16.msra.mxu0 0
      %1523 = vmatprep.subr.bf16.mxu0 0
      %1524 = vmatpush1.bf16.msra.mxu0 0
      %1525 = vmatprep.subr.bf16.mxu0 0
      %1526 = vmatpush1.bf16.msra.mxu0 0
      %1527 = vmatprep.subr.bf16.mxu0 0
      %1528 = vmatpush1.bf16.msra.mxu0 0
      %1529 = vmatprep.subr.bf16.mxu0 0
      %1530 = vmatpush1.bf16.msra.mxu0 0
      %1531 = vmatprep.mubr.bf16.mxu0 0
      %1532 = vmatmul.mubr.bf16.gmra.mrb[0].mxu0 %v1497
      %v1533 = vpop.f32.mrb[0].mxu0
      %v1534 = vadd.f32 0.0, %v1533
      %v1535 = vpop.f32.mrb[0].mxu0
      %v1536 = vpop.f32.mrb[0].mxu0
      %v1537 = vpop.f32.mrb[0].mxu0
      %1538 = vdwg.mxu0
      %v1539 = vadd.f32 %v1485, %v1534
      %s1540 = scalar_lea.vmem %s279, 8
      %v1541 = vld [vmem:[%s1540] sm:$0x3]
      %v1542 = vld [vmem:[%s511] sm:$0xf]
      %v1543 = vld [vmem:[%s511 + $0x4] sm:$0xf]
      %v1546 = vunpack.c.l.b16 %v1542
      %v1547 = vunpack.c.l.b16 %v1543
      %v1548 = vpack.c.b16 %v1547, %v1546
      %v1551 = vsel %vm299, %v1541, 0
      %1553 = vmatprep.subr.bf16.mxu0 0
      %1554 = vmatpush1.bf16.msra.mxu0 %v1548
      %1555 = vmatprep.subr.bf16.mxu0 0
      %1556 = vmatpush1.bf16.msra.mxu0 0
      %1557 = vmatprep.subr.bf16.mxu0 0
      %1558 = vmatpush1.bf16.msra.mxu0 0
      %1559 = vmatprep.subr.bf16.mxu0 0
      %1560 = vmatpush1.bf16.msra.mxu0 0
      %1561 = vmatprep.subr.bf16.mxu0 0
      %1562 = vmatpush1.bf16.msra.mxu0 0
      %1563 = vmatprep.subr.bf16.mxu0 0
      %1564 = vmatpush1.bf16.msra.mxu0 0
      %1565 = vmatprep.subr.bf16.mxu0 0
      %1566 = vmatpush1.bf16.msra.mxu0 0
      %1567 = vmatprep.subr.bf16.mxu0 0
      %1568 = vmatpush1.bf16.msra.mxu0 0
      %1569 = vmatprep.subr.bf16.mxu0 0
      %1570 = vmatpush1.bf16.msra.mxu0 0
      %1571 = vmatprep.subr.bf16.mxu0 0
      %1572 = vmatpush1.bf16.msra.mxu0 0
      %1573 = vmatprep.subr.bf16.mxu0 0
      %1574 = vmatpush1.bf16.msra.mxu0 0
      %1575 = vmatprep.subr.bf16.mxu0 0
      %1576 = vmatpush1.bf16.msra.mxu0 0
      %1577 = vmatprep.subr.bf16.mxu0 0
      %1578 = vmatpush1.bf16.msra.mxu0 0
      %1579 = vmatprep.subr.bf16.mxu0 0
      %1580 = vmatpush1.bf16.msra.mxu0 0
      %1581 = vmatprep.subr.bf16.mxu0 0
      %1582 = vmatpush1.bf16.msra.mxu0 0
      %1583 = vmatprep.subr.bf16.mxu0 0
      %1584 = vmatpush1.bf16.msra.mxu0 0
      %1585 = vmatprep.mubr.bf16.mxu0 0
      %1586 = vmatmul.mubr.bf16.gmra.mrb[0].mxu0 %v1551
      %v1587 = vpop.f32.mrb[0].mxu0
      %v1588 = vadd.f32 0.0, %v1587
      %v1589 = vpop.f32.mrb[0].mxu0
      %v1590 = vpop.f32.mrb[0].mxu0
      %v1591 = vpop.f32.mrb[0].mxu0
      %1592 = vdwg.mxu0
      %v1593 = vadd.f32 %v1539, %v1588
      %v1594 = vld [vmem:[%s1486] sm:$0x7]
      %v1595 = vld [vmem:[%s565] sm:$0xf]
      %v1596 = vld [vmem:[%s565 + $0x4] sm:$0xf]
      %v1598 = vunpack.c.l.b16 %v1594
      %v1599 = vpack.c.b16 %v1598, %v1598
      %v1601 = vshrl.u32 %v1599, 16
      %v1603 = vshll.u32 %v1599, 16
      %v1605 = vrot.slane %v1603, 1
      %v1606 = vor.u32 %v1601, %v1605
      %v1609 = vunpack.c.l.b16 %v1595
      %v1610 = vunpack.c.l.b16 %v1596
      %v1611 = vpack.c.b16 %v1610, %v1609
      %v1614 = vsel %vm299, %v1606, 0
      %1616 = vmatprep.subr.bf16.mxu0 0
      %1617 = vmatpush1.bf16.msra.mxu0 %v1611
      %1618 = vmatprep.subr.bf16.mxu0 0
      %1619 = vmatpush1.bf16.msra.mxu0 0
      %1620 = vmatprep.subr.bf16.mxu0 0
      %1621 = vmatpush1.bf16.msra.mxu0 0
      %1622 = vmatprep.subr.bf16.mxu0 0
      %1623 = vmatpush1.bf16.msra.mxu0 0
      %1624 = vmatprep.subr.bf16.mxu0 0
      %1625 = vmatpush1.bf16.msra.mxu0 0
      %1626 = vmatprep.subr.bf16.mxu0 0
      %1627 = vmatpush1.bf16.msra.mxu0 0
      %1628 = vmatprep.subr.bf16.mxu0 0
      %1629 = vmatpush1.bf16.msra.mxu0 0
      %1630 = vmatprep.subr.bf16.mxu0 0
      %1631 = vmatpush1.bf16.msra.mxu0 0
      %1632 = vmatprep.subr.bf16.mxu0 0
      %1633 = vmatpush1.bf16.msra.mxu0 0
      %1634 = vmatprep.subr.bf16.mxu0 0
      %1635 = vmatpush1.bf16.msra.mxu0 0
      %1636 = vmatprep.subr.bf16.mxu0 0
      %1637 = vmatpush1.bf16.msra.mxu0 0
      %1638 = vmatprep.subr.bf16.mxu0 0
      %1639 = vmatpush1.bf16.msra.mxu0 0
      %1640 = vmatprep.subr.bf16.mxu0 0
      %1641 = vmatpush1.bf16.msra.mxu0 0
      %1642 = vmatprep.subr.bf16.mxu0 0
      %1643 = vmatpush1.bf16.msra.mxu0 0
      %1644 = vmatprep.subr.bf16.mxu0 0
      %1645 = vmatpush1.bf16.msra.mxu0 0
      %1646 = vmatprep.subr.bf16.mxu0 0
      %1647 = vmatpush1.bf16.msra.mxu0 0
      %1648 = vmatprep.mubr.bf16.mxu0 0
      %1649 = vmatmul.mubr.bf16.gmra.mrb[0].mxu0 %v1614
      %v1650 = vpop.f32.mrb[0].mxu0
      %v1651 = vadd.f32 0.0, %v1650
      %v1652 = vpop.f32.mrb[0].mxu0
      %v1653 = vpop.f32.mrb[0].mxu0
      %v1654 = vpop.f32.mrb[0].mxu0
      %1655 = vdwg.mxu0
      %v1656 = vadd.f32 %v1593, %v1651
      %s1657 = scalar_lea.vmem %s264, 12
      %v1658 = vld [vmem:[%s1657] sm:$0x3]
      %v1659 = vld [vmem:[%s630] sm:$0xf]
      %v1660 = vld [vmem:[%s630 + $0x4] sm:$0xf]
      %v1663 = vunpack.c.l.b16 %v1659
      %v1664 = vunpack.c.l.b16 %v1660
      %v1665 = vpack.c.b16 %v1664, %v1663
      %v1668 = vsel %vm299, %v1658, 0
      %1670 = vmatprep.subr.bf16.mxu0 0
      %1671 = vmatpush1.bf16.msra.mxu0 %v1665
      %1672 = vmatprep.subr.bf16.mxu0 0
      %1673 = vmatpush1.bf16.msra.mxu0 0
      %1674 = vmatprep.subr.bf16.mxu0 0
      %1675 = vmatpush1.bf16.msra.mxu0 0
      %1676 = vmatprep.subr.bf16.mxu0 0
      %1677 = vmatpush1.bf16.msra.mxu0 0
      %1678 = vmatprep.subr.bf16.mxu0 0
      %1679 = vmatpush1.bf16.msra.mxu0 0
      %1680 = vmatprep.subr.bf16.mxu0 0
      %1681 = vmatpush1.bf16.msra.mxu0 0
      %1682 = vmatprep.subr.bf16.mxu0 0
      %1683 = vmatpush1.bf16.msra.mxu0 0
      %1684 = vmatprep.subr.bf16.mxu0 0
      %1685 = vmatpush1.bf16.msra.mxu0 0
      %1686 = vmatprep.subr.bf16.mxu0 0
      %1687 = vmatpush1.bf16.msra.mxu0 0
      %1688 = vmatprep.subr.bf16.mxu0 0
      %1689 = vmatpush1.bf16.msra.mxu0 0
      %1690 = vmatprep.subr.bf16.mxu0 0
      %1691 = vmatpush1.bf16.msra.mxu0 0
      %1692 = vmatprep.subr.bf16.mxu0 0
      %1693 = vmatpush1.bf16.msra.mxu0 0
      %1694 = vmatprep.subr.bf16.mxu0 0
      %1695 = vmatpush1.bf16.msra.mxu0 0
      %1696 = vmatprep.subr.bf16.mxu0 0
      %1697 = vmatpush1.bf16.msra.mxu0 0
      %1698 = vmatprep.subr.bf16.mxu0 0
      %1699 = vmatpush1.bf16.msra.mxu0 0
      %1700 = vmatprep.subr.bf16.mxu0 0
      %1701 = vmatpush1.bf16.msra.mxu0 0
      %1702 = vmatprep.mubr.bf16.mxu0 0
      %1703 = vmatmul.mubr.bf16.gmra.mrb[0].mxu0 %v1668
      %v1704 = vpop.f32.mrb[0].mxu0
      %v1705 = vadd.f32 0.0, %v1704
      %v1706 = vpop.f32.mrb[0].mxu0
      %v1707 = vpop.f32.mrb[0].mxu0
      %v1708 = vpop.f32.mrb[0].mxu0
      %1709 = vdwg.mxu0
      %v1710 = vadd.f32 %v1656, %v1705
      %s1711 = scalar_lea.vmem %s269, 12
      %v1712 = vld [vmem:[%s1711] sm:$0x3]
      %v1713 = vld [vmem:[%s685] sm:$0xf]
      %v1714 = vld [vmem:[%s685 + $0x4] sm:$0xf]
      %v1717 = vunpack.c.l.b16 %v1713
      %v1718 = vunpack.c.l.b16 %v1714
      %v1719 = vpack.c.b16 %v1718, %v1717
      %v1722 = vsel %vm299, %v1712, 0
      %1724 = vmatprep.subr.bf16.mxu0 0
      %1725 = vmatpush1.bf16.msra.mxu0 %v1719
      %1726 = vmatprep.subr.bf16.mxu0 0
      %1727 = vmatpush1.bf16.msra.mxu0 0
      %1728 = vmatprep.subr.bf16.mxu0 0
      %1729 = vmatpush1.bf16.msra.mxu0 0
      %1730 = vmatprep.subr.bf16.mxu0 0
      %1731 = vmatpush1.bf16.msra.mxu0 0
      %1732 = vmatprep.subr.bf16.mxu0 0
      %1733 = vmatpush1.bf16.msra.mxu0 0
      %1734 = vmatprep.subr.bf16.mxu0 0
      %1735 = vmatpush1.bf16.msra.mxu0 0
      %1736 = vmatprep.subr.bf16.mxu0 0
      %1737 = vmatpush1.bf16.msra.mxu0 0
      %1738 = vmatprep.subr.bf16.mxu0 0
      %1739 = vmatpush1.bf16.msra.mxu0 0
      %1740 = vmatprep.subr.bf16.mxu0 0
      %1741 = vmatpush1.bf16.msra.mxu0 0
      %1742 = vmatprep.subr.bf16.mxu0 0
      %1743 = vmatpush1.bf16.msra.mxu0 0
      %1744 = vmatprep.subr.bf16.mxu0 0
      %1745 = vmatpush1.bf16.msra.mxu0 0
      %1746 = vmatprep.subr.bf16.mxu0 0
      %1747 = vmatpush1.bf16.msra.mxu0 0
      %1748 = vmatprep.subr.bf16.mxu0 0
      %1749 = vmatpush1.bf16.msra.mxu0 0
      %1750 = vmatprep.subr.bf16.mxu0 0
      %1751 = vmatpush1.bf16.msra.mxu0 0
      %1752 = vmatprep.subr.bf16.mxu0 0
      %1753 = vmatpush1.bf16.msra.mxu0 0
      %1754 = vmatprep.subr.bf16.mxu0 0
      %1755 = vmatpush1.bf16.msra.mxu0 0
      %1756 = vmatprep.mubr.bf16.mxu0 0
      %1757 = vmatmul.mubr.bf16.gmra.mrb[0].mxu0 %v1722
      %v1758 = vpop.f32.mrb[0].mxu0
      %v1759 = vadd.f32 0.0, %v1758
      %v1760 = vpop.f32.mrb[0].mxu0
      %v1761 = vpop.f32.mrb[0].mxu0
      %v1762 = vpop.f32.mrb[0].mxu0
      %1763 = vdwg.mxu0
      %v1764 = vadd.f32 %v1710, %v1759
      %v1765 = vld [vmem:[%s1657] sm:$0x7]
      %v1766 = vld [vmem:[%s739] sm:$0xf]
      %v1767 = vld [vmem:[%s739 + $0x4] sm:$0xf]
      %v1769 = vunpack.c.l.b16 %v1765
      %v1770 = vpack.c.b16 %v1769, %v1769
      %v1772 = vshrl.u32 %v1770, 16
      %v1774 = vshll.u32 %v1770, 16
      %v1776 = vrot.slane %v1774, 1
      %v1777 = vor.u32 %v1772, %v1776
      %v1780 = vunpack.c.l.b16 %v1766
      %v1781 = vunpack.c.l.b16 %v1767
      %v1782 = vpack.c.b16 %v1781, %v1780
      %v1785 = vsel %vm299, %v1777, 0
      %1787 = vmatprep.subr.bf16.mxu0 0
      %1788 = vmatpush1.bf16.msra.mxu0 %v1782
      %1789 = vmatprep.subr.bf16.mxu0 0
      %1790 = vmatpush1.bf16.msra.mxu0 0
      %1791 = vmatprep.subr.bf16.mxu0 0
      %1792 = vmatpush1.bf16.msra.mxu0 0
      %1793 = vmatprep.subr.bf16.mxu0 0
      %1794 = vmatpush1.bf16.msra.mxu0 0
      %1795 = vmatprep.subr.bf16.mxu0 0
      %1796 = vmatpush1.bf16.msra.mxu0 0
      %1797 = vmatprep.subr.bf16.mxu0 0
      %1798 = vmatpush1.bf16.msra.mxu0 0
      %1799 = vmatprep.subr.bf16.mxu0 0
      %1800 = vmatpush1.bf16.msra.mxu0 0
      %1801 = vmatprep.subr.bf16.mxu0 0
      %1802 = vmatpush1.bf16.msra.mxu0 0
      %1803 = vmatprep.subr.bf16.mxu0 0
      %1804 = vmatpush1.bf16.msra.mxu0 0
      %1805 = vmatprep.subr.bf16.mxu0 0
      %1806 = vmatpush1.bf16.msra.mxu0 0
      %1807 = vmatprep.subr.bf16.mxu0 0
      %1808 = vmatpush1.bf16.msra.mxu0 0
      %1809 = vmatprep.subr.bf16.mxu0 0
      %1810 = vmatpush1.bf16.msra.mxu0 0
      %1811 = vmatprep.subr.bf16.mxu0 0
      %1812 = vmatpush1.bf16.msra.mxu0 0
      %1813 = vmatprep.subr.bf16.mxu0 0
      %1814 = vmatpush1.bf16.msra.mxu0 0
      %1815 = vmatprep.subr.bf16.mxu0 0
      %1816 = vmatpush1.bf16.msra.mxu0 0
      %1817 = vmatprep.subr.bf16.mxu0 0
      %1818 = vmatpush1.bf16.msra.mxu0 0
      %1819 = vmatprep.mubr.bf16.mxu0 0
      %1820 = vmatmul.mubr.bf16.gmra.mrb[0].mxu0 %v1785
      %v1821 = vpop.f32.mrb[0].mxu0
      %v1822 = vadd.f32 0.0, %v1821
      %v1823 = vpop.f32.mrb[0].mxu0
      %v1824 = vpop.f32.mrb[0].mxu0
      %v1825 = vpop.f32.mrb[0].mxu0
      %1826 = vdwg.mxu0
      %v1827 = vadd.f32 %v1764, %v1822
      %v1828 = vmax.f32 %v1827, 0.0
      %v1829 = vpack.c.bf16 %v1828, %v1828
      %s1830 = scalar_lea.vmem %s284, 4
      %1831 = vst.msk [vmem:[%s1830] sm:$0x3] %vm804, %v1829
      %v1832 = vld [vmem:[%s1657] sm:$0x3]
      %v1833 = vld [vmem:[%s4] sm:$0xf]
      %v1834 = vld [vmem:[%s4 + $0x4] sm:$0xf]
      %v1835 = vld [vmem:[%s1711] sm:$0x3]
      %v1836 = vld [vmem:[%s290] sm:$0xf]
      %v1837 = vld [vmem:[%s290 + $0x4] sm:$0xf]
      %v1840 = vunpack.c.l.b16 %v1836
      %v1841 = vunpack.c.l.b16 %v1837
      %v1842 = vpack.c.b16 %v1841, %v1840
      %v1845 = vsel %vm299, %v1835, 0
      %1847 = vmatprep.subr.bf16.mxu0 0
      %1848 = vmatpush1.bf16.msra.mxu0 %v1842
      %1849 = vmatprep.subr.bf16.mxu0 0
      %1850 = vmatpush1.bf16.msra.mxu0 0
      %1851 = vmatprep.subr.bf16.mxu0 0
      %1852 = vmatpush1.bf16.msra.mxu0 0
      %1853 = vmatprep.subr.bf16.mxu0 0
      %1854 = vmatpush1.bf16.msra.mxu0 0
      %1855 = vmatprep.subr.bf16.mxu0 0
      %1856 = vmatpush1.bf16.msra.mxu0 0
      %1857 = vmatprep.subr.bf16.mxu0 0
      %1858 = vmatpush1.bf16.msra.mxu0 0
      %1859 = vmatprep.subr.bf16.mxu0 0
      %1860 = vmatpush1.bf16.msra.mxu0 0
      %1861 = vmatprep.subr.bf16.mxu0 0
      %1862 = vmatpush1.bf16.msra.mxu0 0
      %1863 = vmatprep.subr.bf16.mxu0 0
      %1864 = vmatpush1.bf16.msra.mxu0 0
      %1865 = vmatprep.subr.bf16.mxu0 0
      %1866 = vmatpush1.bf16.msra.mxu0 0
      %1867 = vmatprep.subr.bf16.mxu0 0
      %1868 = vmatpush1.bf16.msra.mxu0 0
      %1869 = vmatprep.subr.bf16.mxu0 0
      %1870 = vmatpush1.bf16.msra.mxu0 0
      %1871 = vmatprep.subr.bf16.mxu0 0
      %1872 = vmatpush1.bf16.msra.mxu0 0
      %1873 = vmatprep.subr.bf16.mxu0 0
      %1874 = vmatpush1.bf16.msra.mxu0 0
      %1875 = vmatprep.subr.bf16.mxu0 0
      %1876 = vmatpush1.bf16.msra.mxu0 0
      %1877 = vmatprep.subr.bf16.mxu0 0
      %1878 = vmatpush1.bf16.msra.mxu0 0
      %1879 = vmatprep.mubr.bf16.mxu0 0
      %1880 = vmatmul.mubr.bf16.gmra.mrb[0].mxu0 %v1845
      %v1881 = vpop.f32.mrb[0].mxu0
      %v1882 = vadd.f32 0.0, %v1881
      %v1883 = vpop.f32.mrb[0].mxu0
      %v1884 = vpop.f32.mrb[0].mxu0
      %v1885 = vpop.f32.mrb[0].mxu0
      %1886 = vdwg.mxu0
      %v1889 = vunpack.c.l.b16 %v1833
      %v1890 = vunpack.c.l.b16 %v1834
      %v1891 = vpack.c.b16 %v1890, %v1889
      %v1894 = vsel %vm299, %v1832, 0
      %1896 = vmatprep.subr.bf16.mxu0 0
      %1897 = vmatpush1.bf16.msra.mxu0 %v1891
      %1898 = vmatprep.subr.bf16.mxu0 0
      %1899 = vmatpush1.bf16.msra.mxu0 0
      %1900 = vmatprep.subr.bf16.mxu0 0
      %1901 = vmatpush1.bf16.msra.mxu0 0
      %1902 = vmatprep.subr.bf16.mxu0 0
      %1903 = vmatpush1.bf16.msra.mxu0 0
      %1904 = vmatprep.subr.bf16.mxu0 0
      %1905 = vmatpush1.bf16.msra.mxu0 0
      %1906 = vmatprep.subr.bf16.mxu0 0
      %1907 = vmatpush1.bf16.msra.mxu0 0
      %1908 = vmatprep.subr.bf16.mxu0 0
      %1909 = vmatpush1.bf16.msra.mxu0 0
      %1910 = vmatprep.subr.bf16.mxu0 0
      %1911 = vmatpush1.bf16.msra.mxu0 0
      %1912 = vmatprep.subr.bf16.mxu0 0
      %1913 = vmatpush1.bf16.msra.mxu0 0
      %1914 = vmatprep.subr.bf16.mxu0 0
      %1915 = vmatpush1.bf16.msra.mxu0 0
      %1916 = vmatprep.subr.bf16.mxu0 0
      %1917 = vmatpush1.bf16.msra.mxu0 0
      %1918 = vmatprep.subr.bf16.mxu0 0
      %1919 = vmatpush1.bf16.msra.mxu0 0
      %1920 = vmatprep.subr.bf16.mxu0 0
      %1921 = vmatpush1.bf16.msra.mxu0 0
      %1922 = vmatprep.subr.bf16.mxu0 0
      %1923 = vmatpush1.bf16.msra.mxu0 0
      %1924 = vmatprep.subr.bf16.mxu0 0
      %1925 = vmatpush1.bf16.msra.mxu0 0
      %1926 = vmatprep.subr.bf16.mxu0 0
      %1927 = vmatpush1.bf16.msra.mxu0 0
      %1928 = vmatprep.mubr.bf16.mxu0 0
      %1929 = vmatmul.mubr.bf16.gmra.mrb[0].mxu0 %v1894
      %v1930 = vpop.f32.mrb[0].mxu0
      %v1931 = vadd.f32 %v1882, %v1930
      %v1932 = vpop.f32.mrb[0].mxu0
      %v1933 = vpop.f32.mrb[0].mxu0
      %v1934 = vpop.f32.mrb[0].mxu0
      %1935 = vdwg.mxu0
      %v1936 = vld [vmem:[%s1657] sm:$0x7]
      %v1937 = vld [vmem:[%s393] sm:$0xf]
      %v1938 = vld [vmem:[%s393 + $0x4] sm:$0xf]
      %v1940 = vunpack.c.l.b16 %v1936
      %v1941 = vpack.c.b16 %v1940, %v1940
      %v1943 = vshrl.u32 %v1941, 16
      %v1945 = vshll.u32 %v1941, 16
      %v1947 = vrot.slane %v1945, 1
      %v1948 = vor.u32 %v1943, %v1947
      %v1951 = vunpack.c.l.b16 %v1937
      %v1952 = vunpack.c.l.b16 %v1938
      %v1953 = vpack.c.b16 %v1952, %v1951
      %v1956 = vsel %vm299, %v1948, 0
      %1958 = vmatprep.subr.bf16.mxu0 0
      %1959 = vmatpush1.bf16.msra.mxu0 %v1953
      %1960 = vmatprep.subr.bf16.mxu0 0
      %1961 = vmatpush1.bf16.msra.mxu0 0
      %1962 = vmatprep.subr.bf16.mxu0 0
      %1963 = vmatpush1.bf16.msra.mxu0 0
      %1964 = vmatprep.subr.bf16.mxu0 0
      %1965 = vmatpush1.bf16.msra.mxu0 0
      %1966 = vmatprep.subr.bf16.mxu0 0
      %1967 = vmatpush1.bf16.msra.mxu0 0
      %1968 = vmatprep.subr.bf16.mxu0 0
      %1969 = vmatpush1.bf16.msra.mxu0 0
      %1970 = vmatprep.subr.bf16.mxu0 0
      %1971 = vmatpush1.bf16.msra.mxu0 0
      %1972 = vmatprep.subr.bf16.mxu0 0
      %1973 = vmatpush1.bf16.msra.mxu0 0
      %1974 = vmatprep.subr.bf16.mxu0 0
      %1975 = vmatpush1.bf16.msra.mxu0 0
      %1976 = vmatprep.subr.bf16.mxu0 0
      %1977 = vmatpush1.bf16.msra.mxu0 0
      %1978 = vmatprep.subr.bf16.mxu0 0
      %1979 = vmatpush1.bf16.msra.mxu0 0
      %1980 = vmatprep.subr.bf16.mxu0 0
      %1981 = vmatpush1.bf16.msra.mxu0 0
      %1982 = vmatprep.subr.bf16.mxu0 0
      %1983 = vmatpush1.bf16.msra.mxu0 0
      %1984 = vmatprep.subr.bf16.mxu0 0
      %1985 = vmatpush1.bf16.msra.mxu0 0
      %1986 = vmatprep.subr.bf16.mxu0 0
      %1987 = vmatpush1.bf16.msra.mxu0 0
      %1988 = vmatprep.subr.bf16.mxu0 0
      %1989 = vmatpush1.bf16.msra.mxu0 0
      %1990 = vmatprep.mubr.bf16.mxu0 0
      %1991 = vmatmul.mubr.bf16.gmra.mrb[0].mxu0 %v1956
      %v1992 = vpop.f32.mrb[0].mxu0
      %v1993 = vadd.f32 0.0, %v1992
      %v1994 = vpop.f32.mrb[0].mxu0
      %v1995 = vpop.f32.mrb[0].mxu0
      %v1996 = vpop.f32.mrb[0].mxu0
      %1997 = vdwg.mxu0
      %v1998 = vadd.f32 %v1931, %v1993
      %s1999 = scalar_lea.vmem %s274, 12
      %v2000 = vld [vmem:[%s1999] sm:$0x3]
      %v2001 = vld [vmem:[%s457] sm:$0xf]
      %v2002 = vld [vmem:[%s457 + $0x4] sm:$0xf]
      %v2005 = vunpack.c.l.b16 %v2001
      %v2006 = vunpack.c.l.b16 %v2002
      %v2007 = vpack.c.b16 %v2006, %v2005
      %v2010 = vsel %vm299, %v2000, 0
      %2012 = vmatprep.subr.bf16.mxu0 0
      %2013 = vmatpush1.bf16.msra.mxu0 %v2007
      %2014 = vmatprep.subr.bf16.mxu0 0
      %2015 = vmatpush1.bf16.msra.mxu0 0
      %2016 = vmatprep.subr.bf16.mxu0 0
      %2017 = vmatpush1.bf16.msra.mxu0 0
      %2018 = vmatprep.subr.bf16.mxu0 0
      %2019 = vmatpush1.bf16.msra.mxu0 0
      %2020 = vmatprep.subr.bf16.mxu0 0
      %2021 = vmatpush1.bf16.msra.mxu0 0
      %2022 = vmatprep.subr.bf16.mxu0 0
      %2023 = vmatpush1.bf16.msra.mxu0 0
      %2024 = vmatprep.subr.bf16.mxu0 0
      %2025 = vmatpush1.bf16.msra.mxu0 0
      %2026 = vmatprep.subr.bf16.mxu0 0
      %2027 = vmatpush1.bf16.msra.mxu0 0
      %2028 = vmatprep.subr.bf16.mxu0 0
      %2029 = vmatpush1.bf16.msra.mxu0 0
      %2030 = vmatprep.subr.bf16.mxu0 0
      %2031 = vmatpush1.bf16.msra.mxu0 0
      %2032 = vmatprep.subr.bf16.mxu0 0
      %2033 = vmatpush1.bf16.msra.mxu0 0
      %2034 = vmatprep.subr.bf16.mxu0 0
      %2035 = vmatpush1.bf16.msra.mxu0 0
      %2036 = vmatprep.subr.bf16.mxu0 0
      %2037 = vmatpush1.bf16.msra.mxu0 0
      %2038 = vmatprep.subr.bf16.mxu0 0
      %2039 = vmatpush1.bf16.msra.mxu0 0
      %2040 = vmatprep.subr.bf16.mxu0 0
      %2041 = vmatpush1.bf16.msra.mxu0 0
      %2042 = vmatprep.subr.bf16.mxu0 0
      %2043 = vmatpush1.bf16.msra.mxu0 0
      %2044 = vmatprep.mubr.bf16.mxu0 0
      %2045 = vmatmul.mubr.bf16.gmra.mrb[0].mxu0 %v2010
      %v2046 = vpop.f32.mrb[0].mxu0
      %v2047 = vadd.f32 0.0, %v2046
      %v2048 = vpop.f32.mrb[0].mxu0
      %v2049 = vpop.f32.mrb[0].mxu0
      %v2050 = vpop.f32.mrb[0].mxu0
      %2051 = vdwg.mxu0
      %v2052 = vadd.f32 %v1998, %v2047
      %s2053 = scalar_lea.vmem %s279, 12
      %v2054 = vld [vmem:[%s2053] sm:$0x3]
      %v2055 = vld [vmem:[%s511] sm:$0xf]
      %v2056 = vld [vmem:[%s511 + $0x4] sm:$0xf]
      %v2059 = vunpack.c.l.b16 %v2055
      %v2060 = vunpack.c.l.b16 %v2056
      %v2061 = vpack.c.b16 %v2060, %v2059
      %v2064 = vsel %vm299, %v2054, 0
      %2066 = vmatprep.subr.bf16.mxu0 0
      %2067 = vmatpush1.bf16.msra.mxu0 %v2061
      %2068 = vmatprep.subr.bf16.mxu0 0
      %2069 = vmatpush1.bf16.msra.mxu0 0
      %2070 = vmatprep.subr.bf16.mxu0 0
      %2071 = vmatpush1.bf16.msra.mxu0 0
      %2072 = vmatprep.subr.bf16.mxu0 0
      %2073 = vmatpush1.bf16.msra.mxu0 0
      %2074 = vmatprep.subr.bf16.mxu0 0
      %2075 = vmatpush1.bf16.msra.mxu0 0
      %2076 = vmatprep.subr.bf16.mxu0 0
      %2077 = vmatpush1.bf16.msra.mxu0 0
      %2078 = vmatprep.subr.bf16.mxu0 0
      %2079 = vmatpush1.bf16.msra.mxu0 0
      %2080 = vmatprep.subr.bf16.mxu0 0
      %2081 = vmatpush1.bf16.msra.mxu0 0
      %2082 = vmatprep.subr.bf16.mxu0 0
      %2083 = vmatpush1.bf16.msra.mxu0 0
      %2084 = vmatprep.subr.bf16.mxu0 0
      %2085 = vmatpush1.bf16.msra.mxu0 0
      %2086 = vmatprep.subr.bf16.mxu0 0
      %2087 = vmatpush1.bf16.msra.mxu0 0
      %2088 = vmatprep.subr.bf16.mxu0 0
      %2089 = vmatpush1.bf16.msra.mxu0 0
      %2090 = vmatprep.subr.bf16.mxu0 0
      %2091 = vmatpush1.bf16.msra.mxu0 0
      %2092 = vmatprep.subr.bf16.mxu0 0
      %2093 = vmatpush1.bf16.msra.mxu0 0
      %2094 = vmatprep.subr.bf16.mxu0 0
      %2095 = vmatpush1.bf16.msra.mxu0 0
      %2096 = vmatprep.subr.bf16.mxu0 0
      %2097 = vmatpush1.bf16.msra.mxu0 0
      %2098 = vmatprep.mubr.bf16.mxu0 0
      %2099 = vmatmul.mubr.bf16.gmra.mrb[0].mxu0 %v2064
      %v2100 = vpop.f32.mrb[0].mxu0
      %v2101 = vadd.f32 0.0, %v2100
      %v2102 = vpop.f32.mrb[0].mxu0
      %v2103 = vpop.f32.mrb[0].mxu0
      %v2104 = vpop.f32.mrb[0].mxu0
      %2105 = vdwg.mxu0
      %v2106 = vadd.f32 %v2052, %v2101
      %v2107 = vld [vmem:[%s1999] sm:$0x7]
      %v2108 = vld [vmem:[%s565] sm:$0xf]
      %v2109 = vld [vmem:[%s565 + $0x4] sm:$0xf]
      %v2111 = vunpack.c.l.b16 %v2107
      %v2112 = vpack.c.b16 %v2111, %v2111
      %v2114 = vshrl.u32 %v2112, 16
      %v2116 = vshll.u32 %v2112, 16
      %v2118 = vrot.slane %v2116, 1
      %v2119 = vor.u32 %v2114, %v2118
      %v2122 = vunpack.c.l.b16 %v2108
      %v2123 = vunpack.c.l.b16 %v2109
      %v2124 = vpack.c.b16 %v2123, %v2122
      %v2127 = vsel %vm299, %v2119, 0
      %2129 = vmatprep.subr.bf16.mxu0 0
      %2130 = vmatpush1.bf16.msra.mxu0 %v2124
      %2131 = vmatprep.subr.bf16.mxu0 0
      %2132 = vmatpush1.bf16.msra.mxu0 0
      %2133 = vmatprep.subr.bf16.mxu0 0
      %2134 = vmatpush1.bf16.msra.mxu0 0
      %2135 = vmatprep.subr.bf16.mxu0 0
      %2136 = vmatpush1.bf16.msra.mxu0 0
      %2137 = vmatprep.subr.bf16.mxu0 0
      %2138 = vmatpush1.bf16.msra.mxu0 0
      %2139 = vmatprep.subr.bf16.mxu0 0
      %2140 = vmatpush1.bf16.msra.mxu0 0
      %2141 = vmatprep.subr.bf16.mxu0 0
      %2142 = vmatpush1.bf16.msra.mxu0 0
      %2143 = vmatprep.subr.bf16.mxu0 0
      %2144 = vmatpush1.bf16.msra.mxu0 0
      %2145 = vmatprep.subr.bf16.mxu0 0
      %2146 = vmatpush1.bf16.msra.mxu0 0
      %2147 = vmatprep.subr.bf16.mxu0 0
      %2148 = vmatpush1.bf16.msra.mxu0 0
      %2149 = vmatprep.subr.bf16.mxu0 0
      %2150 = vmatpush1.bf16.msra.mxu0 0
      %2151 = vmatprep.subr.bf16.mxu0 0
      %2152 = vmatpush1.bf16.msra.mxu0 0
      %2153 = vmatprep.subr.bf16.mxu0 0
      %2154 = vmatpush1.bf16.msra.mxu0 0
      %2155 = vmatprep.subr.bf16.mxu0 0
      %2156 = vmatpush1.bf16.msra.mxu0 0
      %2157 = vmatprep.subr.bf16.mxu0 0
      %2158 = vmatpush1.bf16.msra.mxu0 0
      %2159 = vmatprep.subr.bf16.mxu0 0
      %2160 = vmatpush1.bf16.msra.mxu0 0
      %2161 = vmatprep.mubr.bf16.mxu0 0
      %2162 = vmatmul.mubr.bf16.gmra.mrb[0].mxu0 %v2127
      %v2163 = vpop.f32.mrb[0].mxu0
      %v2164 = vadd.f32 0.0, %v2163
      %v2165 = vpop.f32.mrb[0].mxu0
      %v2166 = vpop.f32.mrb[0].mxu0
      %v2167 = vpop.f32.mrb[0].mxu0
      %2168 = vdwg.mxu0
      %v2169 = vadd.f32 %v2106, %v2164
      %s2170 = scalar_lea.vmem %s264, 16
      %v2171 = vld [vmem:[%s2170] sm:$0x3]
      %v2172 = vld [vmem:[%s630] sm:$0xf]
      %v2173 = vld [vmem:[%s630 + $0x4] sm:$0xf]
      %v2176 = vunpack.c.l.b16 %v2172
      %v2177 = vunpack.c.l.b16 %v2173
      %v2178 = vpack.c.b16 %v2177, %v2176
      %v2181 = vsel %vm299, %v2171, 0
      %2183 = vmatprep.subr.bf16.mxu0 0
      %2184 = vmatpush1.bf16.msra.mxu0 %v2178
      %2185 = vmatprep.subr.bf16.mxu0 0
      %2186 = vmatpush1.bf16.msra.mxu0 0
      %2187 = vmatprep.subr.bf16.mxu0 0
      %2188 = vmatpush1.bf16.msra.mxu0 0
      %2189 = vmatprep.subr.bf16.mxu0 0
      %2190 = vmatpush1.bf16.msra.mxu0 0
      %2191 = vmatprep.subr.bf16.mxu0 0
      %2192 = vmatpush1.bf16.msra.mxu0 0
      %2193 = vmatprep.subr.bf16.mxu0 0
      %2194 = vmatpush1.bf16.msra.mxu0 0
      %2195 = vmatprep.subr.bf16.mxu0 0
      %2196 = vmatpush1.bf16.msra.mxu0 0
      %2197 = vmatprep.subr.bf16.mxu0 0
      %2198 = vmatpush1.bf16.msra.mxu0 0
      %2199 = vmatprep.subr.bf16.mxu0 0
      %2200 = vmatpush1.bf16.msra.mxu0 0
      %2201 = vmatprep.subr.bf16.mxu0 0
      %2202 = vmatpush1.bf16.msra.mxu0 0
      %2203 = vmatprep.subr.bf16.mxu0 0
      %2204 = vmatpush1.bf16.msra.mxu0 0
      %2205 = vmatprep.subr.bf16.mxu0 0
      %2206 = vmatpush1.bf16.msra.mxu0 0
      %2207 = vmatprep.subr.bf16.mxu0 0
      %2208 = vmatpush1.bf16.msra.mxu0 0
      %2209 = vmatprep.subr.bf16.mxu0 0
      %2210 = vmatpush1.bf16.msra.mxu0 0
      %2211 = vmatprep.subr.bf16.mxu0 0
      %2212 = vmatpush1.bf16.msra.mxu0 0
      %2213 = vmatprep.subr.bf16.mxu0 0
      %2214 = vmatpush1.bf16.msra.mxu0 0
      %2215 = vmatprep.mubr.bf16.mxu0 0
      %2216 = vmatmul.mubr.bf16.gmra.mrb[0].mxu0 %v2181
      %v2217 = vpop.f32.mrb[0].mxu0
      %v2218 = vadd.f32 0.0, %v2217
      %v2219 = vpop.f32.mrb[0].mxu0
      %v2220 = vpop.f32.mrb[0].mxu0
      %v2221 = vpop.f32.mrb[0].mxu0
      %2222 = vdwg.mxu0
      %v2223 = vadd.f32 %v2169, %v2218
      %s2224 = scalar_lea.vmem %s269, 16
      %v2225 = vld [vmem:[%s2224] sm:$0x3]
      %v2226 = vld [vmem:[%s685] sm:$0xf]
      %v2227 = vld [vmem:[%s685 + $0x4] sm:$0xf]
      %v2230 = vunpack.c.l.b16 %v2226
      %v2231 = vunpack.c.l.b16 %v2227
      %v2232 = vpack.c.b16 %v2231, %v2230
      %v2235 = vsel %vm299, %v2225, 0
      %2237 = vmatprep.subr.bf16.mxu0 0
      %2238 = vmatpush1.bf16.msra.mxu0 %v2232
      %2239 = vmatprep.subr.bf16.mxu0 0
      %2240 = vmatpush1.bf16.msra.mxu0 0
      %2241 = vmatprep.subr.bf16.mxu0 0
      %2242 = vmatpush1.bf16.msra.mxu0 0
      %2243 = vmatprep.subr.bf16.mxu0 0
      %2244 = vmatpush1.bf16.msra.mxu0 0
      %2245 = vmatprep.subr.bf16.mxu0 0
      %2246 = vmatpush1.bf16.msra.mxu0 0
      %2247 = vmatprep.subr.bf16.mxu0 0
      %2248 = vmatpush1.bf16.msra.mxu0 0
      %2249 = vmatprep.subr.bf16.mxu0 0
      %2250 = vmatpush1.bf16.msra.mxu0 0
      %2251 = vmatprep.subr.bf16.mxu0 0
      %2252 = vmatpush1.bf16.msra.mxu0 0
      %2253 = vmatprep.subr.bf16.mxu0 0
      %2254 = vmatpush1.bf16.msra.mxu0 0
      %2255 = vmatprep.subr.bf16.mxu0 0
      %2256 = vmatpush1.bf16.msra.mxu0 0
      %2257 = vmatprep.subr.bf16.mxu0 0
      %2258 = vmatpush1.bf16.msra.mxu0 0
      %2259 = vmatprep.subr.bf16.mxu0 0
      %2260 = vmatpush1.bf16.msra.mxu0 0
      %2261 = vmatprep.subr.bf16.mxu0 0
      %2262 = vmatpush1.bf16.msra.mxu0 0
      %2263 = vmatprep.subr.bf16.mxu0 0
      %2264 = vmatpush1.bf16.msra.mxu0 0
      %2265 = vmatprep.subr.bf16.mxu0 0
      %2266 = vmatpush1.bf16.msra.mxu0 0
      %2267 = vmatprep.subr.bf16.mxu0 0
      %2268 = vmatpush1.bf16.msra.mxu0 0
      %2269 = vmatprep.mubr.bf16.mxu0 0
      %2270 = vmatmul.mubr.bf16.gmra.mrb[0].mxu0 %v2235
      %v2271 = vpop.f32.mrb[0].mxu0
      %v2272 = vadd.f32 0.0, %v2271
      %v2273 = vpop.f32.mrb[0].mxu0
      %v2274 = vpop.f32.mrb[0].mxu0
      %v2275 = vpop.f32.mrb[0].mxu0
      %2276 = vdwg.mxu0
      %v2277 = vadd.f32 %v2223, %v2272
      %v2278 = vld [vmem:[%s2170] sm:$0x7]
      %v2279 = vld [vmem:[%s739] sm:$0xf]
      %v2280 = vld [vmem:[%s739 + $0x4] sm:$0xf]
      %v2282 = vunpack.c.l.b16 %v2278
      %v2283 = vpack.c.b16 %v2282, %v2282
      %v2285 = vshrl.u32 %v2283, 16
      %v2287 = vshll.u32 %v2283, 16
      %v2289 = vrot.slane %v2287, 1
      %v2290 = vor.u32 %v2285, %v2289
      %v2293 = vunpack.c.l.b16 %v2279
      %v2294 = vunpack.c.l.b16 %v2280
      %v2295 = vpack.c.b16 %v2294, %v2293
      %v2298 = vsel %vm299, %v2290, 0
      %2300 = vmatprep.subr.bf16.mxu0 0
      %2301 = vmatpush1.bf16.msra.mxu0 %v2295
      %2302 = vmatprep.subr.bf16.mxu0 0
      %2303 = vmatpush1.bf16.msra.mxu0 0
      %2304 = vmatprep.subr.bf16.mxu0 0
      %2305 = vmatpush1.bf16.msra.mxu0 0
      %2306 = vmatprep.subr.bf16.mxu0 0
      %2307 = vmatpush1.bf16.msra.mxu0 0
      %2308 = vmatprep.subr.bf16.mxu0 0
      %2309 = vmatpush1.bf16.msra.mxu0 0
      %2310 = vmatprep.subr.bf16.mxu0 0
      %2311 = vmatpush1.bf16.msra.mxu0 0
      %2312 = vmatprep.subr.bf16.mxu0 0
      %2313 = vmatpush1.bf16.msra.mxu0 0
      %2314 = vmatprep.subr.bf16.mxu0 0
      %2315 = vmatpush1.bf16.msra.mxu0 0
      %2316 = vmatprep.subr.bf16.mxu0 0
      %2317 = vmatpush1.bf16.msra.mxu0 0
      %2318 = vmatprep.subr.bf16.mxu0 0
      %2319 = vmatpush1.bf16.msra.mxu0 0
      %2320 = vmatprep.subr.bf16.mxu0 0
      %2321 = vmatpush1.bf16.msra.mxu0 0
      %2322 = vmatprep.subr.bf16.mxu0 0
      %2323 = vmatpush1.bf16.msra.mxu0 0
      %2324 = vmatprep.subr.bf16.mxu0 0
      %2325 = vmatpush1.bf16.msra.mxu0 0
      %2326 = vmatprep.subr.bf16.mxu0 0
      %2327 = vmatpush1.bf16.msra.mxu0 0
      %2328 = vmatprep.subr.bf16.mxu0 0
      %2329 = vmatpush1.bf16.msra.mxu0 0
      %2330 = vmatprep.subr.bf16.mxu0 0
      %2331 = vmatpush1.bf16.msra.mxu0 0
      %2332 = vmatprep.mubr.bf16.mxu0 0
      %2333 = vmatmul.mubr.bf16.gmra.mrb[0].mxu0 %v2298
      %v2334 = vpop.f32.mrb[0].mxu0
      %v2335 = vadd.f32 0.0, %v2334
      %v2336 = vpop.f32.mrb[0].mxu0
      %v2337 = vpop.f32.mrb[0].mxu0
      %v2338 = vpop.f32.mrb[0].mxu0
      %2339 = vdwg.mxu0
      %v2340 = vadd.f32 %v2277, %v2335
      %v2341 = vmax.f32 %v2340, 0.0
      %v2342 = vpack.c.bf16 %v2341, %v2341
      %s2343 = scalar_lea.vmem %s284, 6
      %2344 = vst.msk [vmem:[%s2343] sm:$0x3] %vm804, %v2342
      %p2345 = scmp.lt.s32.totalorder %s16, 1
      %s2346 = scalar_select %p2345, %s16, 1
      %s2347 = smul.addr %s2346, 4
      %s2348 = smul.addr %s2347, 2
      %s2349 = scalar_lea.vmem %s5, %s2348
      // Predicated region
      $region41: #{base_model_forward.4} parent=39 // pred_check
        %p2350 = pneg %p159
      $region42: #{base_model_forward.4} parent=39 // pred_check_branch
        %2352 = sbr.rel (%p2350) target = $region44
      $region43: #{base_model_forward.4} parent=39 // pred_region
        _
      $region44: #{base_model_forward.4} parent=39 // pred_fallthru
        _
    $region40: #{base_model_forward.4} parent=5 // pred_fallthru
      _
    %p2353 = scmp.le.s32.totalorder 2, %s11
    // Predicated region
    $region45: #{base_model_forward.4} parent=5 // pred_check
      %p2354 = pneg %p2353
    $region46: #{base_model_forward.4} parent=5 // pred_check_branch
      %2356 = sbr.rel (%p2354) target = $region48
    $region47: #{base_model_forward.4} parent=5 // pred_region
      %s2357 = ssub.s32 %s11, 2
      // Predicated region
      $region49: #{base_model_forward.4} parent=47 // pred_check
        %p2358 = pneg %p165
      $region50: #{base_model_forward.4} parent=47 // pred_check_branch
        %2360 = sbr.rel (%p2358) target = $region52
      $region51: #{base_model_forward.4} parent=47 // pred_region
        %p2361 = scmp.lt.s32.totalorder %s17, 1
        %s2362 = scalar_select %p2361, %s17, 1
        %s2363 = smul.addr %s2362, 4
        %s2364 = smul.addr %s2363, 2
        %s2365 = scalar_lea.vmem %s5, %s2364
      $region52: #{base_model_forward.4} parent=47 // pred_fallthru
        _
    $region48: #{base_model_forward.4} parent=5 // pred_fallthru
      _
  $region6: #{base_model_forward.4} parent=0 // loop_footer
    %s15 = sadd.s32 1, %s11
  $region7: #{base_model_forward.4} parent=0 // loop_footer_branch
    %10 = sbr.rel target = $region3
  $region8: #{base_model_forward.4} parent=0 // loop_exit
    _

// kernel: base_model_forward.3
$region0: #{base_model_forward.3}
  #allocation0 [shape = 'u32[]', space=smem, size = 0x4, offset = 0x4, fixed_abs, tag = 'smem constant byte address 0x4 - core index']
  #allocation1 [shape = 'u32[144,128]{1,0:T(1,128)}', space=vmem, size = 0x12000, scoped, tag = 'internal scratch']
  %s0 = inlined_call_operand.vmem [shape: bf16[2,9,9,8], index: 0, kind: input, shape index: {}]
  %s1 = inlined_call_operand.vmem [shape: bf16[2,9,9,8], index: 1, kind: input, shape index: {}]
  %s2 = inlined_call_operand.vmem [shape: bf16[2,9,9,8], index: 2, kind: input, shape index: {}]
  %s3 = inlined_call_operand.vmem [shape: bf16[2,9,9,8], index: 3, kind: input, shape index: {}]
  %s4 = inlined_call_operand.vmem [shape: bf16[9,8,16], index: 4, kind: input, shape index: {}]
  %s5 = inlined_call_operand.vmem [shape: bf16[2,8,8,16], index: 5, kind: output, shape index: {}]
  %s6 = sld [smem:[#allocation0]]
  $region53: #{base_model_forward.3} parent=0
    _
  %s8 = ssub.s32 1, %s6
  %s9 = scalar_select 0, %s8, %s6
  loop: start=0, step=1, limit=4
  $region2: #{base_model_forward.3} parent=0 // loop_pre_header
    _
  $region3: #{base_model_forward.3} parent=0 // loop_header
    %s11 = sphi 0, %s15
    %p12 = scmp.ge.s32.totalorder %s11, 4
    %s21 = sphi 0, %s23
    %s24 = sphi 0, %s21
    %s25 = sphi 0, %s24
    %s41 = sphi 0, %s25
    %s47 = sphi 0, %s49
    %s50 = sphi 0, %s47
    %s51 = sphi 0, %s50
    %s67 = sphi 0, %s51
    %s73 = sphi 0, %s75
    %s76 = sphi 0, %s73
    %s77 = sphi 0, %s76
    %s93 = sphi 0, %s77
    %s99 = sphi 0, %s101
    %s102 = sphi 0, %s99
    %s103 = sphi 0, %s102
    %s119 = sphi 0, %s103
    %s123 = sphi 0, %s123
    %s125 = sphi 0, %s123
    %s126 = sphi 0, %s125
    %s140 = sphi 0, %s126
    %s146 = sphi 0, %s148
    %s149 = sphi 0, %s146
    %s150 = sphi 0, %s149
    %s166 = sphi 0, %s150
  $region4: #{base_model_forward.3} parent=0 // loop_header_branch
    %14 = sbr.rel (%p12) target = $region8
  $region5: #{base_model_forward.3} parent=0 // loop_body
    %s16 = ssub.s32 %s11, 1
    %s17 = ssub.s32 %s11, 2
    %s18 = sadd.s32 %s11, 1
    %s19 = ssub.s32 %s11, %s18
    %p20 = scmp.eq.s32.totalorder %s19, 0
    %s22 = sadd.s32 %s21, 1
    %s23 = scalar_select %p20, %s21, %s22
    %p26 = pneg %p20
    %p27 = scmp.eq.s32.totalorder %s11, 1
    %p28 = por %p26, %p27
    %p29 = scmp.ne.s32.totalorder %s21, %s24
    %p30 = scmp.eq.s32.totalorder %s11, 0
    %p31 = por %p29, %p30
    %p32 = scmp.ne.s32.totalorder %s21, %s24
    %p33 = scmp.eq.s32.totalorder %s16, 1
    %p34 = por %p32, %p33
    %p35 = scmp.ne.s32.totalorder %s24, %s25
    %p36 = scmp.eq.s32.totalorder %s16, 0
    %p37 = por %p35, %p36
    %p38 = scmp.ne.s32.totalorder %s24, %s25
    %p39 = scmp.eq.s32.totalorder %s17, 1
    %p40 = por %p38, %p39
    %p42 = scmp.ne.s32.totalorder %s25, %s41
    %p43 = scmp.eq.s32.totalorder %s17, 0
    %p44 = por %p42, %p43
    %s45 = ssub.s32 %s11, %s18
    %p46 = scmp.eq.s32.totalorder %s45, 0
    %s48 = sadd.s32 %s47, 1
    %s49 = scalar_select %p46, %s47, %s48
    %p52 = pneg %p46
    %p53 = scmp.eq.s32.totalorder %s11, 1
    %p54 = por %p52, %p53
    %p55 = scmp.ne.s32.totalorder %s47, %s50
    %p56 = scmp.eq.s32.totalorder %s11, 0
    %p57 = por %p55, %p56
    %p58 = scmp.ne.s32.totalorder %s47, %s50
    %p59 = scmp.eq.s32.totalorder %s16, 1
    %p60 = por %p58, %p59
    %p61 = scmp.ne.s32.totalorder %s50, %s51
    %p62 = scmp.eq.s32.totalorder %s16, 0
    %p63 = por %p61, %p62
    %p64 = scmp.ne.s32.totalorder %s50, %s51
    %p65 = scmp.eq.s32.totalorder %s17, 1
    %p66 = por %p64, %p65
    %p68 = scmp.ne.s32.totalorder %s51, %s67
    %p69 = scmp.eq.s32.totalorder %s17, 0
    %p70 = por %p68, %p69
    %s71 = ssub.s32 %s11, %s18
    %p72 = scmp.eq.s32.totalorder %s71, 0
    %s74 = sadd.s32 %s73, 1
    %s75 = scalar_select %p72, %s73, %s74
    %p78 = pneg %p72
    %p79 = scmp.eq.s32.totalorder %s11, 1
    %p80 = por %p78, %p79
    %p81 = scmp.ne.s32.totalorder %s73, %s76
    %p82 = scmp.eq.s32.totalorder %s11, 0
    %p83 = por %p81, %p82
    %p84 = scmp.ne.s32.totalorder %s73, %s76
    %p85 = scmp.eq.s32.totalorder %s16, 1
    %p86 = por %p84, %p85
    %p87 = scmp.ne.s32.totalorder %s76, %s77
    %p88 = scmp.eq.s32.totalorder %s16, 0
    %p89 = por %p87, %p88
    %p90 = scmp.ne.s32.totalorder %s76, %s77
    %p91 = scmp.eq.s32.totalorder %s17, 1
    %p92 = por %p90, %p91
    %p94 = scmp.ne.s32.totalorder %s77, %s93
    %p95 = scmp.eq.s32.totalorder %s17, 0
    %p96 = por %p94, %p95
    %s97 = ssub.s32 %s11, %s18
    %p98 = scmp.eq.s32.totalorder %s97, 0
    %s100 = sadd.s32 %s99, 1
    %s101 = scalar_select %p98, %s99, %s100
    %p104 = pneg %p98
    %p105 = scmp.eq.s32.totalorder %s11, 1
    %p106 = por %p104, %p105
    %p107 = scmp.ne.s32.totalorder %s99, %s102
    %p108 = scmp.eq.s32.totalorder %s11, 0
    %p109 = por %p107, %p108
    %p110 = scmp.ne.s32.totalorder %s99, %s102
    %p111 = scmp.eq.s32.totalorder %s16, 1
    %p112 = por %p110, %p111
    %p113 = scmp.ne.s32.totalorder %s102, %s103
    %p114 = scmp.eq.s32.totalorder %s16, 0
    %p115 = por %p113, %p114
    %p116 = scmp.ne.s32.totalorder %s102, %s103
    %p117 = scmp.eq.s32.totalorder %s17, 1
    %p118 = por %p116, %p117
    %p120 = scmp.ne.s32.totalorder %s103, %s119
    %p121 = scmp.eq.s32.totalorder %s17, 0
    %p122 = por %p120, %p121
    %s124 = sadd.s32 %s123, 1
    %p127 = scmp.eq.s32.totalorder %s11, 1
    %p128 = scmp.ne.s32.totalorder %s123, %s125
    %p129 = scmp.eq.s32.totalorder %s11, 0
    %p130 = por %p128, %p129
    %p131 = scmp.ne.s32.totalorder %s123, %s125
    %p132 = scmp.eq.s32.totalorder %s16, 1
    %p133 = por %p131, %p132
    %p134 = scmp.ne.s32.totalorder %s125, %s126
    %p135 = scmp.eq.s32.totalorder %s16, 0
    %p136 = por %p134, %p135
    %p137 = scmp.ne.s32.totalorder %s125, %s126
    %p138 = scmp.eq.s32.totalorder %s17, 1
    %p139 = por %p137, %p138
    %p141 = scmp.ne.s32.totalorder %s126, %s140
    %p142 = scmp.eq.s32.totalorder %s17, 0
    %p143 = por %p141, %p142
    %s144 = ssub.s32 %s11, %s18
    %p145 = scmp.eq.s32.totalorder %s144, 0
    %s147 = sadd.s32 %s146, 1
    %s148 = scalar_select %p145, %s146, %s147
    %p151 = pneg %p145
    %p152 = scmp.eq.s32.totalorder %s11, 1
    %p153 = por %p151, %p152
    %p154 = scmp.ne.s32.totalorder %s146, %s149
    %p155 = scmp.eq.s32.totalorder %s11, 0
    %p156 = por %p154, %p155
    %p157 = scmp.ne.s32.totalorder %s146, %s149
    %p158 = scmp.eq.s32.totalorder %s16, 1
    %p159 = por %p157, %p158
    %p160 = scmp.ne.s32.totalorder %s149, %s150
    %p161 = scmp.eq.s32.totalorder %s16, 0
    %p162 = por %p160, %p161
    %p163 = scmp.ne.s32.totalorder %s149, %s150
    %p164 = scmp.eq.s32.totalorder %s17, 1
    %p165 = por %p163, %p164
    %p167 = scmp.ne.s32.totalorder %s150, %s166
    %p168 = scmp.eq.s32.totalorder %s17, 0
    %p169 = por %p167, %p168
    %p170 = scmp.le.s32.totalorder 1, %s11
    %p171 = scmp.lt.s32.totalorder %s11, 3
    %p172 = pnand %p170, %p171
    %p173 = pneg %p172
    // Predicated region
    $region9: #{base_model_forward.3} parent=5 // pred_check
      _
    $region10: #{base_model_forward.3} parent=5 // pred_check_branch
      %175 = sbr.rel (%p172) target = $region12
    $region11: #{base_model_forward.3} parent=5 // pred_region
      %s176 = ssub.s32 %s11, 1
      // Predicated region
      $region13: #{base_model_forward.3} parent=11 // pred_check
        %p177 = pneg %p136
      $region14: #{base_model_forward.3} parent=11 // pred_check_branch
        %179 = sbr.rel (%p177) target = $region16
      $region15: #{base_model_forward.3} parent=11 // pred_region
        _
      $region16: #{base_model_forward.3} parent=11 // pred_fallthru
        _
    $region12: #{base_model_forward.3} parent=5 // pred_fallthru
      _
    %p180 = scmp.lt.s32.totalorder %s11, 2
    // Predicated region
    $region17: #{base_model_forward.3} parent=5 // pred_check
      %p181 = pneg %p180
    $region18: #{base_model_forward.3} parent=5 // pred_check_branch
      %183 = sbr.rel (%p181) target = $region20
    $region19: #{base_model_forward.3} parent=5 // pred_region
      // Predicated region
      $region21: #{base_model_forward.3} parent=19 // pred_check
        %p184 = pneg %p31
      $region22: #{base_model_forward.3} parent=19 // pred_check_branch
        %186 = sbr.rel (%p184) target = $region24
      $region23: #{base_model_forward.3} parent=19 // pred_region
        %p187 = scmp.lt.s32.totalorder %s11, 1
        %s188 = scalar_select %p187, %s11, 1
        %s189 = smul.addr %s188, 18
        %s190 = smul.addr %s189, 4
        %s191 = scalar_lea.vmem %s0, %s190
      $region24: #{base_model_forward.3} parent=19 // pred_fallthru
        _
      // Predicated region
      $region25: #{base_model_forward.3} parent=19 // pred_check
        %p192 = pneg %p57
      $region26: #{base_model_forward.3} parent=19 // pred_check_branch
        %194 = sbr.rel (%p192) target = $region28
      $region27: #{base_model_forward.3} parent=19 // pred_region
        %p195 = scmp.lt.s32.totalorder %s11, 1
        %s196 = scalar_select %p195, %s11, 1
        %s197 = smul.addr %s196, 18
        %s198 = smul.addr %s197, 4
        %s199 = scalar_lea.vmem %s1, %s198
      $region28: #{base_model_forward.3} parent=19 // pred_fallthru
        _
      // Predicated region
      $region29: #{base_model_forward.3} parent=19 // pred_check
        %p200 = pneg %p83
      $region30: #{base_model_forward.3} parent=19 // pred_check_branch
        %202 = sbr.rel (%p200) target = $region32
      $region31: #{base_model_forward.3} parent=19 // pred_region
        %p203 = scmp.lt.s32.totalorder %s11, 1
        %s204 = scalar_select %p203, %s11, 1
        %s205 = smul.addr %s204, 18
        %s206 = smul.addr %s205, 4
        %s207 = scalar_lea.vmem %s2, %s206
      $region32: #{base_model_forward.3} parent=19 // pred_fallthru
        _
      // Predicated region
      $region33: #{base_model_forward.3} parent=19 // pred_check
        %p208 = pneg %p109
      $region34: #{base_model_forward.3} parent=19 // pred_check_branch
        %210 = sbr.rel (%p208) target = $region36
      $region35: #{base_model_forward.3} parent=19 // pred_region
        %p211 = scmp.lt.s32.totalorder %s11, 1
        %s212 = scalar_select %p211, %s11, 1
        %s213 = smul.addr %s212, 18
        %s214 = smul.addr %s213, 4
        %s215 = scalar_lea.vmem %s3, %s214
      $region36: #{base_model_forward.3} parent=19 // pred_fallthru
        _
    $region20: #{base_model_forward.3} parent=5 // pred_fallthru
      _
    %p216 = scmp.le.s32.totalorder 1, %s11
    %p217 = scmp.lt.s32.totalorder %s11, 3
    %p218 = pnand %p216, %p217
    %p219 = pneg %p218
    // Predicated region
    $region37: #{base_model_forward.3} parent=5 // pred_check
      _
    $region38: #{base_model_forward.3} parent=5 // pred_check_branch
      %221 = sbr.rel (%p218) target = $region40
    $region39: #{base_model_forward.3} parent=5 // pred_region
      %s222 = ssub.s32 %s11, 1
      %p223 = scmp.lt.s32.totalorder %s16, 1
      %s224 = scalar_select %p223, %s16, 1
      %s225 = smul.addr %s224, 18
      %s226 = smul.addr %s225, 4
      %s227 = scalar_lea.vmem %s0, %s226
      %p228 = pneg %p37
      %p229 = pneg %p34
      %p230 = scmp.lt.s32.totalorder %s16, 1
      %s231 = scalar_select %p230, %s16, 1
      %s232 = smul.addr %s231, 18
      %s233 = smul.addr %s232, 4
      %s234 = scalar_lea.vmem %s1, %s233
      %p235 = pneg %p63
      %p236 = pneg %p60
      %p237 = scmp.lt.s32.totalorder %s16, 1
      %s238 = scalar_select %p237, %s16, 1
      %s239 = smul.addr %s238, 18
      %s240 = smul.addr %s239, 4
      %s241 = scalar_lea.vmem %s2, %s240
      %p242 = pneg %p89
      %p243 = pneg %p86
      %p244 = scmp.lt.s32.totalorder %s16, 1
      %s245 = scalar_select %p244, %s16, 1
      %s246 = smul.addr %s245, 18
      %s247 = smul.addr %s246, 4
      %s248 = scalar_lea.vmem %s3, %s247
      %p249 = pneg %p115
      %p250 = pneg %p112
      %p251 = pneg %p136
      %p252 = pneg %p133
      %p253 = pneg %p162
      %p254 = pneg %p159
      %p255 = scmp.lt.s32.totalorder %s16, 1
      %s256 = scalar_select %p255, %s16, 1
      %s257 = smul.addr %s256, 8
      %s258 = smul.addr %s257, 4
      %s259 = scalar_lea.vmem %s5, %s258
      %p260 = scmp.lt.s32.totalorder %s16, 1
      %s261 = scalar_select %p260, %s16, 1
      %s262 = smul.addr %s261, 18
      %s263 = smul.addr %s262, 4
      %s264 = scalar_lea.vmem %s0, %s263
      %p265 = scmp.lt.s32.totalorder %s16, 1
      %s266 = scalar_select %p265, %s16, 1
      %s267 = smul.addr %s266, 18
      %s268 = smul.addr %s267, 4
      %s269 = scalar_lea.vmem %s1, %s268
      %p270 = scmp.lt.s32.totalorder %s16, 1
      %s271 = scalar_select %p270, %s16, 1
      %s272 = smul.addr %s271, 18
      %s273 = smul.addr %s272, 4
      %s274 = scalar_lea.vmem %s2, %s273
      %p275 = scmp.lt.s32.totalorder %s16, 1
      %s276 = scalar_select %p275, %s16, 1
      %s277 = smul.addr %s276, 18
      %s278 = smul.addr %s277, 4
      %s279 = scalar_lea.vmem %s3, %s278
      %p280 = scmp.lt.s32.totalorder %s16, 1
      %s281 = scalar_select %p280, %s16, 1
      %s282 = smul.addr %s281, 8
      %s283 = smul.addr %s282, 4
      %s284 = scalar_lea.vmem %s5, %s283
      %v286 = vld [vmem:[%s264] sm:$0xf]
      %v287 = vld [vmem:[%s4] sm:$0xf]
      %v288 = vld [vmem:[%s269] sm:$0xf]
      %s289 = scalar_lea.vmem %s4, 4
      %v290 = vld [vmem:[%s289] sm:$0xf]
      %vm291 = vcmask 64512
      %v293 = vsel %vm291, %v288, 0
      %vm295 = vcmask 1043456
      %v297 = vsel %vm295, %v290, 0
      %299 = vmatprep.subr.bf16.mxu0 0
      %300 = vmatpush1.bf16.msra.mxu0 %v297
      %301 = vmatprep.subr.bf16.mxu0 0
      %302 = vmatpush1.bf16.msra.mxu0 0
      %303 = vmatprep.subr.bf16.mxu0 0
      %304 = vmatpush1.bf16.msra.mxu0 0
      %305 = vmatprep.subr.bf16.mxu0 0
      %306 = vmatpush1.bf16.msra.mxu0 0
      %307 = vmatprep.subr.bf16.mxu0 0
      %308 = vmatpush1.bf16.msra.mxu0 0
      %309 = vmatprep.subr.bf16.mxu0 0
      %310 = vmatpush1.bf16.msra.mxu0 0
      %311 = vmatprep.subr.bf16.mxu0 0
      %312 = vmatpush1.bf16.msra.mxu0 0
      %313 = vmatprep.subr.bf16.mxu0 0
      %314 = vmatpush1.bf16.msra.mxu0 0
      %315 = vmatprep.subr.bf16.mxu0 0
      %316 = vmatpush1.bf16.msra.mxu0 0
      %317 = vmatprep.subr.bf16.mxu0 0
      %318 = vmatpush1.bf16.msra.mxu0 0
      %319 = vmatprep.subr.bf16.mxu0 0
      %320 = vmatpush1.bf16.msra.mxu0 0
      %321 = vmatprep.subr.bf16.mxu0 0
      %322 = vmatpush1.bf16.msra.mxu0 0
      %323 = vmatprep.subr.bf16.mxu0 0
      %324 = vmatpush1.bf16.msra.mxu0 0
      %325 = vmatprep.subr.bf16.mxu0 0
      %326 = vmatpush1.bf16.msra.mxu0 0
      %327 = vmatprep.subr.bf16.mxu0 0
      %328 = vmatpush1.bf16.msra.mxu0 0
      %329 = vmatprep.subr.bf16.mxu0 0
      %330 = vmatpush1.bf16.msra.mxu0 0
      %331 = vmatprep.mubr.bf16.mxu0 0
      %332 = vmatmul.mubr.bf16.gmra.mrb[0].mxu0 %v293
      %v333 = vpop.f32.mrb[0].mxu0
      %v334 = vadd.f32 0.0, %v333
      %v335 = vpop.f32.mrb[0].mxu0
      %v336 = vpop.f32.mrb[0].mxu0
      %v337 = vpop.f32.mrb[0].mxu0
      %338 = vdwg.mxu0
      %v340 = vsel %vm291, %v286, 0
      %v343 = vsel %vm295, %v287, 0
      %345 = vmatprep.subr.bf16.mxu0 0
      %346 = vmatpush1.bf16.msra.mxu0 %v343
      %347 = vmatprep.subr.bf16.mxu0 0
      %348 = vmatpush1.bf16.msra.mxu0 0
      %349 = vmatprep.subr.bf16.mxu0 0
      %350 = vmatpush1.bf16.msra.mxu0 0
      %351 = vmatprep.subr.bf16.mxu0 0
      %352 = vmatpush1.bf16.msra.mxu0 0
      %353 = vmatprep.subr.bf16.mxu0 0
      %354 = vmatpush1.bf16.msra.mxu0 0
      %355 = vmatprep.subr.bf16.mxu0 0
      %356 = vmatpush1.bf16.msra.mxu0 0
      %357 = vmatprep.subr.bf16.mxu0 0
      %358 = vmatpush1.bf16.msra.mxu0 0
      %359 = vmatprep.subr.bf16.mxu0 0
      %360 = vmatpush1.bf16.msra.mxu0 0
      %361 = vmatprep.subr.bf16.mxu0 0
      %362 = vmatpush1.bf16.msra.mxu0 0
      %363 = vmatprep.subr.bf16.mxu0 0
      %364 = vmatpush1.bf16.msra.mxu0 0
      %365 = vmatprep.subr.bf16.mxu0 0
      %366 = vmatpush1.bf16.msra.mxu0 0
      %367 = vmatprep.subr.bf16.mxu0 0
      %368 = vmatpush1.bf16.msra.mxu0 0
      %369 = vmatprep.subr.bf16.mxu0 0
      %370 = vmatpush1.bf16.msra.mxu0 0
      %371 = vmatprep.subr.bf16.mxu0 0
      %372 = vmatpush1.bf16.msra.mxu0 0
      %373 = vmatprep.subr.bf16.mxu0 0
      %374 = vmatpush1.bf16.msra.mxu0 0
      %375 = vmatprep.subr.bf16.mxu0 0
      %376 = vmatpush1.bf16.msra.mxu0 0
      %377 = vmatprep.mubr.bf16.mxu0 0
      %378 = vmatmul.mubr.bf16.gmra.mrb[0].mxu0 %v340
      %v379 = vpop.f32.mrb[0].mxu0
      %v380 = vadd.f32 %v334, %v379
      %v381 = vpop.f32.mrb[0].mxu0
      %v382 = vpop.f32.mrb[0].mxu0
      %v383 = vpop.f32.mrb[0].mxu0
      %384 = vdwg.mxu0
      %v385 = vld [vmem:[%s264] sm:$0xf]
      %v386 = vld [vmem:[%s264 + $0x4] sm:$0x1]
      %s387 = scalar_lea.vmem %s4, 8
      %v388 = vld [vmem:[%s387] sm:$0xf]
      %v391 = vunpack.c.l.b16 %v385
      %v392 = vunpack.c.l.b16 %v386
      %v393 = vpack.c.b16 %v392, %v391
      %v395 = vshrl.u32 %v393, 16
      %v397 = vshll.u32 %v393, 16
      %v399 = vrot.slane %v397, 1
      %v400 = vor.u32 %v395, %v399
      %v402 = vsel %vm291, %v400, 0
      %v405 = vsel %vm295, %v388, 0
      %407 = vmatprep.subr.bf16.mxu0 0
      %408 = vmatpush1.bf16.msra.mxu0 %v405
      %409 = vmatprep.subr.bf16.mxu0 0
      %410 = vmatpush1.bf16.msra.mxu0 0
      %411 = vmatprep.subr.bf16.mxu0 0
      %412 = vmatpush1.bf16.msra.mxu0 0
      %413 = vmatprep.subr.bf16.mxu0 0
      %414 = vmatpush1.bf16.msra.mxu0 0
      %415 = vmatprep.subr.bf16.mxu0 0
      %416 = vmatpush1.bf16.msra.mxu0 0
      %417 = vmatprep.subr.bf16.mxu0 0
      %418 = vmatpush1.bf16.msra.mxu0 0
      %419 = vmatprep.subr.bf16.mxu0 0
      %420 = vmatpush1.bf16.msra.mxu0 0
      %421 = vmatprep.subr.bf16.mxu0 0
      %422 = vmatpush1.bf16.msra.mxu0 0
      %423 = vmatprep.subr.bf16.mxu0 0
      %424 = vmatpush1.bf16.msra.mxu0 0
      %425 = vmatprep.subr.bf16.mxu0 0
      %426 = vmatpush1.bf16.msra.mxu0 0
      %427 = vmatprep.subr.bf16.mxu0 0
      %428 = vmatpush1.bf16.msra.mxu0 0
      %429 = vmatprep.subr.bf16.mxu0 0
      %430 = vmatpush1.bf16.msra.mxu0 0
      %431 = vmatprep.subr.bf16.mxu0 0
      %432 = vmatpush1.bf16.msra.mxu0 0
      %433 = vmatprep.subr.bf16.mxu0 0
      %434 = vmatpush1.bf16.msra.mxu0 0
      %435 = vmatprep.subr.bf16.mxu0 0
      %436 = vmatpush1.bf16.msra.mxu0 0
      %437 = vmatprep.subr.bf16.mxu0 0
      %438 = vmatpush1.bf16.msra.mxu0 0
      %439 = vmatprep.mubr.bf16.mxu0 0
      %440 = vmatmul.mubr.bf16.gmra.mrb[0].mxu0 %v402
      %v441 = vpop.f32.mrb[0].mxu0
      %v442 = vadd.f32 0.0, %v441
      %v443 = vpop.f32.mrb[0].mxu0
      %v444 = vpop.f32.mrb[0].mxu0
      %v445 = vpop.f32.mrb[0].mxu0
      %446 = vdwg.mxu0
      %v447 = vadd.f32 %v380, %v442
      %v448 = vld [vmem:[%s274] sm:$0xf]
      %s449 = scalar_lea.vmem %s4, 12
      %v450 = vld [vmem:[%s449] sm:$0xf]
      %v452 = vsel %vm291, %v448, 0
      %v455 = vsel %vm295, %v450, 0
      %457 = vmatprep.subr.bf16.mxu0 0
      %458 = vmatpush1.bf16.msra.mxu0 %v455
      %459 = vmatprep.subr.bf16.mxu0 0
      %460 = vmatpush1.bf16.msra.mxu0 0
      %461 = vmatprep.subr.bf16.mxu0 0
      %462 = vmatpush1.bf16.msra.mxu0 0
      %463 = vmatprep.subr.bf16.mxu0 0
      %464 = vmatpush1.bf16.msra.mxu0 0
      %465 = vmatprep.subr.bf16.mxu0 0
      %466 = vmatpush1.bf16.msra.mxu0 0
      %467 = vmatprep.subr.bf16.mxu0 0
      %468 = vmatpush1.bf16.msra.mxu0 0
      %469 = vmatprep.subr.bf16.mxu0 0
      %470 = vmatpush1.bf16.msra.mxu0 0
      %471 = vmatprep.subr.bf16.mxu0 0
      %472 = vmatpush1.bf16.msra.mxu0 0
      %473 = vmatprep.subr.bf16.mxu0 0
      %474 = vmatpush1.bf16.msra.mxu0 0
      %475 = vmatprep.subr.bf16.mxu0 0
      %476 = vmatpush1.bf16.msra.mxu0 0
      %477 = vmatprep.subr.bf16.mxu0 0
      %478 = vmatpush1.bf16.msra.mxu0 0
      %479 = vmatprep.subr.bf16.mxu0 0
      %480 = vmatpush1.bf16.msra.mxu0 0
      %481 = vmatprep.subr.bf16.mxu0 0
      %482 = vmatpush1.bf16.msra.mxu0 0
      %483 = vmatprep.subr.bf16.mxu0 0
      %484 = vmatpush1.bf16.msra.mxu0 0
      %485 = vmatprep.subr.bf16.mxu0 0
      %486 = vmatpush1.bf16.msra.mxu0 0
      %487 = vmatprep.subr.bf16.mxu0 0
      %488 = vmatpush1.bf16.msra.mxu0 0
      %489 = vmatprep.mubr.bf16.mxu0 0
      %490 = vmatmul.mubr.bf16.gmra.mrb[0].mxu0 %v452
      %v491 = vpop.f32.mrb[0].mxu0
      %v492 = vadd.f32 0.0, %v491
      %v493 = vpop.f32.mrb[0].mxu0
      %v494 = vpop.f32.mrb[0].mxu0
      %v495 = vpop.f32.mrb[0].mxu0
      %496 = vdwg.mxu0
      %v497 = vadd.f32 %v447, %v492
      %v498 = vld [vmem:[%s279] sm:$0xf]
      %s499 = scalar_lea.vmem %s4, 16
      %v500 = vld [vmem:[%s499] sm:$0xf]
      %v502 = vsel %vm291, %v498, 0
      %v505 = vsel %vm295, %v500, 0
      %507 = vmatprep.subr.bf16.mxu0 0
      %508 = vmatpush1.bf16.msra.mxu0 %v505
      %509 = vmatprep.subr.bf16.mxu0 0
      %510 = vmatpush1.bf16.msra.mxu0 0
      %511 = vmatprep.subr.bf16.mxu0 0
      %512 = vmatpush1.bf16.msra.mxu0 0
      %513 = vmatprep.subr.bf16.mxu0 0
      %514 = vmatpush1.bf16.msra.mxu0 0
      %515 = vmatprep.subr.bf16.mxu0 0
      %516 = vmatpush1.bf16.msra.mxu0 0
      %517 = vmatprep.subr.bf16.mxu0 0
      %518 = vmatpush1.bf16.msra.mxu0 0
      %519 = vmatprep.subr.bf16.mxu0 0
      %520 = vmatpush1.bf16.msra.mxu0 0
      %521 = vmatprep.subr.bf16.mxu0 0
      %522 = vmatpush1.bf16.msra.mxu0 0
      %523 = vmatprep.subr.bf16.mxu0 0
      %524 = vmatpush1.bf16.msra.mxu0 0
      %525 = vmatprep.subr.bf16.mxu0 0
      %526 = vmatpush1.bf16.msra.mxu0 0
      %527 = vmatprep.subr.bf16.mxu0 0
      %528 = vmatpush1.bf16.msra.mxu0 0
      %529 = vmatprep.subr.bf16.mxu0 0
      %530 = vmatpush1.bf16.msra.mxu0 0
      %531 = vmatprep.subr.bf16.mxu0 0
      %532 = vmatpush1.bf16.msra.mxu0 0
      %533 = vmatprep.subr.bf16.mxu0 0
      %534 = vmatpush1.bf16.msra.mxu0 0
      %535 = vmatprep.subr.bf16.mxu0 0
      %536 = vmatpush1.bf16.msra.mxu0 0
      %537 = vmatprep.subr.bf16.mxu0 0
      %538 = vmatpush1.bf16.msra.mxu0 0
      %539 = vmatprep.mubr.bf16.mxu0 0
      %540 = vmatmul.mubr.bf16.gmra.mrb[0].mxu0 %v502
      %v541 = vpop.f32.mrb[0].mxu0
      %v542 = vadd.f32 0.0, %v541
      %v543 = vpop.f32.mrb[0].mxu0
      %v544 = vpop.f32.mrb[0].mxu0
      %v545 = vpop.f32.mrb[0].mxu0
      %546 = vdwg.mxu0
      %v547 = vadd.f32 %v497, %v542
      %v548 = vld [vmem:[%s274] sm:$0xf]
      %v549 = vld [vmem:[%s274 + $0x4] sm:$0x1]
      %s550 = scalar_lea.vmem %s4, 20
      %v551 = vld [vmem:[%s550] sm:$0xf]
      %v554 = vunpack.c.l.b16 %v548
      %v555 = vunpack.c.l.b16 %v549
      %v556 = vpack.c.b16 %v555, %v554
      %v558 = vshrl.u32 %v556, 16
      %v560 = vshll.u32 %v556, 16
      %v562 = vrot.slane %v560, 1
      %v563 = vor.u32 %v558, %v562
      %v565 = vsel %vm291, %v563, 0
      %v568 = vsel %vm295, %v551, 0
      %570 = vmatprep.subr.bf16.mxu0 0
      %571 = vmatpush1.bf16.msra.mxu0 %v568
      %572 = vmatprep.subr.bf16.mxu0 0
      %573 = vmatpush1.bf16.msra.mxu0 0
      %574 = vmatprep.subr.bf16.mxu0 0
      %575 = vmatpush1.bf16.msra.mxu0 0
      %576 = vmatprep.subr.bf16.mxu0 0
      %577 = vmatpush1.bf16.msra.mxu0 0
      %578 = vmatprep.subr.bf16.mxu0 0
      %579 = vmatpush1.bf16.msra.mxu0 0
      %580 = vmatprep.subr.bf16.mxu0 0
      %581 = vmatpush1.bf16.msra.mxu0 0
      %582 = vmatprep.subr.bf16.mxu0 0
      %583 = vmatpush1.bf16.msra.mxu0 0
      %584 = vmatprep.subr.bf16.mxu0 0
      %585 = vmatpush1.bf16.msra.mxu0 0
      %586 = vmatprep.subr.bf16.mxu0 0
      %587 = vmatpush1.bf16.msra.mxu0 0
      %588 = vmatprep.subr.bf16.mxu0 0
      %589 = vmatpush1.bf16.msra.mxu0 0
      %590 = vmatprep.subr.bf16.mxu0 0
      %591 = vmatpush1.bf16.msra.mxu0 0
      %592 = vmatprep.subr.bf16.mxu0 0
      %593 = vmatpush1.bf16.msra.mxu0 0
      %594 = vmatprep.subr.bf16.mxu0 0
      %595 = vmatpush1.bf16.msra.mxu0 0
      %596 = vmatprep.subr.bf16.mxu0 0
      %597 = vmatpush1.bf16.msra.mxu0 0
      %598 = vmatprep.subr.bf16.mxu0 0
      %599 = vmatpush1.bf16.msra.mxu0 0
      %600 = vmatprep.subr.bf16.mxu0 0
      %601 = vmatpush1.bf16.msra.mxu0 0
      %602 = vmatprep.mubr.bf16.mxu0 0
      %603 = vmatmul.mubr.bf16.gmra.mrb[0].mxu0 %v565
      %v604 = vpop.f32.mrb[0].mxu0
      %v605 = vadd.f32 0.0, %v604
      %v606 = vpop.f32.mrb[0].mxu0
      %v607 = vpop.f32.mrb[0].mxu0
      %v608 = vpop.f32.mrb[0].mxu0
      %609 = vdwg.mxu0
      %v610 = vadd.f32 %v547, %v605
      %s611 = scalar_lea.vmem %s264, 8
      %v612 = vld [vmem:[%s611] sm:$0xf]
      %s613 = scalar_lea.vmem %s4, 24
      %v614 = vld [vmem:[%s613] sm:$0xf]
      %v616 = vsel %vm291, %v612, 0
      %v619 = vsel %vm295, %v614, 0
      %621 = vmatprep.subr.bf16.mxu0 0
      %622 = vmatpush1.bf16.msra.mxu0 %v619
      %623 = vmatprep.subr.bf16.mxu0 0
      %624 = vmatpush1.bf16.msra.mxu0 0
      %625 = vmatprep.subr.bf16.mxu0 0
      %626 = vmatpush1.bf16.msra.mxu0 0
      %627 = vmatprep.subr.bf16.mxu0 0
      %628 = vmatpush1.bf16.msra.mxu0 0
      %629 = vmatprep.subr.bf16.mxu0 0
      %630 = vmatpush1.bf16.msra.mxu0 0
      %631 = vmatprep.subr.bf16.mxu0 0
      %632 = vmatpush1.bf16.msra.mxu0 0
      %633 = vmatprep.subr.bf16.mxu0 0
      %634 = vmatpush1.bf16.msra.mxu0 0
      %635 = vmatprep.subr.bf16.mxu0 0
      %636 = vmatpush1.bf16.msra.mxu0 0
      %637 = vmatprep.subr.bf16.mxu0 0
      %638 = vmatpush1.bf16.msra.mxu0 0
      %639 = vmatprep.subr.bf16.mxu0 0
      %640 = vmatpush1.bf16.msra.mxu0 0
      %641 = vmatprep.subr.bf16.mxu0 0
      %642 = vmatpush1.bf16.msra.mxu0 0
      %643 = vmatprep.subr.bf16.mxu0 0
      %644 = vmatpush1.bf16.msra.mxu0 0
      %645 = vmatprep.subr.bf16.mxu0 0
      %646 = vmatpush1.bf16.msra.mxu0 0
      %647 = vmatprep.subr.bf16.mxu0 0
      %648 = vmatpush1.bf16.msra.mxu0 0
      %649 = vmatprep.subr.bf16.mxu0 0
      %650 = vmatpush1.bf16.msra.mxu0 0
      %651 = vmatprep.subr.bf16.mxu0 0
      %652 = vmatpush1.bf16.msra.mxu0 0
      %653 = vmatprep.mubr.bf16.mxu0 0
      %654 = vmatmul.mubr.bf16.gmra.mrb[0].mxu0 %v616
      %v655 = vpop.f32.mrb[0].mxu0
      %v656 = vadd.f32 0.0, %v655
      %v657 = vpop.f32.mrb[0].mxu0
      %v658 = vpop.f32.mrb[0].mxu0
      %v659 = vpop.f32.mrb[0].mxu0
      %660 = vdwg.mxu0
      %v661 = vadd.f32 %v610, %v656
      %s662 = scalar_lea.vmem %s269, 8
      %v663 = vld [vmem:[%s662] sm:$0xf]
      %s664 = scalar_lea.vmem %s4, 28
      %v665 = vld [vmem:[%s664] sm:$0xf]
      %v667 = vsel %vm291, %v663, 0
      %v670 = vsel %vm295, %v665, 0
      %672 = vmatprep.subr.bf16.mxu0 0
      %673 = vmatpush1.bf16.msra.mxu0 %v670
      %674 = vmatprep.subr.bf16.mxu0 0
      %675 = vmatpush1.bf16.msra.mxu0 0
      %676 = vmatprep.subr.bf16.mxu0 0
      %677 = vmatpush1.bf16.msra.mxu0 0
      %678 = vmatprep.subr.bf16.mxu0 0
      %679 = vmatpush1.bf16.msra.mxu0 0
      %680 = vmatprep.subr.bf16.mxu0 0
      %681 = vmatpush1.bf16.msra.mxu0 0
      %682 = vmatprep.subr.bf16.mxu0 0
      %683 = vmatpush1.bf16.msra.mxu0 0
      %684 = vmatprep.subr.bf16.mxu0 0
      %685 = vmatpush1.bf16.msra.mxu0 0
      %686 = vmatprep.subr.bf16.mxu0 0
      %687 = vmatpush1.bf16.msra.mxu0 0
      %688 = vmatprep.subr.bf16.mxu0 0
      %689 = vmatpush1.bf16.msra.mxu0 0
      %690 = vmatprep.subr.bf16.mxu0 0
      %691 = vmatpush1.bf16.msra.mxu0 0
      %692 = vmatprep.subr.bf16.mxu0 0
      %693 = vmatpush1.bf16.msra.mxu0 0
      %694 = vmatprep.subr.bf16.mxu0 0
      %695 = vmatpush1.bf16.msra.mxu0 0
      %696 = vmatprep.subr.bf16.mxu0 0
      %697 = vmatpush1.bf16.msra.mxu0 0
      %698 = vmatprep.subr.bf16.mxu0 0
      %699 = vmatpush1.bf16.msra.mxu0 0
      %700 = vmatprep.subr.bf16.mxu0 0
      %701 = vmatpush1.bf16.msra.mxu0 0
      %702 = vmatprep.subr.bf16.mxu0 0
      %703 = vmatpush1.bf16.msra.mxu0 0
      %704 = vmatprep.mubr.bf16.mxu0 0
      %705 = vmatmul.mubr.bf16.gmra.mrb[0].mxu0 %v667
      %v706 = vpop.f32.mrb[0].mxu0
      %v707 = vadd.f32 0.0, %v706
      %v708 = vpop.f32.mrb[0].mxu0
      %v709 = vpop.f32.mrb[0].mxu0
      %v710 = vpop.f32.mrb[0].mxu0
      %711 = vdwg.mxu0
      %v712 = vadd.f32 %v661, %v707
      %v713 = vld [vmem:[%s611] sm:$0xf]
      %v714 = vld [vmem:[%s611 + $0x4] sm:$0x1]
      %s715 = scalar_lea.vmem %s4, 32
      %v716 = vld [vmem:[%s715] sm:$0xf]
      %v719 = vunpack.c.l.b16 %v713
      %v720 = vunpack.c.l.b16 %v714
      %v721 = vpack.c.b16 %v720, %v719
      %v723 = vshrl.u32 %v721, 16
      %v725 = vshll.u32 %v721, 16
      %v727 = vrot.slane %v725, 1
      %v728 = vor.u32 %v723, %v727
      %v730 = vsel %vm291, %v728, 0
      %v733 = vsel %vm295, %v716, 0
      %735 = vmatprep.subr.bf16.mxu0 0
      %736 = vmatpush1.bf16.msra.mxu0 %v733
      %737 = vmatprep.subr.bf16.mxu0 0
      %738 = vmatpush1.bf16.msra.mxu0 0
      %739 = vmatprep.subr.bf16.mxu0 0
      %740 = vmatpush1.bf16.msra.mxu0 0
      %741 = vmatprep.subr.bf16.mxu0 0
      %742 = vmatpush1.bf16.msra.mxu0 0
      %743 = vmatprep.subr.bf16.mxu0 0
      %744 = vmatpush1.bf16.msra.mxu0 0
      %745 = vmatprep.subr.bf16.mxu0 0
      %746 = vmatpush1.bf16.msra.mxu0 0
      %747 = vmatprep.subr.bf16.mxu0 0
      %748 = vmatpush1.bf16.msra.mxu0 0
      %749 = vmatprep.subr.bf16.mxu0 0
      %750 = vmatpush1.bf16.msra.mxu0 0
      %751 = vmatprep.subr.bf16.mxu0 0
      %752 = vmatpush1.bf16.msra.mxu0 0
      %753 = vmatprep.subr.bf16.mxu0 0
      %754 = vmatpush1.bf16.msra.mxu0 0
      %755 = vmatprep.subr.bf16.mxu0 0
      %756 = vmatpush1.bf16.msra.mxu0 0
      %757 = vmatprep.subr.bf16.mxu0 0
      %758 = vmatpush1.bf16.msra.mxu0 0
      %759 = vmatprep.subr.bf16.mxu0 0
      %760 = vmatpush1.bf16.msra.mxu0 0
      %761 = vmatprep.subr.bf16.mxu0 0
      %762 = vmatpush1.bf16.msra.mxu0 0
      %763 = vmatprep.subr.bf16.mxu0 0
      %764 = vmatpush1.bf16.msra.mxu0 0
      %765 = vmatprep.subr.bf16.mxu0 0
      %766 = vmatpush1.bf16.msra.mxu0 0
      %767 = vmatprep.mubr.bf16.mxu0 0
      %768 = vmatmul.mubr.bf16.gmra.mrb[0].mxu0 %v730
      %v769 = vpop.f32.mrb[0].mxu0
      %v770 = vadd.f32 0.0, %v769
      %v771 = vpop.f32.mrb[0].mxu0
      %v772 = vpop.f32.mrb[0].mxu0
      %v773 = vpop.f32.mrb[0].mxu0
      %774 = vdwg.mxu0
      %v775 = vadd.f32 %v712, %v770
      %v776 = vmax.f32 %v775, 0.0
      %v777 = vpack.c.bf16 %v776, %v776
      %vm778 = vcmask 125952
      %779 = vst.msk [vmem:[%s284] sm:$0xf] %vm778, %v777
      %v780 = vld [vmem:[%s611] sm:$0xf]
      %v781 = vld [vmem:[%s4] sm:$0xf]
      %v782 = vld [vmem:[%s662] sm:$0xf]
      %v783 = vld [vmem:[%s289] sm:$0xf]
      %v785 = vsel %vm291, %v782, 0
      %v788 = vsel %vm295, %v783, 0
      %790 = vmatprep.subr.bf16.mxu0 0
      %791 = vmatpush1.bf16.msra.mxu0 %v788
      %792 = vmatprep.subr.bf16.mxu0 0
      %793 = vmatpush1.bf16.msra.mxu0 0
      %794 = vmatprep.subr.bf16.mxu0 0
      %795 = vmatpush1.bf16.msra.mxu0 0
      %796 = vmatprep.subr.bf16.mxu0 0
      %797 = vmatpush1.bf16.msra.mxu0 0
      %798 = vmatprep.subr.bf16.mxu0 0
      %799 = vmatpush1.bf16.msra.mxu0 0
      %800 = vmatprep.subr.bf16.mxu0 0
      %801 = vmatpush1.bf16.msra.mxu0 0
      %802 = vmatprep.subr.bf16.mxu0 0
      %803 = vmatpush1.bf16.msra.mxu0 0
      %804 = vmatprep.subr.bf16.mxu0 0
      %805 = vmatpush1.bf16.msra.mxu0 0
      %806 = vmatprep.subr.bf16.mxu0 0
      %807 = vmatpush1.bf16.msra.mxu0 0
      %808 = vmatprep.subr.bf16.mxu0 0
      %809 = vmatpush1.bf16.msra.mxu0 0
      %810 = vmatprep.subr.bf16.mxu0 0
      %811 = vmatpush1.bf16.msra.mxu0 0
      %812 = vmatprep.subr.bf16.mxu0 0
      %813 = vmatpush1.bf16.msra.mxu0 0
      %814 = vmatprep.subr.bf16.mxu0 0
      %815 = vmatpush1.bf16.msra.mxu0 0
      %816 = vmatprep.subr.bf16.mxu0 0
      %817 = vmatpush1.bf16.msra.mxu0 0
      %818 = vmatprep.subr.bf16.mxu0 0
      %819 = vmatpush1.bf16.msra.mxu0 0
      %820 = vmatprep.subr.bf16.mxu0 0
      %821 = vmatpush1.bf16.msra.mxu0 0
      %822 = vmatprep.mubr.bf16.mxu0 0
      %823 = vmatmul.mubr.bf16.gmra.mrb[0].mxu0 %v785
      %v824 = vpop.f32.mrb[0].mxu0
      %v825 = vadd.f32 0.0, %v824
      %v826 = vpop.f32.mrb[0].mxu0
      %v827 = vpop.f32.mrb[0].mxu0
      %v828 = vpop.f32.mrb[0].mxu0
      %829 = vdwg.mxu0
      %v831 = vsel %vm291, %v780, 0
      %v834 = vsel %vm295, %v781, 0
      %836 = vmatprep.subr.bf16.mxu0 0
      %837 = vmatpush1.bf16.msra.mxu0 %v834
      %838 = vmatprep.subr.bf16.mxu0 0
      %839 = vmatpush1.bf16.msra.mxu0 0
      %840 = vmatprep.subr.bf16.mxu0 0
      %841 = vmatpush1.bf16.msra.mxu0 0
      %842 = vmatprep.subr.bf16.mxu0 0
      %843 = vmatpush1.bf16.msra.mxu0 0
      %844 = vmatprep.subr.bf16.mxu0 0
      %845 = vmatpush1.bf16.msra.mxu0 0
      %846 = vmatprep.subr.bf16.mxu0 0
      %847 = vmatpush1.bf16.msra.mxu0 0
      %848 = vmatprep.subr.bf16.mxu0 0
      %849 = vmatpush1.bf16.msra.mxu0 0
      %850 = vmatprep.subr.bf16.mxu0 0
      %851 = vmatpush1.bf16.msra.mxu0 0
      %852 = vmatprep.subr.bf16.mxu0 0
      %853 = vmatpush1.bf16.msra.mxu0 0
      %854 = vmatprep.subr.bf16.mxu0 0
      %855 = vmatpush1.bf16.msra.mxu0 0
      %856 = vmatprep.subr.bf16.mxu0 0
      %857 = vmatpush1.bf16.msra.mxu0 0
      %858 = vmatprep.subr.bf16.mxu0 0
      %859 = vmatpush1.bf16.msra.mxu0 0
      %860 = vmatprep.subr.bf16.mxu0 0
      %861 = vmatpush1.bf16.msra.mxu0 0
      %862 = vmatprep.subr.bf16.mxu0 0
      %863 = vmatpush1.bf16.msra.mxu0 0
      %864 = vmatprep.subr.bf16.mxu0 0
      %865 = vmatpush1.bf16.msra.mxu0 0
      %866 = vmatprep.subr.bf16.mxu0 0
      %867 = vmatpush1.bf16.msra.mxu0 0
      %868 = vmatprep.mubr.bf16.mxu0 0
      %869 = vmatmul.mubr.bf16.gmra.mrb[0].mxu0 %v831
      %v870 = vpop.f32.mrb[0].mxu0
      %v871 = vadd.f32 %v825, %v870
      %v872 = vpop.f32.mrb[0].mxu0
      %v873 = vpop.f32.mrb[0].mxu0
      %v874 = vpop.f32.mrb[0].mxu0
      %875 = vdwg.mxu0
      %v876 = vld [vmem:[%s611] sm:$0xf]
      %v877 = vld [vmem:[%s611 + $0x4] sm:$0x1]
      %v878 = vld [vmem:[%s387] sm:$0xf]
      %v881 = vunpack.c.l.b16 %v876
      %v882 = vunpack.c.l.b16 %v877
      %v883 = vpack.c.b16 %v882, %v881
      %v885 = vshrl.u32 %v883, 16
      %v887 = vshll.u32 %v883, 16
      %v889 = vrot.slane %v887, 1
      %v890 = vor.u32 %v885, %v889
      %v892 = vsel %vm291, %v890, 0
      %v895 = vsel %vm295, %v878, 0
      %897 = vmatprep.subr.bf16.mxu0 0
      %898 = vmatpush1.bf16.msra.mxu0 %v895
      %899 = vmatprep.subr.bf16.mxu0 0
      %900 = vmatpush1.bf16.msra.mxu0 0
      %901 = vmatprep.subr.bf16.mxu0 0
      %902 = vmatpush1.bf16.msra.mxu0 0
      %903 = vmatprep.subr.bf16.mxu0 0
      %904 = vmatpush1.bf16.msra.mxu0 0
      %905 = vmatprep.subr.bf16.mxu0 0
      %906 = vmatpush1.bf16.msra.mxu0 0
      %907 = vmatprep.subr.bf16.mxu0 0
      %908 = vmatpush1.bf16.msra.mxu0 0
      %909 = vmatprep.subr.bf16.mxu0 0
      %910 = vmatpush1.bf16.msra.mxu0 0
      %911 = vmatprep.subr.bf16.mxu0 0
      %912 = vmatpush1.bf16.msra.mxu0 0
      %913 = vmatprep.subr.bf16.mxu0 0
      %914 = vmatpush1.bf16.msra.mxu0 0
      %915 = vmatprep.subr.bf16.mxu0 0
      %916 = vmatpush1.bf16.msra.mxu0 0
      %917 = vmatprep.subr.bf16.mxu0 0
      %918 = vmatpush1.bf16.msra.mxu0 0
      %919 = vmatprep.subr.bf16.mxu0 0
      %920 = vmatpush1.bf16.msra.mxu0 0
      %921 = vmatprep.subr.bf16.mxu0 0
      %922 = vmatpush1.bf16.msra.mxu0 0
      %923 = vmatprep.subr.bf16.mxu0 0
      %924 = vmatpush1.bf16.msra.mxu0 0
      %925 = vmatprep.subr.bf16.mxu0 0
      %926 = vmatpush1.bf16.msra.mxu0 0
      %927 = vmatprep.subr.bf16.mxu0 0
      %928 = vmatpush1.bf16.msra.mxu0 0
      %929 = vmatprep.mubr.bf16.mxu0 0
      %930 = vmatmul.mubr.bf16.gmra.mrb[0].mxu0 %v892
      %v931 = vpop.f32.mrb[0].mxu0
      %v932 = vadd.f32 0.0, %v931
      %v933 = vpop.f32.mrb[0].mxu0
      %v934 = vpop.f32.mrb[0].mxu0
      %v935 = vpop.f32.mrb[0].mxu0
      %936 = vdwg.mxu0
      %v937 = vadd.f32 %v871, %v932
      %s938 = scalar_lea.vmem %s274, 8
      %v939 = vld [vmem:[%s938] sm:$0xf]
      %v940 = vld [vmem:[%s449] sm:$0xf]
      %v942 = vsel %vm291, %v939, 0
      %v945 = vsel %vm295, %v940, 0
      %947 = vmatprep.subr.bf16.mxu0 0
      %948 = vmatpush1.bf16.msra.mxu0 %v945
      %949 = vmatprep.subr.bf16.mxu0 0
      %950 = vmatpush1.bf16.msra.mxu0 0
      %951 = vmatprep.subr.bf16.mxu0 0
      %952 = vmatpush1.bf16.msra.mxu0 0
      %953 = vmatprep.subr.bf16.mxu0 0
      %954 = vmatpush1.bf16.msra.mxu0 0
      %955 = vmatprep.subr.bf16.mxu0 0
      %956 = vmatpush1.bf16.msra.mxu0 0
      %957 = vmatprep.subr.bf16.mxu0 0
      %958 = vmatpush1.bf16.msra.mxu0 0
      %959 = vmatprep.subr.bf16.mxu0 0
      %960 = vmatpush1.bf16.msra.mxu0 0
      %961 = vmatprep.subr.bf16.mxu0 0
      %962 = vmatpush1.bf16.msra.mxu0 0
      %963 = vmatprep.subr.bf16.mxu0 0
      %964 = vmatpush1.bf16.msra.mxu0 0
      %965 = vmatprep.subr.bf16.mxu0 0
      %966 = vmatpush1.bf16.msra.mxu0 0
      %967 = vmatprep.subr.bf16.mxu0 0
      %968 = vmatpush1.bf16.msra.mxu0 0
      %969 = vmatprep.subr.bf16.mxu0 0
      %970 = vmatpush1.bf16.msra.mxu0 0
      %971 = vmatprep.subr.bf16.mxu0 0
      %972 = vmatpush1.bf16.msra.mxu0 0
      %973 = vmatprep.subr.bf16.mxu0 0
      %974 = vmatpush1.bf16.msra.mxu0 0
      %975 = vmatprep.subr.bf16.mxu0 0
      %976 = vmatpush1.bf16.msra.mxu0 0
      %977 = vmatprep.subr.bf16.mxu0 0
      %978 = vmatpush1.bf16.msra.mxu0 0
      %979 = vmatprep.mubr.bf16.mxu0 0
      %980 = vmatmul.mubr.bf16.gmra.mrb[0].mxu0 %v942
      %v981 = vpop.f32.mrb[0].mxu0
      %v982 = vadd.f32 0.0, %v981
      %v983 = vpop.f32.mrb[0].mxu0
      %v984 = vpop.f32.mrb[0].mxu0
      %v985 = vpop.f32.mrb[0].mxu0
      %986 = vdwg.mxu0
      %v987 = vadd.f32 %v937, %v982
      %s988 = scalar_lea.vmem %s279, 8
      %v989 = vld [vmem:[%s988] sm:$0xf]
      %v990 = vld [vmem:[%s499] sm:$0xf]
      %v992 = vsel %vm291, %v989, 0
      %v995 = vsel %vm295, %v990, 0
      %997 = vmatprep.subr.bf16.mxu0 0
      %998 = vmatpush1.bf16.msra.mxu0 %v995
      %999 = vmatprep.subr.bf16.mxu0 0
      %1000 = vmatpush1.bf16.msra.mxu0 0
      %1001 = vmatprep.subr.bf16.mxu0 0
      %1002 = vmatpush1.bf16.msra.mxu0 0
      %1003 = vmatprep.subr.bf16.mxu0 0
      %1004 = vmatpush1.bf16.msra.mxu0 0
      %1005 = vmatprep.subr.bf16.mxu0 0
      %1006 = vmatpush1.bf16.msra.mxu0 0
      %1007 = vmatprep.subr.bf16.mxu0 0
      %1008 = vmatpush1.bf16.msra.mxu0 0
      %1009 = vmatprep.subr.bf16.mxu0 0
      %1010 = vmatpush1.bf16.msra.mxu0 0
      %1011 = vmatprep.subr.bf16.mxu0 0
      %1012 = vmatpush1.bf16.msra.mxu0 0
      %1013 = vmatprep.subr.bf16.mxu0 0
      %1014 = vmatpush1.bf16.msra.mxu0 0
      %1015 = vmatprep.subr.bf16.mxu0 0
      %1016 = vmatpush1.bf16.msra.mxu0 0
      %1017 = vmatprep.subr.bf16.mxu0 0
      %1018 = vmatpush1.bf16.msra.mxu0 0
      %1019 = vmatprep.subr.bf16.mxu0 0
      %1020 = vmatpush1.bf16.msra.mxu0 0
      %1021 = vmatprep.subr.bf16.mxu0 0
      %1022 = vmatpush1.bf16.msra.mxu0 0
      %1023 = vmatprep.subr.bf16.mxu0 0
      %1024 = vmatpush1.bf16.msra.mxu0 0
      %1025 = vmatprep.subr.bf16.mxu0 0
      %1026 = vmatpush1.bf16.msra.mxu0 0
      %1027 = vmatprep.subr.bf16.mxu0 0
      %1028 = vmatpush1.bf16.msra.mxu0 0
      %1029 = vmatprep.mubr.bf16.mxu0 0
      %1030 = vmatmul.mubr.bf16.gmra.mrb[0].mxu0 %v992
      %v1031 = vpop.f32.mrb[0].mxu0
      %v1032 = vadd.f32 0.0, %v1031
      %v1033 = vpop.f32.mrb[0].mxu0
      %v1034 = vpop.f32.mrb[0].mxu0
      %v1035 = vpop.f32.mrb[0].mxu0
      %1036 = vdwg.mxu0
      %v1037 = vadd.f32 %v987, %v1032
      %v1038 = vld [vmem:[%s938] sm:$0xf]
      %v1039 = vld [vmem:[%s938 + $0x4] sm:$0x1]
      %v1040 = vld [vmem:[%s550] sm:$0xf]
      %v1043 = vunpack.c.l.b16 %v1038
      %v1044 = vunpack.c.l.b16 %v1039
      %v1045 = vpack.c.b16 %v1044, %v1043
      %v1047 = vshrl.u32 %v1045, 16
      %v1049 = vshll.u32 %v1045, 16
      %v1051 = vrot.slane %v1049, 1
      %v1052 = vor.u32 %v1047, %v1051
      %v1054 = vsel %vm291, %v1052, 0
      %v1057 = vsel %vm295, %v1040, 0
      %1059 = vmatprep.subr.bf16.mxu0 0
      %1060 = vmatpush1.bf16.msra.mxu0 %v1057
      %1061 = vmatprep.subr.bf16.mxu0 0
      %1062 = vmatpush1.bf16.msra.mxu0 0
      %1063 = vmatprep.subr.bf16.mxu0 0
      %1064 = vmatpush1.bf16.msra.mxu0 0
      %1065 = vmatprep.subr.bf16.mxu0 0
      %1066 = vmatpush1.bf16.msra.mxu0 0
      %1067 = vmatprep.subr.bf16.mxu0 0
      %1068 = vmatpush1.bf16.msra.mxu0 0
      %1069 = vmatprep.subr.bf16.mxu0 0
      %1070 = vmatpush1.bf16.msra.mxu0 0
      %1071 = vmatprep.subr.bf16.mxu0 0
      %1072 = vmatpush1.bf16.msra.mxu0 0
      %1073 = vmatprep.subr.bf16.mxu0 0
      %1074 = vmatpush1.bf16.msra.mxu0 0
      %1075 = vmatprep.subr.bf16.mxu0 0
      %1076 = vmatpush1.bf16.msra.mxu0 0
      %1077 = vmatprep.subr.bf16.mxu0 0
      %1078 = vmatpush1.bf16.msra.mxu0 0
      %1079 = vmatprep.subr.bf16.mxu0 0
      %1080 = vmatpush1.bf16.msra.mxu0 0
      %1081 = vmatprep.subr.bf16.mxu0 0
      %1082 = vmatpush1.bf16.msra.mxu0 0
      %1083 = vmatprep.subr.bf16.mxu0 0
      %1084 = vmatpush1.bf16.msra.mxu0 0
      %1085 = vmatprep.subr.bf16.mxu0 0
      %1086 = vmatpush1.bf16.msra.mxu0 0
      %1087 = vmatprep.subr.bf16.mxu0 0
      %1088 = vmatpush1.bf16.msra.mxu0 0
      %1089 = vmatprep.subr.bf16.mxu0 0
      %1090 = vmatpush1.bf16.msra.mxu0 0
      %1091 = vmatprep.mubr.bf16.mxu0 0
      %1092 = vmatmul.mubr.bf16.gmra.mrb[0].mxu0 %v1054
      %v1093 = vpop.f32.mrb[0].mxu0
      %v1094 = vadd.f32 0.0, %v1093
      %v1095 = vpop.f32.mrb[0].mxu0
      %v1096 = vpop.f32.mrb[0].mxu0
      %v1097 = vpop.f32.mrb[0].mxu0
      %1098 = vdwg.mxu0
      %v1099 = vadd.f32 %v1037, %v1094
      %s1100 = scalar_lea.vmem %s264, 16
      %v1101 = vld [vmem:[%s1100] sm:$0xf]
      %v1102 = vld [vmem:[%s613] sm:$0xf]
      %v1104 = vsel %vm291, %v1101, 0
      %v1107 = vsel %vm295, %v1102, 0
      %1109 = vmatprep.subr.bf16.mxu0 0
      %1110 = vmatpush1.bf16.msra.mxu0 %v1107
      %1111 = vmatprep.subr.bf16.mxu0 0
      %1112 = vmatpush1.bf16.msra.mxu0 0
      %1113 = vmatprep.subr.bf16.mxu0 0
      %1114 = vmatpush1.bf16.msra.mxu0 0
      %1115 = vmatprep.subr.bf16.mxu0 0
      %1116 = vmatpush1.bf16.msra.mxu0 0
      %1117 = vmatprep.subr.bf16.mxu0 0
      %1118 = vmatpush1.bf16.msra.mxu0 0
      %1119 = vmatprep.subr.bf16.mxu0 0
      %1120 = vmatpush1.bf16.msra.mxu0 0
      %1121 = vmatprep.subr.bf16.mxu0 0
      %1122 = vmatpush1.bf16.msra.mxu0 0
      %1123 = vmatprep.subr.bf16.mxu0 0
      %1124 = vmatpush1.bf16.msra.mxu0 0
      %1125 = vmatprep.subr.bf16.mxu0 0
      %1126 = vmatpush1.bf16.msra.mxu0 0
      %1127 = vmatprep.subr.bf16.mxu0 0
      %1128 = vmatpush1.bf16.msra.mxu0 0
      %1129 = vmatprep.subr.bf16.mxu0 0
      %1130 = vmatpush1.bf16.msra.mxu0 0
      %1131 = vmatprep.subr.bf16.mxu0 0
      %1132 = vmatpush1.bf16.msra.mxu0 0
      %1133 = vmatprep.subr.bf16.mxu0 0
      %1134 = vmatpush1.bf16.msra.mxu0 0
      %1135 = vmatprep.subr.bf16.mxu0 0
      %1136 = vmatpush1.bf16.msra.mxu0 0
      %1137 = vmatprep.subr.bf16.mxu0 0
      %1138 = vmatpush1.bf16.msra.mxu0 0
      %1139 = vmatprep.subr.bf16.mxu0 0
      %1140 = vmatpush1.bf16.msra.mxu0 0
      %1141 = vmatprep.mubr.bf16.mxu0 0
      %1142 = vmatmul.mubr.bf16.gmra.mrb[0].mxu0 %v1104
      %v1143 = vpop.f32.mrb[0].mxu0
      %v1144 = vadd.f32 0.0, %v1143
      %v1145 = vpop.f32.mrb[0].mxu0
      %v1146 = vpop.f32.mrb[0].mxu0
      %v1147 = vpop.f32.mrb[0].mxu0
      %1148 = vdwg.mxu0
      %v1149 = vadd.f32 %v1099, %v1144
      %s1150 = scalar_lea.vmem %s269, 16
      %v1151 = vld [vmem:[%s1150] sm:$0xf]
      %v1152 = vld [vmem:[%s664] sm:$0xf]
      %v1154 = vsel %vm291, %v1151, 0
      %v1157 = vsel %vm295, %v1152, 0
      %1159 = vmatprep.subr.bf16.mxu0 0
      %1160 = vmatpush1.bf16.msra.mxu0 %v1157
      %1161 = vmatprep.subr.bf16.mxu0 0
      %1162 = vmatpush1.bf16.msra.mxu0 0
      %1163 = vmatprep.subr.bf16.mxu0 0
      %1164 = vmatpush1.bf16.msra.mxu0 0
      %1165 = vmatprep.subr.bf16.mxu0 0
      %1166 = vmatpush1.bf16.msra.mxu0 0
      %1167 = vmatprep.subr.bf16.mxu0 0
      %1168 = vmatpush1.bf16.msra.mxu0 0
      %1169 = vmatprep.subr.bf16.mxu0 0
      %1170 = vmatpush1.bf16.msra.mxu0 0
      %1171 = vmatprep.subr.bf16.mxu0 0
      %1172 = vmatpush1.bf16.msra.mxu0 0
      %1173 = vmatprep.subr.bf16.mxu0 0
      %1174 = vmatpush1.bf16.msra.mxu0 0
      %1175 = vmatprep.subr.bf16.mxu0 0
      %1176 = vmatpush1.bf16.msra.mxu0 0
      %1177 = vmatprep.subr.bf16.mxu0 0
      %1178 = vmatpush1.bf16.msra.mxu0 0
      %1179 = vmatprep.subr.bf16.mxu0 0
      %1180 = vmatpush1.bf16.msra.mxu0 0
      %1181 = vmatprep.subr.bf16.mxu0 0
      %1182 = vmatpush1.bf16.msra.mxu0 0
      %1183 = vmatprep.subr.bf16.mxu0 0
      %1184 = vmatpush1.bf16.msra.mxu0 0
      %1185 = vmatprep.subr.bf16.mxu0 0
      %1186 = vmatpush1.bf16.msra.mxu0 0
      %1187 = vmatprep.subr.bf16.mxu0 0
      %1188 = vmatpush1.bf16.msra.mxu0 0
      %1189 = vmatprep.subr.bf16.mxu0 0
      %1190 = vmatpush1.bf16.msra.mxu0 0
      %1191 = vmatprep.mubr.bf16.mxu0 0
      %1192 = vmatmul.mubr.bf16.gmra.mrb[0].mxu0 %v1154
      %v1193 = vpop.f32.mrb[0].mxu0
      %v1194 = vadd.f32 0.0, %v1193
      %v1195 = vpop.f32.mrb[0].mxu0
      %v1196 = vpop.f32.mrb[0].mxu0
      %v1197 = vpop.f32.mrb[0].mxu0
      %1198 = vdwg.mxu0
      %v1199 = vadd.f32 %v1149, %v1194
      %v1200 = vld [vmem:[%s1100] sm:$0xf]
      %v1201 = vld [vmem:[%s1100 + $0x4] sm:$0x1]
      %v1202 = vld [vmem:[%s715] sm:$0xf]
      %v1205 = vunpack.c.l.b16 %v1200
      %v1206 = vunpack.c.l.b16 %v1201
      %v1207 = vpack.c.b16 %v1206, %v1205
      %v1209 = vshrl.u32 %v1207, 16
      %v1211 = vshll.u32 %v1207, 16
      %v1213 = vrot.slane %v1211, 1
      %v1214 = vor.u32 %v1209, %v1213
      %v1216 = vsel %vm291, %v1214, 0
      %v1219 = vsel %vm295, %v1202, 0
      %1221 = vmatprep.subr.bf16.mxu0 0
      %1222 = vmatpush1.bf16.msra.mxu0 %v1219
      %1223 = vmatprep.subr.bf16.mxu0 0
      %1224 = vmatpush1.bf16.msra.mxu0 0
      %1225 = vmatprep.subr.bf16.mxu0 0
      %1226 = vmatpush1.bf16.msra.mxu0 0
      %1227 = vmatprep.subr.bf16.mxu0 0
      %1228 = vmatpush1.bf16.msra.mxu0 0
      %1229 = vmatprep.subr.bf16.mxu0 0
      %1230 = vmatpush1.bf16.msra.mxu0 0
      %1231 = vmatprep.subr.bf16.mxu0 0
      %1232 = vmatpush1.bf16.msra.mxu0 0
      %1233 = vmatprep.subr.bf16.mxu0 0
      %1234 = vmatpush1.bf16.msra.mxu0 0
      %1235 = vmatprep.subr.bf16.mxu0 0
      %1236 = vmatpush1.bf16.msra.mxu0 0
      %1237 = vmatprep.subr.bf16.mxu0 0
      %1238 = vmatpush1.bf16.msra.mxu0 0
      %1239 = vmatprep.subr.bf16.mxu0 0
      %1240 = vmatpush1.bf16.msra.mxu0 0
      %1241 = vmatprep.subr.bf16.mxu0 0
      %1242 = vmatpush1.bf16.msra.mxu0 0
      %1243 = vmatprep.subr.bf16.mxu0 0
      %1244 = vmatpush1.bf16.msra.mxu0 0
      %1245 = vmatprep.subr.bf16.mxu0 0
      %1246 = vmatpush1.bf16.msra.mxu0 0
      %1247 = vmatprep.subr.bf16.mxu0 0
      %1248 = vmatpush1.bf16.msra.mxu0 0
      %1249 = vmatprep.subr.bf16.mxu0 0
      %1250 = vmatpush1.bf16.msra.mxu0 0
      %1251 = vmatprep.subr.bf16.mxu0 0
      %1252 = vmatpush1.bf16.msra.mxu0 0
      %1253 = vmatprep.mubr.bf16.mxu0 0
      %1254 = vmatmul.mubr.bf16.gmra.mrb[0].mxu0 %v1216
      %v1255 = vpop.f32.mrb[0].mxu0
      %v1256 = vadd.f32 0.0, %v1255
      %v1257 = vpop.f32.mrb[0].mxu0
      %v1258 = vpop.f32.mrb[0].mxu0
      %v1259 = vpop.f32.mrb[0].mxu0
      %1260 = vdwg.mxu0
      %v1261 = vadd.f32 %v1199, %v1256
      %v1262 = vmax.f32 %v1261, 0.0
      %v1263 = vpack.c.bf16 %v1262, %v1262
      %s1264 = scalar_lea.vmem %s284, 4
      %1265 = vst.msk [vmem:[%s1264] sm:$0xf] %vm778, %v1263
      %v1266 = vld [vmem:[%s1100] sm:$0xf]
      %v1267 = vld [vmem:[%s4] sm:$0xf]
      %v1268 = vld [vmem:[%s1150] sm:$0xf]
      %v1269 = vld [vmem:[%s289] sm:$0xf]
      %v1271 = vsel %vm291, %v1268, 0
      %v1274 = vsel %vm295, %v1269, 0
      %1276 = vmatprep.subr.bf16.mxu0 0
      %1277 = vmatpush1.bf16.msra.mxu0 %v1274
      %1278 = vmatprep.subr.bf16.mxu0 0
      %1279 = vmatpush1.bf16.msra.mxu0 0
      %1280 = vmatprep.subr.bf16.mxu0 0
      %1281 = vmatpush1.bf16.msra.mxu0 0
      %1282 = vmatprep.subr.bf16.mxu0 0
      %1283 = vmatpush1.bf16.msra.mxu0 0
      %1284 = vmatprep.subr.bf16.mxu0 0
      %1285 = vmatpush1.bf16.msra.mxu0 0
      %1286 = vmatprep.subr.bf16.mxu0 0
      %1287 = vmatpush1.bf16.msra.mxu0 0
      %1288 = vmatprep.subr.bf16.mxu0 0
      %1289 = vmatpush1.bf16.msra.mxu0 0
      %1290 = vmatprep.subr.bf16.mxu0 0
      %1291 = vmatpush1.bf16.msra.mxu0 0
      %1292 = vmatprep.subr.bf16.mxu0 0
      %1293 = vmatpush1.bf16.msra.mxu0 0
      %1294 = vmatprep.subr.bf16.mxu0 0
      %1295 = vmatpush1.bf16.msra.mxu0 0
      %1296 = vmatprep.subr.bf16.mxu0 0
      %1297 = vmatpush1.bf16.msra.mxu0 0
      %1298 = vmatprep.subr.bf16.mxu0 0
      %1299 = vmatpush1.bf16.msra.mxu0 0
      %1300 = vmatprep.subr.bf16.mxu0 0
      %1301 = vmatpush1.bf16.msra.mxu0 0
      %1302 = vmatprep.subr.bf16.mxu0 0
      %1303 = vmatpush1.bf16.msra.mxu0 0
      %1304 = vmatprep.subr.bf16.mxu0 0
      %1305 = vmatpush1.bf16.msra.mxu0 0
      %1306 = vmatprep.subr.bf16.mxu0 0
      %1307 = vmatpush1.bf16.msra.mxu0 0
      %1308 = vmatprep.mubr.bf16.mxu0 0
      %1309 = vmatmul.mubr.bf16.gmra.mrb[0].mxu0 %v1271
      %v1310 = vpop.f32.mrb[0].mxu0
      %v1311 = vadd.f32 0.0, %v1310
      %v1312 = vpop.f32.mrb[0].mxu0
      %v1313 = vpop.f32.mrb[0].mxu0
      %v1314 = vpop.f32.mrb[0].mxu0
      %1315 = vdwg.mxu0
      %v1317 = vsel %vm291, %v1266, 0
      %v1320 = vsel %vm295, %v1267, 0
      %1322 = vmatprep.subr.bf16.mxu0 0
      %1323 = vmatpush1.bf16.msra.mxu0 %v1320
      %1324 = vmatprep.subr.bf16.mxu0 0
      %1325 = vmatpush1.bf16.msra.mxu0 0
      %1326 = vmatprep.subr.bf16.mxu0 0
      %1327 = vmatpush1.bf16.msra.mxu0 0
      %1328 = vmatprep.subr.bf16.mxu0 0
      %1329 = vmatpush1.bf16.msra.mxu0 0
      %1330 = vmatprep.subr.bf16.mxu0 0
      %1331 = vmatpush1.bf16.msra.mxu0 0
      %1332 = vmatprep.subr.bf16.mxu0 0
      %1333 = vmatpush1.bf16.msra.mxu0 0
      %1334 = vmatprep.subr.bf16.mxu0 0
      %1335 = vmatpush1.bf16.msra.mxu0 0
      %1336 = vmatprep.subr.bf16.mxu0 0
      %1337 = vmatpush1.bf16.msra.mxu0 0
      %1338 = vmatprep.subr.bf16.mxu0 0
      %1339 = vmatpush1.bf16.msra.mxu0 0
      %1340 = vmatprep.subr.bf16.mxu0 0
      %1341 = vmatpush1.bf16.msra.mxu0 0
      %1342 = vmatprep.subr.bf16.mxu0 0
      %1343 = vmatpush1.bf16.msra.mxu0 0
      %1344 = vmatprep.subr.bf16.mxu0 0
      %1345 = vmatpush1.bf16.msra.mxu0 0
      %1346 = vmatprep.subr.bf16.mxu0 0
      %1347 = vmatpush1.bf16.msra.mxu0 0
      %1348 = vmatprep.subr.bf16.mxu0 0
      %1349 = vmatpush1.bf16.msra.mxu0 0
      %1350 = vmatprep.subr.bf16.mxu0 0
      %1351 = vmatpush1.bf16.msra.mxu0 0
      %1352 = vmatprep.subr.bf16.mxu0 0
      %1353 = vmatpush1.bf16.msra.mxu0 0
      %1354 = vmatprep.mubr.bf16.mxu0 0
      %1355 = vmatmul.mubr.bf16.gmra.mrb[0].mxu0 %v1317
      %v1356 = vpop.f32.mrb[0].mxu0
      %v1357 = vadd.f32 %v1311, %v1356
      %v1358 = vpop.f32.mrb[0].mxu0
      %v1359 = vpop.f32.mrb[0].mxu0
      %v1360 = vpop.f32.mrb[0].mxu0
      %1361 = vdwg.mxu0
      %v1362 = vld [vmem:[%s1100] sm:$0xf]
      %v1363 = vld [vmem:[%s1100 + $0x4] sm:$0x1]
      %v1364 = vld [vmem:[%s387] sm:$0xf]
      %v1367 = vunpack.c.l.b16 %v1362
      %v1368 = vunpack.c.l.b16 %v1363
      %v1369 = vpack.c.b16 %v1368, %v1367
      %v1371 = vshrl.u32 %v1369, 16
      %v1373 = vshll.u32 %v1369, 16
      %v1375 = vrot.slane %v1373, 1
      %v1376 = vor.u32 %v1371, %v1375
      %v1378 = vsel %vm291, %v1376, 0
      %v1381 = vsel %vm295, %v1364, 0
      %1383 = vmatprep.subr.bf16.mxu0 0
      %1384 = vmatpush1.bf16.msra.mxu0 %v1381
      %1385 = vmatprep.subr.bf16.mxu0 0
      %1386 = vmatpush1.bf16.msra.mxu0 0
      %1387 = vmatprep.subr.bf16.mxu0 0
      %1388 = vmatpush1.bf16.msra.mxu0 0
      %1389 = vmatprep.subr.bf16.mxu0 0
      %1390 = vmatpush1.bf16.msra.mxu0 0
      %1391 = vmatprep.subr.bf16.mxu0 0
      %1392 = vmatpush1.bf16.msra.mxu0 0
      %1393 = vmatprep.subr.bf16.mxu0 0
      %1394 = vmatpush1.bf16.msra.mxu0 0
      %1395 = vmatprep.subr.bf16.mxu0 0
      %1396 = vmatpush1.bf16.msra.mxu0 0
      %1397 = vmatprep.subr.bf16.mxu0 0
      %1398 = vmatpush1.bf16.msra.mxu0 0
      %1399 = vmatprep.subr.bf16.mxu0 0
      %1400 = vmatpush1.bf16.msra.mxu0 0
      %1401 = vmatprep.subr.bf16.mxu0 0
      %1402 = vmatpush1.bf16.msra.mxu0 0
      %1403 = vmatprep.subr.bf16.mxu0 0
      %1404 = vmatpush1.bf16.msra.mxu0 0
      %1405 = vmatprep.subr.bf16.mxu0 0
      %1406 = vmatpush1.bf16.msra.mxu0 0
      %1407 = vmatprep.subr.bf16.mxu0 0
      %1408 = vmatpush1.bf16.msra.mxu0 0
      %1409 = vmatprep.subr.bf16.mxu0 0
      %1410 = vmatpush1.bf16.msra.mxu0 0
      %1411 = vmatprep.subr.bf16.mxu0 0
      %1412 = vmatpush1.bf16.msra.mxu0 0
      %1413 = vmatprep.subr.bf16.mxu0 0
      %1414 = vmatpush1.bf16.msra.mxu0 0
      %1415 = vmatprep.mubr.bf16.mxu0 0
      %1416 = vmatmul.mubr.bf16.gmra.mrb[0].mxu0 %v1378
      %v1417 = vpop.f32.mrb[0].mxu0
      %v1418 = vadd.f32 0.0, %v1417
      %v1419 = vpop.f32.mrb[0].mxu0
      %v1420 = vpop.f32.mrb[0].mxu0
      %v1421 = vpop.f32.mrb[0].mxu0
      %1422 = vdwg.mxu0
      %v1423 = vadd.f32 %v1357, %v1418
      %s1424 = scalar_lea.vmem %s274, 16
      %v1425 = vld [vmem:[%s1424] sm:$0xf]
      %v1426 = vld [vmem:[%s449] sm:$0xf]
      %v1428 = vsel %vm291, %v1425, 0
      %v1431 = vsel %vm295, %v1426, 0
      %1433 = vmatprep.subr.bf16.mxu0 0
      %1434 = vmatpush1.bf16.msra.mxu0 %v1431
      %1435 = vmatprep.subr.bf16.mxu0 0
      %1436 = vmatpush1.bf16.msra.mxu0 0
      %1437 = vmatprep.subr.bf16.mxu0 0
      %1438 = vmatpush1.bf16.msra.mxu0 0
      %1439 = vmatprep.subr.bf16.mxu0 0
      %1440 = vmatpush1.bf16.msra.mxu0 0
      %1441 = vmatprep.subr.bf16.mxu0 0
      %1442 = vmatpush1.bf16.msra.mxu0 0
      %1443 = vmatprep.subr.bf16.mxu0 0
      %1444 = vmatpush1.bf16.msra.mxu0 0
      %1445 = vmatprep.subr.bf16.mxu0 0
      %1446 = vmatpush1.bf16.msra.mxu0 0
      %1447 = vmatprep.subr.bf16.mxu0 0
      %1448 = vmatpush1.bf16.msra.mxu0 0
      %1449 = vmatprep.subr.bf16.mxu0 0
      %1450 = vmatpush1.bf16.msra.mxu0 0
      %1451 = vmatprep.subr.bf16.mxu0 0
      %1452 = vmatpush1.bf16.msra.mxu0 0
      %1453 = vmatprep.subr.bf16.mxu0 0
      %1454 = vmatpush1.bf16.msra.mxu0 0
      %1455 = vmatprep.subr.bf16.mxu0 0
      %1456 = vmatpush1.bf16.msra.mxu0 0
      %1457 = vmatprep.subr.bf16.mxu0 0
      %1458 = vmatpush1.bf16.msra.mxu0 0
      %1459 = vmatprep.subr.bf16.mxu0 0
      %1460 = vmatpush1.bf16.msra.mxu0 0
      %1461 = vmatprep.subr.bf16.mxu0 0
      %1462 = vmatpush1.bf16.msra.mxu0 0
      %1463 = vmatprep.subr.bf16.mxu0 0
      %1464 = vmatpush1.bf16.msra.mxu0 0
      %1465 = vmatprep.mubr.bf16.mxu0 0
      %1466 = vmatmul.mubr.bf16.gmra.mrb[0].mxu0 %v1428
      %v1467 = vpop.f32.mrb[0].mxu0
      %v1468 = vadd.f32 0.0, %v1467
      %v1469 = vpop.f32.mrb[0].mxu0
      %v1470 = vpop.f32.mrb[0].mxu0
      %v1471 = vpop.f32.mrb[0].mxu0
      %1472 = vdwg.mxu0
      %v1473 = vadd.f32 %v1423, %v1468
      %s1474 = scalar_lea.vmem %s279, 16
      %v1475 = vld [vmem:[%s1474] sm:$0xf]
      %v1476 = vld [vmem:[%s499] sm:$0xf]
      %v1478 = vsel %vm291, %v1475, 0
      %v1481 = vsel %vm295, %v1476, 0
      %1483 = vmatprep.subr.bf16.mxu0 0
      %1484 = vmatpush1.bf16.msra.mxu0 %v1481
      %1485 = vmatprep.subr.bf16.mxu0 0
      %1486 = vmatpush1.bf16.msra.mxu0 0
      %1487 = vmatprep.subr.bf16.mxu0 0
      %1488 = vmatpush1.bf16.msra.mxu0 0
      %1489 = vmatprep.subr.bf16.mxu0 0
      %1490 = vmatpush1.bf16.msra.mxu0 0
      %1491 = vmatprep.subr.bf16.mxu0 0
      %1492 = vmatpush1.bf16.msra.mxu0 0
      %1493 = vmatprep.subr.bf16.mxu0 0
      %1494 = vmatpush1.bf16.msra.mxu0 0
      %1495 = vmatprep.subr.bf16.mxu0 0
      %1496 = vmatpush1.bf16.msra.mxu0 0
      %1497 = vmatprep.subr.bf16.mxu0 0
      %1498 = vmatpush1.bf16.msra.mxu0 0
      %1499 = vmatprep.subr.bf16.mxu0 0
      %1500 = vmatpush1.bf16.msra.mxu0 0
      %1501 = vmatprep.subr.bf16.mxu0 0
      %1502 = vmatpush1.bf16.msra.mxu0 0
      %1503 = vmatprep.subr.bf16.mxu0 0
      %1504 = vmatpush1.bf16.msra.mxu0 0
      %1505 = vmatprep.subr.bf16.mxu0 0
      %1506 = vmatpush1.bf16.msra.mxu0 0
      %1507 = vmatprep.subr.bf16.mxu0 0
      %1508 = vmatpush1.bf16.msra.mxu0 0
      %1509 = vmatprep.subr.bf16.mxu0 0
      %1510 = vmatpush1.bf16.msra.mxu0 0
      %1511 = vmatprep.subr.bf16.mxu0 0
      %1512 = vmatpush1.bf16.msra.mxu0 0
      %1513 = vmatprep.subr.bf16.mxu0 0
      %1514 = vmatpush1.bf16.msra.mxu0 0
      %1515 = vmatprep.mubr.bf16.mxu0 0
      %1516 = vmatmul.mubr.bf16.gmra.mrb[0].mxu0 %v1478
      %v1517 = vpop.f32.mrb[0].mxu0
      %v1518 = vadd.f32 0.0, %v1517
      %v1519 = vpop.f32.mrb[0].mxu0
      %v1520 = vpop.f32.mrb[0].mxu0
      %v1521 = vpop.f32.mrb[0].mxu0
      %1522 = vdwg.mxu0
      %v1523 = vadd.f32 %v1473, %v1518
      %v1524 = vld [vmem:[%s1424] sm:$0xf]
      %v1525 = vld [vmem:[%s1424 + $0x4] sm:$0x1]
      %v1526 = vld [vmem:[%s550] sm:$0xf]
      %v1529 = vunpack.c.l.b16 %v1524
      %v1530 = vunpack.c.l.b16 %v1525
      %v1531 = vpack.c.b16 %v1530, %v1529
      %v1533 = vshrl.u32 %v1531, 16
      %v1535 = vshll.u32 %v1531, 16
      %v1537 = vrot.slane %v1535, 1
      %v1538 = vor.u32 %v1533, %v1537
      %v1540 = vsel %vm291, %v1538, 0
      %v1543 = vsel %vm295, %v1526, 0
      %1545 = vmatprep.subr.bf16.mxu0 0
      %1546 = vmatpush1.bf16.msra.mxu0 %v1543
      %1547 = vmatprep.subr.bf16.mxu0 0
      %1548 = vmatpush1.bf16.msra.mxu0 0
      %1549 = vmatprep.subr.bf16.mxu0 0
      %1550 = vmatpush1.bf16.msra.mxu0 0
      %1551 = vmatprep.subr.bf16.mxu0 0
      %1552 = vmatpush1.bf16.msra.mxu0 0
      %1553 = vmatprep.subr.bf16.mxu0 0
      %1554 = vmatpush1.bf16.msra.mxu0 0
      %1555 = vmatprep.subr.bf16.mxu0 0
      %1556 = vmatpush1.bf16.msra.mxu0 0
      %1557 = vmatprep.subr.bf16.mxu0 0
      %1558 = vmatpush1.bf16.msra.mxu0 0
      %1559 = vmatprep.subr.bf16.mxu0 0
      %1560 = vmatpush1.bf16.msra.mxu0 0
      %1561 = vmatprep.subr.bf16.mxu0 0
      %1562 = vmatpush1.bf16.msra.mxu0 0
      %1563 = vmatprep.subr.bf16.mxu0 0
      %1564 = vmatpush1.bf16.msra.mxu0 0
      %1565 = vmatprep.subr.bf16.mxu0 0
      %1566 = vmatpush1.bf16.msra.mxu0 0
      %1567 = vmatprep.subr.bf16.mxu0 0
      %1568 = vmatpush1.bf16.msra.mxu0 0
      %1569 = vmatprep.subr.bf16.mxu0 0
      %1570 = vmatpush1.bf16.msra.mxu0 0
      %1571 = vmatprep.subr.bf16.mxu0 0
      %1572 = vmatpush1.bf16.msra.mxu0 0
      %1573 = vmatprep.subr.bf16.mxu0 0
      %1574 = vmatpush1.bf16.msra.mxu0 0
      %1575 = vmatprep.subr.bf16.mxu0 0
      %1576 = vmatpush1.bf16.msra.mxu0 0
      %1577 = vmatprep.mubr.bf16.mxu0 0
      %1578 = vmatmul.mubr.bf16.gmra.mrb[0].mxu0 %v1540
      %v1579 = vpop.f32.mrb[0].mxu0
      %v1580 = vadd.f32 0.0, %v1579
      %v1581 = vpop.f32.mrb[0].mxu0
      %v1582 = vpop.f32.mrb[0].mxu0
      %v1583 = vpop.f32.mrb[0].mxu0
      %1584 = vdwg.mxu0
      %v1585 = vadd.f32 %v1523, %v1580
      %s1586 = scalar_lea.vmem %s264, 24
      %v1587 = vld [vmem:[%s1586] sm:$0xf]
      %v1588 = vld [vmem:[%s613] sm:$0xf]
      %v1590 = vsel %vm291, %v1587, 0
      %v1593 = vsel %vm295, %v1588, 0
      %1595 = vmatprep.subr.bf16.mxu0 0
      %1596 = vmatpush1.bf16.msra.mxu0 %v1593
      %1597 = vmatprep.subr.bf16.mxu0 0
      %1598 = vmatpush1.bf16.msra.mxu0 0
      %1599 = vmatprep.subr.bf16.mxu0 0
      %1600 = vmatpush1.bf16.msra.mxu0 0
      %1601 = vmatprep.subr.bf16.mxu0 0
      %1602 = vmatpush1.bf16.msra.mxu0 0
      %1603 = vmatprep.subr.bf16.mxu0 0
      %1604 = vmatpush1.bf16.msra.mxu0 0
      %1605 = vmatprep.subr.bf16.mxu0 0
      %1606 = vmatpush1.bf16.msra.mxu0 0
      %1607 = vmatprep.subr.bf16.mxu0 0
      %1608 = vmatpush1.bf16.msra.mxu0 0
      %1609 = vmatprep.subr.bf16.mxu0 0
      %1610 = vmatpush1.bf16.msra.mxu0 0
      %1611 = vmatprep.subr.bf16.mxu0 0
      %1612 = vmatpush1.bf16.msra.mxu0 0
      %1613 = vmatprep.subr.bf16.mxu0 0
      %1614 = vmatpush1.bf16.msra.mxu0 0
      %1615 = vmatprep.subr.bf16.mxu0 0
      %1616 = vmatpush1.bf16.msra.mxu0 0
      %1617 = vmatprep.subr.bf16.mxu0 0
      %1618 = vmatpush1.bf16.msra.mxu0 0
      %1619 = vmatprep.subr.bf16.mxu0 0
      %1620 = vmatpush1.bf16.msra.mxu0 0
      %1621 = vmatprep.subr.bf16.mxu0 0
      %1622 = vmatpush1.bf16.msra.mxu0 0
      %1623 = vmatprep.subr.bf16.mxu0 0
      %1624 = vmatpush1.bf16.msra.mxu0 0
      %1625 = vmatprep.subr.bf16.mxu0 0
      %1626 = vmatpush1.bf16.msra.mxu0 0
      %1627 = vmatprep.mubr.bf16.mxu0 0
      %1628 = vmatmul.mubr.bf16.gmra.mrb[0].mxu0 %v1590
      %v1629 = vpop.f32.mrb[0].mxu0
      %v1630 = vadd.f32 0.0, %v1629
      %v1631 = vpop.f32.mrb[0].mxu0
      %v1632 = vpop.f32.mrb[0].mxu0
      %v1633 = vpop.f32.mrb[0].mxu0
      %1634 = vdwg.mxu0
      %v1635 = vadd.f32 %v1585, %v1630
      %s1636 = scalar_lea.vmem %s269, 24
      %v1637 = vld [vmem:[%s1636] sm:$0xf]
      %v1638 = vld [vmem:[%s664] sm:$0xf]
      %v1640 = vsel %vm291, %v1637, 0
      %v1643 = vsel %vm295, %v1638, 0
      %1645 = vmatprep.subr.bf16.mxu0 0
      %1646 = vmatpush1.bf16.msra.mxu0 %v1643
      %1647 = vmatprep.subr.bf16.mxu0 0
      %1648 = vmatpush1.bf16.msra.mxu0 0
      %1649 = vmatprep.subr.bf16.mxu0 0
      %1650 = vmatpush1.bf16.msra.mxu0 0
      %1651 = vmatprep.subr.bf16.mxu0 0
      %1652 = vmatpush1.bf16.msra.mxu0 0
      %1653 = vmatprep.subr.bf16.mxu0 0
      %1654 = vmatpush1.bf16.msra.mxu0 0
      %1655 = vmatprep.subr.bf16.mxu0 0
      %1656 = vmatpush1.bf16.msra.mxu0 0
      %1657 = vmatprep.subr.bf16.mxu0 0
      %1658 = vmatpush1.bf16.msra.mxu0 0
      %1659 = vmatprep.subr.bf16.mxu0 0
      %1660 = vmatpush1.bf16.msra.mxu0 0
      %1661 = vmatprep.subr.bf16.mxu0 0
      %1662 = vmatpush1.bf16.msra.mxu0 0
      %1663 = vmatprep.subr.bf16.mxu0 0
      %1664 = vmatpush1.bf16.msra.mxu0 0
      %1665 = vmatprep.subr.bf16.mxu0 0
      %1666 = vmatpush1.bf16.msra.mxu0 0
      %1667 = vmatprep.subr.bf16.mxu0 0
      %1668 = vmatpush1.bf16.msra.mxu0 0
      %1669 = vmatprep.subr.bf16.mxu0 0
      %1670 = vmatpush1.bf16.msra.mxu0 0
      %1671 = vmatprep.subr.bf16.mxu0 0
      %1672 = vmatpush1.bf16.msra.mxu0 0
      %1673 = vmatprep.subr.bf16.mxu0 0
      %1674 = vmatpush1.bf16.msra.mxu0 0
      %1675 = vmatprep.subr.bf16.mxu0 0
      %1676 = vmatpush1.bf16.msra.mxu0 0
      %1677 = vmatprep.mubr.bf16.mxu0 0
      %1678 = vmatmul.mubr.bf16.gmra.mrb[0].mxu0 %v1640
      %v1679 = vpop.f32.mrb[0].mxu0
      %v1680 = vadd.f32 0.0, %v1679
      %v1681 = vpop.f32.mrb[0].mxu0
      %v1682 = vpop.f32.mrb[0].mxu0
      %v1683 = vpop.f32.mrb[0].mxu0
      %1684 = vdwg.mxu0
      %v1685 = vadd.f32 %v1635, %v1680
      %v1686 = vld [vmem:[%s1586] sm:$0xf]
      %v1687 = vld [vmem:[%s1586 + $0x4] sm:$0x1]
      %v1688 = vld [vmem:[%s715] sm:$0xf]
      %v1691 = vunpack.c.l.b16 %v1686
      %v1692 = vunpack.c.l.b16 %v1687
      %v1693 = vpack.c.b16 %v1692, %v1691
      %v1695 = vshrl.u32 %v1693, 16
      %v1697 = vshll.u32 %v1693, 16
      %v1699 = vrot.slane %v1697, 1
      %v1700 = vor.u32 %v1695, %v1699
      %v1702 = vsel %vm291, %v1700, 0
      %v1705 = vsel %vm295, %v1688, 0
      %1707 = vmatprep.subr.bf16.mxu0 0
      %1708 = vmatpush1.bf16.msra.mxu0 %v1705
      %1709 = vmatprep.subr.bf16.mxu0 0
      %1710 = vmatpush1.bf16.msra.mxu0 0
      %1711 = vmatprep.subr.bf16.mxu0 0
      %1712 = vmatpush1.bf16.msra.mxu0 0
      %1713 = vmatprep.subr.bf16.mxu0 0
      %1714 = vmatpush1.bf16.msra.mxu0 0
      %1715 = vmatprep.subr.bf16.mxu0 0
      %1716 = vmatpush1.bf16.msra.mxu0 0
      %1717 = vmatprep.subr.bf16.mxu0 0
      %1718 = vmatpush1.bf16.msra.mxu0 0
      %1719 = vmatprep.subr.bf16.mxu0 0
      %1720 = vmatpush1.bf16.msra.mxu0 0
      %1721 = vmatprep.subr.bf16.mxu0 0
      %1722 = vmatpush1.bf16.msra.mxu0 0
      %1723 = vmatprep.subr.bf16.mxu0 0
      %1724 = vmatpush1.bf16.msra.mxu0 0
      %1725 = vmatprep.subr.bf16.mxu0 0
      %1726 = vmatpush1.bf16.msra.mxu0 0
      %1727 = vmatprep.subr.bf16.mxu0 0
      %1728 = vmatpush1.bf16.msra.mxu0 0
      %1729 = vmatprep.subr.bf16.mxu0 0
      %1730 = vmatpush1.bf16.msra.mxu0 0
      %1731 = vmatprep.subr.bf16.mxu0 0
      %1732 = vmatpush1.bf16.msra.mxu0 0
      %1733 = vmatprep.subr.bf16.mxu0 0
      %1734 = vmatpush1.bf16.msra.mxu0 0
      %1735 = vmatprep.subr.bf16.mxu0 0
      %1736 = vmatpush1.bf16.msra.mxu0 0
      %1737 = vmatprep.subr.bf16.mxu0 0
      %1738 = vmatpush1.bf16.msra.mxu0 0
      %1739 = vmatprep.mubr.bf16.mxu0 0
      %1740 = vmatmul.mubr.bf16.gmra.mrb[0].mxu0 %v1702
      %v1741 = vpop.f32.mrb[0].mxu0
      %v1742 = vadd.f32 0.0, %v1741
      %v1743 = vpop.f32.mrb[0].mxu0
      %v1744 = vpop.f32.mrb[0].mxu0
      %v1745 = vpop.f32.mrb[0].mxu0
      %1746 = vdwg.mxu0
      %v1747 = vadd.f32 %v1685, %v1742
      %v1748 = vmax.f32 %v1747, 0.0
      %v1749 = vpack.c.bf16 %v1748, %v1748
      %s1750 = scalar_lea.vmem %s284, 8
      %1751 = vst.msk [vmem:[%s1750] sm:$0xf] %vm778, %v1749
      %v1752 = vld [vmem:[%s1586] sm:$0xf]
      %v1753 = vld [vmem:[%s4] sm:$0xf]
      %v1754 = vld [vmem:[%s1636] sm:$0xf]
      %v1755 = vld [vmem:[%s289] sm:$0xf]
      %v1757 = vsel %vm291, %v1754, 0
      %v1760 = vsel %vm295, %v1755, 0
      %1762 = vmatprep.subr.bf16.mxu0 0
      %1763 = vmatpush1.bf16.msra.mxu0 %v1760
      %1764 = vmatprep.subr.bf16.mxu0 0
      %1765 = vmatpush1.bf16.msra.mxu0 0
      %1766 = vmatprep.subr.bf16.mxu0 0
      %1767 = vmatpush1.bf16.msra.mxu0 0
      %1768 = vmatprep.subr.bf16.mxu0 0
      %1769 = vmatpush1.bf16.msra.mxu0 0
      %1770 = vmatprep.subr.bf16.mxu0 0
      %1771 = vmatpush1.bf16.msra.mxu0 0
      %1772 = vmatprep.subr.bf16.mxu0 0
      %1773 = vmatpush1.bf16.msra.mxu0 0
      %1774 = vmatprep.subr.bf16.mxu0 0
      %1775 = vmatpush1.bf16.msra.mxu0 0
      %1776 = vmatprep.subr.bf16.mxu0 0
      %1777 = vmatpush1.bf16.msra.mxu0 0
      %1778 = vmatprep.subr.bf16.mxu0 0
      %1779 = vmatpush1.bf16.msra.mxu0 0
      %1780 = vmatprep.subr.bf16.mxu0 0
      %1781 = vmatpush1.bf16.msra.mxu0 0
      %1782 = vmatprep.subr.bf16.mxu0 0
      %1783 = vmatpush1.bf16.msra.mxu0 0
      %1784 = vmatprep.subr.bf16.mxu0 0
      %1785 = vmatpush1.bf16.msra.mxu0 0
      %1786 = vmatprep.subr.bf16.mxu0 0
      %1787 = vmatpush1.bf16.msra.mxu0 0
      %1788 = vmatprep.subr.bf16.mxu0 0
      %1789 = vmatpush1.bf16.msra.mxu0 0
      %1790 = vmatprep.subr.bf16.mxu0 0
      %1791 = vmatpush1.bf16.msra.mxu0 0
      %1792 = vmatprep.subr.bf16.mxu0 0
      %1793 = vmatpush1.bf16.msra.mxu0 0
      %1794 = vmatprep.mubr.bf16.mxu0 0
      %1795 = vmatmul.mubr.bf16.gmra.mrb[0].mxu0 %v1757
      %v1796 = vpop.f32.mrb[0].mxu0
      %v1797 = vadd.f32 0.0, %v1796
      %v1798 = vpop.f32.mrb[0].mxu0
      %v1799 = vpop.f32.mrb[0].mxu0
      %v1800 = vpop.f32.mrb[0].mxu0
      %1801 = vdwg.mxu0
      %v1803 = vsel %vm291, %v1752, 0
      %v1806 = vsel %vm295, %v1753, 0
      %1808 = vmatprep.subr.bf16.mxu0 0
      %1809 = vmatpush1.bf16.msra.mxu0 %v1806
      %1810 = vmatprep.subr.bf16.mxu0 0
      %1811 = vmatpush1.bf16.msra.mxu0 0
      %1812 = vmatprep.subr.bf16.mxu0 0
      %1813 = vmatpush1.bf16.msra.mxu0 0
      %1814 = vmatprep.subr.bf16.mxu0 0
      %1815 = vmatpush1.bf16.msra.mxu0 0
      %1816 = vmatprep.subr.bf16.mxu0 0
      %1817 = vmatpush1.bf16.msra.mxu0 0
      %1818 = vmatprep.subr.bf16.mxu0 0
      %1819 = vmatpush1.bf16.msra.mxu0 0
      %1820 = vmatprep.subr.bf16.mxu0 0
      %1821 = vmatpush1.bf16.msra.mxu0 0
      %1822 = vmatprep.subr.bf16.mxu0 0
      %1823 = vmatpush1.bf16.msra.mxu0 0
      %1824 = vmatprep.subr.bf16.mxu0 0
      %1825 = vmatpush1.bf16.msra.mxu0 0
      %1826 = vmatprep.subr.bf16.mxu0 0
      %1827 = vmatpush1.bf16.msra.mxu0 0
      %1828 = vmatprep.subr.bf16.mxu0 0
      %1829 = vmatpush1.bf16.msra.mxu0 0
      %1830 = vmatprep.subr.bf16.mxu0 0
      %1831 = vmatpush1.bf16.msra.mxu0 0
      %1832 = vmatprep.subr.bf16.mxu0 0
      %1833 = vmatpush1.bf16.msra.mxu0 0
      %1834 = vmatprep.subr.bf16.mxu0 0
      %1835 = vmatpush1.bf16.msra.mxu0 0
      %1836 = vmatprep.subr.bf16.mxu0 0
      %1837 = vmatpush1.bf16.msra.mxu0 0
      %1838 = vmatprep.subr.bf16.mxu0 0
      %1839 = vmatpush1.bf16.msra.mxu0 0
      %1840 = vmatprep.mubr.bf16.mxu0 0
      %1841 = vmatmul.mubr.bf16.gmra.mrb[0].mxu0 %v1803
      %v1842 = vpop.f32.mrb[0].mxu0
      %v1843 = vadd.f32 %v1797, %v1842
      %v1844 = vpop.f32.mrb[0].mxu0
      %v1845 = vpop.f32.mrb[0].mxu0
      %v1846 = vpop.f32.mrb[0].mxu0
      %1847 = vdwg.mxu0
      %v1848 = vld [vmem:[%s1586] sm:$0xf]
      %v1849 = vld [vmem:[%s1586 + $0x4] sm:$0x1]
      %v1850 = vld [vmem:[%s387] sm:$0xf]
      %v1853 = vunpack.c.l.b16 %v1848
      %v1854 = vunpack.c.l.b16 %v1849
      %v1855 = vpack.c.b16 %v1854, %v1853
      %v1857 = vshrl.u32 %v1855, 16
      %v1859 = vshll.u32 %v1855, 16
      %v1861 = vrot.slane %v1859, 1
      %v1862 = vor.u32 %v1857, %v1861
      %v1864 = vsel %vm291, %v1862, 0
      %v1867 = vsel %vm295, %v1850, 0
      %1869 = vmatprep.subr.bf16.mxu0 0
      %1870 = vmatpush1.bf16.msra.mxu0 %v1867
      %1871 = vmatprep.subr.bf16.mxu0 0
      %1872 = vmatpush1.bf16.msra.mxu0 0
      %1873 = vmatprep.subr.bf16.mxu0 0
      %1874 = vmatpush1.bf16.msra.mxu0 0
      %1875 = vmatprep.subr.bf16.mxu0 0
      %1876 = vmatpush1.bf16.msra.mxu0 0
      %1877 = vmatprep.subr.bf16.mxu0 0
      %1878 = vmatpush1.bf16.msra.mxu0 0
      %1879 = vmatprep.subr.bf16.mxu0 0
      %1880 = vmatpush1.bf16.msra.mxu0 0
      %1881 = vmatprep.subr.bf16.mxu0 0
      %1882 = vmatpush1.bf16.msra.mxu0 0
      %1883 = vmatprep.subr.bf16.mxu0 0
      %1884 = vmatpush1.bf16.msra.mxu0 0
      %1885 = vmatprep.subr.bf16.mxu0 0
      %1886 = vmatpush1.bf16.msra.mxu0 0
      %1887 = vmatprep.subr.bf16.mxu0 0
      %1888 = vmatpush1.bf16.msra.mxu0 0
      %1889 = vmatprep.subr.bf16.mxu0 0
      %1890 = vmatpush1.bf16.msra.mxu0 0
      %1891 = vmatprep.subr.bf16.mxu0 0
      %1892 = vmatpush1.bf16.msra.mxu0 0
      %1893 = vmatprep.subr.bf16.mxu0 0
      %1894 = vmatpush1.bf16.msra.mxu0 0
      %1895 = vmatprep.subr.bf16.mxu0 0
      %1896 = vmatpush1.bf16.msra.mxu0 0
      %1897 = vmatprep.subr.bf16.mxu0 0
      %1898 = vmatpush1.bf16.msra.mxu0 0
      %1899 = vmatprep.subr.bf16.mxu0 0
      %1900 = vmatpush1.bf16.msra.mxu0 0
      %1901 = vmatprep.mubr.bf16.mxu0 0
      %1902 = vmatmul.mubr.bf16.gmra.mrb[0].mxu0 %v1864
      %v1903 = vpop.f32.mrb[0].mxu0
      %v1904 = vadd.f32 0.0, %v1903
      %v1905 = vpop.f32.mrb[0].mxu0
      %v1906 = vpop.f32.mrb[0].mxu0
      %v1907 = vpop.f32.mrb[0].mxu0
      %1908 = vdwg.mxu0
      %v1909 = vadd.f32 %v1843, %v1904
      %s1910 = scalar_lea.vmem %s274, 24
      %v1911 = vld [vmem:[%s1910] sm:$0xf]
      %v1912 = vld [vmem:[%s449] sm:$0xf]
      %v1914 = vsel %vm291, %v1911, 0
      %v1917 = vsel %vm295, %v1912, 0
      %1919 = vmatprep.subr.bf16.mxu0 0
      %1920 = vmatpush1.bf16.msra.mxu0 %v1917
      %1921 = vmatprep.subr.bf16.mxu0 0
      %1922 = vmatpush1.bf16.msra.mxu0 0
      %1923 = vmatprep.subr.bf16.mxu0 0
      %1924 = vmatpush1.bf16.msra.mxu0 0
      %1925 = vmatprep.subr.bf16.mxu0 0
      %1926 = vmatpush1.bf16.msra.mxu0 0
      %1927 = vmatprep.subr.bf16.mxu0 0
      %1928 = vmatpush1.bf16.msra.mxu0 0
      %1929 = vmatprep.subr.bf16.mxu0 0
      %1930 = vmatpush1.bf16.msra.mxu0 0
      %1931 = vmatprep.subr.bf16.mxu0 0
      %1932 = vmatpush1.bf16.msra.mxu0 0
      %1933 = vmatprep.subr.bf16.mxu0 0
      %1934 = vmatpush1.bf16.msra.mxu0 0
      %1935 = vmatprep.subr.bf16.mxu0 0
      %1936 = vmatpush1.bf16.msra.mxu0 0
      %1937 = vmatprep.subr.bf16.mxu0 0
      %1938 = vmatpush1.bf16.msra.mxu0 0
      %1939 = vmatprep.subr.bf16.mxu0 0
      %1940 = vmatpush1.bf16.msra.mxu0 0
      %1941 = vmatprep.subr.bf16.mxu0 0
      %1942 = vmatpush1.bf16.msra.mxu0 0
      %1943 = vmatprep.subr.bf16.mxu0 0
      %1944 = vmatpush1.bf16.msra.mxu0 0
      %1945 = vmatprep.subr.bf16.mxu0 0
      %1946 = vmatpush1.bf16.msra.mxu0 0
      %1947 = vmatprep.subr.bf16.mxu0 0
      %1948 = vmatpush1.bf16.msra.mxu0 0
      %1949 = vmatprep.subr.bf16.mxu0 0
      %1950 = vmatpush1.bf16.msra.mxu0 0
      %1951 = vmatprep.mubr.bf16.mxu0 0
      %1952 = vmatmul.mubr.bf16.gmra.mrb[0].mxu0 %v1914
      %v1953 = vpop.f32.mrb[0].mxu0
      %v1954 = vadd.f32 0.0, %v1953
      %v1955 = vpop.f32.mrb[0].mxu0
      %v1956 = vpop.f32.mrb[0].mxu0
      %v1957 = vpop.f32.mrb[0].mxu0
      %1958 = vdwg.mxu0
      %v1959 = vadd.f32 %v1909, %v1954
      %s1960 = scalar_lea.vmem %s279, 24
      %v1961 = vld [vmem:[%s1960] sm:$0xf]
      %v1962 = vld [vmem:[%s499] sm:$0xf]
      %v1964 = vsel %vm291, %v1961, 0
      %v1967 = vsel %vm295, %v1962, 0
      %1969 = vmatprep.subr.bf16.mxu0 0
      %1970 = vmatpush1.bf16.msra.mxu0 %v1967
      %1971 = vmatprep.subr.bf16.mxu0 0
      %1972 = vmatpush1.bf16.msra.mxu0 0
      %1973 = vmatprep.subr.bf16.mxu0 0
      %1974 = vmatpush1.bf16.msra.mxu0 0
      %1975 = vmatprep.subr.bf16.mxu0 0
      %1976 = vmatpush1.bf16.msra.mxu0 0
      %1977 = vmatprep.subr.bf16.mxu0 0
      %1978 = vmatpush1.bf16.msra.mxu0 0
      %1979 = vmatprep.subr.bf16.mxu0 0
      %1980 = vmatpush1.bf16.msra.mxu0 0
      %1981 = vmatprep.subr.bf16.mxu0 0
      %1982 = vmatpush1.bf16.msra.mxu0 0
      %1983 = vmatprep.subr.bf16.mxu0 0
      %1984 = vmatpush1.bf16.msra.mxu0 0
      %1985 = vmatprep.subr.bf16.mxu0 0
      %1986 = vmatpush1.bf16.msra.mxu0 0
      %1987 = vmatprep.subr.bf16.mxu0 0
      %1988 = vmatpush1.bf16.msra.mxu0 0
      %1989 = vmatprep.subr.bf16.mxu0 0
      %1990 = vmatpush1.bf16.msra.mxu0 0
      %1991 = vmatprep.subr.bf16.mxu0 0
      %1992 = vmatpush1.bf16.msra.mxu0 0
      %1993 = vmatprep.subr.bf16.mxu0 0
      %1994 = vmatpush1.bf16.msra.mxu0 0
      %1995 = vmatprep.subr.bf16.mxu0 0
      %1996 = vmatpush1.bf16.msra.mxu0 0
      %1997 = vmatprep.subr.bf16.mxu0 0
      %1998 = vmatpush1.bf16.msra.mxu0 0
      %1999 = vmatprep.subr.bf16.mxu0 0
      %2000 = vmatpush1.bf16.msra.mxu0 0
      %2001 = vmatprep.mubr.bf16.mxu0 0
      %2002 = vmatmul.mubr.bf16.gmra.mrb[0].mxu0 %v1964
      %v2003 = vpop.f32.mrb[0].mxu0
      %v2004 = vadd.f32 0.0, %v2003
      %v2005 = vpop.f32.mrb[0].mxu0
      %v2006 = vpop.f32.mrb[0].mxu0
      %v2007 = vpop.f32.mrb[0].mxu0
      %2008 = vdwg.mxu0
      %v2009 = vadd.f32 %v1959, %v2004
      %v2010 = vld [vmem:[%s1910] sm:$0xf]
      %v2011 = vld [vmem:[%s1910 + $0x4] sm:$0x1]
      %v2012 = vld [vmem:[%s550] sm:$0xf]
      %v2015 = vunpack.c.l.b16 %v2010
      %v2016 = vunpack.c.l.b16 %v2011
      %v2017 = vpack.c.b16 %v2016, %v2015
      %v2019 = vshrl.u32 %v2017, 16
      %v2021 = vshll.u32 %v2017, 16
      %v2023 = vrot.slane %v2021, 1
      %v2024 = vor.u32 %v2019, %v2023
      %v2026 = vsel %vm291, %v2024, 0
      %v2029 = vsel %vm295, %v2012, 0
      %2031 = vmatprep.subr.bf16.mxu0 0
      %2032 = vmatpush1.bf16.msra.mxu0 %v2029
      %2033 = vmatprep.subr.bf16.mxu0 0
      %2034 = vmatpush1.bf16.msra.mxu0 0
      %2035 = vmatprep.subr.bf16.mxu0 0
      %2036 = vmatpush1.bf16.msra.mxu0 0
      %2037 = vmatprep.subr.bf16.mxu0 0
      %2038 = vmatpush1.bf16.msra.mxu0 0
      %2039 = vmatprep.subr.bf16.mxu0 0
      %2040 = vmatpush1.bf16.msra.mxu0 0
      %2041 = vmatprep.subr.bf16.mxu0 0
      %2042 = vmatpush1.bf16.msra.mxu0 0
      %2043 = vmatprep.subr.bf16.mxu0 0
      %2044 = vmatpush1.bf16.msra.mxu0 0
      %2045 = vmatprep.subr.bf16.mxu0 0
      %2046 = vmatpush1.bf16.msra.mxu0 0
      %2047 = vmatprep.subr.bf16.mxu0 0
      %2048 = vmatpush1.bf16.msra.mxu0 0
      %2049 = vmatprep.subr.bf16.mxu0 0
      %2050 = vmatpush1.bf16.msra.mxu0 0
      %2051 = vmatprep.subr.bf16.mxu0 0
      %2052 = vmatpush1.bf16.msra.mxu0 0
      %2053 = vmatprep.subr.bf16.mxu0 0
      %2054 = vmatpush1.bf16.msra.mxu0 0
      %2055 = vmatprep.subr.bf16.mxu0 0
      %2056 = vmatpush1.bf16.msra.mxu0 0
      %2057 = vmatprep.subr.bf16.mxu0 0
      %2058 = vmatpush1.bf16.msra.mxu0 0
      %2059 = vmatprep.subr.bf16.mxu0 0
      %2060 = vmatpush1.bf16.msra.mxu0 0
      %2061 = vmatprep.subr.bf16.mxu0 0
      %2062 = vmatpush1.bf16.msra.mxu0 0
      %2063 = vmatprep.mubr.bf16.mxu0 0
      %2064 = vmatmul.mubr.bf16.gmra.mrb[0].mxu0 %v2026
      %v2065 = vpop.f32.mrb[0].mxu0
      %v2066 = vadd.f32 0.0, %v2065
      %v2067 = vpop.f32.mrb[0].mxu0
      %v2068 = vpop.f32.mrb[0].mxu0
      %v2069 = vpop.f32.mrb[0].mxu0
      %2070 = vdwg.mxu0
      %v2071 = vadd.f32 %v2009, %v2066
      %s2072 = scalar_lea.vmem %s264, 32
      %v2073 = vld [vmem:[%s2072] sm:$0xf]
      %v2074 = vld [vmem:[%s613] sm:$0xf]
      %v2076 = vsel %vm291, %v2073, 0
      %v2079 = vsel %vm295, %v2074, 0
      %2081 = vmatprep.subr.bf16.mxu0 0
      %2082 = vmatpush1.bf16.msra.mxu0 %v2079
      %2083 = vmatprep.subr.bf16.mxu0 0
      %2084 = vmatpush1.bf16.msra.mxu0 0
      %2085 = vmatprep.subr.bf16.mxu0 0
      %2086 = vmatpush1.bf16.msra.mxu0 0
      %2087 = vmatprep.subr.bf16.mxu0 0
      %2088 = vmatpush1.bf16.msra.mxu0 0
      %2089 = vmatprep.subr.bf16.mxu0 0
      %2090 = vmatpush1.bf16.msra.mxu0 0
      %2091 = vmatprep.subr.bf16.mxu0 0
      %2092 = vmatpush1.bf16.msra.mxu0 0
      %2093 = vmatprep.subr.bf16.mxu0 0
      %2094 = vmatpush1.bf16.msra.mxu0 0
      %2095 = vmatprep.subr.bf16.mxu0 0
      %2096 = vmatpush1.bf16.msra.mxu0 0
      %2097 = vmatprep.subr.bf16.mxu0 0
      %2098 = vmatpush1.bf16.msra.mxu0 0
      %2099 = vmatprep.subr.bf16.mxu0 0
      %2100 = vmatpush1.bf16.msra.mxu0 0
      %2101 = vmatprep.subr.bf16.mxu0 0
      %2102 = vmatpush1.bf16.msra.mxu0 0
      %2103 = vmatprep.subr.bf16.mxu0 0
      %2104 = vmatpush1.bf16.msra.mxu0 0
      %2105 = vmatprep.subr.bf16.mxu0 0
      %2106 = vmatpush1.bf16.msra.mxu0 0
      %2107 = vmatprep.subr.bf16.mxu0 0
      %2108 = vmatpush1.bf16.msra.mxu0 0
      %2109 = vmatprep.subr.bf16.mxu0 0
      %2110 = vmatpush1.bf16.msra.mxu0 0
      %2111 = vmatprep.subr.bf16.mxu0 0
      %2112 = vmatpush1.bf16.msra.mxu0 0
      %2113 = vmatprep.mubr.bf16.mxu0 0
      %2114 = vmatmul.mubr.bf16.gmra.mrb[0].mxu0 %v2076
      %v2115 = vpop.f32.mrb[0].mxu0
      %v2116 = vadd.f32 0.0, %v2115
      %v2117 = vpop.f32.mrb[0].mxu0
      %v2118 = vpop.f32.mrb[0].mxu0
      %v2119 = vpop.f32.mrb[0].mxu0
      %2120 = vdwg.mxu0
      %v2121 = vadd.f32 %v2071, %v2116
      %s2122 = scalar_lea.vmem %s269, 32
      %v2123 = vld [vmem:[%s2122] sm:$0xf]
      %v2124 = vld [vmem:[%s664] sm:$0xf]
      %v2126 = vsel %vm291, %v2123, 0
      %v2129 = vsel %vm295, %v2124, 0
      %2131 = vmatprep.subr.bf16.mxu0 0
      %2132 = vmatpush1.bf16.msra.mxu0 %v2129
      %2133 = vmatprep.subr.bf16.mxu0 0
      %2134 = vmatpush1.bf16.msra.mxu0 0
      %2135 = vmatprep.subr.bf16.mxu0 0
      %2136 = vmatpush1.bf16.msra.mxu0 0
      %2137 = vmatprep.subr.bf16.mxu0 0
      %2138 = vmatpush1.bf16.msra.mxu0 0
      %2139 = vmatprep.subr.bf16.mxu0 0
      %2140 = vmatpush1.bf16.msra.mxu0 0
      %2141 = vmatprep.subr.bf16.mxu0 0
      %2142 = vmatpush1.bf16.msra.mxu0 0
      %2143 = vmatprep.subr.bf16.mxu0 0
      %2144 = vmatpush1.bf16.msra.mxu0 0
      %2145 = vmatprep.subr.bf16.mxu0 0
      %2146 = vmatpush1.bf16.msra.mxu0 0
      %2147 = vmatprep.subr.bf16.mxu0 0
      %2148 = vmatpush1.bf16.msra.mxu0 0
      %2149 = vmatprep.subr.bf16.mxu0 0
      %2150 = vmatpush1.bf16.msra.mxu0 0
      %2151 = vmatprep.subr.bf16.mxu0 0
      %2152 = vmatpush1.bf16.msra.mxu0 0
      %2153 = vmatprep.subr.bf16.mxu0 0
      %2154 = vmatpush1.bf16.msra.mxu0 0
      %2155 = vmatprep.subr.bf16.mxu0 0
      %2156 = vmatpush1.bf16.msra.mxu0 0
      %2157 = vmatprep.subr.bf16.mxu0 0
      %2158 = vmatpush1.bf16.msra.mxu0 0
      %2159 = vmatprep.subr.bf16.mxu0 0
      %2160 = vmatpush1.bf16.msra.mxu0 0
      %2161 = vmatprep.subr.bf16.mxu0 0
      %2162 = vmatpush1.bf16.msra.mxu0 0
      %2163 = vmatprep.mubr.bf16.mxu0 0
      %2164 = vmatmul.mubr.bf16.gmra.mrb[0].mxu0 %v2126
      %v2165 = vpop.f32.mrb[0].mxu0
      %v2166 = vadd.f32 0.0, %v2165
      %v2167 = vpop.f32.mrb[0].mxu0
      %v2168 = vpop.f32.mrb[0].mxu0
      %v2169 = vpop.f32.mrb[0].mxu0
      %2170 = vdwg.mxu0
      %v2171 = vadd.f32 %v2121, %v2166
      %v2172 = vld [vmem:[%s2072] sm:$0xf]
      %v2173 = vld [vmem:[%s2072 + $0x4] sm:$0x1]
      %v2174 = vld [vmem:[%s715] sm:$0xf]
      %v2177 = vunpack.c.l.b16 %v2172
      %v2178 = vunpack.c.l.b16 %v2173
      %v2179 = vpack.c.b16 %v2178, %v2177
      %v2181 = vshrl.u32 %v2179, 16
      %v2183 = vshll.u32 %v2179, 16
      %v2185 = vrot.slane %v2183, 1
      %v2186 = vor.u32 %v2181, %v2185
      %v2188 = vsel %vm291, %v2186, 0
      %v2191 = vsel %vm295, %v2174, 0
      %2193 = vmatprep.subr.bf16.mxu0 0
      %2194 = vmatpush1.bf16.msra.mxu0 %v2191
      %2195 = vmatprep.subr.bf16.mxu0 0
      %2196 = vmatpush1.bf16.msra.mxu0 0
      %2197 = vmatprep.subr.bf16.mxu0 0
      %2198 = vmatpush1.bf16.msra.mxu0 0
      %2199 = vmatprep.subr.bf16.mxu0 0
      %2200 = vmatpush1.bf16.msra.mxu0 0
      %2201 = vmatprep.subr.bf16.mxu0 0
      %2202 = vmatpush1.bf16.msra.mxu0 0
      %2203 = vmatprep.subr.bf16.mxu0 0
      %2204 = vmatpush1.bf16.msra.mxu0 0
      %2205 = vmatprep.subr.bf16.mxu0 0
      %2206 = vmatpush1.bf16.msra.mxu0 0
      %2207 = vmatprep.subr.bf16.mxu0 0
      %2208 = vmatpush1.bf16.msra.mxu0 0
      %2209 = vmatprep.subr.bf16.mxu0 0
      %2210 = vmatpush1.bf16.msra.mxu0 0
      %2211 = vmatprep.subr.bf16.mxu0 0
      %2212 = vmatpush1.bf16.msra.mxu0 0
      %2213 = vmatprep.subr.bf16.mxu0 0
      %2214 = vmatpush1.bf16.msra.mxu0 0
      %2215 = vmatprep.subr.bf16.mxu0 0
      %2216 = vmatpush1.bf16.msra.mxu0 0
      %2217 = vmatprep.subr.bf16.mxu0 0
      %2218 = vmatpush1.bf16.msra.mxu0 0
      %2219 = vmatprep.subr.bf16.mxu0 0
      %2220 = vmatpush1.bf16.msra.mxu0 0
      %2221 = vmatprep.subr.bf16.mxu0 0
      %2222 = vmatpush1.bf16.msra.mxu0 0
      %2223 = vmatprep.subr.bf16.mxu0 0
      %2224 = vmatpush1.bf16.msra.mxu0 0
      %2225 = vmatprep.mubr.bf16.mxu0 0
      %2226 = vmatmul.mubr.bf16.gmra.mrb[0].mxu0 %v2188
      %v2227 = vpop.f32.mrb[0].mxu0
      %v2228 = vadd.f32 0.0, %v2227
      %v2229 = vpop.f32.mrb[0].mxu0
      %v2230 = vpop.f32.mrb[0].mxu0
      %v2231 = vpop.f32.mrb[0].mxu0
      %2232 = vdwg.mxu0
      %v2233 = vadd.f32 %v2171, %v2228
      %v2234 = vmax.f32 %v2233, 0.0
      %v2235 = vpack.c.bf16 %v2234, %v2234
      %s2236 = scalar_lea.vmem %s284, 12
      %2237 = vst.msk [vmem:[%s2236] sm:$0xf] %vm778, %v2235
      %v2238 = vld [vmem:[%s2072] sm:$0xf]
      %v2239 = vld [vmem:[%s4] sm:$0xf]
      %v2240 = vld [vmem:[%s2122] sm:$0xf]
      %v2241 = vld [vmem:[%s289] sm:$0xf]
      %v2243 = vsel %vm291, %v2240, 0
      %v2246 = vsel %vm295, %v2241, 0
      %2248 = vmatprep.subr.bf16.mxu0 0
      %2249 = vmatpush1.bf16.msra.mxu0 %v2246
      %2250 = vmatprep.subr.bf16.mxu0 0
      %2251 = vmatpush1.bf16.msra.mxu0 0
      %2252 = vmatprep.subr.bf16.mxu0 0
      %2253 = vmatpush1.bf16.msra.mxu0 0
      %2254 = vmatprep.subr.bf16.mxu0 0
      %2255 = vmatpush1.bf16.msra.mxu0 0
      %2256 = vmatprep.subr.bf16.mxu0 0
      %2257 = vmatpush1.bf16.msra.mxu0 0
      %2258 = vmatprep.subr.bf16.mxu0 0
      %2259 = vmatpush1.bf16.msra.mxu0 0
      %2260 = vmatprep.subr.bf16.mxu0 0
      %2261 = vmatpush1.bf16.msra.mxu0 0
      %2262 = vmatprep.subr.bf16.mxu0 0
      %2263 = vmatpush1.bf16.msra.mxu0 0
      %2264 = vmatprep.subr.bf16.mxu0 0
      %2265 = vmatpush1.bf16.msra.mxu0 0
      %2266 = vmatprep.subr.bf16.mxu0 0
      %2267 = vmatpush1.bf16.msra.mxu0 0
      %2268 = vmatprep.subr.bf16.mxu0 0
      %2269 = vmatpush1.bf16.msra.mxu0 0
      %2270 = vmatprep.subr.bf16.mxu0 0
      %2271 = vmatpush1.bf16.msra.mxu0 0
      %2272 = vmatprep.subr.bf16.mxu0 0
      %2273 = vmatpush1.bf16.msra.mxu0 0
      %2274 = vmatprep.subr.bf16.mxu0 0
      %2275 = vmatpush1.bf16.msra.mxu0 0
      %2276 = vmatprep.subr.bf16.mxu0 0
      %2277 = vmatpush1.bf16.msra.mxu0 0
      %2278 = vmatprep.subr.bf16.mxu0 0
      %2279 = vmatpush1.bf16.msra.mxu0 0
      %2280 = vmatprep.mubr.bf16.mxu0 0
      %2281 = vmatmul.mubr.bf16.gmra.mrb[0].mxu0 %v2243
      %v2282 = vpop.f32.mrb[0].mxu0
      %v2283 = vadd.f32 0.0, %v2282
      %v2284 = vpop.f32.mrb[0].mxu0
      %v2285 = vpop.f32.mrb[0].mxu0
      %v2286 = vpop.f32.mrb[0].mxu0
      %2287 = vdwg.mxu0
      %v2289 = vsel %vm291, %v2238, 0
      %v2292 = vsel %vm295, %v2239, 0
      %2294 = vmatprep.subr.bf16.mxu0 0
      %2295 = vmatpush1.bf16.msra.mxu0 %v2292
      %2296 = vmatprep.subr.bf16.mxu0 0
      %2297 = vmatpush1.bf16.msra.mxu0 0
      %2298 = vmatprep.subr.bf16.mxu0 0
      %2299 = vmatpush1.bf16.msra.mxu0 0
      %2300 = vmatprep.subr.bf16.mxu0 0
      %2301 = vmatpush1.bf16.msra.mxu0 0
      %2302 = vmatprep.subr.bf16.mxu0 0
      %2303 = vmatpush1.bf16.msra.mxu0 0
      %2304 = vmatprep.subr.bf16.mxu0 0
      %2305 = vmatpush1.bf16.msra.mxu0 0
      %2306 = vmatprep.subr.bf16.mxu0 0
      %2307 = vmatpush1.bf16.msra.mxu0 0
      %2308 = vmatprep.subr.bf16.mxu0 0
      %2309 = vmatpush1.bf16.msra.mxu0 0
      %2310 = vmatprep.subr.bf16.mxu0 0
      %2311 = vmatpush1.bf16.msra.mxu0 0
      %2312 = vmatprep.subr.bf16.mxu0 0
      %2313 = vmatpush1.bf16.msra.mxu0 0
      %2314 = vmatprep.subr.bf16.mxu0 0
      %2315 = vmatpush1.bf16.msra.mxu0 0
      %2316 = vmatprep.subr.bf16.mxu0 0
      %2317 = vmatpush1.bf16.msra.mxu0 0
      %2318 = vmatprep.subr.bf16.mxu0 0
      %2319 = vmatpush1.bf16.msra.mxu0 0
      %2320 = vmatprep.subr.bf16.mxu0 0
      %2321 = vmatpush1.bf16.msra.mxu0 0
      %2322 = vmatprep.subr.bf16.mxu0 0
      %2323 = vmatpush1.bf16.msra.mxu0 0
      %2324 = vmatprep.subr.bf16.mxu0 0
      %2325 = vmatpush1.bf16.msra.mxu0 0
      %2326 = vmatprep.mubr.bf16.mxu0 0
      %2327 = vmatmul.mubr.bf16.gmra.mrb[0].mxu0 %v2289
      %v2328 = vpop.f32.mrb[0].mxu0
      %v2329 = vadd.f32 %v2283, %v2328
      %v2330 = vpop.f32.mrb[0].mxu0
      %v2331 = vpop.f32.mrb[0].mxu0
      %v2332 = vpop.f32.mrb[0].mxu0
      %2333 = vdwg.mxu0
      %v2334 = vld [vmem:[%s2072] sm:$0xf]
      %v2335 = vld [vmem:[%s2072 + $0x4] sm:$0x1]
      %v2336 = vld [vmem:[%s387] sm:$0xf]
      %v2339 = vunpack.c.l.b16 %v2334
      %v2340 = vunpack.c.l.b16 %v2335
      %v2341 = vpack.c.b16 %v2340, %v2339
      %v2343 = vshrl.u32 %v2341, 16
      %v2345 = vshll.u32 %v2341, 16
      %v2347 = vrot.slane %v2345, 1
      %v2348 = vor.u32 %v2343, %v2347
      %v2350 = vsel %vm291, %v2348, 0
      %v2353 = vsel %vm295, %v2336, 0
      %2355 = vmatprep.subr.bf16.mxu0 0
      %2356 = vmatpush1.bf16.msra.mxu0 %v2353
      %2357 = vmatprep.subr.bf16.mxu0 0
      %2358 = vmatpush1.bf16.msra.mxu0 0
      %2359 = vmatprep.subr.bf16.mxu0 0
      %2360 = vmatpush1.bf16.msra.mxu0 0
      %2361 = vmatprep.subr.bf16.mxu0 0
      %2362 = vmatpush1.bf16.msra.mxu0 0
      %2363 = vmatprep.subr.bf16.mxu0 0
      %2364 = vmatpush1.bf16.msra.mxu0 0
      %2365 = vmatprep.subr.bf16.mxu0 0
      %2366 = vmatpush1.bf16.msra.mxu0 0
      %2367 = vmatprep.subr.bf16.mxu0 0
      %2368 = vmatpush1.bf16.msra.mxu0 0
      %2369 = vmatprep.subr.bf16.mxu0 0
      %2370 = vmatpush1.bf16.msra.mxu0 0
      %2371 = vmatprep.subr.bf16.mxu0 0
      %2372 = vmatpush1.bf16.msra.mxu0 0
      %2373 = vmatprep.subr.bf16.mxu0 0
      %2374 = vmatpush1.bf16.msra.mxu0 0
      %2375 = vmatprep.subr.bf16.mxu0 0
      %2376 = vmatpush1.bf16.msra.mxu0 0
      %2377 = vmatprep.subr.bf16.mxu0 0
      %2378 = vmatpush1.bf16.msra.mxu0 0
      %2379 = vmatprep.subr.bf16.mxu0 0
      %2380 = vmatpush1.bf16.msra.mxu0 0
      %2381 = vmatprep.subr.bf16.mxu0 0
      %2382 = vmatpush1.bf16.msra.mxu0 0
      %2383 = vmatprep.subr.bf16.mxu0 0
      %2384 = vmatpush1.bf16.msra.mxu0 0
      %2385 = vmatprep.subr.bf16.mxu0 0
      %2386 = vmatpush1.bf16.msra.mxu0 0
      %2387 = vmatprep.mubr.bf16.mxu0 0
      %2388 = vmatmul.mubr.bf16.gmra.mrb[0].mxu0 %v2350
      %v2389 = vpop.f32.mrb[0].mxu0
      %v2390 = vadd.f32 0.0, %v2389
      %v2391 = vpop.f32.mrb[0].mxu0
      %v2392 = vpop.f32.mrb[0].mxu0
      %v2393 = vpop.f32.mrb[0].mxu0
      %2394 = vdwg.mxu0
      %v2395 = vadd.f32 %v2329, %v2390
      %s2396 = scalar_lea.vmem %s274, 32
      %v2397 = vld [vmem:[%s2396] sm:$0xf]
      %v2398 = vld [vmem:[%s449] sm:$0xf]
      %v2400 = vsel %vm291, %v2397, 0
      %v2403 = vsel %vm295, %v2398, 0
      %2405 = vmatprep.subr.bf16.mxu0 0
      %2406 = vmatpush1.bf16.msra.mxu0 %v2403
      %2407 = vmatprep.subr.bf16.mxu0 0
      %2408 = vmatpush1.bf16.msra.mxu0 0
      %2409 = vmatprep.subr.bf16.mxu0 0
      %2410 = vmatpush1.bf16.msra.mxu0 0
      %2411 = vmatprep.subr.bf16.mxu0 0
      %2412 = vmatpush1.bf16.msra.mxu0 0
      %2413 = vmatprep.subr.bf16.mxu0 0
      %2414 = vmatpush1.bf16.msra.mxu0 0
      %2415 = vmatprep.subr.bf16.mxu0 0
      %2416 = vmatpush1.bf16.msra.mxu0 0
      %2417 = vmatprep.subr.bf16.mxu0 0
      %2418 = vmatpush1.bf16.msra.mxu0 0
      %2419 = vmatprep.subr.bf16.mxu0 0
      %2420 = vmatpush1.bf16.msra.mxu0 0
      %2421 = vmatprep.subr.bf16.mxu0 0
      %2422 = vmatpush1.bf16.msra.mxu0 0
      %2423 = vmatprep.subr.bf16.mxu0 0
      %2424 = vmatpush1.bf16.msra.mxu0 0
      %2425 = vmatprep.subr.bf16.mxu0 0
      %2426 = vmatpush1.bf16.msra.mxu0 0
      %2427 = vmatprep.subr.bf16.mxu0 0
      %2428 = vmatpush1.bf16.msra.mxu0 0
      %2429 = vmatprep.subr.bf16.mxu0 0
      %2430 = vmatpush1.bf16.msra.mxu0 0
      %2431 = vmatprep.subr.bf16.mxu0 0
      %2432 = vmatpush1.bf16.msra.mxu0 0
      %2433 = vmatprep.subr.bf16.mxu0 0
      %2434 = vmatpush1.bf16.msra.mxu0 0
      %2435 = vmatprep.subr.bf16.mxu0 0
      %2436 = vmatpush1.bf16.msra.mxu0 0
      %2437 = vmatprep.mubr.bf16.mxu0 0
      %2438 = vmatmul.mubr.bf16.gmra.mrb[0].mxu0 %v2400
      %v2439 = vpop.f32.mrb[0].mxu0
      %v2440 = vadd.f32 0.0, %v2439
      %v2441 = vpop.f32.mrb[0].mxu0
      %v2442 = vpop.f32.mrb[0].mxu0
      %v2443 = vpop.f32.mrb[0].mxu0
      %2444 = vdwg.mxu0
      %v2445 = vadd.f32 %v2395, %v2440
      %s2446 = scalar_lea.vmem %s279, 32
      %v2447 = vld [vmem:[%s2446] sm:$0xf]
      %v2448 = vld [vmem:[%s499] sm:$0xf]
      %v2450 = vsel %vm291, %v2447, 0
      %v2453 = vsel %vm295, %v2448, 0
      %2455 = vmatprep.subr.bf16.mxu0 0
      %2456 = vmatpush1.bf16.msra.mxu0 %v2453
      %2457 = vmatprep.subr.bf16.mxu0 0
      %2458 = vmatpush1.bf16.msra.mxu0 0
      %2459 = vmatprep.subr.bf16.mxu0 0
      %2460 = vmatpush1.bf16.msra.mxu0 0
      %2461 = vmatprep.subr.bf16.mxu0 0
      %2462 = vmatpush1.bf16.msra.mxu0 0
      %2463 = vmatprep.subr.bf16.mxu0 0
      %2464 = vmatpush1.bf16.msra.mxu0 0
      %2465 = vmatprep.subr.bf16.mxu0 0
      %2466 = vmatpush1.bf16.msra.mxu0 0
      %2467 = vmatprep.subr.bf16.mxu0 0
      %2468 = vmatpush1.bf16.msra.mxu0 0
      %2469 = vmatprep.subr.bf16.mxu0 0
      %2470 = vmatpush1.bf16.msra.mxu0 0
      %2471 = vmatprep.subr.bf16.mxu0 0
      %2472 = vmatpush1.bf16.msra.mxu0 0
      %2473 = vmatprep.subr.bf16.mxu0 0
      %2474 = vmatpush1.bf16.msra.mxu0 0
      %2475 = vmatprep.subr.bf16.mxu0 0
      %2476 = vmatpush1.bf16.msra.mxu0 0
      %2477 = vmatprep.subr.bf16.mxu0 0
      %2478 = vmatpush1.bf16.msra.mxu0 0
      %2479 = vmatprep.subr.bf16.mxu0 0
      %2480 = vmatpush1.bf16.msra.mxu0 0
      %2481 = vmatprep.subr.bf16.mxu0 0
      %2482 = vmatpush1.bf16.msra.mxu0 0
      %2483 = vmatprep.subr.bf16.mxu0 0
      %2484 = vmatpush1.bf16.msra.mxu0 0
      %2485 = vmatprep.subr.bf16.mxu0 0
      %2486 = vmatpush1.bf16.msra.mxu0 0
      %2487 = vmatprep.mubr.bf16.mxu0 0
      %2488 = vmatmul.mubr.bf16.gmra.mrb[0].mxu0 %v2450
      %v2489 = vpop.f32.mrb[0].mxu0
      %v2490 = vadd.f32 0.0, %v2489
      %v2491 = vpop.f32.mrb[0].mxu0
      %v2492 = vpop.f32.mrb[0].mxu0
      %v2493 = vpop.f32.mrb[0].mxu0
      %2494 = vdwg.mxu0
      %v2495 = vadd.f32 %v2445, %v2490
      %v2496 = vld [vmem:[%s2396] sm:$0xf]
      %v2497 = vld [vmem:[%s2396 + $0x4] sm:$0x1]
      %v2498 = vld [vmem:[%s550] sm:$0xf]
      %v2501 = vunpack.c.l.b16 %v2496
      %v2502 = vunpack.c.l.b16 %v2497
      %v2503 = vpack.c.b16 %v2502, %v2501
      %v2505 = vshrl.u32 %v2503, 16
      %v2507 = vshll.u32 %v2503, 16
      %v2509 = vrot.slane %v2507, 1
      %v2510 = vor.u32 %v2505, %v2509
      %v2512 = vsel %vm291, %v2510, 0
      %v2515 = vsel %vm295, %v2498, 0
      %2517 = vmatprep.subr.bf16.mxu0 0
      %2518 = vmatpush1.bf16.msra.mxu0 %v2515
      %2519 = vmatprep.subr.bf16.mxu0 0
      %2520 = vmatpush1.bf16.msra.mxu0 0
      %2521 = vmatprep.subr.bf16.mxu0 0
      %2522 = vmatpush1.bf16.msra.mxu0 0
      %2523 = vmatprep.subr.bf16.mxu0 0
      %2524 = vmatpush1.bf16.msra.mxu0 0
      %2525 = vmatprep.subr.bf16.mxu0 0
      %2526 = vmatpush1.bf16.msra.mxu0 0
      %2527 = vmatprep.subr.bf16.mxu0 0
      %2528 = vmatpush1.bf16.msra.mxu0 0
      %2529 = vmatprep.subr.bf16.mxu0 0
      %2530 = vmatpush1.bf16.msra.mxu0 0
      %2531 = vmatprep.subr.bf16.mxu0 0
      %2532 = vmatpush1.bf16.msra.mxu0 0
      %2533 = vmatprep.subr.bf16.mxu0 0
      %2534 = vmatpush1.bf16.msra.mxu0 0
      %2535 = vmatprep.subr.bf16.mxu0 0
      %2536 = vmatpush1.bf16.msra.mxu0 0
      %2537 = vmatprep.subr.bf16.mxu0 0
      %2538 = vmatpush1.bf16.msra.mxu0 0
      %2539 = vmatprep.subr.bf16.mxu0 0
      %2540 = vmatpush1.bf16.msra.mxu0 0
      %2541 = vmatprep.subr.bf16.mxu0 0
      %2542 = vmatpush1.bf16.msra.mxu0 0
      %2543 = vmatprep.subr.bf16.mxu0 0
      %2544 = vmatpush1.bf16.msra.mxu0 0
      %2545 = vmatprep.subr.bf16.mxu0 0
      %2546 = vmatpush1.bf16.msra.mxu0 0
      %2547 = vmatprep.subr.bf16.mxu0 0
      %2548 = vmatpush1.bf16.msra.mxu0 0
      %2549 = vmatprep.mubr.bf16.mxu0 0
      %2550 = vmatmul.mubr.bf16.gmra.mrb[0].mxu0 %v2512
      %v2551 = vpop.f32.mrb[0].mxu0
      %v2552 = vadd.f32 0.0, %v2551
      %v2553 = vpop.f32.mrb[0].mxu0
      %v2554 = vpop.f32.mrb[0].mxu0
      %v2555 = vpop.f32.mrb[0].mxu0
      %2556 = vdwg.mxu0
      %v2557 = vadd.f32 %v2495, %v2552
      %s2558 = scalar_lea.vmem %s264, 40
      %v2559 = vld [vmem:[%s2558] sm:$0xf]
      %v2560 = vld [vmem:[%s613] sm:$0xf]
      %v2562 = vsel %vm291, %v2559, 0
      %v2565 = vsel %vm295, %v2560, 0
      %2567 = vmatprep.subr.bf16.mxu0 0
      %2568 = vmatpush1.bf16.msra.mxu0 %v2565
      %2569 = vmatprep.subr.bf16.mxu0 0
      %2570 = vmatpush1.bf16.msra.mxu0 0
      %2571 = vmatprep.subr.bf16.mxu0 0
      %2572 = vmatpush1.bf16.msra.mxu0 0
      %2573 = vmatprep.subr.bf16.mxu0 0
      %2574 = vmatpush1.bf16.msra.mxu0 0
      %2575 = vmatprep.subr.bf16.mxu0 0
      %2576 = vmatpush1.bf16.msra.mxu0 0
      %2577 = vmatprep.subr.bf16.mxu0 0
      %2578 = vmatpush1.bf16.msra.mxu0 0
      %2579 = vmatprep.subr.bf16.mxu0 0
      %2580 = vmatpush1.bf16.msra.mxu0 0
      %2581 = vmatprep.subr.bf16.mxu0 0
      %2582 = vmatpush1.bf16.msra.mxu0 0
      %2583 = vmatprep.subr.bf16.mxu0 0
      %2584 = vmatpush1.bf16.msra.mxu0 0
      %2585 = vmatprep.subr.bf16.mxu0 0
      %2586 = vmatpush1.bf16.msra.mxu0 0
      %2587 = vmatprep.subr.bf16.mxu0 0
      %2588 = vmatpush1.bf16.msra.mxu0 0
      %2589 = vmatprep.subr.bf16.mxu0 0
      %2590 = vmatpush1.bf16.msra.mxu0 0
      %2591 = vmatprep.subr.bf16.mxu0 0
      %2592 = vmatpush1.bf16.msra.mxu0 0
      %2593 = vmatprep.subr.bf16.mxu0 0
      %2594 = vmatpush1.bf16.msra.mxu0 0
      %2595 = vmatprep.subr.bf16.mxu0 0
      %2596 = vmatpush1.bf16.msra.mxu0 0
      %2597 = vmatprep.subr.bf16.mxu0 0
      %2598 = vmatpush1.bf16.msra.mxu0 0
      %2599 = vmatprep.mubr.bf16.mxu0 0
      %2600 = vmatmul.mubr.bf16.gmra.mrb[0].mxu0 %v2562
      %v2601 = vpop.f32.mrb[0].mxu0
      %v2602 = vadd.f32 0.0, %v2601
      %v2603 = vpop.f32.mrb[0].mxu0
      %v2604 = vpop.f32.mrb[0].mxu0
      %v2605 = vpop.f32.mrb[0].mxu0
      %2606 = vdwg.mxu0
      %v2607 = vadd.f32 %v2557, %v2602
      %s2608 = scalar_lea.vmem %s269, 40
      %v2609 = vld [vmem:[%s2608] sm:$0xf]
      %v2610 = vld [vmem:[%s664] sm:$0xf]
      %v2612 = vsel %vm291, %v2609, 0
      %v2615 = vsel %vm295, %v2610, 0
      %2617 = vmatprep.subr.bf16.mxu0 0
      %2618 = vmatpush1.bf16.msra.mxu0 %v2615
      %2619 = vmatprep.subr.bf16.mxu0 0
      %2620 = vmatpush1.bf16.msra.mxu0 0
      %2621 = vmatprep.subr.bf16.mxu0 0
      %2622 = vmatpush1.bf16.msra.mxu0 0
      %2623 = vmatprep.subr.bf16.mxu0 0
      %2624 = vmatpush1.bf16.msra.mxu0 0
      %2625 = vmatprep.subr.bf16.mxu0 0
      %2626 = vmatpush1.bf16.msra.mxu0 0
      %2627 = vmatprep.subr.bf16.mxu0 0
      %2628 = vmatpush1.bf16.msra.mxu0 0
      %2629 = vmatprep.subr.bf16.mxu0 0
      %2630 = vmatpush1.bf16.msra.mxu0 0
      %2631 = vmatprep.subr.bf16.mxu0 0
      %2632 = vmatpush1.bf16.msra.mxu0 0
      %2633 = vmatprep.subr.bf16.mxu0 0
      %2634 = vmatpush1.bf16.msra.mxu0 0
      %2635 = vmatprep.subr.bf16.mxu0 0
      %2636 = vmatpush1.bf16.msra.mxu0 0
      %2637 = vmatprep.subr.bf16.mxu0 0
      %2638 = vmatpush1.bf16.msra.mxu0 0
      %2639 = vmatprep.subr.bf16.mxu0 0
      %2640 = vmatpush1.bf16.msra.mxu0 0
      %2641 = vmatprep.subr.bf16.mxu0 0
      %2642 = vmatpush1.bf16.msra.mxu0 0
      %2643 = vmatprep.subr.bf16.mxu0 0
      %2644 = vmatpush1.bf16.msra.mxu0 0
      %2645 = vmatprep.subr.bf16.mxu0 0
      %2646 = vmatpush1.bf16.msra.mxu0 0
      %2647 = vmatprep.subr.bf16.mxu0 0
      %2648 = vmatpush1.bf16.msra.mxu0 0
      %2649 = vmatprep.mubr.bf16.mxu0 0
      %2650 = vmatmul.mubr.bf16.gmra.mrb[0].mxu0 %v2612
      %v2651 = vpop.f32.mrb[0].mxu0
      %v2652 = vadd.f32 0.0, %v2651
      %v2653 = vpop.f32.mrb[0].mxu0
      %v2654 = vpop.f32.mrb[0].mxu0
      %v2655 = vpop.f32.mrb[0].mxu0
      %2656 = vdwg.mxu0
      %v2657 = vadd.f32 %v2607, %v2652
      %v2658 = vld [vmem:[%s2558] sm:$0xf]
      %v2659 = vld [vmem:[%s2558 + $0x4] sm:$0x1]
      %v2660 = vld [vmem:[%s715] sm:$0xf]
      %v2663 = vunpack.c.l.b16 %v2658
      %v2664 = vunpack.c.l.b16 %v2659
      %v2665 = vpack.c.b16 %v2664, %v2663
      %v2667 = vshrl.u32 %v2665, 16
      %v2669 = vshll.u32 %v2665, 16
      %v2671 = vrot.slane %v2669, 1
      %v2672 = vor.u32 %v2667, %v2671
      %v2674 = vsel %vm291, %v2672, 0
      %v2677 = vsel %vm295, %v2660, 0
      %2679 = vmatprep.subr.bf16.mxu0 0
      %2680 = vmatpush1.bf16.msra.mxu0 %v2677
      %2681 = vmatprep.subr.bf16.mxu0 0
      %2682 = vmatpush1.bf16.msra.mxu0 0
      %2683 = vmatprep.subr.bf16.mxu0 0
      %2684 = vmatpush1.bf16.msra.mxu0 0
      %2685 = vmatprep.subr.bf16.mxu0 0
      %2686 = vmatpush1.bf16.msra.mxu0 0
      %2687 = vmatprep.subr.bf16.mxu0 0
      %2688 = vmatpush1.bf16.msra.mxu0 0
      %2689 = vmatprep.subr.bf16.mxu0 0
      %2690 = vmatpush1.bf16.msra.mxu0 0
      %2691 = vmatprep.subr.bf16.mxu0 0
      %2692 = vmatpush1.bf16.msra.mxu0 0
      %2693 = vmatprep.subr.bf16.mxu0 0
      %2694 = vmatpush1.bf16.msra.mxu0 0
      %2695 = vmatprep.subr.bf16.mxu0 0
      %2696 = vmatpush1.bf16.msra.mxu0 0
      %2697 = vmatprep.subr.bf16.mxu0 0
      %2698 = vmatpush1.bf16.msra.mxu0 0
      %2699 = vmatprep.subr.bf16.mxu0 0
      %2700 = vmatpush1.bf16.msra.mxu0 0
      %2701 = vmatprep.subr.bf16.mxu0 0
      %2702 = vmatpush1.bf16.msra.mxu0 0
      %2703 = vmatprep.subr.bf16.mxu0 0
      %2704 = vmatpush1.bf16.msra.mxu0 0
      %2705 = vmatprep.subr.bf16.mxu0 0
      %2706 = vmatpush1.bf16.msra.mxu0 0
      %2707 = vmatprep.subr.bf16.mxu0 0
      %2708 = vmatpush1.bf16.msra.mxu0 0
      %2709 = vmatprep.subr.bf16.mxu0 0
      %2710 = vmatpush1.bf16.msra.mxu0 0
      %2711 = vmatprep.mubr.bf16.mxu0 0
      %2712 = vmatmul.mubr.bf16.gmra.mrb[0].mxu0 %v2674
      %v2713 = vpop.f32.mrb[0].mxu0
      %v2714 = vadd.f32 0.0, %v2713
      %v2715 = vpop.f32.mrb[0].mxu0
      %v2716 = vpop.f32.mrb[0].mxu0
      %v2717 = vpop.f32.mrb[0].mxu0
      %2718 = vdwg.mxu0
      %v2719 = vadd.f32 %v2657, %v2714
      %v2720 = vmax.f32 %v2719, 0.0
      %v2721 = vpack.c.bf16 %v2720, %v2720
      %s2722 = scalar_lea.vmem %s284, 16
      %2723 = vst.msk [vmem:[%s2722] sm:$0xf] %vm778, %v2721
      %v2724 = vld [vmem:[%s2558] sm:$0xf]
      %v2725 = vld [vmem:[%s4] sm:$0xf]
      %v2726 = vld [vmem:[%s2608] sm:$0xf]
      %v2727 = vld [vmem:[%s289] sm:$0xf]
      %v2729 = vsel %vm291, %v2726, 0
      %v2732 = vsel %vm295, %v2727, 0
      %2734 = vmatprep.subr.bf16.mxu0 0
      %2735 = vmatpush1.bf16.msra.mxu0 %v2732
      %2736 = vmatprep.subr.bf16.mxu0 0
      %2737 = vmatpush1.bf16.msra.mxu0 0
      %2738 = vmatprep.subr.bf16.mxu0 0
      %2739 = vmatpush1.bf16.msra.mxu0 0
      %2740 = vmatprep.subr.bf16.mxu0 0
      %2741 = vmatpush1.bf16.msra.mxu0 0
      %2742 = vmatprep.subr.bf16.mxu0 0
      %2743 = vmatpush1.bf16.msra.mxu0 0
      %2744 = vmatprep.subr.bf16.mxu0 0
      %2745 = vmatpush1.bf16.msra.mxu0 0
      %2746 = vmatprep.subr.bf16.mxu0 0
      %2747 = vmatpush1.bf16.msra.mxu0 0
      %2748 = vmatprep.subr.bf16.mxu0 0
      %2749 = vmatpush1.bf16.msra.mxu0 0
      %2750 = vmatprep.subr.bf16.mxu0 0
      %2751 = vmatpush1.bf16.msra.mxu0 0
      %2752 = vmatprep.subr.bf16.mxu0 0
      %2753 = vmatpush1.bf16.msra.mxu0 0
      %2754 = vmatprep.subr.bf16.mxu0 0
      %2755 = vmatpush1.bf16.msra.mxu0 0
      %2756 = vmatprep.subr.bf16.mxu0 0
      %2757 = vmatpush1.bf16.msra.mxu0 0
      %2758 = vmatprep.subr.bf16.mxu0 0
      %2759 = vmatpush1.bf16.msra.mxu0 0
      %2760 = vmatprep.subr.bf16.mxu0 0
      %2761 = vmatpush1.bf16.msra.mxu0 0
      %2762 = vmatprep.subr.bf16.mxu0 0
      %2763 = vmatpush1.bf16.msra.mxu0 0
      %2764 = vmatprep.subr.bf16.mxu0 0
      %2765 = vmatpush1.bf16.msra.mxu0 0
      %2766 = vmatprep.mubr.bf16.mxu0 0
      %2767 = vmatmul.mubr.bf16.gmra.mrb[0].mxu0 %v2729
      %v2768 = vpop.f32.mrb[0].mxu0
      %v2769 = vadd.f32 0.0, %v2768
      %v2770 = vpop.f32.mrb[0].mxu0
      %v2771 = vpop.f32.mrb[0].mxu0
      %v2772 = vpop.f32.mrb[0].mxu0
      %2773 = vdwg.mxu0
      %v2775 = vsel %vm291, %v2724, 0
      %v2778 = vsel %vm295, %v2725, 0
      %2780 = vmatprep.subr.bf16.mxu0 0
      %2781 = vmatpush1.bf16.msra.mxu0 %v2778
      %2782 = vmatprep.subr.bf16.mxu0 0
      %2783 = vmatpush1.bf16.msra.mxu0 0
      %2784 = vmatprep.subr.bf16.mxu0 0
      %2785 = vmatpush1.bf16.msra.mxu0 0
      %2786 = vmatprep.subr.bf16.mxu0 0
      %2787 = vmatpush1.bf16.msra.mxu0 0
      %2788 = vmatprep.subr.bf16.mxu0 0
      %2789 = vmatpush1.bf16.msra.mxu0 0
      %2790 = vmatprep.subr.bf16.mxu0 0
      %2791 = vmatpush1.bf16.msra.mxu0 0
      %2792 = vmatprep.subr.bf16.mxu0 0
      %2793 = vmatpush1.bf16.msra.mxu0 0
      %2794 = vmatprep.subr.bf16.mxu0 0
      %2795 = vmatpush1.bf16.msra.mxu0 0
      %2796 = vmatprep.subr.bf16.mxu0 0
      %2797 = vmatpush1.bf16.msra.mxu0 0
      %2798 = vmatprep.subr.bf16.mxu0 0
      %2799 = vmatpush1.bf16.msra.mxu0 0
      %2800 = vmatprep.subr.bf16.mxu0 0
      %2801 = vmatpush1.bf16.msra.mxu0 0
      %2802 = vmatprep.subr.bf16.mxu0 0
      %2803 = vmatpush1.bf16.msra.mxu0 0
      %2804 = vmatprep.subr.bf16.mxu0 0
      %2805 = vmatpush1.bf16.msra.mxu0 0
      %2806 = vmatprep.subr.bf16.mxu0 0
      %2807 = vmatpush1.bf16.msra.mxu0 0
      %2808 = vmatprep.subr.bf16.mxu0 0
      %2809 = vmatpush1.bf16.msra.mxu0 0
      %2810 = vmatprep.subr.bf16.mxu0 0
      %2811 = vmatpush1.bf16.msra.mxu0 0
      %2812 = vmatprep.mubr.bf16.mxu0 0
      %2813 = vmatmul.mubr.bf16.gmra.mrb[0].mxu0 %v2775
      %v2814 = vpop.f32.mrb[0].mxu0
      %v2815 = vadd.f32 %v2769, %v2814
      %v2816 = vpop.f32.mrb[0].mxu0
      %v2817 = vpop.f32.mrb[0].mxu0
      %v2818 = vpop.f32.mrb[0].mxu0
      %2819 = vdwg.mxu0
      %v2820 = vld [vmem:[%s2558] sm:$0xf]
      %v2821 = vld [vmem:[%s2558 + $0x4] sm:$0x1]
      %v2822 = vld [vmem:[%s387] sm:$0xf]
      %v2825 = vunpack.c.l.b16 %v2820
      %v2826 = vunpack.c.l.b16 %v2821
      %v2827 = vpack.c.b16 %v2826, %v2825
      %v2829 = vshrl.u32 %v2827, 16
      %v2831 = vshll.u32 %v2827, 16
      %v2833 = vrot.slane %v2831, 1
      %v2834 = vor.u32 %v2829, %v2833
      %v2836 = vsel %vm291, %v2834, 0
      %v2839 = vsel %vm295, %v2822, 0
      %2841 = vmatprep.subr.bf16.mxu0 0
      %2842 = vmatpush1.bf16.msra.mxu0 %v2839
      %2843 = vmatprep.subr.bf16.mxu0 0
      %2844 = vmatpush1.bf16.msra.mxu0 0
      %2845 = vmatprep.subr.bf16.mxu0 0
      %2846 = vmatpush1.bf16.msra.mxu0 0
      %2847 = vmatprep.subr.bf16.mxu0 0
      %2848 = vmatpush1.bf16.msra.mxu0 0
      %2849 = vmatprep.subr.bf16.mxu0 0
      %2850 = vmatpush1.bf16.msra.mxu0 0
      %2851 = vmatprep.subr.bf16.mxu0 0
      %2852 = vmatpush1.bf16.msra.mxu0 0
      %2853 = vmatprep.subr.bf16.mxu0 0
      %2854 = vmatpush1.bf16.msra.mxu0 0
      %2855 = vmatprep.subr.bf16.mxu0 0
      %2856 = vmatpush1.bf16.msra.mxu0 0
      %2857 = vmatprep.subr.bf16.mxu0 0
      %2858 = vmatpush1.bf16.msra.mxu0 0
      %2859 = vmatprep.subr.bf16.mxu0 0
      %2860 = vmatpush1.bf16.msra.mxu0 0
      %2861 = vmatprep.subr.bf16.mxu0 0
      %2862 = vmatpush1.bf16.msra.mxu0 0
      %2863 = vmatprep.subr.bf16.mxu0 0
      %2864 = vmatpush1.bf16.msra.mxu0 0
      %2865 = vmatprep.subr.bf16.mxu0 0
      %2866 = vmatpush1.bf16.msra.mxu0 0
      %2867 = vmatprep.subr.bf16.mxu0 0
      %2868 = vmatpush1.bf16.msra.mxu0 0
      %2869 = vmatprep.subr.bf16.mxu0 0
      %2870 = vmatpush1.bf16.msra.mxu0 0
      %2871 = vmatprep.subr.bf16.mxu0 0
      %2872 = vmatpush1.bf16.msra.mxu0 0
      %2873 = vmatprep.mubr.bf16.mxu0 0
      %2874 = vmatmul.mubr.bf16.gmra.mrb[0].mxu0 %v2836
      %v2875 = vpop.f32.mrb[0].mxu0
      %v2876 = vadd.f32 0.0, %v2875
      %v2877 = vpop.f32.mrb[0].mxu0
      %v2878 = vpop.f32.mrb[0].mxu0
      %v2879 = vpop.f32.mrb[0].mxu0
      %2880 = vdwg.mxu0
      %v2881 = vadd.f32 %v2815, %v2876
      %s2882 = scalar_lea.vmem %s274, 40
      %v2883 = vld [vmem:[%s2882] sm:$0xf]
      %v2884 = vld [vmem:[%s449] sm:$0xf]
      %v2886 = vsel %vm291, %v2883, 0
      %v2889 = vsel %vm295, %v2884, 0
      %2891 = vmatprep.subr.bf16.mxu0 0
      %2892 = vmatpush1.bf16.msra.mxu0 %v2889
      %2893 = vmatprep.subr.bf16.mxu0 0
      %2894 = vmatpush1.bf16.msra.mxu0 0
      %2895 = vmatprep.subr.bf16.mxu0 0
      %2896 = vmatpush1.bf16.msra.mxu0 0
      %2897 = vmatprep.subr.bf16.mxu0 0
      %2898 = vmatpush1.bf16.msra.mxu0 0
      %2899 = vmatprep.subr.bf16.mxu0 0
      %2900 = vmatpush1.bf16.msra.mxu0 0
      %2901 = vmatprep.subr.bf16.mxu0 0
      %2902 = vmatpush1.bf16.msra.mxu0 0
      %2903 = vmatprep.subr.bf16.mxu0 0
      %2904 = vmatpush1.bf16.msra.mxu0 0
      %2905 = vmatprep.subr.bf16.mxu0 0
      %2906 = vmatpush1.bf16.msra.mxu0 0
      %2907 = vmatprep.subr.bf16.mxu0 0
      %2908 = vmatpush1.bf16.msra.mxu0 0
      %2909 = vmatprep.subr.bf16.mxu0 0
      %2910 = vmatpush1.bf16.msra.mxu0 0
      %2911 = vmatprep.subr.bf16.mxu0 0
      %2912 = vmatpush1.bf16.msra.mxu0 0
      %2913 = vmatprep.subr.bf16.mxu0 0
      %2914 = vmatpush1.bf16.msra.mxu0 0
      %2915 = vmatprep.subr.bf16.mxu0 0
      %2916 = vmatpush1.bf16.msra.mxu0 0
      %2917 = vmatprep.subr.bf16.mxu0 0
      %2918 = vmatpush1.bf16.msra.mxu0 0
      %2919 = vmatprep.subr.bf16.mxu0 0
      %2920 = vmatpush1.bf16.msra.mxu0 0
      %2921 = vmatprep.subr.bf16.mxu0 0
      %2922 = vmatpush1.bf16.msra.mxu0 0
      %2923 = vmatprep.mubr.bf16.mxu0 0
      %2924 = vmatmul.mubr.bf16.gmra.mrb[0].mxu0 %v2886
      %v2925 = vpop.f32.mrb[0].mxu0
      %v2926 = vadd.f32 0.0, %v2925
      %v2927 = vpop.f32.mrb[0].mxu0
      %v2928 = vpop.f32.mrb[0].mxu0
      %v2929 = vpop.f32.mrb[0].mxu0
      %2930 = vdwg.mxu0
      %v2931 = vadd.f32 %v2881, %v2926
      %s2932 = scalar_lea.vmem %s279, 40
      %v2933 = vld [vmem:[%s2932] sm:$0xf]
      %v2934 = vld [vmem:[%s499] sm:$0xf]
      %v2936 = vsel %vm291, %v2933, 0
      %v2939 = vsel %vm295, %v2934, 0
      %2941 = vmatprep.subr.bf16.mxu0 0
      %2942 = vmatpush1.bf16.msra.mxu0 %v2939
      %2943 = vmatprep.subr.bf16.mxu0 0
      %2944 = vmatpush1.bf16.msra.mxu0 0
      %2945 = vmatprep.subr.bf16.mxu0 0
      %2946 = vmatpush1.bf16.msra.mxu0 0
      %2947 = vmatprep.subr.bf16.mxu0 0
      %2948 = vmatpush1.bf16.msra.mxu0 0
      %2949 = vmatprep.subr.bf16.mxu0 0
      %2950 = vmatpush1.bf16.msra.mxu0 0
      %2951 = vmatprep.subr.bf16.mxu0 0
      %2952 = vmatpush1.bf16.msra.mxu0 0
      %2953 = vmatprep.subr.bf16.mxu0 0
      %2954 = vmatpush1.bf16.msra.mxu0 0
      %2955 = vmatprep.subr.bf16.mxu0 0
      %2956 = vmatpush1.bf16.msra.mxu0 0
      %2957 = vmatprep.subr.bf16.mxu0 0
      %2958 = vmatpush1.bf16.msra.mxu0 0
      %2959 = vmatprep.subr.bf16.mxu0 0
      %2960 = vmatpush1.bf16.msra.mxu0 0
      %2961 = vmatprep.subr.bf16.mxu0 0
      %2962 = vmatpush1.bf16.msra.mxu0 0
      %2963 = vmatprep.subr.bf16.mxu0 0
      %2964 = vmatpush1.bf16.msra.mxu0 0
      %2965 = vmatprep.subr.bf16.mxu0 0
      %2966 = vmatpush1.bf16.msra.mxu0 0
      %2967 = vmatprep.subr.bf16.mxu0 0
      %2968 = vmatpush1.bf16.msra.mxu0 0
      %2969 = vmatprep.subr.bf16.mxu0 0
      %2970 = vmatpush1.bf16.msra.mxu0 0
      %2971 = vmatprep.subr.bf16.mxu0 0
      %2972 = vmatpush1.bf16.msra.mxu0 0
      %2973 = vmatprep.mubr.bf16.mxu0 0
      %2974 = vmatmul.mubr.bf16.gmra.mrb[0].mxu0 %v2936
      %v2975 = vpop.f32.mrb[0].mxu0
      %v2976 = vadd.f32 0.0, %v2975
      %v2977 = vpop.f32.mrb[0].mxu0
      %v2978 = vpop.f32.mrb[0].mxu0
      %v2979 = vpop.f32.mrb[0].mxu0
      %2980 = vdwg.mxu0
      %v2981 = vadd.f32 %v2931, %v2976
      %v2982 = vld [vmem:[%s2882] sm:$0xf]
      %v2983 = vld [vmem:[%s2882 + $0x4] sm:$0x1]
      %v2984 = vld [vmem:[%s550] sm:$0xf]
      %v2987 = vunpack.c.l.b16 %v2982
      %v2988 = vunpack.c.l.b16 %v2983
      %v2989 = vpack.c.b16 %v2988, %v2987
      %v2991 = vshrl.u32 %v2989, 16
      %v2993 = vshll.u32 %v2989, 16
      %v2995 = vrot.slane %v2993, 1
      %v2996 = vor.u32 %v2991, %v2995
      %v2998 = vsel %vm291, %v2996, 0
      %v3001 = vsel %vm295, %v2984, 0
      %3003 = vmatprep.subr.bf16.mxu0 0
      %3004 = vmatpush1.bf16.msra.mxu0 %v3001
      %3005 = vmatprep.subr.bf16.mxu0 0
      %3006 = vmatpush1.bf16.msra.mxu0 0
      %3007 = vmatprep.subr.bf16.mxu0 0
      %3008 = vmatpush1.bf16.msra.mxu0 0
      %3009 = vmatprep.subr.bf16.mxu0 0
      %3010 = vmatpush1.bf16.msra.mxu0 0
      %3011 = vmatprep.subr.bf16.mxu0 0
      %3012 = vmatpush1.bf16.msra.mxu0 0
      %3013 = vmatprep.subr.bf16.mxu0 0
      %3014 = vmatpush1.bf16.msra.mxu0 0
      %3015 = vmatprep.subr.bf16.mxu0 0
      %3016 = vmatpush1.bf16.msra.mxu0 0
      %3017 = vmatprep.subr.bf16.mxu0 0
      %3018 = vmatpush1.bf16.msra.mxu0 0
      %3019 = vmatprep.subr.bf16.mxu0 0
      %3020 = vmatpush1.bf16.msra.mxu0 0
      %3021 = vmatprep.subr.bf16.mxu0 0
      %3022 = vmatpush1.bf16.msra.mxu0 0
      %3023 = vmatprep.subr.bf16.mxu0 0
      %3024 = vmatpush1.bf16.msra.mxu0 0
      %3025 = vmatprep.subr.bf16.mxu0 0
      %3026 = vmatpush1.bf16.msra.mxu0 0
      %3027 = vmatprep.subr.bf16.mxu0 0
      %3028 = vmatpush1.bf16.msra.mxu0 0
      %3029 = vmatprep.subr.bf16.mxu0 0
      %3030 = vmatpush1.bf16.msra.mxu0 0
      %3031 = vmatprep.subr.bf16.mxu0 0
      %3032 = vmatpush1.bf16.msra.mxu0 0
      %3033 = vmatprep.subr.bf16.mxu0 0
      %3034 = vmatpush1.bf16.msra.mxu0 0
      %3035 = vmatprep.mubr.bf16.mxu0 0
      %3036 = vmatmul.mubr.bf16.gmra.mrb[0].mxu0 %v2998
      %v3037 = vpop.f32.mrb[0].mxu0
      %v3038 = vadd.f32 0.0, %v3037
      %v3039 = vpop.f32.mrb[0].mxu0
      %v3040 = vpop.f32.mrb[0].mxu0
      %v3041 = vpop.f32.mrb[0].mxu0
      %3042 = vdwg.mxu0
      %v3043 = vadd.f32 %v2981, %v3038
      %s3044 = scalar_lea.vmem %s264, 48
      %v3045 = vld [vmem:[%s3044] sm:$0xf]
      %v3046 = vld [vmem:[%s613] sm:$0xf]
      %v3048 = vsel %vm291, %v3045, 0
      %v3051 = vsel %vm295, %v3046, 0
      %3053 = vmatprep.subr.bf16.mxu0 0
      %3054 = vmatpush1.bf16.msra.mxu0 %v3051
      %3055 = vmatprep.subr.bf16.mxu0 0
      %3056 = vmatpush1.bf16.msra.mxu0 0
      %3057 = vmatprep.subr.bf16.mxu0 0
      %3058 = vmatpush1.bf16.msra.mxu0 0
      %3059 = vmatprep.subr.bf16.mxu0 0
      %3060 = vmatpush1.bf16.msra.mxu0 0
      %3061 = vmatprep.subr.bf16.mxu0 0
      %3062 = vmatpush1.bf16.msra.mxu0 0
      %3063 = vmatprep.subr.bf16.mxu0 0
      %3064 = vmatpush1.bf16.msra.mxu0 0
      %3065 = vmatprep.subr.bf16.mxu0 0
      %3066 = vmatpush1.bf16.msra.mxu0 0
      %3067 = vmatprep.subr.bf16.mxu0 0
      %3068 = vmatpush1.bf16.msra.mxu0 0
      %3069 = vmatprep.subr.bf16.mxu0 0
      %3070 = vmatpush1.bf16.msra.mxu0 0
      %3071 = vmatprep.subr.bf16.mxu0 0
      %3072 = vmatpush1.bf16.msra.mxu0 0
      %3073 = vmatprep.subr.bf16.mxu0 0
      %3074 = vmatpush1.bf16.msra.mxu0 0
      %3075 = vmatprep.subr.bf16.mxu0 0
      %3076 = vmatpush1.bf16.msra.mxu0 0
      %3077 = vmatprep.subr.bf16.mxu0 0
      %3078 = vmatpush1.bf16.msra.mxu0 0
      %3079 = vmatprep.subr.bf16.mxu0 0
      %3080 = vmatpush1.bf16.msra.mxu0 0
      %3081 = vmatprep.subr.bf16.mxu0 0
      %3082 = vmatpush1.bf16.msra.mxu0 0
      %3083 = vmatprep.subr.bf16.mxu0 0
      %3084 = vmatpush1.bf16.msra.mxu0 0
      %3085 = vmatprep.mubr.bf16.mxu0 0
      %3086 = vmatmul.mubr.bf16.gmra.mrb[0].mxu0 %v3048
      %v3087 = vpop.f32.mrb[0].mxu0
      %v3088 = vadd.f32 0.0, %v3087
      %v3089 = vpop.f32.mrb[0].mxu0
      %v3090 = vpop.f32.mrb[0].mxu0
      %v3091 = vpop.f32.mrb[0].mxu0
      %3092 = vdwg.mxu0
      %v3093 = vadd.f32 %v3043, %v3088
      %s3094 = scalar_lea.vmem %s269, 48
      %v3095 = vld [vmem:[%s3094] sm:$0xf]
      %v3096 = vld [vmem:[%s664] sm:$0xf]
      %v3098 = vsel %vm291, %v3095, 0
      %v3101 = vsel %vm295, %v3096, 0
      %3103 = vmatprep.subr.bf16.mxu0 0
      %3104 = vmatpush1.bf16.msra.mxu0 %v3101
      %3105 = vmatprep.subr.bf16.mxu0 0
      %3106 = vmatpush1.bf16.msra.mxu0 0
      %3107 = vmatprep.subr.bf16.mxu0 0
      %3108 = vmatpush1.bf16.msra.mxu0 0
      %3109 = vmatprep.subr.bf16.mxu0 0
      %3110 = vmatpush1.bf16.msra.mxu0 0
      %3111 = vmatprep.subr.bf16.mxu0 0
      %3112 = vmatpush1.bf16.msra.mxu0 0
      %3113 = vmatprep.subr.bf16.mxu0 0
      %3114 = vmatpush1.bf16.msra.mxu0 0
      %3115 = vmatprep.subr.bf16.mxu0 0
      %3116 = vmatpush1.bf16.msra.mxu0 0
      %3117 = vmatprep.subr.bf16.mxu0 0
      %3118 = vmatpush1.bf16.msra.mxu0 0
      %3119 = vmatprep.subr.bf16.mxu0 0
      %3120 = vmatpush1.bf16.msra.mxu0 0
      %3121 = vmatprep.subr.bf16.mxu0 0
      %3122 = vmatpush1.bf16.msra.mxu0 0
      %3123 = vmatprep.subr.bf16.mxu0 0
      %3124 = vmatpush1.bf16.msra.mxu0 0
      %3125 = vmatprep.subr.bf16.mxu0 0
      %3126 = vmatpush1.bf16.msra.mxu0 0
      %3127 = vmatprep.subr.bf16.mxu0 0
      %3128 = vmatpush1.bf16.msra.mxu0 0
      %3129 = vmatprep.subr.bf16.mxu0 0
      %3130 = vmatpush1.bf16.msra.mxu0 0
      %3131 = vmatprep.subr.bf16.mxu0 0
      %3132 = vmatpush1.bf16.msra.mxu0 0
      %3133 = vmatprep.subr.bf16.mxu0 0
      %3134 = vmatpush1.bf16.msra.mxu0 0
      %3135 = vmatprep.mubr.bf16.mxu0 0
      %3136 = vmatmul.mubr.bf16.gmra.mrb[0].mxu0 %v3098
      %v3137 = vpop.f32.mrb[0].mxu0
      %v3138 = vadd.f32 0.0, %v3137
      %v3139 = vpop.f32.mrb[0].mxu0
      %v3140 = vpop.f32.mrb[0].mxu0
      %v3141 = vpop.f32.mrb[0].mxu0
      %3142 = vdwg.mxu0
      %v3143 = vadd.f32 %v3093, %v3138
      %v3144 = vld [vmem:[%s3044] sm:$0xf]
      %v3145 = vld [vmem:[%s3044 + $0x4] sm:$0x1]
      %v3146 = vld [vmem:[%s715] sm:$0xf]
      %v3149 = vunpack.c.l.b16 %v3144
      %v3150 = vunpack.c.l.b16 %v3145
      %v3151 = vpack.c.b16 %v3150, %v3149
      %v3153 = vshrl.u32 %v3151, 16
      %v3155 = vshll.u32 %v3151, 16
      %v3157 = vrot.slane %v3155, 1
      %v3158 = vor.u32 %v3153, %v3157
      %v3160 = vsel %vm291, %v3158, 0
      %v3163 = vsel %vm295, %v3146, 0
      %3165 = vmatprep.subr.bf16.mxu0 0
      %3166 = vmatpush1.bf16.msra.mxu0 %v3163
      %3167 = vmatprep.subr.bf16.mxu0 0
      %3168 = vmatpush1.bf16.msra.mxu0 0
      %3169 = vmatprep.subr.bf16.mxu0 0
      %3170 = vmatpush1.bf16.msra.mxu0 0
      %3171 = vmatprep.subr.bf16.mxu0 0
      %3172 = vmatpush1.bf16.msra.mxu0 0
      %3173 = vmatprep.subr.bf16.mxu0 0
      %3174 = vmatpush1.bf16.msra.mxu0 0
      %3175 = vmatprep.subr.bf16.mxu0 0
      %3176 = vmatpush1.bf16.msra.mxu0 0
      %3177 = vmatprep.subr.bf16.mxu0 0
      %3178 = vmatpush1.bf16.msra.mxu0 0
      %3179 = vmatprep.subr.bf16.mxu0 0
      %3180 = vmatpush1.bf16.msra.mxu0 0
      %3181 = vmatprep.subr.bf16.mxu0 0
      %3182 = vmatpush1.bf16.msra.mxu0 0
      %3183 = vmatprep.subr.bf16.mxu0 0
      %3184 = vmatpush1.bf16.msra.mxu0 0
      %3185 = vmatprep.subr.bf16.mxu0 0
      %3186 = vmatpush1.bf16.msra.mxu0 0
      %3187 = vmatprep.subr.bf16.mxu0 0
      %3188 = vmatpush1.bf16.msra.mxu0 0
      %3189 = vmatprep.subr.bf16.mxu0 0
      %3190 = vmatpush1.bf16.msra.mxu0 0
      %3191 = vmatprep.subr.bf16.mxu0 0
      %3192 = vmatpush1.bf16.msra.mxu0 0
      %3193 = vmatprep.subr.bf16.mxu0 0
      %3194 = vmatpush1.bf16.msra.mxu0 0
      %3195 = vmatprep.subr.bf16.mxu0 0
      %3196 = vmatpush1.bf16.msra.mxu0 0
      %3197 = vmatprep.mubr.bf16.mxu0 0
      %3198 = vmatmul.mubr.bf16.gmra.mrb[0].mxu0 %v3160
      %v3199 = vpop.f32.mrb[0].mxu0
      %v3200 = vadd.f32 0.0, %v3199
      %v3201 = vpop.f32.mrb[0].mxu0
      %v3202 = vpop.f32.mrb[0].mxu0
      %v3203 = vpop.f32.mrb[0].mxu0
      %3204 = vdwg.mxu0
      %v3205 = vadd.f32 %v3143, %v3200
      %v3206 = vmax.f32 %v3205, 0.0
      %v3207 = vpack.c.bf16 %v3206, %v3206
      %s3208 = scalar_lea.vmem %s284, 20
      %3209 = vst.msk [vmem:[%s3208] sm:$0xf] %vm778, %v3207
      %v3210 = vld [vmem:[%s3044] sm:$0xf]
      %v3211 = vld [vmem:[%s4] sm:$0xf]
      %v3212 = vld [vmem:[%s3094] sm:$0xf]
      %v3213 = vld [vmem:[%s289] sm:$0xf]
      %v3215 = vsel %vm291, %v3212, 0
      %v3218 = vsel %vm295, %v3213, 0
      %3220 = vmatprep.subr.bf16.mxu0 0
      %3221 = vmatpush1.bf16.msra.mxu0 %v3218
      %3222 = vmatprep.subr.bf16.mxu0 0
      %3223 = vmatpush1.bf16.msra.mxu0 0
      %3224 = vmatprep.subr.bf16.mxu0 0
      %3225 = vmatpush1.bf16.msra.mxu0 0
      %3226 = vmatprep.subr.bf16.mxu0 0
      %3227 = vmatpush1.bf16.msra.mxu0 0
      %3228 = vmatprep.subr.bf16.mxu0 0
      %3229 = vmatpush1.bf16.msra.mxu0 0
      %3230 = vmatprep.subr.bf16.mxu0 0
      %3231 = vmatpush1.bf16.msra.mxu0 0
      %3232 = vmatprep.subr.bf16.mxu0 0
      %3233 = vmatpush1.bf16.msra.mxu0 0
      %3234 = vmatprep.subr.bf16.mxu0 0
      %3235 = vmatpush1.bf16.msra.mxu0 0
      %3236 = vmatprep.subr.bf16.mxu0 0
      %3237 = vmatpush1.bf16.msra.mxu0 0
      %3238 = vmatprep.subr.bf16.mxu0 0
      %3239 = vmatpush1.bf16.msra.mxu0 0
      %3240 = vmatprep.subr.bf16.mxu0 0
      %3241 = vmatpush1.bf16.msra.mxu0 0
      %3242 = vmatprep.subr.bf16.mxu0 0
      %3243 = vmatpush1.bf16.msra.mxu0 0
      %3244 = vmatprep.subr.bf16.mxu0 0
      %3245 = vmatpush1.bf16.msra.mxu0 0
      %3246 = vmatprep.subr.bf16.mxu0 0
      %3247 = vmatpush1.bf16.msra.mxu0 0
      %3248 = vmatprep.subr.bf16.mxu0 0
      %3249 = vmatpush1.bf16.msra.mxu0 0
      %3250 = vmatprep.subr.bf16.mxu0 0
      %3251 = vmatpush1.bf16.msra.mxu0 0
      %3252 = vmatprep.mubr.bf16.mxu0 0
      %3253 = vmatmul.mubr.bf16.gmra.mrb[0].mxu0 %v3215
      %v3254 = vpop.f32.mrb[0].mxu0
      %v3255 = vadd.f32 0.0, %v3254
      %v3256 = vpop.f32.mrb[0].mxu0
      %v3257 = vpop.f32.mrb[0].mxu0
      %v3258 = vpop.f32.mrb[0].mxu0
      %3259 = vdwg.mxu0
      %v3261 = vsel %vm291, %v3210, 0
      %v3264 = vsel %vm295, %v3211, 0
      %3266 = vmatprep.subr.bf16.mxu0 0
      %3267 = vmatpush1.bf16.msra.mxu0 %v3264
      %3268 = vmatprep.subr.bf16.mxu0 0
      %3269 = vmatpush1.bf16.msra.mxu0 0
      %3270 = vmatprep.subr.bf16.mxu0 0
      %3271 = vmatpush1.bf16.msra.mxu0 0
      %3272 = vmatprep.subr.bf16.mxu0 0
      %3273 = vmatpush1.bf16.msra.mxu0 0
      %3274 = vmatprep.subr.bf16.mxu0 0
      %3275 = vmatpush1.bf16.msra.mxu0 0
      %3276 = vmatprep.subr.bf16.mxu0 0
      %3277 = vmatpush1.bf16.msra.mxu0 0
      %3278 = vmatprep.subr.bf16.mxu0 0
      %3279 = vmatpush1.bf16.msra.mxu0 0
      %3280 = vmatprep.subr.bf16.mxu0 0
      %3281 = vmatpush1.bf16.msra.mxu0 0
      %3282 = vmatprep.subr.bf16.mxu0 0
      %3283 = vmatpush1.bf16.msra.mxu0 0
      %3284 = vmatprep.subr.bf16.mxu0 0
      %3285 = vmatpush1.bf16.msra.mxu0 0
      %3286 = vmatprep.subr.bf16.mxu0 0
      %3287 = vmatpush1.bf16.msra.mxu0 0
      %3288 = vmatprep.subr.bf16.mxu0 0
      %3289 = vmatpush1.bf16.msra.mxu0 0
      %3290 = vmatprep.subr.bf16.mxu0 0
      %3291 = vmatpush1.bf16.msra.mxu0 0
      %3292 = vmatprep.subr.bf16.mxu0 0
      %3293 = vmatpush1.bf16.msra.mxu0 0
      %3294 = vmatprep.subr.bf16.mxu0 0
      %3295 = vmatpush1.bf16.msra.mxu0 0
      %3296 = vmatprep.subr.bf16.mxu0 0
      %3297 = vmatpush1.bf16.msra.mxu0 0
      %3298 = vmatprep.mubr.bf16.mxu0 0
      %3299 = vmatmul.mubr.bf16.gmra.mrb[0].mxu0 %v3261
      %v3300 = vpop.f32.mrb[0].mxu0
      %v3301 = vadd.f32 %v3255, %v3300
      %v3302 = vpop.f32.mrb[0].mxu0
      %v3303 = vpop.f32.mrb[0].mxu0
      %v3304 = vpop.f32.mrb[0].mxu0
      %3305 = vdwg.mxu0
      %v3306 = vld [vmem:[%s3044] sm:$0xf]
      %v3307 = vld [vmem:[%s3044 + $0x4] sm:$0x1]
      %v3308 = vld [vmem:[%s387] sm:$0xf]
      %v3311 = vunpack.c.l.b16 %v3306
      %v3312 = vunpack.c.l.b16 %v3307
      %v3313 = vpack.c.b16 %v3312, %v3311
      %v3315 = vshrl.u32 %v3313, 16
      %v3317 = vshll.u32 %v3313, 16
      %v3319 = vrot.slane %v3317, 1
      %v3320 = vor.u32 %v3315, %v3319
      %v3322 = vsel %vm291, %v3320, 0
      %v3325 = vsel %vm295, %v3308, 0
      %3327 = vmatprep.subr.bf16.mxu0 0
      %3328 = vmatpush1.bf16.msra.mxu0 %v3325
      %3329 = vmatprep.subr.bf16.mxu0 0
      %3330 = vmatpush1.bf16.msra.mxu0 0
      %3331 = vmatprep.subr.bf16.mxu0 0
      %3332 = vmatpush1.bf16.msra.mxu0 0
      %3333 = vmatprep.subr.bf16.mxu0 0
      %3334 = vmatpush1.bf16.msra.mxu0 0
      %3335 = vmatprep.subr.bf16.mxu0 0
      %3336 = vmatpush1.bf16.msra.mxu0 0
      %3337 = vmatprep.subr.bf16.mxu0 0
      %3338 = vmatpush1.bf16.msra.mxu0 0
      %3339 = vmatprep.subr.bf16.mxu0 0
      %3340 = vmatpush1.bf16.msra.mxu0 0
      %3341 = vmatprep.subr.bf16.mxu0 0
      %3342 = vmatpush1.bf16.msra.mxu0 0
      %3343 = vmatprep.subr.bf16.mxu0 0
      %3344 = vmatpush1.bf16.msra.mxu0 0
      %3345 = vmatprep.subr.bf16.mxu0 0
      %3346 = vmatpush1.bf16.msra.mxu0 0
      %3347 = vmatprep.subr.bf16.mxu0 0
      %3348 = vmatpush1.bf16.msra.mxu0 0
      %3349 = vmatprep.subr.bf16.mxu0 0
      %3350 = vmatpush1.bf16.msra.mxu0 0
      %3351 = vmatprep.subr.bf16.mxu0 0
      %3352 = vmatpush1.bf16.msra.mxu0 0
      %3353 = vmatprep.subr.bf16.mxu0 0
      %3354 = vmatpush1.bf16.msra.mxu0 0
      %3355 = vmatprep.subr.bf16.mxu0 0
      %3356 = vmatpush1.bf16.msra.mxu0 0
      %3357 = vmatprep.subr.bf16.mxu0 0
      %3358 = vmatpush1.bf16.msra.mxu0 0
      %3359 = vmatprep.mubr.bf16.mxu0 0
      %3360 = vmatmul.mubr.bf16.gmra.mrb[0].mxu0 %v3322
      %v3361 = vpop.f32.mrb[0].mxu0
      %v3362 = vadd.f32 0.0, %v3361
      %v3363 = vpop.f32.mrb[0].mxu0
      %v3364 = vpop.f32.mrb[0].mxu0
      %v3365 = vpop.f32.mrb[0].mxu0
      %3366 = vdwg.mxu0
      %v3367 = vadd.f32 %v3301, %v3362
      %s3368 = scalar_lea.vmem %s274, 48
      %v3369 = vld [vmem:[%s3368] sm:$0xf]
      %v3370 = vld [vmem:[%s449] sm:$0xf]
      %v3372 = vsel %vm291, %v3369, 0
      %v3375 = vsel %vm295, %v3370, 0
      %3377 = vmatprep.subr.bf16.mxu0 0
      %3378 = vmatpush1.bf16.msra.mxu0 %v3375
      %3379 = vmatprep.subr.bf16.mxu0 0
      %3380 = vmatpush1.bf16.msra.mxu0 0
      %3381 = vmatprep.subr.bf16.mxu0 0
      %3382 = vmatpush1.bf16.msra.mxu0 0
      %3383 = vmatprep.subr.bf16.mxu0 0
      %3384 = vmatpush1.bf16.msra.mxu0 0
      %3385 = vmatprep.subr.bf16.mxu0 0
      %3386 = vmatpush1.bf16.msra.mxu0 0
      %3387 = vmatprep.subr.bf16.mxu0 0
      %3388 = vmatpush1.bf16.msra.mxu0 0
      %3389 = vmatprep.subr.bf16.mxu0 0
      %3390 = vmatpush1.bf16.msra.mxu0 0
      %3391 = vmatprep.subr.bf16.mxu0 0
      %3392 = vmatpush1.bf16.msra.mxu0 0
      %3393 = vmatprep.subr.bf16.mxu0 0
      %3394 = vmatpush1.bf16.msra.mxu0 0
      %3395 = vmatprep.subr.bf16.mxu0 0
      %3396 = vmatpush1.bf16.msra.mxu0 0
      %3397 = vmatprep.subr.bf16.mxu0 0
      %3398 = vmatpush1.bf16.msra.mxu0 0
      %3399 = vmatprep.subr.bf16.mxu0 0
      %3400 = vmatpush1.bf16.msra.mxu0 0
      %3401 = vmatprep.subr.bf16.mxu0 0
      %3402 = vmatpush1.bf16.msra.mxu0 0
      %3403 = vmatprep.subr.bf16.mxu0 0
      %3404 = vmatpush1.bf16.msra.mxu0 0
      %3405 = vmatprep.subr.bf16.mxu0 0
      %3406 = vmatpush1.bf16.msra.mxu0 0
      %3407 = vmatprep.subr.bf16.mxu0 0
      %3408 = vmatpush1.bf16.msra.mxu0 0
      %3409 = vmatprep.mubr.bf16.mxu0 0
      %3410 = vmatmul.mubr.bf16.gmra.mrb[0].mxu0 %v3372
      %v3411 = vpop.f32.mrb[0].mxu0
      %v3412 = vadd.f32 0.0, %v3411
      %v3413 = vpop.f32.mrb[0].mxu0
      %v3414 = vpop.f32.mrb[0].mxu0
      %v3415 = vpop.f32.mrb[0].mxu0
      %3416 = vdwg.mxu0
      %v3417 = vadd.f32 %v3367, %v3412
      %s3418 = scalar_lea.vmem %s279, 48
      %v3419 = vld [vmem:[%s3418] sm:$0xf]
      %v3420 = vld [vmem:[%s499] sm:$0xf]
      %v3422 = vsel %vm291, %v3419, 0
      %v3425 = vsel %vm295, %v3420, 0
      %3427 = vmatprep.subr.bf16.mxu0 0
      %3428 = vmatpush1.bf16.msra.mxu0 %v3425
      %3429 = vmatprep.subr.bf16.mxu0 0
      %3430 = vmatpush1.bf16.msra.mxu0 0
      %3431 = vmatprep.subr.bf16.mxu0 0
      %3432 = vmatpush1.bf16.msra.mxu0 0
      %3433 = vmatprep.subr.bf16.mxu0 0
      %3434 = vmatpush1.bf16.msra.mxu0 0
      %3435 = vmatprep.subr.bf16.mxu0 0
      %3436 = vmatpush1.bf16.msra.mxu0 0
      %3437 = vmatprep.subr.bf16.mxu0 0
      %3438 = vmatpush1.bf16.msra.mxu0 0
      %3439 = vmatprep.subr.bf16.mxu0 0
      %3440 = vmatpush1.bf16.msra.mxu0 0
      %3441 = vmatprep.subr.bf16.mxu0 0
      %3442 = vmatpush1.bf16.msra.mxu0 0
      %3443 = vmatprep.subr.bf16.mxu0 0
      %3444 = vmatpush1.bf16.msra.mxu0 0
      %3445 = vmatprep.subr.bf16.mxu0 0
      %3446 = vmatpush1.bf16.msra.mxu0 0
      %3447 = vmatprep.subr.bf16.mxu0 0
      %3448 = vmatpush1.bf16.msra.mxu0 0
      %3449 = vmatprep.subr.bf16.mxu0 0
      %3450 = vmatpush1.bf16.msra.mxu0 0
      %3451 = vmatprep.subr.bf16.mxu0 0
      %3452 = vmatpush1.bf16.msra.mxu0 0
      %3453 = vmatprep.subr.bf16.mxu0 0
      %3454 = vmatpush1.bf16.msra.mxu0 0
      %3455 = vmatprep.subr.bf16.mxu0 0
      %3456 = vmatpush1.bf16.msra.mxu0 0
      %3457 = vmatprep.subr.bf16.mxu0 0
      %3458 = vmatpush1.bf16.msra.mxu0 0
      %3459 = vmatprep.mubr.bf16.mxu0 0
      %3460 = vmatmul.mubr.bf16.gmra.mrb[0].mxu0 %v3422
      %v3461 = vpop.f32.mrb[0].mxu0
      %v3462 = vadd.f32 0.0, %v3461
      %v3463 = vpop.f32.mrb[0].mxu0
      %v3464 = vpop.f32.mrb[0].mxu0
      %v3465 = vpop.f32.mrb[0].mxu0
      %3466 = vdwg.mxu0
      %v3467 = vadd.f32 %v3417, %v3462
      %v3468 = vld [vmem:[%s3368] sm:$0xf]
      %v3469 = vld [vmem:[%s3368 + $0x4] sm:$0x1]
      %v3470 = vld [vmem:[%s550] sm:$0xf]
      %v3473 = vunpack.c.l.b16 %v3468
      %v3474 = vunpack.c.l.b16 %v3469
      %v3475 = vpack.c.b16 %v3474, %v3473
      %v3477 = vshrl.u32 %v3475, 16
      %v3479 = vshll.u32 %v3475, 16
      %v3481 = vrot.slane %v3479, 1
      %v3482 = vor.u32 %v3477, %v3481
      %v3484 = vsel %vm291, %v3482, 0
      %v3487 = vsel %vm295, %v3470, 0
      %3489 = vmatprep.subr.bf16.mxu0 0
      %3490 = vmatpush1.bf16.msra.mxu0 %v3487
      %3491 = vmatprep.subr.bf16.mxu0 0
      %3492 = vmatpush1.bf16.msra.mxu0 0
      %3493 = vmatprep.subr.bf16.mxu0 0
      %3494 = vmatpush1.bf16.msra.mxu0 0
      %3495 = vmatprep.subr.bf16.mxu0 0
      %3496 = vmatpush1.bf16.msra.mxu0 0
      %3497 = vmatprep.subr.bf16.mxu0 0
      %3498 = vmatpush1.bf16.msra.mxu0 0
      %3499 = vmatprep.subr.bf16.mxu0 0
      %3500 = vmatpush1.bf16.msra.mxu0 0
      %3501 = vmatprep.subr.bf16.mxu0 0
      %3502 = vmatpush1.bf16.msra.mxu0 0
      %3503 = vmatprep.subr.bf16.mxu0 0
      %3504 = vmatpush1.bf16.msra.mxu0 0
      %3505 = vmatprep.subr.bf16.mxu0 0
      %3506 = vmatpush1.bf16.msra.mxu0 0
      %3507 = vmatprep.subr.bf16.mxu0 0
      %3508 = vmatpush1.bf16.msra.mxu0 0
      %3509 = vmatprep.subr.bf16.mxu0 0
      %3510 = vmatpush1.bf16.msra.mxu0 0
      %3511 = vmatprep.subr.bf16.mxu0 0
      %3512 = vmatpush1.bf16.msra.mxu0 0
      %3513 = vmatprep.subr.bf16.mxu0 0
      %3514 = vmatpush1.bf16.msra.mxu0 0
      %3515 = vmatprep.subr.bf16.mxu0 0
      %3516 = vmatpush1.bf16.msra.mxu0 0
      %3517 = vmatprep.subr.bf16.mxu0 0
      %3518 = vmatpush1.bf16.msra.mxu0 0
      %3519 = vmatprep.subr.bf16.mxu0 0
      %3520 = vmatpush1.bf16.msra.mxu0 0
      %3521 = vmatprep.mubr.bf16.mxu0 0
      %3522 = vmatmul.mubr.bf16.gmra.mrb[0].mxu0 %v3484
      %v3523 = vpop.f32.mrb[0].mxu0
      %v3524 = vadd.f32 0.0, %v3523
      %v3525 = vpop.f32.mrb[0].mxu0
      %v3526 = vpop.f32.mrb[0].mxu0
      %v3527 = vpop.f32.mrb[0].mxu0
      %3528 = vdwg.mxu0
      %v3529 = vadd.f32 %v3467, %v3524
      %s3530 = scalar_lea.vmem %s264, 56
      %v3531 = vld [vmem:[%s3530] sm:$0xf]
      %v3532 = vld [vmem:[%s613] sm:$0xf]
      %v3534 = vsel %vm291, %v3531, 0
      %v3537 = vsel %vm295, %v3532, 0
      %3539 = vmatprep.subr.bf16.mxu0 0
      %3540 = vmatpush1.bf16.msra.mxu0 %v3537
      %3541 = vmatprep.subr.bf16.mxu0 0
      %3542 = vmatpush1.bf16.msra.mxu0 0
      %3543 = vmatprep.subr.bf16.mxu0 0
      %3544 = vmatpush1.bf16.msra.mxu0 0
      %3545 = vmatprep.subr.bf16.mxu0 0
      %3546 = vmatpush1.bf16.msra.mxu0 0
      %3547 = vmatprep.subr.bf16.mxu0 0
      %3548 = vmatpush1.bf16.msra.mxu0 0
      %3549 = vmatprep.subr.bf16.mxu0 0
      %3550 = vmatpush1.bf16.msra.mxu0 0
      %3551 = vmatprep.subr.bf16.mxu0 0
      %3552 = vmatpush1.bf16.msra.mxu0 0
      %3553 = vmatprep.subr.bf16.mxu0 0
      %3554 = vmatpush1.bf16.msra.mxu0 0
      %3555 = vmatprep.subr.bf16.mxu0 0
      %3556 = vmatpush1.bf16.msra.mxu0 0
      %3557 = vmatprep.subr.bf16.mxu0 0
      %3558 = vmatpush1.bf16.msra.mxu0 0
      %3559 = vmatprep.subr.bf16.mxu0 0
      %3560 = vmatpush1.bf16.msra.mxu0 0
      %3561 = vmatprep.subr.bf16.mxu0 0
      %3562 = vmatpush1.bf16.msra.mxu0 0
      %3563 = vmatprep.subr.bf16.mxu0 0
      %3564 = vmatpush1.bf16.msra.mxu0 0
      %3565 = vmatprep.subr.bf16.mxu0 0
      %3566 = vmatpush1.bf16.msra.mxu0 0
      %3567 = vmatprep.subr.bf16.mxu0 0
      %3568 = vmatpush1.bf16.msra.mxu0 0
      %3569 = vmatprep.subr.bf16.mxu0 0
      %3570 = vmatpush1.bf16.msra.mxu0 0
      %3571 = vmatprep.mubr.bf16.mxu0 0
      %3572 = vmatmul.mubr.bf16.gmra.mrb[0].mxu0 %v3534
      %v3573 = vpop.f32.mrb[0].mxu0
      %v3574 = vadd.f32 0.0, %v3573
      %v3575 = vpop.f32.mrb[0].mxu0
      %v3576 = vpop.f32.mrb[0].mxu0
      %v3577 = vpop.f32.mrb[0].mxu0
      %3578 = vdwg.mxu0
      %v3579 = vadd.f32 %v3529, %v3574
      %s3580 = scalar_lea.vmem %s269, 56
      %v3581 = vld [vmem:[%s3580] sm:$0xf]
      %v3582 = vld [vmem:[%s664] sm:$0xf]
      %v3584 = vsel %vm291, %v3581, 0
      %v3587 = vsel %vm295, %v3582, 0
      %3589 = vmatprep.subr.bf16.mxu0 0
      %3590 = vmatpush1.bf16.msra.mxu0 %v3587
      %3591 = vmatprep.subr.bf16.mxu0 0
      %3592 = vmatpush1.bf16.msra.mxu0 0
      %3593 = vmatprep.subr.bf16.mxu0 0
      %3594 = vmatpush1.bf16.msra.mxu0 0
      %3595 = vmatprep.subr.bf16.mxu0 0
      %3596 = vmatpush1.bf16.msra.mxu0 0
      %3597 = vmatprep.subr.bf16.mxu0 0
      %3598 = vmatpush1.bf16.msra.mxu0 0
      %3599 = vmatprep.subr.bf16.mxu0 0
      %3600 = vmatpush1.bf16.msra.mxu0 0
      %3601 = vmatprep.subr.bf16.mxu0 0
      %3602 = vmatpush1.bf16.msra.mxu0 0
      %3603 = vmatprep.subr.bf16.mxu0 0
      %3604 = vmatpush1.bf16.msra.mxu0 0
      %3605 = vmatprep.subr.bf16.mxu0 0
      %3606 = vmatpush1.bf16.msra.mxu0 0
      %3607 = vmatprep.subr.bf16.mxu0 0
      %3608 = vmatpush1.bf16.msra.mxu0 0
      %3609 = vmatprep.subr.bf16.mxu0 0
      %3610 = vmatpush1.bf16.msra.mxu0 0
      %3611 = vmatprep.subr.bf16.mxu0 0
      %3612 = vmatpush1.bf16.msra.mxu0 0
      %3613 = vmatprep.subr.bf16.mxu0 0
      %3614 = vmatpush1.bf16.msra.mxu0 0
      %3615 = vmatprep.subr.bf16.mxu0 0
      %3616 = vmatpush1.bf16.msra.mxu0 0
      %3617 = vmatprep.subr.bf16.mxu0 0
      %3618 = vmatpush1.bf16.msra.mxu0 0
      %3619 = vmatprep.subr.bf16.mxu0 0
      %3620 = vmatpush1.bf16.msra.mxu0 0
      %3621 = vmatprep.mubr.bf16.mxu0 0
      %3622 = vmatmul.mubr.bf16.gmra.mrb[0].mxu0 %v3584
      %v3623 = vpop.f32.mrb[0].mxu0
      %v3624 = vadd.f32 0.0, %v3623
      %v3625 = vpop.f32.mrb[0].mxu0
      %v3626 = vpop.f32.mrb[0].mxu0
      %v3627 = vpop.f32.mrb[0].mxu0
      %3628 = vdwg.mxu0
      %v3629 = vadd.f32 %v3579, %v3624
      %v3630 = vld [vmem:[%s3530] sm:$0xf]
      %v3631 = vld [vmem:[%s3530 + $0x4] sm:$0x1]
      %v3632 = vld [vmem:[%s715] sm:$0xf]
      %v3635 = vunpack.c.l.b16 %v3630
      %v3636 = vunpack.c.l.b16 %v3631
      %v3637 = vpack.c.b16 %v3636, %v3635
      %v3639 = vshrl.u32 %v3637, 16
      %v3641 = vshll.u32 %v3637, 16
      %v3643 = vrot.slane %v3641, 1
      %v3644 = vor.u32 %v3639, %v3643
      %v3646 = vsel %vm291, %v3644, 0
      %v3649 = vsel %vm295, %v3632, 0
      %3651 = vmatprep.subr.bf16.mxu0 0
      %3652 = vmatpush1.bf16.msra.mxu0 %v3649
      %3653 = vmatprep.subr.bf16.mxu0 0
      %3654 = vmatpush1.bf16.msra.mxu0 0
      %3655 = vmatprep.subr.bf16.mxu0 0
      %3656 = vmatpush1.bf16.msra.mxu0 0
      %3657 = vmatprep.subr.bf16.mxu0 0
      %3658 = vmatpush1.bf16.msra.mxu0 0
      %3659 = vmatprep.subr.bf16.mxu0 0
      %3660 = vmatpush1.bf16.msra.mxu0 0
      %3661 = vmatprep.subr.bf16.mxu0 0
      %3662 = vmatpush1.bf16.msra.mxu0 0
      %3663 = vmatprep.subr.bf16.mxu0 0
      %3664 = vmatpush1.bf16.msra.mxu0 0
      %3665 = vmatprep.subr.bf16.mxu0 0
      %3666 = vmatpush1.bf16.msra.mxu0 0
      %3667 = vmatprep.subr.bf16.mxu0 0
      %3668 = vmatpush1.bf16.msra.mxu0 0
      %3669 = vmatprep.subr.bf16.mxu0 0
      %3670 = vmatpush1.bf16.msra.mxu0 0
      %3671 = vmatprep.subr.bf16.mxu0 0
      %3672 = vmatpush1.bf16.msra.mxu0 0
      %3673 = vmatprep.subr.bf16.mxu0 0
      %3674 = vmatpush1.bf16.msra.mxu0 0
      %3675 = vmatprep.subr.bf16.mxu0 0
      %3676 = vmatpush1.bf16.msra.mxu0 0
      %3677 = vmatprep.subr.bf16.mxu0 0
      %3678 = vmatpush1.bf16.msra.mxu0 0
      %3679 = vmatprep.subr.bf16.mxu0 0
      %3680 = vmatpush1.bf16.msra.mxu0 0
      %3681 = vmatprep.subr.bf16.mxu0 0
      %3682 = vmatpush1.bf16.msra.mxu0 0
      %3683 = vmatprep.mubr.bf16.mxu0 0
      %3684 = vmatmul.mubr.bf16.gmra.mrb[0].mxu0 %v3646
      %v3685 = vpop.f32.mrb[0].mxu0
      %v3686 = vadd.f32 0.0, %v3685
      %v3687 = vpop.f32.mrb[0].mxu0
      %v3688 = vpop.f32.mrb[0].mxu0
      %v3689 = vpop.f32.mrb[0].mxu0
      %3690 = vdwg.mxu0
      %v3691 = vadd.f32 %v3629, %v3686
      %v3692 = vmax.f32 %v3691, 0.0
      %v3693 = vpack.c.bf16 %v3692, %v3692
      %s3694 = scalar_lea.vmem %s284, 24
      %3695 = vst.msk [vmem:[%s3694] sm:$0xf] %vm778, %v3693
      %v3696 = vld [vmem:[%s3530] sm:$0xf]
      %v3697 = vld [vmem:[%s4] sm:$0xf]
      %v3698 = vld [vmem:[%s3580] sm:$0xf]
      %v3699 = vld [vmem:[%s289] sm:$0xf]
      %v3701 = vsel %vm291, %v3698, 0
      %v3704 = vsel %vm295, %v3699, 0
      %3706 = vmatprep.subr.bf16.mxu0 0
      %3707 = vmatpush1.bf16.msra.mxu0 %v3704
      %3708 = vmatprep.subr.bf16.mxu0 0
      %3709 = vmatpush1.bf16.msra.mxu0 0
      %3710 = vmatprep.subr.bf16.mxu0 0
      %3711 = vmatpush1.bf16.msra.mxu0 0
      %3712 = vmatprep.subr.bf16.mxu0 0
      %3713 = vmatpush1.bf16.msra.mxu0 0
      %3714 = vmatprep.subr.bf16.mxu0 0
      %3715 = vmatpush1.bf16.msra.mxu0 0
      %3716 = vmatprep.subr.bf16.mxu0 0
      %3717 = vmatpush1.bf16.msra.mxu0 0
      %3718 = vmatprep.subr.bf16.mxu0 0
      %3719 = vmatpush1.bf16.msra.mxu0 0
      %3720 = vmatprep.subr.bf16.mxu0 0
      %3721 = vmatpush1.bf16.msra.mxu0 0
      %3722 = vmatprep.subr.bf16.mxu0 0
      %3723 = vmatpush1.bf16.msra.mxu0 0
      %3724 = vmatprep.subr.bf16.mxu0 0
      %3725 = vmatpush1.bf16.msra.mxu0 0
      %3726 = vmatprep.subr.bf16.mxu0 0
      %3727 = vmatpush1.bf16.msra.mxu0 0
      %3728 = vmatprep.subr.bf16.mxu0 0
      %3729 = vmatpush1.bf16.msra.mxu0 0
      %3730 = vmatprep.subr.bf16.mxu0 0
      %3731 = vmatpush1.bf16.msra.mxu0 0
      %3732 = vmatprep.subr.bf16.mxu0 0
      %3733 = vmatpush1.bf16.msra.mxu0 0
      %3734 = vmatprep.subr.bf16.mxu0 0
      %3735 = vmatpush1.bf16.msra.mxu0 0
      %3736 = vmatprep.subr.bf16.mxu0 0
      %3737 = vmatpush1.bf16.msra.mxu0 0
      %3738 = vmatprep.mubr.bf16.mxu0 0
      %3739 = vmatmul.mubr.bf16.gmra.mrb[0].mxu0 %v3701
      %v3740 = vpop.f32.mrb[0].mxu0
      %v3741 = vadd.f32 0.0, %v3740
      %v3742 = vpop.f32.mrb[0].mxu0
      %v3743 = vpop.f32.mrb[0].mxu0
      %v3744 = vpop.f32.mrb[0].mxu0
      %3745 = vdwg.mxu0
      %v3747 = vsel %vm291, %v3696, 0
      %v3750 = vsel %vm295, %v3697, 0
      %3752 = vmatprep.subr.bf16.mxu0 0
      %3753 = vmatpush1.bf16.msra.mxu0 %v3750
      %3754 = vmatprep.subr.bf16.mxu0 0
      %3755 = vmatpush1.bf16.msra.mxu0 0
      %3756 = vmatprep.subr.bf16.mxu0 0
      %3757 = vmatpush1.bf16.msra.mxu0 0
      %3758 = vmatprep.subr.bf16.mxu0 0
      %3759 = vmatpush1.bf16.msra.mxu0 0
      %3760 = vmatprep.subr.bf16.mxu0 0
      %3761 = vmatpush1.bf16.msra.mxu0 0
      %3762 = vmatprep.subr.bf16.mxu0 0
      %3763 = vmatpush1.bf16.msra.mxu0 0
      %3764 = vmatprep.subr.bf16.mxu0 0
      %3765 = vmatpush1.bf16.msra.mxu0 0
      %3766 = vmatprep.subr.bf16.mxu0 0
      %3767 = vmatpush1.bf16.msra.mxu0 0
      %3768 = vmatprep.subr.bf16.mxu0 0
      %3769 = vmatpush1.bf16.msra.mxu0 0
      %3770 = vmatprep.subr.bf16.mxu0 0
      %3771 = vmatpush1.bf16.msra.mxu0 0
      %3772 = vmatprep.subr.bf16.mxu0 0
      %3773 = vmatpush1.bf16.msra.mxu0 0
      %3774 = vmatprep.subr.bf16.mxu0 0
      %3775 = vmatpush1.bf16.msra.mxu0 0
      %3776 = vmatprep.subr.bf16.mxu0 0
      %3777 = vmatpush1.bf16.msra.mxu0 0
      %3778 = vmatprep.subr.bf16.mxu0 0
      %3779 = vmatpush1.bf16.msra.mxu0 0
      %3780 = vmatprep.subr.bf16.mxu0 0
      %3781 = vmatpush1.bf16.msra.mxu0 0
      %3782 = vmatprep.subr.bf16.mxu0 0
      %3783 = vmatpush1.bf16.msra.mxu0 0
      %3784 = vmatprep.mubr.bf16.mxu0 0
      %3785 = vmatmul.mubr.bf16.gmra.mrb[0].mxu0 %v3747
      %v3786 = vpop.f32.mrb[0].mxu0
      %v3787 = vadd.f32 %v3741, %v3786
      %v3788 = vpop.f32.mrb[0].mxu0
      %v3789 = vpop.f32.mrb[0].mxu0
      %v3790 = vpop.f32.mrb[0].mxu0
      %3791 = vdwg.mxu0
      %v3792 = vld [vmem:[%s3530] sm:$0xf]
      %v3793 = vld [vmem:[%s3530 + $0x4] sm:$0x1]
      %v3794 = vld [vmem:[%s387] sm:$0xf]
      %v3797 = vunpack.c.l.b16 %v3792
      %v3798 = vunpack.c.l.b16 %v3793
      %v3799 = vpack.c.b16 %v3798, %v3797
      %v3801 = vshrl.u32 %v3799, 16
      %v3803 = vshll.u32 %v3799, 16
      %v3805 = vrot.slane %v3803, 1
      %v3806 = vor.u32 %v3801, %v3805
      %v3808 = vsel %vm291, %v3806, 0
      %v3811 = vsel %vm295, %v3794, 0
      %3813 = vmatprep.subr.bf16.mxu0 0
      %3814 = vmatpush1.bf16.msra.mxu0 %v3811
      %3815 = vmatprep.subr.bf16.mxu0 0
      %3816 = vmatpush1.bf16.msra.mxu0 0
      %3817 = vmatprep.subr.bf16.mxu0 0
      %3818 = vmatpush1.bf16.msra.mxu0 0
      %3819 = vmatprep.subr.bf16.mxu0 0
      %3820 = vmatpush1.bf16.msra.mxu0 0
      %3821 = vmatprep.subr.bf16.mxu0 0
      %3822 = vmatpush1.bf16.msra.mxu0 0
      %3823 = vmatprep.subr.bf16.mxu0 0
      %3824 = vmatpush1.bf16.msra.mxu0 0
      %3825 = vmatprep.subr.bf16.mxu0 0
      %3826 = vmatpush1.bf16.msra.mxu0 0
      %3827 = vmatprep.subr.bf16.mxu0 0
      %3828 = vmatpush1.bf16.msra.mxu0 0
      %3829 = vmatprep.subr.bf16.mxu0 0
      %3830 = vmatpush1.bf16.msra.mxu0 0
      %3831 = vmatprep.subr.bf16.mxu0 0
      %3832 = vmatpush1.bf16.msra.mxu0 0
      %3833 = vmatprep.subr.bf16.mxu0 0
      %3834 = vmatpush1.bf16.msra.mxu0 0
      %3835 = vmatprep.subr.bf16.mxu0 0
      %3836 = vmatpush1.bf16.msra.mxu0 0
      %3837 = vmatprep.subr.bf16.mxu0 0
      %3838 = vmatpush1.bf16.msra.mxu0 0
      %3839 = vmatprep.subr.bf16.mxu0 0
      %3840 = vmatpush1.bf16.msra.mxu0 0
      %3841 = vmatprep.subr.bf16.mxu0 0
      %3842 = vmatpush1.bf16.msra.mxu0 0
      %3843 = vmatprep.subr.bf16.mxu0 0
      %3844 = vmatpush1.bf16.msra.mxu0 0
      %3845 = vmatprep.mubr.bf16.mxu0 0
      %3846 = vmatmul.mubr.bf16.gmra.mrb[0].mxu0 %v3808
      %v3847 = vpop.f32.mrb[0].mxu0
      %v3848 = vadd.f32 0.0, %v3847
      %v3849 = vpop.f32.mrb[0].mxu0
      %v3850 = vpop.f32.mrb[0].mxu0
      %v3851 = vpop.f32.mrb[0].mxu0
      %3852 = vdwg.mxu0
      %v3853 = vadd.f32 %v3787, %v3848
      %s3854 = scalar_lea.vmem %s274, 56
      %v3855 = vld [vmem:[%s3854] sm:$0xf]
      %v3856 = vld [vmem:[%s449] sm:$0xf]
      %v3858 = vsel %vm291, %v3855, 0
      %v3861 = vsel %vm295, %v3856, 0
      %3863 = vmatprep.subr.bf16.mxu0 0
      %3864 = vmatpush1.bf16.msra.mxu0 %v3861
      %3865 = vmatprep.subr.bf16.mxu0 0
      %3866 = vmatpush1.bf16.msra.mxu0 0
      %3867 = vmatprep.subr.bf16.mxu0 0
      %3868 = vmatpush1.bf16.msra.mxu0 0
      %3869 = vmatprep.subr.bf16.mxu0 0
      %3870 = vmatpush1.bf16.msra.mxu0 0
      %3871 = vmatprep.subr.bf16.mxu0 0
      %3872 = vmatpush1.bf16.msra.mxu0 0
      %3873 = vmatprep.subr.bf16.mxu0 0
      %3874 = vmatpush1.bf16.msra.mxu0 0
      %3875 = vmatprep.subr.bf16.mxu0 0
      %3876 = vmatpush1.bf16.msra.mxu0 0
      %3877 = vmatprep.subr.bf16.mxu0 0
      %3878 = vmatpush1.bf16.msra.mxu0 0
      %3879 = vmatprep.subr.bf16.mxu0 0
      %3880 = vmatpush1.bf16.msra.mxu0 0
      %3881 = vmatprep.subr.bf16.mxu0 0
      %3882 = vmatpush1.bf16.msra.mxu0 0
      %3883 = vmatprep.subr.bf16.mxu0 0
      %3884 = vmatpush1.bf16.msra.mxu0 0
      %3885 = vmatprep.subr.bf16.mxu0 0
      %3886 = vmatpush1.bf16.msra.mxu0 0
      %3887 = vmatprep.subr.bf16.mxu0 0
      %3888 = vmatpush1.bf16.msra.mxu0 0
      %3889 = vmatprep.subr.bf16.mxu0 0
      %3890 = vmatpush1.bf16.msra.mxu0 0
      %3891 = vmatprep.subr.bf16.mxu0 0
      %3892 = vmatpush1.bf16.msra.mxu0 0
      %3893 = vmatprep.subr.bf16.mxu0 0
      %3894 = vmatpush1.bf16.msra.mxu0 0
      %3895 = vmatprep.mubr.bf16.mxu0 0
      %3896 = vmatmul.mubr.bf16.gmra.mrb[0].mxu0 %v3858
      %v3897 = vpop.f32.mrb[0].mxu0
      %v3898 = vadd.f32 0.0, %v3897
      %v3899 = vpop.f32.mrb[0].mxu0
      %v3900 = vpop.f32.mrb[0].mxu0
      %v3901 = vpop.f32.mrb[0].mxu0
      %3902 = vdwg.mxu0
      %v3903 = vadd.f32 %v3853, %v3898
      %s3904 = scalar_lea.vmem %s279, 56
      %v3905 = vld [vmem:[%s3904] sm:$0xf]
      %v3906 = vld [vmem:[%s499] sm:$0xf]
      %v3908 = vsel %vm291, %v3905, 0
      %v3911 = vsel %vm295, %v3906, 0
      %3913 = vmatprep.subr.bf16.mxu0 0
      %3914 = vmatpush1.bf16.msra.mxu0 %v3911
      %3915 = vmatprep.subr.bf16.mxu0 0
      %3916 = vmatpush1.bf16.msra.mxu0 0
      %3917 = vmatprep.subr.bf16.mxu0 0
      %3918 = vmatpush1.bf16.msra.mxu0 0
      %3919 = vmatprep.subr.bf16.mxu0 0
      %3920 = vmatpush1.bf16.msra.mxu0 0
      %3921 = vmatprep.subr.bf16.mxu0 0
      %3922 = vmatpush1.bf16.msra.mxu0 0
      %3923 = vmatprep.subr.bf16.mxu0 0
      %3924 = vmatpush1.bf16.msra.mxu0 0
      %3925 = vmatprep.subr.bf16.mxu0 0
      %3926 = vmatpush1.bf16.msra.mxu0 0
      %3927 = vmatprep.subr.bf16.mxu0 0
      %3928 = vmatpush1.bf16.msra.mxu0 0
      %3929 = vmatprep.subr.bf16.mxu0 0
      %3930 = vmatpush1.bf16.msra.mxu0 0
      %3931 = vmatprep.subr.bf16.mxu0 0
      %3932 = vmatpush1.bf16.msra.mxu0 0
      %3933 = vmatprep.subr.bf16.mxu0 0
      %3934 = vmatpush1.bf16.msra.mxu0 0
      %3935 = vmatprep.subr.bf16.mxu0 0
      %3936 = vmatpush1.bf16.msra.mxu0 0
      %3937 = vmatprep.subr.bf16.mxu0 0
      %3938 = vmatpush1.bf16.msra.mxu0 0
      %3939 = vmatprep.subr.bf16.mxu0 0
      %3940 = vmatpush1.bf16.msra.mxu0 0
      %3941 = vmatprep.subr.bf16.mxu0 0
      %3942 = vmatpush1.bf16.msra.mxu0 0
      %3943 = vmatprep.subr.bf16.mxu0 0
      %3944 = vmatpush1.bf16.msra.mxu0 0
      %3945 = vmatprep.mubr.bf16.mxu0 0
      %3946 = vmatmul.mubr.bf16.gmra.mrb[0].mxu0 %v3908
      %v3947 = vpop.f32.mrb[0].mxu0
      %v3948 = vadd.f32 0.0, %v3947
      %v3949 = vpop.f32.mrb[0].mxu0
      %v3950 = vpop.f32.mrb[0].mxu0
      %v3951 = vpop.f32.mrb[0].mxu0
      %3952 = vdwg.mxu0
      %v3953 = vadd.f32 %v3903, %v3948
      %v3954 = vld [vmem:[%s3854] sm:$0xf]
      %v3955 = vld [vmem:[%s3854 + $0x4] sm:$0x1]
      %v3956 = vld [vmem:[%s550] sm:$0xf]
      %v3959 = vunpack.c.l.b16 %v3954
      %v3960 = vunpack.c.l.b16 %v3955
      %v3961 = vpack.c.b16 %v3960, %v3959
      %v3963 = vshrl.u32 %v3961, 16
      %v3965 = vshll.u32 %v3961, 16
      %v3967 = vrot.slane %v3965, 1
      %v3968 = vor.u32 %v3963, %v3967
      %v3970 = vsel %vm291, %v3968, 0
      %v3973 = vsel %vm295, %v3956, 0
      %3975 = vmatprep.subr.bf16.mxu0 0
      %3976 = vmatpush1.bf16.msra.mxu0 %v3973
      %3977 = vmatprep.subr.bf16.mxu0 0
      %3978 = vmatpush1.bf16.msra.mxu0 0
      %3979 = vmatprep.subr.bf16.mxu0 0
      %3980 = vmatpush1.bf16.msra.mxu0 0
      %3981 = vmatprep.subr.bf16.mxu0 0
      %3982 = vmatpush1.bf16.msra.mxu0 0
      %3983 = vmatprep.subr.bf16.mxu0 0
      %3984 = vmatpush1.bf16.msra.mxu0 0
      %3985 = vmatprep.subr.bf16.mxu0 0
      %3986 = vmatpush1.bf16.msra.mxu0 0
      %3987 = vmatprep.subr.bf16.mxu0 0
      %3988 = vmatpush1.bf16.msra.mxu0 0
      %3989 = vmatprep.subr.bf16.mxu0 0
      %3990 = vmatpush1.bf16.msra.mxu0 0
      %3991 = vmatprep.subr.bf16.mxu0 0
      %3992 = vmatpush1.bf16.msra.mxu0 0
      %3993 = vmatprep.subr.bf16.mxu0 0
      %3994 = vmatpush1.bf16.msra.mxu0 0
      %3995 = vmatprep.subr.bf16.mxu0 0
      %3996 = vmatpush1.bf16.msra.mxu0 0
      %3997 = vmatprep.subr.bf16.mxu0 0
      %3998 = vmatpush1.bf16.msra.mxu0 0
      %3999 = vmatprep.subr.bf16.mxu0 0
      %4000 = vmatpush1.bf16.msra.mxu0 0
      %4001 = vmatprep.subr.bf16.mxu0 0
      %4002 = vmatpush1.bf16.msra.mxu0 0
      %4003 = vmatprep.subr.bf16.mxu0 0
      %4004 = vmatpush1.bf16.msra.mxu0 0
      %4005 = vmatprep.subr.bf16.mxu0 0
      %4006 = vmatpush1.bf16.msra.mxu0 0
      %4007 = vmatprep.mubr.bf16.mxu0 0
      %4008 = vmatmul.mubr.bf16.gmra.mrb[0].mxu0 %v3970
      %v4009 = vpop.f32.mrb[0].mxu0
      %v4010 = vadd.f32 0.0, %v4009
      %v4011 = vpop.f32.mrb[0].mxu0
      %v4012 = vpop.f32.mrb[0].mxu0
      %v4013 = vpop.f32.mrb[0].mxu0
      %4014 = vdwg.mxu0
      %v4015 = vadd.f32 %v3953, %v4010
      %s4016 = scalar_lea.vmem %s264, 64
      %v4017 = vld [vmem:[%s4016] sm:$0xf]
      %v4018 = vld [vmem:[%s613] sm:$0xf]
      %v4020 = vsel %vm291, %v4017, 0
      %v4023 = vsel %vm295, %v4018, 0
      %4025 = vmatprep.subr.bf16.mxu0 0
      %4026 = vmatpush1.bf16.msra.mxu0 %v4023
      %4027 = vmatprep.subr.bf16.mxu0 0
      %4028 = vmatpush1.bf16.msra.mxu0 0
      %4029 = vmatprep.subr.bf16.mxu0 0
      %4030 = vmatpush1.bf16.msra.mxu0 0
      %4031 = vmatprep.subr.bf16.mxu0 0
      %4032 = vmatpush1.bf16.msra.mxu0 0
      %4033 = vmatprep.subr.bf16.mxu0 0
      %4034 = vmatpush1.bf16.msra.mxu0 0
      %4035 = vmatprep.subr.bf16.mxu0 0
      %4036 = vmatpush1.bf16.msra.mxu0 0
      %4037 = vmatprep.subr.bf16.mxu0 0
      %4038 = vmatpush1.bf16.msra.mxu0 0
      %4039 = vmatprep.subr.bf16.mxu0 0
      %4040 = vmatpush1.bf16.msra.mxu0 0
      %4041 = vmatprep.subr.bf16.mxu0 0
      %4042 = vmatpush1.bf16.msra.mxu0 0
      %4043 = vmatprep.subr.bf16.mxu0 0
      %4044 = vmatpush1.bf16.msra.mxu0 0
      %4045 = vmatprep.subr.bf16.mxu0 0
      %4046 = vmatpush1.bf16.msra.mxu0 0
      %4047 = vmatprep.subr.bf16.mxu0 0
      %4048 = vmatpush1.bf16.msra.mxu0 0
      %4049 = vmatprep.subr.bf16.mxu0 0
      %4050 = vmatpush1.bf16.msra.mxu0 0
      %4051 = vmatprep.subr.bf16.mxu0 0
      %4052 = vmatpush1.bf16.msra.mxu0 0
      %4053 = vmatprep.subr.bf16.mxu0 0
      %4054 = vmatpush1.bf16.msra.mxu0 0
      %4055 = vmatprep.subr.bf16.mxu0 0
      %4056 = vmatpush1.bf16.msra.mxu0 0
      %4057 = vmatprep.mubr.bf16.mxu0 0
      %4058 = vmatmul.mubr.bf16.gmra.mrb[0].mxu0 %v4020
      %v4059 = vpop.f32.mrb[0].mxu0
      %v4060 = vadd.f32 0.0, %v4059
      %v4061 = vpop.f32.mrb[0].mxu0
      %v4062 = vpop.f32.mrb[0].mxu0
      %v4063 = vpop.f32.mrb[0].mxu0
      %4064 = vdwg.mxu0
      %v4065 = vadd.f32 %v4015, %v4060
      %s4066 = scalar_lea.vmem %s269, 64
      %v4067 = vld [vmem:[%s4066] sm:$0xf]
      %v4068 = vld [vmem:[%s664] sm:$0xf]
      %v4070 = vsel %vm291, %v4067, 0
      %v4073 = vsel %vm295, %v4068, 0
      %4075 = vmatprep.subr.bf16.mxu0 0
      %4076 = vmatpush1.bf16.msra.mxu0 %v4073
      %4077 = vmatprep.subr.bf16.mxu0 0
      %4078 = vmatpush1.bf16.msra.mxu0 0
      %4079 = vmatprep.subr.bf16.mxu0 0
      %4080 = vmatpush1.bf16.msra.mxu0 0
      %4081 = vmatprep.subr.bf16.mxu0 0
      %4082 = vmatpush1.bf16.msra.mxu0 0
      %4083 = vmatprep.subr.bf16.mxu0 0
      %4084 = vmatpush1.bf16.msra.mxu0 0
      %4085 = vmatprep.subr.bf16.mxu0 0
      %4086 = vmatpush1.bf16.msra.mxu0 0
      %4087 = vmatprep.subr.bf16.mxu0 0
      %4088 = vmatpush1.bf16.msra.mxu0 0
      %4089 = vmatprep.subr.bf16.mxu0 0
      %4090 = vmatpush1.bf16.msra.mxu0 0
      %4091 = vmatprep.subr.bf16.mxu0 0
      %4092 = vmatpush1.bf16.msra.mxu0 0
      %4093 = vmatprep.subr.bf16.mxu0 0
      %4094 = vmatpush1.bf16.msra.mxu0 0
      %4095 = vmatprep.subr.bf16.mxu0 0
      %4096 = vmatpush1.bf16.msra.mxu0 0
      %4097 = vmatprep.subr.bf16.mxu0 0
      %4098 = vmatpush1.bf16.msra.mxu0 0
      %4099 = vmatprep.subr.bf16.mxu0 0
      %4100 = vmatpush1.bf16.msra.mxu0 0
      %4101 = vmatprep.subr.bf16.mxu0 0
      %4102 = vmatpush1.bf16.msra.mxu0 0
      %4103 = vmatprep.subr.bf16.mxu0 0
      %4104 = vmatpush1.bf16.msra.mxu0 0
      %4105 = vmatprep.subr.bf16.mxu0 0
      %4106 = vmatpush1.bf16.msra.mxu0 0
      %4107 = vmatprep.mubr.bf16.mxu0 0
      %4108 = vmatmul.mubr.bf16.gmra.mrb[0].mxu0 %v4070
      %v4109 = vpop.f32.mrb[0].mxu0
      %v4110 = vadd.f32 0.0, %v4109
      %v4111 = vpop.f32.mrb[0].mxu0
      %v4112 = vpop.f32.mrb[0].mxu0
      %v4113 = vpop.f32.mrb[0].mxu0
      %4114 = vdwg.mxu0
      %v4115 = vadd.f32 %v4065, %v4110
      %v4116 = vld [vmem:[%s4016] sm:$0xf]
      %v4117 = vld [vmem:[%s4016 + $0x4] sm:$0x1]
      %v4118 = vld [vmem:[%s715] sm:$0xf]
      %v4121 = vunpack.c.l.b16 %v4116
      %v4122 = vunpack.c.l.b16 %v4117
      %v4123 = vpack.c.b16 %v4122, %v4121
      %v4125 = vshrl.u32 %v4123, 16
      %v4127 = vshll.u32 %v4123, 16
      %v4129 = vrot.slane %v4127, 1
      %v4130 = vor.u32 %v4125, %v4129
      %v4132 = vsel %vm291, %v4130, 0
      %v4135 = vsel %vm295, %v4118, 0
      %4137 = vmatprep.subr.bf16.mxu0 0
      %4138 = vmatpush1.bf16.msra.mxu0 %v4135
      %4139 = vmatprep.subr.bf16.mxu0 0
      %4140 = vmatpush1.bf16.msra.mxu0 0
      %4141 = vmatprep.subr.bf16.mxu0 0
      %4142 = vmatpush1.bf16.msra.mxu0 0
      %4143 = vmatprep.subr.bf16.mxu0 0
      %4144 = vmatpush1.bf16.msra.mxu0 0
      %4145 = vmatprep.subr.bf16.mxu0 0
      %4146 = vmatpush1.bf16.msra.mxu0 0
      %4147 = vmatprep.subr.bf16.mxu0 0
      %4148 = vmatpush1.bf16.msra.mxu0 0
      %4149 = vmatprep.subr.bf16.mxu0 0
      %4150 = vmatpush1.bf16.msra.mxu0 0
      %4151 = vmatprep.subr.bf16.mxu0 0
      %4152 = vmatpush1.bf16.msra.mxu0 0
      %4153 = vmatprep.subr.bf16.mxu0 0
      %4154 = vmatpush1.bf16.msra.mxu0 0
      %4155 = vmatprep.subr.bf16.mxu0 0
      %4156 = vmatpush1.bf16.msra.mxu0 0
      %4157 = vmatprep.subr.bf16.mxu0 0
      %4158 = vmatpush1.bf16.msra.mxu0 0
      %4159 = vmatprep.subr.bf16.mxu0 0
      %4160 = vmatpush1.bf16.msra.mxu0 0
      %4161 = vmatprep.subr.bf16.mxu0 0
      %4162 = vmatpush1.bf16.msra.mxu0 0
      %4163 = vmatprep.subr.bf16.mxu0 0
      %4164 = vmatpush1.bf16.msra.mxu0 0
      %4165 = vmatprep.subr.bf16.mxu0 0
      %4166 = vmatpush1.bf16.msra.mxu0 0
      %4167 = vmatprep.subr.bf16.mxu0 0
      %4168 = vmatpush1.bf16.msra.mxu0 0
      %4169 = vmatprep.mubr.bf16.mxu0 0
      %4170 = vmatmul.mubr.bf16.gmra.mrb[0].mxu0 %v4132
      %v4171 = vpop.f32.mrb[0].mxu0
      %v4172 = vadd.f32 0.0, %v4171
      %v4173 = vpop.f32.mrb[0].mxu0
      %v4174 = vpop.f32.mrb[0].mxu0
      %v4175 = vpop.f32.mrb[0].mxu0
      %4176 = vdwg.mxu0
      %v4177 = vadd.f32 %v4115, %v4172
      %v4178 = vmax.f32 %v4177, 0.0
      %v4179 = vpack.c.bf16 %v4178, %v4178
      %s4180 = scalar_lea.vmem %s284, 28
      %4181 = vst.msk [vmem:[%s4180] sm:$0xf] %vm778, %v4179
      %p4182 = scmp.lt.s32.totalorder %s16, 1
      %s4183 = scalar_select %p4182, %s16, 1
      %s4184 = smul.addr %s4183, 8
      %s4185 = smul.addr %s4184, 4
      %s4186 = scalar_lea.vmem %s5, %s4185
      // Predicated region
      $region41: #{base_model_forward.3} parent=39 // pred_check
        %p4187 = pneg %p159
      $region42: #{base_model_forward.3} parent=39 // pred_check_branch
        %4189 = sbr.rel (%p4187) target = $region44
      $region43: #{base_model_forward.3} parent=39 // pred_region
        _
      $region44: #{base_model_forward.3} parent=39 // pred_fallthru
        _
    $region40: #{base_model_forward.3} parent=5 // pred_fallthru
      _
    %p4190 = scmp.le.s32.totalorder 2, %s11
    // Predicated region
    $region45: #{base_model_forward.3} parent=5 // pred_check
      %p4191 = pneg %p4190
    $region46: #{base_model_forward.3} parent=5 // pred_check_branch
      %4193 = sbr.rel (%p4191) target = $region48
    $region47: #{base_model_forward.3} parent=5 // pred_region
      %s4194 = ssub.s32 %s11, 2
      // Predicated region
      $region49: #{base_model_forward.3} parent=47 // pred_check
        %p4195 = pneg %p165
      $region50: #{base_model_forward.3} parent=47 // pred_check_branch
        %4197 = sbr.rel (%p4195) target = $region52
      $region51: #{base_model_forward.3} parent=47 // pred_region
        %p4198 = scmp.lt.s32.totalorder %s17, 1
        %s4199 = scalar_select %p4198, %s17, 1
        %s4200 = smul.addr %s4199, 8
        %s4201 = smul.addr %s4200, 4
        %s4202 = scalar_lea.vmem %s5, %s4201
      $region52: #{base_model_forward.3} parent=47 // pred_fallthru
        _
    $region48: #{base_model_forward.3} parent=5 // pred_fallthru
      _
  $region6: #{base_model_forward.3} parent=0 // loop_footer
    %s15 = sadd.s32 1, %s11
  $region7: #{base_model_forward.3} parent=0 // loop_footer_branch
    %10 = sbr.rel target = $region3
  $region8: #{base_model_forward.3} parent=0 // loop_exit
    _

</llo_original>
